<compile_context>
chip_gen: v7x
topology: tpu7x:2x2x1
jax: 0.10.0
libtpu: 0.0.40
codegen_flags: <defaults>
</compile_context>

<pallas_src>
import functools

import numpy as np

import jax
import jax.numpy as jnp
from jax.experimental import pallas as pl
from jax.experimental.pallas import tpu as pltpu


# ---------------------------------------------------------------------------
# Fused Pallas kernel
# ---------------------------------------------------------------------------
def _lenet_fused_kernel(x_ref,
                        c1w_ref, c1b_ref, c1s_ref, c1t_ref,
                        c2w_ref, c2b_ref, c2s_ref, c2t_ref,
                        f1w_ref, f1b_ref, f2w_ref, f2b_ref,
                        f3w_ref, f3b_ref, f4w_ref, f4b_ref,
                        out_ref):
    bt = x_ref.shape[0]

    # ---- layer1: Conv2d(1->32, k=5) + bias + ReLU + BN + 2x2 MaxPool --------
    # ONE banded matmul with K = 5*28 = 140: the five kh-shifted row slabs are
    # lane-concatenated; the (140, 768) bf16 weight folds the kw shift and the
    # 1->32 channel expansion.  Output columns are parity-ordered over w
    # (even-w 384 lanes | odd-w 384 lanes) so pooling needs no layout crossing.
    xh = x_ref[...].astype(jnp.bfloat16)                          # (bt, 28, 28)
    lhs1 = jnp.concatenate([xh[:, i:i + 24, :] for i in range(5)],
                           axis=2).reshape(bt * 24, 140)
    a1 = jnp.dot(lhs1, c1w_ref[...], preferred_element_type=jnp.float32)
    a1 = jnp.maximum(a1 + c1b_ref[...], 0.0) * c1s_ref[...] + c1t_ref[...]
    zw1 = jnp.maximum(a1[:, :384], a1[:, 384:])          # width pool  -> (bt*24, 12*32)
    o1 = zw1.reshape(bt * 12, 2, 384).max(axis=1)        # height pool -> (bt*12, 12*32)
    # TODO(synk): Dropout(0.25) after the pool is identity in eval mode.

    # ---- layer2: Conv2d(32->64, k=3) + bias + ReLU + BN + 2x2 MaxPool -------
    # Same trick, fused to one K = 3*384 = 1152 dot.  Output width is padded
    # 10 -> 12 (dummy columns stay zero) so the parity halves stay 128-aligned.
    o1h = o1.astype(jnp.bfloat16).reshape(bt, 12, 384)
    lhs2 = jnp.concatenate([o1h[:, i:i + 10, :] for i in range(3)],
                           axis=2).reshape(bt * 10, 1152)
    a2 = jnp.dot(lhs2, c2w_ref[...], preferred_element_type=jnp.float32)
    a2 = jnp.maximum(a2 + c2b_ref[...], 0.0) * c2s_ref[...] + c2t_ref[...]
    zw2 = jnp.maximum(a2[:, :384], a2[:, 384:])          # width pool  -> (bt*10, 6*64)
    o2 = zw2.reshape(bt * 5, 2, 384).max(axis=1)         # height pool -> (bt*5, 6*64)
    # TODO(synk): Dropout(0.25) after the pool is identity in eval mode.

    # ---- FC stack (fc1..fc3 post-ReLU BatchNorms folded into the next layer).
    # PyTorch's NCHW flatten order is absorbed into f1w's row permutation; the
    # dummy width block of o2 hits all-zero rows of f1w.  fc3/fc4 are padded to
    # 128 lanes (pad logits get bias -1e30 so the softmax normalizer is exact).
    o2h = o2.astype(jnp.bfloat16).reshape(bt, 5, 384)
    h = f1b_ref[...]
    for hh in range(5):
        h = h + jnp.dot(o2h[:, hh, :], f1w_ref[hh],
                        preferred_element_type=jnp.float32)
    h = jnp.maximum(h, 0.0)
    h = jnp.maximum(
        jnp.dot(h.astype(jnp.bfloat16), f2w_ref[...],
                preferred_element_type=jnp.float32) + f2b_ref[...], 0.0)
    h = jnp.maximum(
        jnp.dot(h.astype(jnp.bfloat16), f3w_ref[...],
                preferred_element_type=jnp.float32) + f3b_ref[...], 0.0)
    # TODO(synk): Dropout(0.25) after fc3's BatchNorm is identity in eval mode.
    logits = jnp.dot(h.astype(jnp.bfloat16), f4w_ref[...],
                     preferred_element_type=jnp.float32) + f4b_ref[...]

    # log_softmax over the (padded) class axis; pad lanes contribute exp(...)=0.
    m = jnp.max(logits, axis=-1, keepdims=True)
    e = jnp.exp(logits - m)
    out_ref[...] = logits - (jnp.log(jnp.sum(e, axis=-1, keepdims=True)) + m)


# ---------------------------------------------------------------------------
# pallas_call wrapper
# ---------------------------------------------------------------------------
def _pallas_forward(x_img, kp, bt):
    bpad = x_img.shape[0]
    n_tiles = bpad // bt
    c2 = lambda i: (0, 0)
    c3 = lambda i: (0, 0, 0)

    # Cost estimate (per banded/padded matmul) so XLA schedules the surrounding
    # pad/reshape/slice ops sensibly around the custom call.
    weight_bytes = sum(int(np.prod(v.shape)) * v.dtype.itemsize for v in kp.values())
    flops_per_img = 2 * (24 * 140 * 768        # conv1 banded matmul
                         + 10 * 1152 * 768     # conv2 banded matmul
                         + 5 * 384 * 256       # fc1
                         + 256 * 128 + 128 * 128 + 128 * 128)   # fc2..fc4
    cost = pl.CostEstimate(
        flops=flops_per_img * bpad,
        transcendentals=128 * bpad,
        bytes_accessed=weight_bytes + bpad * (28 * 28 * 4 + 128 * 4))

    # bt >= 96 is only auto-selected on v5e/v6e (128 MiB VMEM); v7x stays at 64.
    vmem_limit = (100 if bt >= 96 else 56) * 1024 * 1024

    return pl.pallas_call(
        _lenet_fused_kernel,
        out_shape=jax.ShapeDtypeStruct((bpad, 128), jnp.float32),
        grid=(n_tiles,),
        in_specs=[
            pl.BlockSpec((bt, 28, 28), lambda i: (i, 0, 0)),   # input images
            pl.BlockSpec((140, 768), c2),                      # conv1 banded weights (bf16)
            pl.BlockSpec((1, 768), c2),                        # conv1 bias
            pl.BlockSpec((1, 768), c2),                        # conv1 BN scale
            pl.BlockSpec((1, 768), c2),                        # conv1 BN shift
            pl.BlockSpec((1152, 768), c2),                     # conv2 banded weights (bf16)
            pl.BlockSpec((1, 768), c2),                        # conv2 bias
            pl.BlockSpec((1, 768), c2),                        # conv2 BN scale
            pl.BlockSpec((1, 768), c2),                        # conv2 BN shift
            pl.BlockSpec((5, 384, 256), c3),                   # fc1 weights (permuted, bf16)
            pl.BlockSpec((1, 256), c2),                        # fc1 bias
            pl.BlockSpec((256, 128), c2),                      # fc2 weights (BN folded, bf16)
            pl.BlockSpec((1, 128), c2),
            pl.BlockSpec((128, 128), c2),                      # fc3 weights (BN folded, padded)
            pl.BlockSpec((1, 128), c2),
            pl.BlockSpec((128, 128), c2),                      # fc4 weights (BN folded, padded)
            pl.BlockSpec((1, 128), c2),                        # fc4 bias (pad lanes = -1e30)
        ],
        out_specs=pl.BlockSpec((bt, 128), lambda i: (i, 0)),
        compiler_params=pltpu.CompilerParams(
            dimension_semantics=("parallel",),
            vmem_limit_bytes=vmem_limit),
        cost_estimate=cost,
    )(x_img, kp["c1w"], kp["c1b"], kp["c1s"], kp["c1t"],
      kp["c2w"], kp["c2b"], kp["c2s"], kp["c2t"],
      kp["f1w"], kp["f1b"], kp["f2w"], kp["f2b"],
      kp["f3w"], kp["f3b"], kp["f4w"], kp["f4b"])


def _default_batch_tile():
    # v5e/v6e TensorCores have 128 MiB VMEM -> larger tile; v7x has 64 MiB per
    # TC (and 2 TCs fed by the "parallel" grid axis), so keep the tile smaller.
    try:
        kind = jax.devices()[0].device_kind.lower()
        if "v5" in kind or "v6" in kind:
            return 128
    except Exception:
        pass
    return 64


@functools.partial(jax.jit, static_argnames=("batch_tile",))
def _forward_jit(x, kparams, batch_tile):
    b = x.shape[0]
    x_img = x.reshape(b, 28, 28)                     # Cin = 1 -> drop channel (free)
    bt = b if b <= batch_tile else batch_tile
    n_tiles = -(-b // bt)
    bpad = n_tiles * bt
    if bpad != b:
        x_img = jnp.concatenate(
            [x_img, jnp.zeros((bpad - b, 28, 28), x_img.dtype)], axis=0)
    out = _pallas_forward(x_img, kparams, bt)
    return out[:b, :10]                              # drop batch pad + class-lane pad


def advanced_lenet_forward(x, kparams, batch_tile=None):
    """x: [B, 1, 28, 28] float32 (NCHW, like PyTorch). Returns log-probs [B, 10]."""
    if batch_tile is None:
        batch_tile = _default_batch_tile()
    return _forward_jit(x, kparams, batch_tile)


# ---------------------------------------------------------------------------
# Parameter preparation (host side, one-time): banded conv weights, parity
# column ordering, fc1 row permutation, FC BatchNorm folding, lane padding,
# bf16 cast of all matmul operands.
# ---------------------------------------------------------------------------
def prepare_params(p):
    f32 = np.float32
    eps = 1e-5

    def bn_fold(prefix):
        g = np.asarray(p[prefix + "_g"], f32)
        b = np.asarray(p[prefix + "_b"], f32)
        m = np.asarray(p[prefix + "_m"], f32)
        v = np.asarray(p[prefix + "_v"], f32)
        s = g / np.sqrt(v + eps)
        return s, b - m * s

    # ---- layer1: 24 output widths, 32 channels, parity-ordered columns.
    w1 = np.asarray(p["conv1_w"], f32)               # (32, 1, 5, 5) OIHW
    b1 = np.asarray(p["conv1_b"], f32)
    s1, t1 = bn_fold("bn1")

    def col1(w):
        return (w % 2) * 384 + (w // 2) * 32

    c1w = np.zeros((5, 28, 768), f32)
    c1b = np.zeros((1, 768), f32)
    c1s = np.zeros((1, 768), f32)
    c1t = np.zeros((1, 768), f32)
    for w in range(24):
        c0 = col1(w)
        c1b[0, c0:c0 + 32] = b1
        c1s[0, c0:c0 + 32] = s1
        c1t[0, c0:c0 + 32] = t1
        for i in range(5):
            for j in range(5):
                c1w[i, w + j, c0:c0 + 32] = w1[:, 0, i, j]
    c1w = c1w.reshape(140, 768)                      # fused-K banded weight

    # ---- layer2: 10 output widths padded to 12 (dummy cols zero), 64 channels.
    w2 = np.asarray(p["conv2_w"], f32)               # (64, 32, 3, 3)
    b2 = np.asarray(p["conv2_b"], f32)
    s2, t2 = bn_fold("bn2")

    def col2(w):
        return (w % 2) * 384 + (w // 2) * 64

    c2w = np.zeros((3, 384, 768), f32)
    c2b = np.zeros((1, 768), f32)
    c2s = np.zeros((1, 768), f32)
    c2t = np.zeros((1, 768), f32)
    for w in range(10):
        c0 = col2(w)
        c2b[0, c0:c0 + 64] = b2
        c2s[0, c0:c0 + 64] = s2
        c2t[0, c0:c0 + 64] = t2
        for i in range(3):
            for j in range(3):
                c2w[i, (w + j) * 32:(w + j + 1) * 32, c0:c0 + 64] = w2[:, :, i, j].T
    c2w = c2w.reshape(1152, 768)                     # fused-K banded weight

    # ---- fc1: rows permuted from PyTorch (C,H,W) flatten order to the
    #      kernel's pooled (h, (w, c)) layout; zero rows for the dummy w block.
    fw1 = np.asarray(p["fc1_w"], f32).T              # (1600, 256); row = c*25 + h*5 + w
    f1w = np.zeros((5, 384, 256), f32)
    fw1_r = fw1.reshape(64, 5, 5, 256)               # (c, h, w, n)
    for h in range(5):
        f1w[h, :320, :] = np.transpose(fw1_r[:, h, :, :], (1, 0, 2)).reshape(320, 256)
    f1b = np.asarray(p["fc1_b"], f32).reshape(1, 256)

    # ---- fc2..fc4: fold the previous layer's post-ReLU BatchNorm into the
    #      next Linear; pad fc3 to 128 lanes and fc4 to 128 classes.  Padded
    #      class logits get bias -1e30 so log_softmax over 128 lanes is exact.
    sf1, tf1 = bn_fold("bnf1")
    sf2, tf2 = bn_fold("bnf2")
    sf3, tf3 = bn_fold("bnf3")
    fw2 = np.asarray(p["fc2_w"], f32).T              # (256, 128)
    fw3 = np.asarray(p["fc3_w"], f32).T              # (128, 84)
    fw4 = np.asarray(p["fc4_w"], f32).T              # (84, 10)
    f2w = sf1[:, None] * fw2
    f2b = (tf1 @ fw2 + np.asarray(p["fc2_b"], f32)).reshape(1, 128)

    f3w = np.zeros((128, 128), f32)
    f3w[:, :84] = sf2[:, None] * fw3
    f3b = np.zeros((1, 128), f32)
    f3b[0, :84] = tf2 @ fw3 + np.asarray(p["fc3_b"], f32)

    f4w = np.zeros((128, 128), f32)
    f4w[:84, :10] = sf3[:, None] * fw4
    f4b = np.full((1, 128), -1e30, f32)
    f4b[0, :10] = tf3 @ fw4 + np.asarray(p["fc4_b"], f32)

    bf16 = jnp.bfloat16
    return dict(
        c1w=jnp.asarray(c1w, bf16), c1b=jnp.asarray(c1b),
        c1s=jnp.asarray(c1s), c1t=jnp.asarray(c1t),
        c2w=jnp.asarray(c2w, bf16), c2b=jnp.asarray(c2b),
        c2s=jnp.asarray(c2s), c2t=jnp.asarray(c2t),
        f1w=jnp.asarray(f1w, bf16), f1b=jnp.asarray(f1b),
        f2w=jnp.asarray(f2w, bf16), f2b=jnp.asarray(f2b),
        f3w=jnp.asarray(f3w, bf16), f3b=jnp.asarray(f3b),
        f4w=jnp.asarray(f4w, bf16), f4b=jnp.asarray(f4b))


# ---------------------------------------------------------------------------
# Pure-JAX reference with faithful PyTorch (eval-mode) semantics.
# ---------------------------------------------------------------------------
def reference_forward(x, p):
    eps = 1e-5
    b = x.shape[0]

    def conv(h, w, bias):
        out = jax.lax.conv_general_dilated(
            h, w, window_strides=(1, 1), padding="VALID",
            dimension_numbers=("NCHW", "OIHW", "NCHW"))
        return out + bias[None, :, None, None]

    def bn2d(h, pre):
        s = p[pre + "_g"] / jnp.sqrt(p[pre + "_v"] + eps)
        return (h - p[pre + "_m"][None, :, None, None]) * s[None, :, None, None] \
            + p[pre + "_b"][None, :, None, None]

    def pool(h):
        bb, c, hh, ww = h.shape
        return h.reshape(bb, c, hh // 2, 2, ww // 2, 2).max(axis=(3, 5))

    def bn1d(h, pre):
        s = p[pre + "_g"] / jnp.sqrt(p[pre + "_v"] + eps)
        return (h - p[pre + "_m"]) * s + p[pre + "_b"]

    h = pool(bn2d(jax.nn.relu(conv(x, p["conv1_w"], p["conv1_b"])), "bn1"))
    h = pool(bn2d(jax.nn.relu(conv(h, p["conv2_w"], p["conv2_b"])), "bn2"))
    h = h.reshape(b, -1)                             # NCHW flatten: (C, H, W) order
    h = bn1d(jax.nn.relu(h @ p["fc1_w"].T + p["fc1_b"]), "bnf1")
    h = bn1d(jax.nn.relu(h @ p["fc2_w"].T + p["fc2_b"]), "bnf2")
    h = bn1d(jax.nn.relu(h @ p["fc3_w"].T + p["fc3_b"]), "bnf3")
    logits = h @ p["fc4_w"].T + p["fc4_b"]
    return jax.nn.log_softmax(logits, axis=1)


# ---------------------------------------------------------------------------
# Deterministic canonical (PyTorch-layout) parameters
# ---------------------------------------------------------------------------
def init_params(key):
    keys = iter(jax.random.split(key, 64))

    def normal(shape, scale):
        return (scale * jax.random.normal(next(keys), shape)).astype(jnp.float32)

    def bn_params(n):
        return dict(g=1.0 + normal((n,), 0.1), b=normal((n,), 0.1),
                    m=normal((n,), 0.1), v=1.0 + jnp.abs(normal((n,), 0.1)))

    p = {}
    p["conv1_w"] = normal((32, 1, 5, 5), 0.1)
    p["conv1_b"] = normal((32,), 0.1)
    for k, v in bn_params(32).items():
        p["bn1_" + k] = v
    p["conv2_w"] = normal((64, 32, 3, 3), 0.05)
    p["conv2_b"] = normal((64,), 0.1)
    for k, v in bn_params(64).items():
        p["bn2_" + k] = v
    p["fc1_w"] = normal((256, 1600), 0.02)
    p["fc1_b"] = normal((256,), 0.05)
    for k, v in bn_params(256).items():
        p["bnf1_" + k] = v
    p["fc2_w"] = normal((128, 256), 0.05)
    p["fc2_b"] = normal((128,), 0.05)
    for k, v in bn_params(128).items():
        p["bnf2_" + k] = v
    p["fc3_w"] = normal((84, 128), 0.08)
    p["fc3_b"] = normal((84,), 0.05)
    for k, v in bn_params(84).items():
        p["bnf3_" + k] = v
    p["fc4_w"] = normal((10, 84), 0.1)
    p["fc4_b"] = normal((10,), 0.05)
    return p


if __name__ == "__main__":
    key = jax.random.PRNGKey(0)
    kx, kx2, kx3, kp = jax.random.split(key, 4)

    params = init_params(kp)
    kparams = prepare_params(params)

    # Input shape is forced by the module (fc1 expects 64*5*5 => 28x28, 1 channel).
    x = jax.random.normal(kx, (2, 1, 28, 28), dtype=jnp.float32)
    out = jax.block_until_ready(advanced_lenet_forward(x, kparams))
    assert out.shape == (2, 10), out.shape
    ref = reference_forward(x, params)
    max_err = float(jnp.max(jnp.abs(out - ref)))
    assert max_err < 5e-2, f"mismatch vs reference: {max_err}"
    assert float(jnp.max(jnp.abs(jnp.sum(jnp.exp(out), axis=1) - 1.0))) < 1e-3

    # Multi-tile "parallel" grid + batch-padding path (small explicit tile).
    xb = jax.random.normal(kx2, (13, 1, 28, 28), dtype=jnp.float32)
    outb = jax.block_until_ready(advanced_lenet_forward(xb, kparams, batch_tile=8))
    refb = reference_forward(xb, params)
    assert outb.shape == (13, 10), outb.shape
    max_err_b = float(jnp.max(jnp.abs(outb - refb)))
    assert max_err_b < 5e-2, f"batched mismatch vs reference: {max_err_b}"

    # Production-sized batch tile (auto-selected: 128 on v5e/v6e, 64 on v7x).
    xc = jax.random.normal(kx3, (96, 1, 28, 28), dtype=jnp.float32)
    outc = jax.block_until_ready(advanced_lenet_forward(xc, kparams))
    refc = reference_forward(xc, params)
    assert outc.shape == (96, 10), outc.shape
    max_err_c = float(jnp.max(jnp.abs(outc - refc)))
    assert max_err_c < 5e-2, f"large-tile mismatch vs reference: {max_err_c}"

    print("KERNEL_OK")
</pallas_src>

<mosaic_0001>
module attributes {stable_mosaic.version = 11 : i64} {
  func.func @_lenet_fused_kernel(%arg0: i32, %arg1: memref<2x28x28xf32, #tpu.memory_space<vmem>>, %arg2: memref<140x768xbf16, #tpu.memory_space<vmem>>, %arg3: memref<1x768xf32, #tpu.memory_space<vmem>>, %arg4: memref<1x768xf32, #tpu.memory_space<vmem>>, %arg5: memref<1x768xf32, #tpu.memory_space<vmem>>, %arg6: memref<1152x768xbf16, #tpu.memory_space<vmem>>, %arg7: memref<1x768xf32, #tpu.memory_space<vmem>>, %arg8: memref<1x768xf32, #tpu.memory_space<vmem>>, %arg9: memref<1x768xf32, #tpu.memory_space<vmem>>, %arg10: memref<5x384x256xbf16, #tpu.memory_space<vmem>>, %arg11: memref<1x256xf32, #tpu.memory_space<vmem>>, %arg12: memref<256x128xbf16, #tpu.memory_space<vmem>>, %arg13: memref<1x128xf32, #tpu.memory_space<vmem>>, %arg14: memref<128x128xbf16, #tpu.memory_space<vmem>>, %arg15: memref<1x128xf32, #tpu.memory_space<vmem>>, %arg16: memref<128x128xbf16, #tpu.memory_space<vmem>>, %arg17: memref<1x128xf32, #tpu.memory_space<vmem>>, %arg18: memref<2x128xf32, #tpu.memory_space<vmem>>) attributes {dimension_semantics = [#tpu.dimension_semantics<parallel>], iteration_bounds = array<i64: 1>, scalar_prefetch = 0 : i64, scratch_operands = 0 : i64, tpu.core_type = #tpu.core_type<tc>, window_params = [{transform_indices = @transform_0, window_bounds = array<i64: 2, 28, 28>}, {pipeline_mode = #tpu.pipeline_mode<synchronous>, transform_indices = @transform_1, window_bounds = array<i64: 140, 768>}, {pipeline_mode = #tpu.pipeline_mode<synchronous>, transform_indices = @transform_2, window_bounds = array<i64: 1, 768>}, {pipeline_mode = #tpu.pipeline_mode<synchronous>, transform_indices = @transform_3, window_bounds = array<i64: 1, 768>}, {pipeline_mode = #tpu.pipeline_mode<synchronous>, transform_indices = @transform_4, window_bounds = array<i64: 1, 768>}, {pipeline_mode = #tpu.pipeline_mode<synchronous>, transform_indices = @transform_5, window_bounds = array<i64: 1152, 768>}, {pipeline_mode = #tpu.pipeline_mode<synchronous>, transform_indices = @transform_6, window_bounds = array<i64: 1, 768>}, {pipeline_mode = #tpu.pipeline_mode<synchronous>, transform_indices = @transform_7, window_bounds = array<i64: 1, 768>}, {pipeline_mode = #tpu.pipeline_mode<synchronous>, transform_indices = @transform_8, window_bounds = array<i64: 1, 768>}, {pipeline_mode = #tpu.pipeline_mode<synchronous>, transform_indices = @transform_9, window_bounds = array<i64: 5, 384, 256>}, {pipeline_mode = #tpu.pipeline_mode<synchronous>, transform_indices = @transform_10, window_bounds = array<i64: 1, 256>}, {pipeline_mode = #tpu.pipeline_mode<synchronous>, transform_indices = @transform_11, window_bounds = array<i64: 256, 128>}, {pipeline_mode = #tpu.pipeline_mode<synchronous>, transform_indices = @transform_12, window_bounds = array<i64: 1, 128>}, {pipeline_mode = #tpu.pipeline_mode<synchronous>, transform_indices = @transform_13, window_bounds = array<i64: 128, 128>}, {pipeline_mode = #tpu.pipeline_mode<synchronous>, transform_indices = @transform_14, window_bounds = array<i64: 1, 128>}, {pipeline_mode = #tpu.pipeline_mode<synchronous>, transform_indices = @transform_15, window_bounds = array<i64: 128, 128>}, {pipeline_mode = #tpu.pipeline_mode<synchronous>, transform_indices = @transform_16, window_bounds = array<i64: 1, 128>}, {transform_indices = @transform_17, window_bounds = array<i64: 2, 128>}]} {
    %c0 = arith.constant 0 : index
    %c0_0 = arith.constant 0 : index
    %c0_1 = arith.constant 0 : index
    %0 = vector.load %arg1[%c0, %c0_0, %c0_1] : memref<2x28x28xf32, #tpu.memory_space<vmem>>, vector<2x28x28xf32>
    %1 = arith.truncf %0 : vector<2x28x28xf32> to vector<2x28x28xbf16>
    %2 = vector.extract_strided_slice %1 {offsets = [0, 0, 0], sizes = [2, 24, 28], strides = [1, 1, 1]} : vector<2x28x28xbf16> to vector<2x24x28xbf16>
    %3 = vector.extract_strided_slice %1 {offsets = [0, 1, 0], sizes = [2, 24, 28], strides = [1, 1, 1]} : vector<2x28x28xbf16> to vector<2x24x28xbf16>
    %4 = vector.extract_strided_slice %1 {offsets = [0, 2, 0], sizes = [2, 24, 28], strides = [1, 1, 1]} : vector<2x28x28xbf16> to vector<2x24x28xbf16>
    %5 = vector.extract_strided_slice %1 {offsets = [0, 3, 0], sizes = [2, 24, 28], strides = [1, 1, 1]} : vector<2x28x28xbf16> to vector<2x24x28xbf16>
    %6 = vector.extract_strided_slice %1 {offsets = [0, 4, 0], sizes = [2, 24, 28], strides = [1, 1, 1]} : vector<2x28x28xbf16> to vector<2x24x28xbf16>
    %7 = tpu.concatenate %2, %3, %4, %5, %6 in 2 : vector<2x24x28xbf16>, vector<2x24x28xbf16>, vector<2x24x28xbf16>, vector<2x24x28xbf16>, vector<2x24x28xbf16> -> vector<2x24x140xbf16>
    %8 = vector.shape_cast %7 : vector<2x24x140xbf16> to vector<48x140xbf16>
    %c0_2 = arith.constant 0 : index
    %c0_3 = arith.constant 0 : index
    %9 = vector.load %arg2[%c0_2, %c0_3] : memref<140x768xbf16, #tpu.memory_space<vmem>>, vector<140x768xbf16>
    %cst = arith.constant dense<0.000000e+00> : vector<48x768xf32>
    %10 = tpu.matmul %8, %9, %cst {dimension_numbers = #tpu.dot_dimension_numbers<[1], [0], [0], [1], [0, 0, 1, 1], [], []>} : vector<48x140xbf16>, vector<140x768xbf16>, vector<48x768xf32> -> vector<48x768xf32>
    %c0_4 = arith.constant 0 : index
    %c0_5 = arith.constant 0 : index
    %11 = vector.load %arg3[%c0_4, %c0_5] : memref<1x768xf32, #tpu.memory_space<vmem>>, vector<1x768xf32>
    %12 = vector.broadcast %11 : vector<1x768xf32> to vector<48x768xf32>
    %13 = arith.addf %10, %12 : vector<48x768xf32>
    %cst_6 = arith.constant 0.000000e+00 : f32
    %14 = vector.broadcast %cst_6 : f32 to vector<48x768xf32>
    %15 = arith.maximumf %13, %14 : vector<48x768xf32>
    %c0_7 = arith.constant 0 : index
    %c0_8 = arith.constant 0 : index
    %16 = vector.load %arg4[%c0_7, %c0_8] : memref<1x768xf32, #tpu.memory_space<vmem>>, vector<1x768xf32>
    %17 = vector.broadcast %16 : vector<1x768xf32> to vector<48x768xf32>
    %18 = arith.mulf %15, %17 : vector<48x768xf32>
    %c0_9 = arith.constant 0 : index
    %c0_10 = arith.constant 0 : index
    %19 = vector.load %arg5[%c0_9, %c0_10] : memref<1x768xf32, #tpu.memory_space<vmem>>, vector<1x768xf32>
    %20 = vector.broadcast %19 : vector<1x768xf32> to vector<48x768xf32>
    %21 = arith.addf %18, %20 : vector<48x768xf32>
    %22 = vector.extract_strided_slice %21 {offsets = [0, 0], sizes = [48, 384], strides = [1, 1]} : vector<48x768xf32> to vector<48x384xf32>
    %23 = vector.extract_strided_slice %21 {offsets = [0, 384], sizes = [48, 384], strides = [1, 1]} : vector<48x768xf32> to vector<48x384xf32>
    %24 = arith.maximumf %22, %23 : vector<48x384xf32>
    %25 = vector.shape_cast %24 : vector<48x384xf32> to vector<24x2x384xf32>
    %cst_11 = arith.constant dense<0xFF800000> : vector<24x384xf32>
    %26 = vector.multi_reduction <maximumf>, %25, %cst_11 [1] : vector<24x2x384xf32> to vector<24x384xf32>
    %27 = arith.truncf %26 : vector<24x384xf32> to vector<24x384xbf16>
    %28 = vector.shape_cast %27 : vector<24x384xbf16> to vector<2x12x384xbf16>
    %29 = vector.extract_strided_slice %28 {offsets = [0, 0, 0], sizes = [2, 10, 384], strides = [1, 1, 1]} : vector<2x12x384xbf16> to vector<2x10x384xbf16>
    %30 = vector.extract_strided_slice %28 {offsets = [0, 1, 0], sizes = [2, 10, 384], strides = [1, 1, 1]} : vector<2x12x384xbf16> to vector<2x10x384xbf16>
    %31 = vector.extract_strided_slice %28 {offsets = [0, 2, 0], sizes = [2, 10, 384], strides = [1, 1, 1]} : vector<2x12x384xbf16> to vector<2x10x384xbf16>
    %32 = tpu.concatenate %29, %30, %31 in 2 : vector<2x10x384xbf16>, vector<2x10x384xbf16>, vector<2x10x384xbf16> -> vector<2x10x1152xbf16>
    %33 = vector.shape_cast %32 : vector<2x10x1152xbf16> to vector<20x1152xbf16>
    %c0_12 = arith.constant 0 : index
    %c0_13 = arith.constant 0 : index
    %34 = vector.load %arg6[%c0_12, %c0_13] : memref<1152x768xbf16, #tpu.memory_space<vmem>>, vector<1152x768xbf16>
    %cst_14 = arith.constant dense<0.000000e+00> : vector<20x768xf32>
    %35 = tpu.matmul %33, %34, %cst_14 {dimension_numbers = #tpu.dot_dimension_numbers<[1], [0], [0], [1], [0, 0, 1, 1], [], []>} : vector<20x1152xbf16>, vector<1152x768xbf16>, vector<20x768xf32> -> vector<20x768xf32>
    %c0_15 = arith.constant 0 : index
    %c0_16 = arith.constant 0 : index
    %36 = vector.load %arg7[%c0_15, %c0_16] : memref<1x768xf32, #tpu.memory_space<vmem>>, vector<1x768xf32>
    %37 = vector.broadcast %36 : vector<1x768xf32> to vector<20x768xf32>
    %38 = arith.addf %35, %37 : vector<20x768xf32>
    %cst_17 = arith.constant 0.000000e+00 : f32
    %39 = vector.broadcast %cst_17 : f32 to vector<20x768xf32>
    %40 = arith.maximumf %38, %39 : vector<20x768xf32>
    %c0_18 = arith.constant 0 : index
    %c0_19 = arith.constant 0 : index
    %41 = vector.load %arg8[%c0_18, %c0_19] : memref<1x768xf32, #tpu.memory_space<vmem>>, vector<1x768xf32>
    %42 = vector.broadcast %41 : vector<1x768xf32> to vector<20x768xf32>
    %43 = arith.mulf %40, %42 : vector<20x768xf32>
    %c0_20 = arith.constant 0 : index
    %c0_21 = arith.constant 0 : index
    %44 = vector.load %arg9[%c0_20, %c0_21] : memref<1x768xf32, #tpu.memory_space<vmem>>, vector<1x768xf32>
    %45 = vector.broadcast %44 : vector<1x768xf32> to vector<20x768xf32>
    %46 = arith.addf %43, %45 : vector<20x768xf32>
    %47 = vector.extract_strided_slice %46 {offsets = [0, 0], sizes = [20, 384], strides = [1, 1]} : vector<20x768xf32> to vector<20x384xf32>
    %48 = vector.extract_strided_slice %46 {offsets = [0, 384], sizes = [20, 384], strides = [1, 1]} : vector<20x768xf32> to vector<20x384xf32>
    %49 = arith.maximumf %47, %48 : vector<20x384xf32>
    %50 = vector.shape_cast %49 : vector<20x384xf32> to vector<10x2x384xf32>
    %cst_22 = arith.constant dense<0xFF800000> : vector<10x384xf32>
    %51 = vector.multi_reduction <maximumf>, %50, %cst_22 [1] : vector<10x2x384xf32> to vector<10x384xf32>
    %52 = arith.truncf %51 : vector<10x384xf32> to vector<10x384xbf16>
    %53 = vector.shape_cast %52 : vector<10x384xbf16> to vector<2x5x384xbf16>
    %c0_23 = arith.constant 0 : index
    %c0_24 = arith.constant 0 : index
    %54 = vector.load %arg11[%c0_23, %c0_24] : memref<1x256xf32, #tpu.memory_space<vmem>>, vector<1x256xf32>
    %55 = vector.extract_strided_slice %53 {offsets = [0, 0, 0], sizes = [2, 1, 384], strides = [1, 1, 1]} : vector<2x5x384xbf16> to vector<2x1x384xbf16>
    %56 = vector.shape_cast %55 : vector<2x1x384xbf16> to vector<2x384xbf16>
    %c0_25 = arith.constant 0 : index
    %c0_26 = arith.constant 0 : index
    %c0_27 = arith.constant 0 : index
    %57 = vector.load %arg10[%c0_25, %c0_26, %c0_27] : memref<5x384x256xbf16, #tpu.memory_space<vmem>>, vector<1x384x256xbf16>
    %58 = vector.shape_cast %57 : vector<1x384x256xbf16> to vector<384x256xbf16>
    %cst_28 = arith.constant dense<0.000000e+00> : vector<2x256xf32>
    %59 = tpu.matmul %56, %58, %cst_28 {dimension_numbers = #tpu.dot_dimension_numbers<[1], [0], [0], [1], [0, 0, 1, 1], [], []>} : vector<2x384xbf16>, vector<384x256xbf16>, vector<2x256xf32> -> vector<2x256xf32>
    %60 = vector.broadcast %54 : vector<1x256xf32> to vector<2x256xf32>
    %61 = arith.addf %60, %59 : vector<2x256xf32>
    %62 = vector.extract_strided_slice %53 {offsets = [0, 1, 0], sizes = [2, 1, 384], strides = [1, 1, 1]} : vector<2x5x384xbf16> to vector<2x1x384xbf16>
    %63 = vector.shape_cast %62 : vector<2x1x384xbf16> to vector<2x384xbf16>
    %c1 = arith.constant 1 : index
    %c0_29 = arith.constant 0 : index
    %c0_30 = arith.constant 0 : index
    %64 = vector.load %arg10[%c1, %c0_29, %c0_30] : memref<5x384x256xbf16, #tpu.memory_space<vmem>>, vector<1x384x256xbf16>
    %65 = vector.shape_cast %64 : vector<1x384x256xbf16> to vector<384x256xbf16>
    %cst_31 = arith.constant dense<0.000000e+00> : vector<2x256xf32>
    %66 = tpu.matmul %63, %65, %cst_31 {dimension_numbers = #tpu.dot_dimension_numbers<[1], [0], [0], [1], [0, 0, 1, 1], [], []>} : vector<2x384xbf16>, vector<384x256xbf16>, vector<2x256xf32> -> vector<2x256xf32>
    %67 = arith.addf %61, %66 : vector<2x256xf32>
    %68 = vector.extract_strided_slice %53 {offsets = [0, 2, 0], sizes = [2, 1, 384], strides = [1, 1, 1]} : vector<2x5x384xbf16> to vector<2x1x384xbf16>
    %69 = vector.shape_cast %68 : vector<2x1x384xbf16> to vector<2x384xbf16>
    %c2 = arith.constant 2 : index
    %c0_32 = arith.constant 0 : index
    %c0_33 = arith.constant 0 : index
    %70 = vector.load %arg10[%c2, %c0_32, %c0_33] : memref<5x384x256xbf16, #tpu.memory_space<vmem>>, vector<1x384x256xbf16>
    %71 = vector.shape_cast %70 : vector<1x384x256xbf16> to vector<384x256xbf16>
    %cst_34 = arith.constant dense<0.000000e+00> : vector<2x256xf32>
    %72 = tpu.matmul %69, %71, %cst_34 {dimension_numbers = #tpu.dot_dimension_numbers<[1], [0], [0], [1], [0, 0, 1, 1], [], []>} : vector<2x384xbf16>, vector<384x256xbf16>, vector<2x256xf32> -> vector<2x256xf32>
    %73 = arith.addf %67, %72 : vector<2x256xf32>
    %74 = vector.extract_strided_slice %53 {offsets = [0, 3, 0], sizes = [2, 1, 384], strides = [1, 1, 1]} : vector<2x5x384xbf16> to vector<2x1x384xbf16>
    %75 = vector.shape_cast %74 : vector<2x1x384xbf16> to vector<2x384xbf16>
    %c3 = arith.constant 3 : index
    %c0_35 = arith.constant 0 : index
    %c0_36 = arith.constant 0 : index
    %76 = vector.load %arg10[%c3, %c0_35, %c0_36] : memref<5x384x256xbf16, #tpu.memory_space<vmem>>, vector<1x384x256xbf16>
    %77 = vector.shape_cast %76 : vector<1x384x256xbf16> to vector<384x256xbf16>
    %cst_37 = arith.constant dense<0.000000e+00> : vector<2x256xf32>
    %78 = tpu.matmul %75, %77, %cst_37 {dimension_numbers = #tpu.dot_dimension_numbers<[1], [0], [0], [1], [0, 0, 1, 1], [], []>} : vector<2x384xbf16>, vector<384x256xbf16>, vector<2x256xf32> -> vector<2x256xf32>
    %79 = arith.addf %73, %78 : vector<2x256xf32>
    %80 = vector.extract_strided_slice %53 {offsets = [0, 4, 0], sizes = [2, 1, 384], strides = [1, 1, 1]} : vector<2x5x384xbf16> to vector<2x1x384xbf16>
    %81 = vector.shape_cast %80 : vector<2x1x384xbf16> to vector<2x384xbf16>
    %c4 = arith.constant 4 : index
    %c0_38 = arith.constant 0 : index
    %c0_39 = arith.constant 0 : index
    %82 = vector.load %arg10[%c4, %c0_38, %c0_39] : memref<5x384x256xbf16, #tpu.memory_space<vmem>>, vector<1x384x256xbf16>
    %83 = vector.shape_cast %82 : vector<1x384x256xbf16> to vector<384x256xbf16>
    %cst_40 = arith.constant dense<0.000000e+00> : vector<2x256xf32>
    %84 = tpu.matmul %81, %83, %cst_40 {dimension_numbers = #tpu.dot_dimension_numbers<[1], [0], [0], [1], [0, 0, 1, 1], [], []>} : vector<2x384xbf16>, vector<384x256xbf16>, vector<2x256xf32> -> vector<2x256xf32>
    %85 = arith.addf %79, %84 : vector<2x256xf32>
    %cst_41 = arith.constant 0.000000e+00 : f32
    %86 = vector.broadcast %cst_41 : f32 to vector<2x256xf32>
    %87 = arith.maximumf %85, %86 : vector<2x256xf32>
    %88 = arith.truncf %87 : vector<2x256xf32> to vector<2x256xbf16>
    %c0_42 = arith.constant 0 : index
    %c0_43 = arith.constant 0 : index
    %89 = vector.load %arg12[%c0_42, %c0_43] : memref<256x128xbf16, #tpu.memory_space<vmem>>, vector<256x128xbf16>
    %cst_44 = arith.constant dense<0.000000e+00> : vector<2x128xf32>
    %90 = tpu.matmul %88, %89, %cst_44 {dimension_numbers = #tpu.dot_dimension_numbers<[1], [0], [0], [1], [0, 0, 1, 1], [], []>} : vector<2x256xbf16>, vector<256x128xbf16>, vector<2x128xf32> -> vector<2x128xf32>
    %c0_45 = arith.constant 0 : index
    %c0_46 = arith.constant 0 : index
    %91 = vector.load %arg13[%c0_45, %c0_46] : memref<1x128xf32, #tpu.memory_space<vmem>>, vector<1x128xf32>
    %92 = vector.broadcast %91 : vector<1x128xf32> to vector<2x128xf32>
    %93 = arith.addf %90, %92 : vector<2x128xf32>
    %cst_47 = arith.constant 0.000000e+00 : f32
    %94 = vector.broadcast %cst_47 : f32 to vector<2x128xf32>
    %95 = arith.maximumf %93, %94 : vector<2x128xf32>
    %96 = arith.truncf %95 : vector<2x128xf32> to vector<2x128xbf16>
    %c0_48 = arith.constant 0 : index
    %c0_49 = arith.constant 0 : index
    %97 = vector.load %arg14[%c0_48, %c0_49] : memref<128x128xbf16, #tpu.memory_space<vmem>>, vector<128x128xbf16>
    %cst_50 = arith.constant dense<0.000000e+00> : vector<2x128xf32>
    %98 = tpu.matmul %96, %97, %cst_50 {dimension_numbers = #tpu.dot_dimension_numbers<[1], [0], [0], [1], [0, 0, 1, 1], [], []>} : vector<2x128xbf16>, vector<128x128xbf16>, vector<2x128xf32> -> vector<2x128xf32>
    %c0_51 = arith.constant 0 : index
    %c0_52 = arith.constant 0 : index
    %99 = vector.load %arg15[%c0_51, %c0_52] : memref<1x128xf32, #tpu.memory_space<vmem>>, vector<1x128xf32>
    %100 = vector.broadcast %99 : vector<1x128xf32> to vector<2x128xf32>
    %101 = arith.addf %98, %100 : vector<2x128xf32>
    %cst_53 = arith.constant 0.000000e+00 : f32
    %102 = vector.broadcast %cst_53 : f32 to vector<2x128xf32>
    %103 = arith.maximumf %101, %102 : vector<2x128xf32>
    %104 = arith.truncf %103 : vector<2x128xf32> to vector<2x128xbf16>
    %c0_54 = arith.constant 0 : index
    %c0_55 = arith.constant 0 : index
    %105 = vector.load %arg16[%c0_54, %c0_55] : memref<128x128xbf16, #tpu.memory_space<vmem>>, vector<128x128xbf16>
    %cst_56 = arith.constant dense<0.000000e+00> : vector<2x128xf32>
    %106 = tpu.matmul %104, %105, %cst_56 {dimension_numbers = #tpu.dot_dimension_numbers<[1], [0], [0], [1], [0, 0, 1, 1], [], []>} : vector<2x128xbf16>, vector<128x128xbf16>, vector<2x128xf32> -> vector<2x128xf32>
    %c0_57 = arith.constant 0 : index
    %c0_58 = arith.constant 0 : index
    %107 = vector.load %arg17[%c0_57, %c0_58] : memref<1x128xf32, #tpu.memory_space<vmem>>, vector<1x128xf32>
    %108 = vector.broadcast %107 : vector<1x128xf32> to vector<2x128xf32>
    %109 = arith.addf %106, %108 : vector<2x128xf32>
    %cst_59 = arith.constant dense<0xFF800000> : vector<2xf32>
    %110 = vector.multi_reduction <maximumf>, %109, %cst_59 [1] : vector<2x128xf32> to vector<2xf32>
    %111 = vector.shape_cast %110 : vector<2xf32> to vector<2x1xf32>
    %112 = vector.broadcast %111 : vector<2x1xf32> to vector<2x128xf32>
    %113 = arith.subf %109, %112 : vector<2x128xf32>
    %114 = math.exp %113 : vector<2x128xf32>
    %cst_60 = arith.constant dense<0.000000e+00> : vector<2xf32>
    %115 = vector.multi_reduction <add>, %114, %cst_60 [1] : vector<2x128xf32> to vector<2xf32>
    %116 = vector.shape_cast %115 : vector<2xf32> to vector<2x1xf32>
    %117 = math.log %116 : vector<2x1xf32>
    %118 = arith.addf %117, %111 : vector<2x1xf32>
    %119 = vector.broadcast %118 : vector<2x1xf32> to vector<2x128xf32>
    %120 = arith.subf %109, %119 : vector<2x128xf32>
    %c0_61 = arith.constant 0 : index
    %c0_62 = arith.constant 0 : index
    %121 = vector.load %arg18[%c0_61, %c0_62] : memref<2x128xf32, #tpu.memory_space<vmem>>, vector<2x128xf32>
    tpu.vector_store %arg18[%c0_61, %c0_62], %120 {strides = array<i32>} : memref<2x128xf32, #tpu.memory_space<vmem>>, vector<2x128xf32>,
    return
  }
  func.func @transform_0(%arg0: i32) -> (i32, i32, i32) {
    %c0_i32 = arith.constant 0 : i32
    %c0_i32_0 = arith.constant 0 : i32
    %c0_i32_1 = arith.constant 0 : i32
    return %arg0, %c0_i32, %c0_i32_0 : i32, i32, i32
  }
  func.func @transform_1(%arg0: i32) -> (i32, i32) {
    %c0_i32 = arith.constant 0 : i32
    %c0_i32_0 = arith.constant 0 : i32
    %c0_i32_1 = arith.constant 0 : i32
    return %c0_i32, %c0_i32_0 : i32, i32
  }
  func.func @transform_2(%arg0: i32) -> (i32, i32) {
    %c0_i32 = arith.constant 0 : i32
    %c0_i32_0 = arith.constant 0 : i32
    %c0_i32_1 = arith.constant 0 : i32
    return %c0_i32, %c0_i32_0 : i32, i32
  }
  func.func @transform_3(%arg0: i32) -> (i32, i32) {
    %c0_i32 = arith.constant 0 : i32
    %c0_i32_0 = arith.constant 0 : i32
    %c0_i32_1 = arith.constant 0 : i32
    return %c0_i32, %c0_i32_0 : i32, i32
  }
  func.func @transform_4(%arg0: i32) -> (i32, i32) {
    %c0_i32 = arith.constant 0 : i32
    %c0_i32_0 = arith.constant 0 : i32
    %c0_i32_1 = arith.constant 0 : i32
    return %c0_i32, %c0_i32_0 : i32, i32
  }
  func.func @transform_5(%arg0: i32) -> (i32, i32) {
    %c0_i32 = arith.constant 0 : i32
    %c0_i32_0 = arith.constant 0 : i32
    %c0_i32_1 = arith.constant 0 : i32
    return %c0_i32, %c0_i32_0 : i32, i32
  }
  func.func @transform_6(%arg0: i32) -> (i32, i32) {
    %c0_i32 = arith.constant 0 : i32
    %c0_i32_0 = arith.constant 0 : i32
    %c0_i32_1 = arith.constant 0 : i32
    return %c0_i32, %c0_i32_0 : i32, i32
  }
  func.func @transform_7(%arg0: i32) -> (i32, i32) {
    %c0_i32 = arith.constant 0 : i32
    %c0_i32_0 = arith.constant 0 : i32
    %c0_i32_1 = arith.constant 0 : i32
    return %c0_i32, %c0_i32_0 : i32, i32
  }
  func.func @transform_8(%arg0: i32) -> (i32, i32) {
    %c0_i32 = arith.constant 0 : i32
    %c0_i32_0 = arith.constant 0 : i32
    %c0_i32_1 = arith.constant 0 : i32
    return %c0_i32, %c0_i32_0 : i32, i32
  }
  func.func @transform_9(%arg0: i32) -> (i32, i32, i32) {
    %c0_i32 = arith.constant 0 : i32
    %c0_i32_0 = arith.constant 0 : i32
    %c0_i32_1 = arith.constant 0 : i32
    %c0_i32_2 = arith.constant 0 : i32
    return %c0_i32, %c0_i32_0, %c0_i32_1 : i32, i32, i32
  }
  func.func @transform_10(%arg0: i32) -> (i32, i32) {
    %c0_i32 = arith.constant 0 : i32
    %c0_i32_0 = arith.constant 0 : i32
    %c0_i32_1 = arith.constant 0 : i32
    return %c0_i32, %c0_i32_0 : i32, i32
  }
  func.func @transform_11(%arg0: i32) -> (i32, i32) {
    %c0_i32 = arith.constant 0 : i32
    %c0_i32_0 = arith.constant 0 : i32
    %c0_i32_1 = arith.constant 0 : i32
    return %c0_i32, %c0_i32_0 : i32, i32
  }
  func.func @transform_12(%arg0: i32) -> (i32, i32) {
    %c0_i32 = arith.constant 0 : i32
    %c0_i32_0 = arith.constant 0 : i32
    %c0_i32_1 = arith.constant 0 : i32
    return %c0_i32, %c0_i32_0 : i32, i32
  }
  func.func @transform_13(%arg0: i32) -> (i32, i32) {
    %c0_i32 = arith.constant 0 : i32
    %c0_i32_0 = arith.constant 0 : i32
    %c0_i32_1 = arith.constant 0 : i32
    return %c0_i32, %c0_i32_0 : i32, i32
  }
  func.func @transform_14(%arg0: i32) -> (i32, i32) {
    %c0_i32 = arith.constant 0 : i32
    %c0_i32_0 = arith.constant 0 : i32
    %c0_i32_1 = arith.constant 0 : i32
    return %c0_i32, %c0_i32_0 : i32, i32
  }
  func.func @transform_15(%arg0: i32) -> (i32, i32) {
    %c0_i32 = arith.constant 0 : i32
    %c0_i32_0 = arith.constant 0 : i32
    %c0_i32_1 = arith.constant 0 : i32
    return %c0_i32, %c0_i32_0 : i32, i32
  }
  func.func @transform_16(%arg0: i32) -> (i32, i32) {
    %c0_i32 = arith.constant 0 : i32
    %c0_i32_0 = arith.constant 0 : i32
    %c0_i32_1 = arith.constant 0 : i32
    return %c0_i32, %c0_i32_0 : i32, i32
  }
  func.func @transform_17(%arg0: i32) -> (i32, i32) {
    %c0_i32 = arith.constant 0 : i32
    %c0_i32_0 = arith.constant 0 : i32
    return %arg0, %c0_i32 : i32, i32
  }
}

</mosaic_0001>

<llo_original>
// kernel: _forward_jit.1
$region0: #{_forward_jit.1}
  #allocation0 [shape = 'u32[]', space=smem, size = 0x4, offset = 0x4, fixed_abs, tag = 'smem constant byte address 0x4 - core index']
  #allocation1 [shape = 'u32[144,128]{1,0:T(1,128)}', space=vmem, size = 0x12000, scoped, tag = 'internal scratch']
  %s0 = inlined_call_operand.vmem [shape: f32[2,28,28], index: 0, kind: input, shape index: {}]
  %s1 = inlined_call_operand.hbm [shape: bf16[140,768], index: 1, kind: input, shape index: {}]
  %s2 = inlined_call_operand.hbm [shape: f32[1,768], index: 2, kind: input, shape index: {}]
  %s3 = inlined_call_operand.hbm [shape: f32[1,768], index: 3, kind: input, shape index: {}]
  %s4 = inlined_call_operand.hbm [shape: f32[1,768], index: 4, kind: input, shape index: {}]
  %s5 = inlined_call_operand.hbm [shape: bf16[1152,768], index: 5, kind: input, shape index: {}]
  %s6 = inlined_call_operand.hbm [shape: f32[1,768], index: 6, kind: input, shape index: {}]
  %s7 = inlined_call_operand.hbm [shape: f32[1,768], index: 7, kind: input, shape index: {}]
  %s8 = inlined_call_operand.hbm [shape: f32[1,768], index: 8, kind: input, shape index: {}]
  %s9 = inlined_call_operand.hbm [shape: bf16[5,384,256], index: 9, kind: input, shape index: {}]
  %s10 = inlined_call_operand.hbm [shape: f32[1,256], index: 10, kind: input, shape index: {}]
  %s11 = inlined_call_operand.hbm [shape: bf16[256,128], index: 11, kind: input, shape index: {}]
  %s12 = inlined_call_operand.hbm [shape: f32[1,128], index: 12, kind: input, shape index: {}]
  %s13 = inlined_call_operand.hbm [shape: bf16[128,128], index: 13, kind: input, shape index: {}]
  %s14 = inlined_call_operand.hbm [shape: f32[1,128], index: 14, kind: input, shape index: {}]
  %s15 = inlined_call_operand.hbm [shape: bf16[128,128], index: 15, kind: input, shape index: {}]
  %s16 = inlined_call_operand.hbm [shape: f32[1,128], index: 16, kind: input, shape index: {}]
  %s17 = inlined_call_operand.hbm [shape: f32[2,128], index: 17, kind: output, shape index: {}]
  %s18 = sld [smem:[#allocation0]]
  $region142: #{_forward_jit.1} parent=0
    _
  %s20 = ssub.s32 1, %s18
  %s21 = scalar_select 0, %s20, %s18
  $region1: #{_forward_jit.1} parent=0
    #allocation2 [shape = 'u8[221184]{0}', space=vmem, size = 0x36000, scoped, tag = 'input window, operand 1, single buffered']
    #allocation3 [shape = 's32[1]{0}', space=sflag, size = 0x4, scoped, tag = 'scoped memory for _forward_jit.1']
    #allocation4 [shape = 's32[1]{0}', space=sflag, size = 0x4, scoped, tag = 'scoped memory for _forward_jit.1']
    #allocation5 [shape = 'u8[3072]{0}', space=vmem, size = 0xc00, scoped, tag = 'input window, operand 2, single buffered']
    #allocation6 [shape = 's32[1]{0}', space=sflag, size = 0x4, scoped, tag = 'scoped memory for _forward_jit.1']
    #allocation7 [shape = 'u8[3072]{0}', space=vmem, size = 0xc00, scoped, tag = 'input window, operand 3, single buffered']
    #allocation8 [shape = 'u8[3072]{0}', space=vmem, size = 0xc00, scoped, tag = 'input window, operand 4, single buffered']
    #allocation9 [shape = 's32[1]{0}', space=sflag, size = 0x4, scoped, tag = 'scoped memory for _forward_jit.1']
    #allocation10 [shape = 'u8[1769472]{0}', space=vmem, size = 0x1b0000, scoped, tag = 'input window, operand 5, single buffered']
    #allocation11 [shape = 'u8[3072]{0}', space=vmem, size = 0xc00, scoped, tag = 'input window, operand 6, single buffered']
    #allocation12 [shape = 's32[1]{0}', space=sflag, size = 0x4, scoped, tag = 'scoped memory for _forward_jit.1']
    #allocation13 [shape = 'u8[3072]{0}', space=vmem, size = 0xc00, scoped, tag = 'input window, operand 7, single buffered']
    #allocation14 [shape = 'u8[3072]{0}', space=vmem, size = 0xc00, scoped, tag = 'input window, operand 8, single buffered']
    #allocation15 [shape = 's32[1]{0}', space=sflag, size = 0x4, scoped, tag = 'scoped memory for _forward_jit.1']
    #allocation16 [shape = 'u8[983040]{0}', space=vmem, size = 0xf0000, scoped, tag = 'input window, operand 9, single buffered']
    #allocation17 [shape = 'u8[1024]{0}', space=vmem, size = 0x400, scoped, tag = 'input window, operand 10, single buffered']
    #allocation18 [shape = 's32[1]{0}', space=sflag, size = 0x4, scoped, tag = 'scoped memory for _forward_jit.1']
    #allocation19 [shape = 'u8[65536]{0}', space=vmem, size = 0x10000, scoped, tag = 'input window, operand 11, single buffered']
    #allocation20 [shape = 'u8[512]{0}', space=vmem, size = 0x400, scoped, tag = 'input window, operand 12, single buffered']
    #allocation21 [shape = 's32[1]{0}', space=sflag, size = 0x4, scoped, tag = 'scoped memory for _forward_jit.1']
    #allocation22 [shape = 'u8[32768]{0}', space=vmem, size = 0x8000, scoped, tag = 'input window, operand 13, single buffered']
    #allocation23 [shape = 'u8[512]{0}', space=vmem, size = 0x400, scoped, tag = 'input window, operand 14, single buffered']
    #allocation24 [shape = 's32[1]{0}', space=sflag, size = 0x4, scoped, tag = 'scoped memory for _forward_jit.1']
    #allocation25 [shape = 'u8[32768]{0}', space=vmem, size = 0x8000, scoped, tag = 'input window, operand 15, single buffered']
    #allocation26 [shape = 'u8[512]{0}', space=vmem, size = 0x400, scoped, tag = 'input window, operand 16, single buffered']
    #allocation27 [shape = 's32[1]{0}', space=sflag, size = 0x4, scoped, tag = 'scoped memory for _forward_jit.1']
    #allocation28 [shape = 'u8[1024]{0}', space=vmem, size = 0x400, scoped, tag = 'output window, operand 0, single buffered']
    %22 = vsyncpa [#allocation3], 0
    %23 = vsyncpa [#allocation6], 0
    %24 = vsyncpa [#allocation9], 0
    %25 = vsyncpa [#allocation12], 0
    %26 = vsyncpa [#allocation15], 0
    %27 = vsyncpa [#allocation18], 0
    %28 = vsyncpa [#allocation21], 0
    %29 = vsyncpa [#allocation24], 0
    %30 = vsyncpa [#allocation27], 0
    %31 = vsyncpa [#allocation4], 0
    // Predicated region
    $region2: #{_forward_jit.1} parent=1 // pred_check
      _
    $region3: #{_forward_jit.1} parent=1 // pred_check_branch
      %33 = sbr.rel (0) target = $region5
    $region4: #{_forward_jit.1} parent=1 // pred_region
      _
    $region5: #{_forward_jit.1} parent=1 // pred_fallthru
      _
    // Predicated region
    $region6: #{_forward_jit.1} parent=1 // pred_check
      _
    $region7: #{_forward_jit.1} parent=1 // pred_check_branch
      %35 = sbr.rel (0) target = $region9
    $region8: #{_forward_jit.1} parent=1 // pred_region
      %s37 = ssub.s32 6912, 6912
      %38 = vsyncadd [#allocation3], %s37
      %s39 = sshll.u32 [#allocation2], 4
      %s40 = int_to_ptr.vmem [resolvable:$true] %s39
      %45 = dma.hbm_to_vmem [thread:$0]  %s1, 6912, %s40, [#allocation3], 384, 384, 24
    $region9: #{_forward_jit.1} parent=1 // pred_fallthru
      _
    // Predicated region
    $region10: #{_forward_jit.1} parent=1 // pred_check
      _
    $region11: #{_forward_jit.1} parent=1 // pred_check_branch
      %47 = sbr.rel (0) target = $region13
    $region12: #{_forward_jit.1} parent=1 // pred_region
      %s49 = ssub.s32 96, 96
      %50 = vsyncadd [#allocation6], %s49
      %s52 = sshll.u32 [#allocation5], 4
      %s53 = int_to_ptr.vmem [resolvable:$true] %s52
      %55 = dma.hbm_to_vmem [thread:$0]  %s2, 96, %s53, [#allocation6]
    $region13: #{_forward_jit.1} parent=1 // pred_fallthru
      _
    // Predicated region
    $region14: #{_forward_jit.1} parent=1 // pred_check
      _
    $region15: #{_forward_jit.1} parent=1 // pred_check_branch
      %57 = sbr.rel (0) target = $region17
    $region16: #{_forward_jit.1} parent=1 // pred_region
      %s59 = ssub.s32 96, 96
      %60 = vsyncadd [#allocation6], %s59
      %s62 = sshll.u32 [#allocation7], 4
      %s63 = int_to_ptr.vmem [resolvable:$true] %s62
      %65 = dma.hbm_to_vmem [thread:$0]  %s3, 96, %s63, [#allocation6]
    $region17: #{_forward_jit.1} parent=1 // pred_fallthru
      _
    // Predicated region
    $region18: #{_forward_jit.1} parent=1 // pred_check
      _
    $region19: #{_forward_jit.1} parent=1 // pred_check_branch
      %67 = sbr.rel (0) target = $region21
    $region20: #{_forward_jit.1} parent=1 // pred_region
      %s69 = ssub.s32 96, 96
      %70 = vsyncadd [#allocation9], %s69
      %s72 = sshll.u32 [#allocation8], 4
      %s73 = int_to_ptr.vmem [resolvable:$true] %s72
      %75 = dma.hbm_to_vmem [thread:$0]  %s4, 96, %s73, [#allocation9]
    $region21: #{_forward_jit.1} parent=1 // pred_fallthru
      _
    // Predicated region
    $region22: #{_forward_jit.1} parent=1 // pred_check
      _
    $region23: #{_forward_jit.1} parent=1 // pred_check_branch
      %77 = sbr.rel (0) target = $region25
    $region24: #{_forward_jit.1} parent=1 // pred_region
      %s79 = ssub.s32 55296, 55296
      %80 = vsyncadd [#allocation9], %s79
      %s81 = sshll.u32 [#allocation10], 4
      %s82 = int_to_ptr.vmem [resolvable:$true] %s81
      %87 = dma.hbm_to_vmem [thread:$0]  %s5, 55296, %s82, [#allocation9], 384, 384, 24
    $region25: #{_forward_jit.1} parent=1 // pred_fallthru
      _
    // Predicated region
    $region26: #{_forward_jit.1} parent=1 // pred_check
      _
    $region27: #{_forward_jit.1} parent=1 // pred_check_branch
      %89 = sbr.rel (0) target = $region29
    $region28: #{_forward_jit.1} parent=1 // pred_region
      %s91 = ssub.s32 96, 96
      %92 = vsyncadd [#allocation12], %s91
      %s94 = sshll.u32 [#allocation11], 4
      %s95 = int_to_ptr.vmem [resolvable:$true] %s94
      %97 = dma.hbm_to_vmem [thread:$0]  %s6, 96, %s95, [#allocation12]
    $region29: #{_forward_jit.1} parent=1 // pred_fallthru
      _
    // Predicated region
    $region30: #{_forward_jit.1} parent=1 // pred_check
      _
    $region31: #{_forward_jit.1} parent=1 // pred_check_branch
      %99 = sbr.rel (0) target = $region33
    $region32: #{_forward_jit.1} parent=1 // pred_region
      %s101 = ssub.s32 96, 96
      %102 = vsyncadd [#allocation12], %s101
      %s104 = sshll.u32 [#allocation13], 4
      %s105 = int_to_ptr.vmem [resolvable:$true] %s104
      %107 = dma.hbm_to_vmem [thread:$0]  %s7, 96, %s105, [#allocation12]
    $region33: #{_forward_jit.1} parent=1 // pred_fallthru
      _
    // Predicated region
    $region34: #{_forward_jit.1} parent=1 // pred_check
      _
    $region35: #{_forward_jit.1} parent=1 // pred_check_branch
      %109 = sbr.rel (0) target = $region37
    $region36: #{_forward_jit.1} parent=1 // pred_region
      %s111 = ssub.s32 96, 96
      %112 = vsyncadd [#allocation15], %s111
      %s114 = sshll.u32 [#allocation14], 4
      %s115 = int_to_ptr.vmem [resolvable:$true] %s114
      %117 = dma.hbm_to_vmem [thread:$0]  %s8, 96, %s115, [#allocation15]
    $region37: #{_forward_jit.1} parent=1 // pred_fallthru
      _
    // Predicated region
    $region38: #{_forward_jit.1} parent=1 // pred_check
      _
    $region39: #{_forward_jit.1} parent=1 // pred_check_branch
      %119 = sbr.rel (0) target = $region41
    $region40: #{_forward_jit.1} parent=1 // pred_region
      %s121 = ssub.s32 30720, 30720
      %122 = vsyncadd [#allocation15], %s121
      %s123 = sshll.u32 [#allocation16], 4
      %s124 = int_to_ptr.vmem [resolvable:$true] %s123
      %129 = dma.hbm_to_vmem [thread:$0]  %s9, 30720, %s124, [#allocation15], 128, 128, 8
    $region41: #{_forward_jit.1} parent=1 // pred_fallthru
      _
    // Predicated region
    $region42: #{_forward_jit.1} parent=1 // pred_check
      _
    $region43: #{_forward_jit.1} parent=1 // pred_check_branch
      %131 = sbr.rel (0) target = $region45
    $region44: #{_forward_jit.1} parent=1 // pred_region
      %s133 = ssub.s32 32, 32
      %134 = vsyncadd [#allocation18], %s133
      %s136 = sshll.u32 [#allocation17], 4
      %s137 = int_to_ptr.vmem [resolvable:$true] %s136
      %139 = dma.hbm_to_vmem [thread:$0]  %s10, 32, %s137, [#allocation18]
    $region45: #{_forward_jit.1} parent=1 // pred_fallthru
      _
    // Predicated region
    $region46: #{_forward_jit.1} parent=1 // pred_check
      _
    $region47: #{_forward_jit.1} parent=1 // pred_check_branch
      %141 = sbr.rel (0) target = $region49
    $region48: #{_forward_jit.1} parent=1 // pred_region
      %s143 = ssub.s32 2048, 2048
      %144 = vsyncadd [#allocation18], %s143
      %s145 = sshll.u32 [#allocation19], 4
      %s146 = int_to_ptr.vmem [resolvable:$true] %s145
      %151 = dma.hbm_to_vmem [thread:$0]  %s11, 2048, %s146, [#allocation18], 64, 64, 4
    $region49: #{_forward_jit.1} parent=1 // pred_fallthru
      _
    // Predicated region
    $region50: #{_forward_jit.1} parent=1 // pred_check
      _
    $region51: #{_forward_jit.1} parent=1 // pred_check_branch
      %153 = sbr.rel (0) target = $region53
    $region52: #{_forward_jit.1} parent=1 // pred_region
      %s155 = ssub.s32 16, 16
      %156 = vsyncadd [#allocation21], %s155
      %s158 = sshll.u32 [#allocation20], 4
      %s159 = int_to_ptr.vmem [resolvable:$true] %s158
      %161 = dma.hbm_to_vmem [thread:$0]  %s12, 16, %s159, [#allocation21]
    $region53: #{_forward_jit.1} parent=1 // pred_fallthru
      _
    // Predicated region
    $region54: #{_forward_jit.1} parent=1 // pred_check
      _
    $region55: #{_forward_jit.1} parent=1 // pred_check_branch
      %163 = sbr.rel (0) target = $region57
    $region56: #{_forward_jit.1} parent=1 // pred_region
      %s165 = ssub.s32 1024, 1024
      %166 = vsyncadd [#allocation21], %s165
      %s167 = sshll.u32 [#allocation22], 4
      %s168 = int_to_ptr.vmem [resolvable:$true] %s167
      %173 = dma.hbm_to_vmem [thread:$0]  %s13, 1024, %s168, [#allocation21], 64, 64, 4
    $region57: #{_forward_jit.1} parent=1 // pred_fallthru
      _
    // Predicated region
    $region58: #{_forward_jit.1} parent=1 // pred_check
      _
    $region59: #{_forward_jit.1} parent=1 // pred_check_branch
      %175 = sbr.rel (0) target = $region61
    $region60: #{_forward_jit.1} parent=1 // pred_region
      %s177 = ssub.s32 16, 16
      %178 = vsyncadd [#allocation24], %s177
      %s180 = sshll.u32 [#allocation23], 4
      %s181 = int_to_ptr.vmem [resolvable:$true] %s180
      %183 = dma.hbm_to_vmem [thread:$0]  %s14, 16, %s181, [#allocation24]
    $region61: #{_forward_jit.1} parent=1 // pred_fallthru
      _
    // Predicated region
    $region62: #{_forward_jit.1} parent=1 // pred_check
      _
    $region63: #{_forward_jit.1} parent=1 // pred_check_branch
      %185 = sbr.rel (0) target = $region65
    $region64: #{_forward_jit.1} parent=1 // pred_region
      %s187 = ssub.s32 1024, 1024
      %188 = vsyncadd [#allocation24], %s187
      %s189 = sshll.u32 [#allocation25], 4
      %s190 = int_to_ptr.vmem [resolvable:$true] %s189
      %195 = dma.hbm_to_vmem [thread:$0]  %s15, 1024, %s190, [#allocation24], 64, 64, 4
    $region65: #{_forward_jit.1} parent=1 // pred_fallthru
      _
    // Predicated region
    $region66: #{_forward_jit.1} parent=1 // pred_check
      _
    $region67: #{_forward_jit.1} parent=1 // pred_check_branch
      %197 = sbr.rel (0) target = $region69
    $region68: #{_forward_jit.1} parent=1 // pred_region
      %s199 = ssub.s32 16, 16
      %200 = vsyncadd [#allocation27], %s199
      %s202 = sshll.u32 [#allocation26], 4
      %s203 = int_to_ptr.vmem [resolvable:$true] %s202
      %205 = dma.hbm_to_vmem [thread:$0]  %s16, 16, %s203, [#allocation27]
    $region69: #{_forward_jit.1} parent=1 // pred_fallthru
      _
    // Predicated region
    $region70: #{_forward_jit.1} parent=1 // pred_check
      _
    $region71: #{_forward_jit.1} parent=1 // pred_check_branch
      %207 = sbr.rel (0) target = $region73
    $region72: #{_forward_jit.1} parent=1 // pred_region
      %208 = dma.done [#allocation3], 6912
    $region73: #{_forward_jit.1} parent=1 // pred_fallthru
      _
    // Predicated region
    $region74: #{_forward_jit.1} parent=1 // pred_check
      _
    $region75: #{_forward_jit.1} parent=1 // pred_check_branch
      %210 = sbr.rel (0) target = $region77
    $region76: #{_forward_jit.1} parent=1 // pred_region
      %211 = dma.done [#allocation6], 96
    $region77: #{_forward_jit.1} parent=1 // pred_fallthru
      _
    // Predicated region
    $region78: #{_forward_jit.1} parent=1 // pred_check
      _
    $region79: #{_forward_jit.1} parent=1 // pred_check_branch
      %213 = sbr.rel (0) target = $region81
    $region80: #{_forward_jit.1} parent=1 // pred_region
      %214 = dma.done [#allocation6], 96
    $region81: #{_forward_jit.1} parent=1 // pred_fallthru
      _
    // Predicated region
    $region82: #{_forward_jit.1} parent=1 // pred_check
      _
    $region83: #{_forward_jit.1} parent=1 // pred_check_branch
      %216 = sbr.rel (0) target = $region85
    $region84: #{_forward_jit.1} parent=1 // pred_region
      %217 = dma.done [#allocation9], 96
    $region85: #{_forward_jit.1} parent=1 // pred_fallthru
      _
    // Predicated region
    $region86: #{_forward_jit.1} parent=1 // pred_check
      _
    $region87: #{_forward_jit.1} parent=1 // pred_check_branch
      %219 = sbr.rel (0) target = $region89
    $region88: #{_forward_jit.1} parent=1 // pred_region
      %220 = dma.done [#allocation9], 55296
    $region89: #{_forward_jit.1} parent=1 // pred_fallthru
      _
    // Predicated region
    $region90: #{_forward_jit.1} parent=1 // pred_check
      _
    $region91: #{_forward_jit.1} parent=1 // pred_check_branch
      %222 = sbr.rel (0) target = $region93
    $region92: #{_forward_jit.1} parent=1 // pred_region
      %223 = dma.done [#allocation12], 96
    $region93: #{_forward_jit.1} parent=1 // pred_fallthru
      _
    // Predicated region
    $region94: #{_forward_jit.1} parent=1 // pred_check
      _
    $region95: #{_forward_jit.1} parent=1 // pred_check_branch
      %225 = sbr.rel (0) target = $region97
    $region96: #{_forward_jit.1} parent=1 // pred_region
      %226 = dma.done [#allocation12], 96
    $region97: #{_forward_jit.1} parent=1 // pred_fallthru
      _
    // Predicated region
    $region98: #{_forward_jit.1} parent=1 // pred_check
      _
    $region99: #{_forward_jit.1} parent=1 // pred_check_branch
      %228 = sbr.rel (0) target = $region101
    $region100: #{_forward_jit.1} parent=1 // pred_region
      %229 = dma.done [#allocation15], 96
    $region101: #{_forward_jit.1} parent=1 // pred_fallthru
      _
    // Predicated region
    $region102: #{_forward_jit.1} parent=1 // pred_check
      _
    $region103: #{_forward_jit.1} parent=1 // pred_check_branch
      %231 = sbr.rel (0) target = $region105
    $region104: #{_forward_jit.1} parent=1 // pred_region
      %232 = dma.done [#allocation15], 30720
    $region105: #{_forward_jit.1} parent=1 // pred_fallthru
      _
    // Predicated region
    $region106: #{_forward_jit.1} parent=1 // pred_check
      _
    $region107: #{_forward_jit.1} parent=1 // pred_check_branch
      %234 = sbr.rel (0) target = $region109
    $region108: #{_forward_jit.1} parent=1 // pred_region
      %235 = dma.done [#allocation18], 32
    $region109: #{_forward_jit.1} parent=1 // pred_fallthru
      _
    // Predicated region
    $region110: #{_forward_jit.1} parent=1 // pred_check
      _
    $region111: #{_forward_jit.1} parent=1 // pred_check_branch
      %237 = sbr.rel (0) target = $region113
    $region112: #{_forward_jit.1} parent=1 // pred_region
      %238 = dma.done [#allocation18], 2048
    $region113: #{_forward_jit.1} parent=1 // pred_fallthru
      _
    // Predicated region
    $region114: #{_forward_jit.1} parent=1 // pred_check
      _
    $region115: #{_forward_jit.1} parent=1 // pred_check_branch
      %240 = sbr.rel (0) target = $region117
    $region116: #{_forward_jit.1} parent=1 // pred_region
      %241 = dma.done [#allocation21], 16
    $region117: #{_forward_jit.1} parent=1 // pred_fallthru
      _
    // Predicated region
    $region118: #{_forward_jit.1} parent=1 // pred_check
      _
    $region119: #{_forward_jit.1} parent=1 // pred_check_branch
      %243 = sbr.rel (0) target = $region121
    $region120: #{_forward_jit.1} parent=1 // pred_region
      %244 = dma.done [#allocation21], 1024
    $region121: #{_forward_jit.1} parent=1 // pred_fallthru
      _
    // Predicated region
    $region122: #{_forward_jit.1} parent=1 // pred_check
      _
    $region123: #{_forward_jit.1} parent=1 // pred_check_branch
      %246 = sbr.rel (0) target = $region125
    $region124: #{_forward_jit.1} parent=1 // pred_region
      %247 = dma.done [#allocation24], 16
    $region125: #{_forward_jit.1} parent=1 // pred_fallthru
      _
    // Predicated region
    $region126: #{_forward_jit.1} parent=1 // pred_check
      _
    $region127: #{_forward_jit.1} parent=1 // pred_check_branch
      %249 = sbr.rel (0) target = $region129
    $region128: #{_forward_jit.1} parent=1 // pred_region
      %250 = dma.done [#allocation24], 1024
    $region129: #{_forward_jit.1} parent=1 // pred_fallthru
      _
    // Predicated region
    $region130: #{_forward_jit.1} parent=1 // pred_check
      _
    $region131: #{_forward_jit.1} parent=1 // pred_check_branch
      %252 = sbr.rel (0) target = $region133
    $region132: #{_forward_jit.1} parent=1 // pred_region
      %253 = dma.done [#allocation27], 16
    $region133: #{_forward_jit.1} parent=1 // pred_fallthru
      _
    %v255 = vld [vmem:[%s0] sm:$0xff]
    %v256 = vld [vmem:[%s0 + $0x8] sm:$0xff]
    %v257 = vld [vmem:[%s0 + $0x10] sm:$0xff]
    %v258 = vld [vmem:[%s0 + $0x18] sm:$0xf]
    %v259 = vld [vmem:[%s0 + $0x20] sm:$0xff]
    %v260 = vld [vmem:[%s0 + $0x28] sm:$0xff]
    %v261 = vld [vmem:[%s0 + $0x30] sm:$0xff]
    %v262 = vld [vmem:[%s0 + $0x38] sm:$0xf]
    %v263 = vpack.c.bf16 %v256, %v255
    %v264 = vpack.c.bf16 %v258, %v257
    %v265 = vpack.c.bf16 %v260, %v259
    %v266 = vpack.c.bf16 %v262, %v261
    %vm267 = vsmask.f32 7424
    %v269 = vshrl.u32 %v263, 16
    %v271 = vshll.u32 %v263, 16
    %v273 = vrot.slane %v271, 1
    %v274 = vor.u32 %v269, %v273
    %v276 = vshll.u32 %v264, 16
    %v278 = vrot.slane %v276, 1
    %v279 = vsel %vm267, %v274, %v278
    %v280 = vshrl.u32 %v264, 16
    %v282 = vor.u32 %v280, %v278
    %v284 = vshrl.u32 %v265, 16
    %v286 = vshll.u32 %v265, 16
    %v288 = vrot.slane %v286, 1
    %v289 = vor.u32 %v284, %v288
    %v291 = vshll.u32 %v266, 16
    %v293 = vrot.slane %v291, 1
    %v294 = vsel %vm267, %v289, %v293
    %v295 = vshrl.u32 %v266, 16
    %v297 = vor.u32 %v295, %v293
    %298 = vrot.lane.b32.xlu0 %v279, 28
    %v299 = vpop.permute.xlu0 %298
    %300 = vrot.lane.b32.xlu0 %v282, 28
    %v301 = vpop.permute.xlu0 %300
    %302 = vrot.lane.b32.xlu0 %v294, 28
    %v303 = vpop.permute.xlu0 %302
    %304 = vrot.lane.b32.xlu0 %v297, 28
    %v305 = vpop.permute.xlu0 %304
    %vm310 = vcmask 1046528
    %v311 = vrot.slane %v263, 1
    %v312 = vrot.slane %v264, 1
    %v313 = vsel %vm310, %v311, %v312
    %v314 = vrot.slane %v265, 1
    %v315 = vrot.slane %v266, 1
    %v316 = vsel %vm310, %v314, %v315
    %317 = vrot.lane.b32.xlu0 %v313, 56
    %v318 = vpop.permute.xlu0 %317
    %319 = vrot.lane.b32.xlu0 %v312, 56
    %v320 = vpop.permute.xlu0 %319
    %321 = vrot.lane.b32.xlu0 %v316, 56
    %v322 = vpop.permute.xlu0 %321
    %323 = vrot.lane.b32.xlu0 %v315, 56
    %v324 = vpop.permute.xlu0 %323
    %vm325 = vsmask.f32 6400
    %v326 = vrot.slane %v269, 1
    %v327 = vrot.slane %v271, 2
    %v328 = vor.u32 %v326, %v327
    %v329 = vrot.slane %v280, 1
    %v330 = vrot.slane %v276, 2
    %v331 = vor.u32 %v329, %v330
    %v332 = vsel %vm325, %v328, %v331
    %v333 = vrot.slane %v284, 1
    %v334 = vrot.slane %v286, 2
    %v335 = vor.u32 %v333, %v334
    %v336 = vrot.slane %v295, 1
    %v337 = vrot.slane %v291, 2
    %v338 = vor.u32 %v336, %v337
    %v339 = vsel %vm325, %v335, %v338
    %340 = vrot.lane.b32.xlu0 %v332, 84
    %v341 = vpop.permute.xlu0 %340
    %342 = vrot.lane.b32.xlu0 %v331, 84
    %v343 = vpop.permute.xlu0 %342
    %344 = vrot.lane.b32.xlu0 %v339, 84
    %v345 = vpop.permute.xlu0 %344
    %346 = vrot.lane.b32.xlu0 %v338, 84
    %v347 = vpop.permute.xlu0 %346
    %vm348 = vcmask 1045504
    %v349 = vrot.slane %v263, 2
    %v350 = vrot.slane %v264, 2
    %v351 = vsel %vm348, %v349, %v350
    %v352 = vrot.slane %v265, 2
    %v353 = vrot.slane %v266, 2
    %v354 = vsel %vm348, %v352, %v353
    %355 = vrot.lane.b32.xlu0 %v351, 112
    %v356 = vpop.permute.xlu0 %355
    %357 = vrot.lane.b32.xlu0 %v350, 112
    %v358 = vpop.permute.xlu0 %357
    %359 = vrot.lane.b32.xlu0 %v354, 112
    %v360 = vpop.permute.xlu0 %359
    %361 = vrot.lane.b32.xlu0 %v353, 112
    %v362 = vpop.permute.xlu0 %361
    %vm363 = vcmask 228352
    %v365 = vsel %vm363, %v263, %v299
    %v367 = vsel %vm363, %v264, %v301
    %v369 = vsel %vm363, %v265, %v303
    %v371 = vsel %vm363, %v266, %v305
    %vm372 = vcmask 457728
    %v374 = vsel %vm372, %v365, %v318
    %v376 = vsel %vm372, %v367, %v320
    %v378 = vsel %vm372, %v369, %v322
    %v380 = vsel %vm372, %v371, %v324
    %vm381 = vcmask 687104
    %v383 = vsel %vm381, %v374, %v341
    %v385 = vsel %vm381, %v376, %v343
    %v387 = vsel %vm381, %v378, %v345
    %v389 = vsel %vm381, %v380, %v347
    %vm390 = vcmask 916480
    %v392 = vsel %vm390, %v383, %v356
    %v394 = vsel %vm390, %v385, %v358
    %v396 = vsel %vm390, %v387, %v360
    %v398 = vsel %vm390, %v389, %v362
    %v403 = vunpack.c.l.b16 %v392
    %v404 = vunpack.c.l.b16 %v356
    %v405 = vunpack.c.h.b16 %v392
    %v406 = vunpack.c.h.b16 %v356
    %v407 = vunpack.c.l.b16 %v394
    %v408 = vunpack.c.l.b16 %v358
    %v409 = vunpack.c.l.b16 %v396
    %v410 = vunpack.c.l.b16 %v360
    %v411 = vunpack.c.h.b16 %v396
    %v412 = vunpack.c.h.b16 %v360
    %v413 = vunpack.c.l.b16 %v398
    %v414 = vunpack.c.l.b16 %v362
    %v415 = vld [vmem:[#allocation2] sm:$0xff]
    %v416 = vld [vmem:[#allocation2 + $0x8] sm:$0xff]
    %v417 = vld [vmem:[#allocation2 + $0x10] sm:$0xff]
    %v418 = vld [vmem:[#allocation2 + $0x18] sm:$0xff]
    %v419 = vld [vmem:[#allocation2 + $0x20] sm:$0xff]
    %v420 = vld [vmem:[#allocation2 + $0x28] sm:$0xff]
    %v421 = vld [vmem:[#allocation2 + $0x30] sm:$0xff]
    %v422 = vld [vmem:[#allocation2 + $0x38] sm:$0xff]
    %v423 = vld [vmem:[#allocation2 + $0x40] sm:$0xff]
    %v424 = vld [vmem:[#allocation2 + $0x48] sm:$0xff]
    %v425 = vld [vmem:[#allocation2 + $0x50] sm:$0xff]
    %v426 = vld [vmem:[#allocation2 + $0x58] sm:$0xff]
    %v427 = vld [vmem:[#allocation2 + $0x60] sm:$0xff]
    %v428 = vld [vmem:[#allocation2 + $0x68] sm:$0xff]
    %v429 = vld [vmem:[#allocation2 + $0x70] sm:$0xff]
    %v430 = vld [vmem:[#allocation2 + $0x78] sm:$0xff]
    %v431 = vld [vmem:[#allocation2 + $0x80] sm:$0xff]
    %v432 = vld [vmem:[#allocation2 + $0x88] sm:$0xff]
    %v433 = vld [vmem:[#allocation2 + $0x90] sm:$0xff]
    %v434 = vld [vmem:[#allocation2 + $0x98] sm:$0xff]
    %v435 = vld [vmem:[#allocation2 + $0xa0] sm:$0xff]
    %v436 = vld [vmem:[#allocation2 + $0xa8] sm:$0xff]
    %v437 = vld [vmem:[#allocation2 + $0xb0] sm:$0xff]
    %v438 = vld [vmem:[#allocation2 + $0xb8] sm:$0xff]
    %v439 = vld [vmem:[#allocation2 + $0xc0] sm:$0xff]
    %v440 = vld [vmem:[#allocation2 + $0xc8] sm:$0xff]
    %v441 = vld [vmem:[#allocation2 + $0xd0] sm:$0xff]
    %v442 = vld [vmem:[#allocation2 + $0xd8] sm:$0xff]
    %v443 = vld [vmem:[#allocation2 + $0xe0] sm:$0xff]
    %v444 = vld [vmem:[#allocation2 + $0xe8] sm:$0xff]
    %v445 = vld [vmem:[#allocation2 + $0xf0] sm:$0xff]
    %v446 = vld [vmem:[#allocation2 + $0xf8] sm:$0xff]
    %v447 = vld [vmem:[#allocation2 + $0x100] sm:$0xff]
    %v448 = vld [vmem:[#allocation2 + $0x108] sm:$0xff]
    %v449 = vld [vmem:[#allocation2 + $0x110] sm:$0xff]
    %v450 = vld [vmem:[#allocation2 + $0x118] sm:$0xff]
    %v451 = vld [vmem:[#allocation2 + $0x120] sm:$0xff]
    %v452 = vld [vmem:[#allocation2 + $0x128] sm:$0xff]
    %v453 = vld [vmem:[#allocation2 + $0x130] sm:$0xff]
    %v454 = vld [vmem:[#allocation2 + $0x138] sm:$0xff]
    %v455 = vld [vmem:[#allocation2 + $0x140] sm:$0xff]
    %v456 = vld [vmem:[#allocation2 + $0x148] sm:$0xff]
    %v457 = vld [vmem:[#allocation2 + $0x150] sm:$0xff]
    %v458 = vld [vmem:[#allocation2 + $0x158] sm:$0xff]
    %v459 = vld [vmem:[#allocation2 + $0x160] sm:$0xff]
    %v460 = vld [vmem:[#allocation2 + $0x168] sm:$0xff]
    %v461 = vld [vmem:[#allocation2 + $0x170] sm:$0xff]
    %v462 = vld [vmem:[#allocation2 + $0x178] sm:$0xff]
    %v463 = vld [vmem:[#allocation2 + $0x180] sm:$0xff]
    %v464 = vld [vmem:[#allocation2 + $0x188] sm:$0xff]
    %v465 = vld [vmem:[#allocation2 + $0x190] sm:$0xff]
    %v466 = vld [vmem:[#allocation2 + $0x198] sm:$0x33]
    %v467 = vld [vmem:[#allocation2 + $0x1a0] sm:$0x33]
    %v468 = vld [vmem:[#allocation2 + $0x1a8] sm:$0x33]
    %v469 = vld [vmem:[#allocation5] sm:$0x3f]
    %v471 = vlaneseq
    %v472 = vshrl.u32 %v471, 7
    %v473 = vsub.s32 0, %v472
    %v474 = vrot.slane %v469, %v473
    %v475 = vlaneseq
    %v476 = vshrl.u32 %v475, 7
    %v477 = vsub.s32 1, %v476
    %v478 = vrot.slane %v469, %v477
    %v479 = vlaneseq
    %v480 = vshrl.u32 %v479, 7
    %v481 = vsub.s32 2, %v480
    %v482 = vrot.slane %v469, %v481
    %v483 = vlaneseq
    %v484 = vshrl.u32 %v483, 7
    %v485 = vsub.s32 3, %v484
    %v486 = vrot.slane %v469, %v485
    %v487 = vlaneseq
    %v488 = vshrl.u32 %v487, 7
    %v489 = vsub.s32 4, %v488
    %v490 = vrot.slane %v469, %v489
    %v491 = vlaneseq
    %v492 = vshrl.u32 %v491, 7
    %v493 = vsub.s32 5, %v492
    %v494 = vrot.slane %v469, %v493
    %v501 = vpack.c.b16 %v405, %v403
    %v502 = vpack.c.b16 %v406, %v404
    %v503 = vpack.c.b16 %v409, %v407
    %v504 = vpack.c.b16 %v410, %v408
    %v505 = vpack.c.b16 %v413, %v411
    %v506 = vpack.c.b16 %v414, %v412
    %v564 = vunpack.c.l.b16 %v415
    %v565 = vunpack.c.h.b16 %v415
    %v566 = vunpack.c.l.b16 %v416
    %v567 = vunpack.c.h.b16 %v416
    %v568 = vunpack.c.l.b16 %v417
    %v569 = vunpack.c.h.b16 %v417
    %v570 = vunpack.c.l.b16 %v418
    %v571 = vunpack.c.h.b16 %v418
    %v572 = vunpack.c.l.b16 %v419
    %v573 = vunpack.c.h.b16 %v419
    %v574 = vunpack.c.l.b16 %v420
    %v575 = vunpack.c.h.b16 %v420
    %v576 = vunpack.c.l.b16 %v421
    %v577 = vunpack.c.h.b16 %v421
    %v578 = vunpack.c.l.b16 %v422
    %v579 = vunpack.c.h.b16 %v422
    %v580 = vunpack.c.l.b16 %v423
    %v581 = vunpack.c.h.b16 %v423
    %v582 = vunpack.c.l.b16 %v424
    %v583 = vunpack.c.h.b16 %v424
    %v584 = vunpack.c.l.b16 %v425
    %v585 = vunpack.c.h.b16 %v425
    %v586 = vunpack.c.l.b16 %v426
    %v587 = vunpack.c.h.b16 %v426
    %v588 = vunpack.c.l.b16 %v427
    %v589 = vunpack.c.h.b16 %v427
    %v590 = vunpack.c.l.b16 %v428
    %v591 = vunpack.c.h.b16 %v428
    %v592 = vunpack.c.l.b16 %v429
    %v593 = vunpack.c.h.b16 %v429
    %v594 = vunpack.c.l.b16 %v430
    %v595 = vunpack.c.h.b16 %v430
    %v596 = vunpack.c.l.b16 %v431
    %v597 = vunpack.c.h.b16 %v431
    %v598 = vunpack.c.l.b16 %v432
    %v599 = vunpack.c.h.b16 %v432
    %v600 = vunpack.c.l.b16 %v433
    %v601 = vunpack.c.h.b16 %v433
    %v602 = vunpack.c.l.b16 %v434
    %v603 = vunpack.c.h.b16 %v434
    %v604 = vunpack.c.l.b16 %v435
    %v605 = vunpack.c.h.b16 %v435
    %v606 = vunpack.c.l.b16 %v436
    %v607 = vunpack.c.h.b16 %v436
    %v608 = vunpack.c.l.b16 %v437
    %v609 = vunpack.c.h.b16 %v437
    %v610 = vunpack.c.l.b16 %v438
    %v611 = vunpack.c.h.b16 %v438
    %v612 = vunpack.c.l.b16 %v439
    %v613 = vunpack.c.h.b16 %v439
    %v614 = vunpack.c.l.b16 %v440
    %v615 = vunpack.c.h.b16 %v440
    %v616 = vunpack.c.l.b16 %v441
    %v617 = vunpack.c.h.b16 %v441
    %v618 = vunpack.c.l.b16 %v442
    %v619 = vunpack.c.h.b16 %v442
    %v620 = vunpack.c.l.b16 %v443
    %v621 = vunpack.c.h.b16 %v443
    %v622 = vunpack.c.l.b16 %v444
    %v623 = vunpack.c.h.b16 %v444
    %v624 = vunpack.c.l.b16 %v445
    %v625 = vunpack.c.h.b16 %v445
    %v626 = vunpack.c.l.b16 %v446
    %v627 = vunpack.c.h.b16 %v446
    %v628 = vunpack.c.l.b16 %v447
    %v629 = vunpack.c.h.b16 %v447
    %v630 = vunpack.c.l.b16 %v448
    %v631 = vunpack.c.h.b16 %v448
    %v632 = vunpack.c.l.b16 %v449
    %v633 = vunpack.c.h.b16 %v449
    %v634 = vunpack.c.l.b16 %v450
    %v635 = vunpack.c.h.b16 %v450
    %v636 = vunpack.c.l.b16 %v451
    %v637 = vunpack.c.h.b16 %v451
    %v638 = vunpack.c.l.b16 %v452
    %v639 = vunpack.c.h.b16 %v452
    %v640 = vunpack.c.l.b16 %v453
    %v641 = vunpack.c.h.b16 %v453
    %v642 = vunpack.c.l.b16 %v454
    %v643 = vunpack.c.h.b16 %v454
    %v644 = vunpack.c.l.b16 %v455
    %v645 = vunpack.c.h.b16 %v455
    %v646 = vunpack.c.l.b16 %v456
    %v647 = vunpack.c.h.b16 %v456
    %v648 = vunpack.c.l.b16 %v457
    %v649 = vunpack.c.h.b16 %v457
    %v650 = vunpack.c.l.b16 %v458
    %v651 = vunpack.c.h.b16 %v458
    %v652 = vunpack.c.l.b16 %v459
    %v653 = vunpack.c.h.b16 %v459
    %v654 = vunpack.c.l.b16 %v460
    %v655 = vunpack.c.h.b16 %v460
    %v656 = vunpack.c.l.b16 %v461
    %v657 = vunpack.c.h.b16 %v461
    %v658 = vunpack.c.l.b16 %v462
    %v659 = vunpack.c.h.b16 %v462
    %v660 = vunpack.c.l.b16 %v463
    %v661 = vunpack.c.h.b16 %v463
    %v662 = vunpack.c.l.b16 %v464
    %v663 = vunpack.c.h.b16 %v464
    %v664 = vunpack.c.l.b16 %v465
    %v665 = vunpack.c.h.b16 %v465
    %v666 = vunpack.c.l.b16 %v466
    %v667 = vunpack.c.h.b16 %v466
    %v668 = vunpack.c.l.b16 %v467
    %v669 = vunpack.c.h.b16 %v467
    %v670 = vunpack.c.l.b16 %v468
    %v671 = vunpack.c.h.b16 %v468
    %v672 = vpack.c.b16 %v570, %v564
    %v673 = vpack.c.b16 %v571, %v565
    %v674 = vpack.c.b16 %v572, %v566
    %v675 = vpack.c.b16 %v573, %v567
    %v676 = vpack.c.b16 %v574, %v568
    %v677 = vpack.c.b16 %v575, %v569
    %v678 = vpack.c.b16 %v582, %v576
    %v679 = vpack.c.b16 %v583, %v577
    %v680 = vpack.c.b16 %v584, %v578
    %v681 = vpack.c.b16 %v585, %v579
    %v682 = vpack.c.b16 %v586, %v580
    %v683 = vpack.c.b16 %v587, %v581
    %v684 = vpack.c.b16 %v594, %v588
    %v685 = vpack.c.b16 %v595, %v589
    %v686 = vpack.c.b16 %v596, %v590
    %v687 = vpack.c.b16 %v597, %v591
    %v688 = vpack.c.b16 %v598, %v592
    %v689 = vpack.c.b16 %v599, %v593
    %v690 = vpack.c.b16 %v606, %v600
    %v691 = vpack.c.b16 %v607, %v601
    %v692 = vpack.c.b16 %v608, %v602
    %v693 = vpack.c.b16 %v609, %v603
    %v694 = vpack.c.b16 %v610, %v604
    %v695 = vpack.c.b16 %v611, %v605
    %v696 = vpack.c.b16 %v618, %v612
    %v697 = vpack.c.b16 %v619, %v613
    %v698 = vpack.c.b16 %v620, %v614
    %v699 = vpack.c.b16 %v621, %v615
    %v700 = vpack.c.b16 %v622, %v616
    %v701 = vpack.c.b16 %v623, %v617
    %v702 = vpack.c.b16 %v630, %v624
    %v703 = vpack.c.b16 %v631, %v625
    %v704 = vpack.c.b16 %v632, %v626
    %v705 = vpack.c.b16 %v633, %v627
    %v706 = vpack.c.b16 %v634, %v628
    %v707 = vpack.c.b16 %v635, %v629
    %v708 = vpack.c.b16 %v642, %v636
    %v709 = vpack.c.b16 %v643, %v637
    %v710 = vpack.c.b16 %v644, %v638
    %v711 = vpack.c.b16 %v645, %v639
    %v712 = vpack.c.b16 %v646, %v640
    %v713 = vpack.c.b16 %v647, %v641
    %v714 = vpack.c.b16 %v654, %v648
    %v715 = vpack.c.b16 %v655, %v649
    %v716 = vpack.c.b16 %v656, %v650
    %v717 = vpack.c.b16 %v657, %v651
    %v718 = vpack.c.b16 %v658, %v652
    %v719 = vpack.c.b16 %v659, %v653
    %v720 = vpack.c.b16 %v666, %v660
    %v721 = vpack.c.b16 %v667, %v661
    %v722 = vpack.c.b16 %v668, %v662
    %v723 = vpack.c.b16 %v669, %v663
    %v724 = vpack.c.b16 %v670, %v664
    %v725 = vpack.c.b16 %v671, %v665
    %vm774 = vcmask 97280
    %v776 = vsel %vm774, %v502, 0
    %v779 = vsel %vm774, %v504, 0
    %v782 = vsel %vm774, %v506, 0
    %vm784 = vcmask 1045504
    %v786 = vsel %vm784, %v720, 0
    %v789 = vsel %vm784, %v721, 0
    %v792 = vsel %vm784, %v722, 0
    %v795 = vsel %vm784, %v723, 0
    %v798 = vsel %vm784, %v724, 0
    %v801 = vsel %vm784, %v725, 0
    %803 = vmatprep.subr.bf16.mxu0 %v673
    %804 = vmatpush1.bf16.msra.mxu0 %v672
    %805 = vmatprep.subr.bf16.mxu0 %v679
    %806 = vmatpush1.bf16.msra.mxu0 %v678
    %807 = vmatprep.subr.bf16.mxu0 %v685
    %808 = vmatpush1.bf16.msra.mxu0 %v684
    %809 = vmatprep.subr.bf16.mxu0 %v691
    %810 = vmatpush1.bf16.msra.mxu0 %v690
    %811 = vmatprep.subr.bf16.mxu0 %v697
    %812 = vmatpush1.bf16.msra.mxu0 %v696
    %813 = vmatprep.subr.bf16.mxu0 %v703
    %814 = vmatpush1.bf16.msra.mxu0 %v702
    %815 = vmatprep.subr.bf16.mxu0 %v709
    %816 = vmatpush1.bf16.msra.mxu0 %v708
    %817 = vmatprep.subr.bf16.mxu0 %v715
    %818 = vmatpush1.bf16.msra.mxu0 %v714
    %819 = vmatprep.subr.bf16.mxu0 %v789
    %820 = vmatpush1.bf16.msra.mxu0 %v786
    %821 = vmatprep.subr.bf16.mxu0 0
    %822 = vmatpush1.bf16.msra.mxu0 0
    %823 = vmatprep.subr.bf16.mxu0 0
    %824 = vmatpush1.bf16.msra.mxu0 0
    %825 = vmatprep.subr.bf16.mxu0 0
    %826 = vmatpush1.bf16.msra.mxu0 0
    %827 = vmatprep.subr.bf16.mxu0 0
    %828 = vmatpush1.bf16.msra.mxu0 0
    %829 = vmatprep.subr.bf16.mxu0 0
    %830 = vmatpush1.bf16.msra.mxu0 0
    %831 = vmatprep.subr.bf16.mxu0 0
    %832 = vmatpush1.bf16.msra.mxu0 0
    %833 = vmatprep.subr.bf16.mxu0 0
    %834 = vmatpush1.bf16.msra.mxu0 0
    %835 = vmatprep.mubr.bf16.mxu0 %v776
    %836 = vmatmul.mubr.bf16.gmra.mrb[0].mxu0 %v501
    %v837 = vpop.f32.mrb[0].mxu0
    %v838 = vadd.f32 %v474, %v837
    %v839 = vpop.f32.mrb[0].mxu0
    %v840 = vadd.f32 %v478, %v839
    %v841 = vpop.f32.mrb[0].mxu0
    %v842 = vadd.f32 %v474, %v841
    %v843 = vpop.f32.mrb[0].mxu0
    %v844 = vadd.f32 %v478, %v843
    %845 = vmatprep.mubr.bf16.mxu0 %v779
    %846 = vmatmul.mubr.bf16.gmra.mrb[0].mxu0 %v503
    %v847 = vpop.f32.mrb[0].mxu0
    %v848 = vadd.f32 %v474, %v847
    %v849 = vpop.f32.mrb[0].mxu0
    %v850 = vadd.f32 %v478, %v849
    %v851 = vpop.f32.mrb[0].mxu0
    %v852 = vadd.f32 %v474, %v851
    %v853 = vpop.f32.mrb[0].mxu0
    %v854 = vadd.f32 %v478, %v853
    %855 = vmatprep.mubr.bf16.mxu0 %v782
    %856 = vmatmul.mubr.bf16.gmra.mrb[0].mxu0 %v505
    %v857 = vpop.f32.mrb[0].mxu0
    %v858 = vadd.f32 %v474, %v857
    %v859 = vpop.f32.mrb[0].mxu0
    %v860 = vadd.f32 %v478, %v859
    %v861 = vpop.f32.mrb[0].mxu0
    %v862 = vadd.f32 %v474, %v861
    %v863 = vpop.f32.mrb[0].mxu0
    %v864 = vadd.f32 %v478, %v863
    %865 = vdwg.mxu0
    %866 = vmatprep.subr.bf16.mxu0 %v675
    %867 = vmatpush1.bf16.msra.mxu0 %v674
    %868 = vmatprep.subr.bf16.mxu0 %v681
    %869 = vmatpush1.bf16.msra.mxu0 %v680
    %870 = vmatprep.subr.bf16.mxu0 %v687
    %871 = vmatpush1.bf16.msra.mxu0 %v686
    %872 = vmatprep.subr.bf16.mxu0 %v693
    %873 = vmatpush1.bf16.msra.mxu0 %v692
    %874 = vmatprep.subr.bf16.mxu0 %v699
    %875 = vmatpush1.bf16.msra.mxu0 %v698
    %876 = vmatprep.subr.bf16.mxu0 %v705
    %877 = vmatpush1.bf16.msra.mxu0 %v704
    %878 = vmatprep.subr.bf16.mxu0 %v711
    %879 = vmatpush1.bf16.msra.mxu0 %v710
    %880 = vmatprep.subr.bf16.mxu0 %v717
    %881 = vmatpush1.bf16.msra.mxu0 %v716
    %882 = vmatprep.subr.bf16.mxu0 %v795
    %883 = vmatpush1.bf16.msra.mxu0 %v792
    %884 = vmatprep.subr.bf16.mxu0 0
    %885 = vmatpush1.bf16.msra.mxu0 0
    %886 = vmatprep.subr.bf16.mxu0 0
    %887 = vmatpush1.bf16.msra.mxu0 0
    %888 = vmatprep.subr.bf16.mxu0 0
    %889 = vmatpush1.bf16.msra.mxu0 0
    %890 = vmatprep.subr.bf16.mxu0 0
    %891 = vmatpush1.bf16.msra.mxu0 0
    %892 = vmatprep.subr.bf16.mxu0 0
    %893 = vmatpush1.bf16.msra.mxu0 0
    %894 = vmatprep.subr.bf16.mxu0 0
    %895 = vmatpush1.bf16.msra.mxu0 0
    %896 = vmatprep.subr.bf16.mxu0 0
    %897 = vmatpush1.bf16.msra.mxu0 0
    %898 = vmatprep.mubr.bf16.mxu0 %v776
    %899 = vmatmul.mubr.bf16.gmra.mrb[0].mxu0 %v501
    %v900 = vpop.f32.mrb[0].mxu0
    %v901 = vadd.f32 %v482, %v900
    %v902 = vpop.f32.mrb[0].mxu0
    %v903 = vadd.f32 %v486, %v902
    %v904 = vpop.f32.mrb[0].mxu0
    %v905 = vadd.f32 %v482, %v904
    %v906 = vpop.f32.mrb[0].mxu0
    %v907 = vadd.f32 %v486, %v906
    %908 = vmatprep.mubr.bf16.mxu0 %v779
    %909 = vmatmul.mubr.bf16.gmra.mrb[0].mxu0 %v503
    %v910 = vpop.f32.mrb[0].mxu0
    %v911 = vadd.f32 %v482, %v910
    %v912 = vpop.f32.mrb[0].mxu0
    %v913 = vadd.f32 %v486, %v912
    %v914 = vpop.f32.mrb[0].mxu0
    %v915 = vadd.f32 %v482, %v914
    %v916 = vpop.f32.mrb[0].mxu0
    %v917 = vadd.f32 %v486, %v916
    %918 = vmatprep.mubr.bf16.mxu0 %v782
    %919 = vmatmul.mubr.bf16.gmra.mrb[0].mxu0 %v505
    %v920 = vpop.f32.mrb[0].mxu0
    %v921 = vadd.f32 %v482, %v920
    %v922 = vpop.f32.mrb[0].mxu0
    %v923 = vadd.f32 %v486, %v922
    %v924 = vpop.f32.mrb[0].mxu0
    %v925 = vadd.f32 %v482, %v924
    %v926 = vpop.f32.mrb[0].mxu0
    %v927 = vadd.f32 %v486, %v926
    %928 = vdwg.mxu0
    %929 = vmatprep.subr.bf16.mxu0 %v677
    %930 = vmatpush1.bf16.msra.mxu0 %v676
    %931 = vmatprep.subr.bf16.mxu0 %v683
    %932 = vmatpush1.bf16.msra.mxu0 %v682
    %933 = vmatprep.subr.bf16.mxu0 %v689
    %934 = vmatpush1.bf16.msra.mxu0 %v688
    %935 = vmatprep.subr.bf16.mxu0 %v695
    %936 = vmatpush1.bf16.msra.mxu0 %v694
    %937 = vmatprep.subr.bf16.mxu0 %v701
    %938 = vmatpush1.bf16.msra.mxu0 %v700
    %939 = vmatprep.subr.bf16.mxu0 %v707
    %940 = vmatpush1.bf16.msra.mxu0 %v706
    %941 = vmatprep.subr.bf16.mxu0 %v713
    %942 = vmatpush1.bf16.msra.mxu0 %v712
    %943 = vmatprep.subr.bf16.mxu0 %v719
    %944 = vmatpush1.bf16.msra.mxu0 %v718
    %945 = vmatprep.subr.bf16.mxu0 %v801
    %946 = vmatpush1.bf16.msra.mxu0 %v798
    %947 = vmatprep.subr.bf16.mxu0 0
    %948 = vmatpush1.bf16.msra.mxu0 0
    %949 = vmatprep.subr.bf16.mxu0 0
    %950 = vmatpush1.bf16.msra.mxu0 0
    %951 = vmatprep.subr.bf16.mxu0 0
    %952 = vmatpush1.bf16.msra.mxu0 0
    %953 = vmatprep.subr.bf16.mxu0 0
    %954 = vmatpush1.bf16.msra.mxu0 0
    %955 = vmatprep.subr.bf16.mxu0 0
    %956 = vmatpush1.bf16.msra.mxu0 0
    %957 = vmatprep.subr.bf16.mxu0 0
    %958 = vmatpush1.bf16.msra.mxu0 0
    %959 = vmatprep.subr.bf16.mxu0 0
    %960 = vmatpush1.bf16.msra.mxu0 0
    %961 = vmatprep.mubr.bf16.mxu0 %v776
    %962 = vmatmul.mubr.bf16.gmra.mrb[0].mxu0 %v501
    %v963 = vpop.f32.mrb[0].mxu0
    %v964 = vadd.f32 %v490, %v963
    %v965 = vpop.f32.mrb[0].mxu0
    %v966 = vadd.f32 %v494, %v965
    %v967 = vpop.f32.mrb[0].mxu0
    %v968 = vadd.f32 %v490, %v967
    %v969 = vpop.f32.mrb[0].mxu0
    %v970 = vadd.f32 %v494, %v969
    %971 = vmatprep.mubr.bf16.mxu0 %v779
    %972 = vmatmul.mubr.bf16.gmra.mrb[0].mxu0 %v503
    %v973 = vpop.f32.mrb[0].mxu0
    %v974 = vadd.f32 %v490, %v973
    %v975 = vpop.f32.mrb[0].mxu0
    %v976 = vadd.f32 %v494, %v975
    %v977 = vpop.f32.mrb[0].mxu0
    %v978 = vadd.f32 %v490, %v977
    %v979 = vpop.f32.mrb[0].mxu0
    %v980 = vadd.f32 %v494, %v979
    %981 = vmatprep.mubr.bf16.mxu0 %v782
    %982 = vmatmul.mubr.bf16.gmra.mrb[0].mxu0 %v505
    %v983 = vpop.f32.mrb[0].mxu0
    %v984 = vadd.f32 %v490, %v983
    %v985 = vpop.f32.mrb[0].mxu0
    %v986 = vadd.f32 %v494, %v985
    %v987 = vpop.f32.mrb[0].mxu0
    %v988 = vadd.f32 %v490, %v987
    %v989 = vpop.f32.mrb[0].mxu0
    %v990 = vadd.f32 %v494, %v989
    %991 = vdwg.mxu0
    %v992 = vmax.f32 %v838, 0.0
    %v993 = vmax.f32 %v840, 0.0
    %v994 = vmax.f32 %v901, 0.0
    %v995 = vmax.f32 %v903, 0.0
    %v996 = vmax.f32 %v964, 0.0
    %v997 = vmax.f32 %v966, 0.0
    %v998 = vmax.f32 %v842, 0.0
    %v999 = vmax.f32 %v844, 0.0
    %v1000 = vmax.f32 %v905, 0.0
    %v1001 = vmax.f32 %v907, 0.0
    %v1002 = vmax.f32 %v968, 0.0
    %v1003 = vmax.f32 %v970, 0.0
    %v1004 = vmax.f32 %v848, 0.0
    %v1005 = vmax.f32 %v850, 0.0
    %v1006 = vmax.f32 %v911, 0.0
    %v1007 = vmax.f32 %v913, 0.0
    %v1008 = vmax.f32 %v974, 0.0
    %v1009 = vmax.f32 %v976, 0.0
    %v1010 = vmax.f32 %v852, 0.0
    %v1011 = vmax.f32 %v854, 0.0
    %v1012 = vmax.f32 %v915, 0.0
    %v1013 = vmax.f32 %v917, 0.0
    %v1014 = vmax.f32 %v978, 0.0
    %v1015 = vmax.f32 %v980, 0.0
    %v1016 = vmax.f32 %v858, 0.0
    %v1017 = vmax.f32 %v860, 0.0
    %v1018 = vmax.f32 %v921, 0.0
    %v1019 = vmax.f32 %v923, 0.0
    %v1020 = vmax.f32 %v984, 0.0
    %v1021 = vmax.f32 %v986, 0.0
    %v1022 = vmax.f32 %v862, 0.0
    %v1023 = vmax.f32 %v864, 0.0
    %v1024 = vmax.f32 %v925, 0.0
    %v1025 = vmax.f32 %v927, 0.0
    %v1026 = vmax.f32 %v988, 0.0
    %v1027 = vmax.f32 %v990, 0.0
    %v1028 = vld [vmem:[#allocation7] sm:$0x3f]
    %v1030 = vlaneseq
    %v1031 = vshrl.u32 %v1030, 7
    %v1032 = vsub.s32 0, %v1031
    %v1033 = vrot.slane %v1028, %v1032
    %v1034 = vlaneseq
    %v1035 = vshrl.u32 %v1034, 7
    %v1036 = vsub.s32 1, %v1035
    %v1037 = vrot.slane %v1028, %v1036
    %v1038 = vlaneseq
    %v1039 = vshrl.u32 %v1038, 7
    %v1040 = vsub.s32 2, %v1039
    %v1041 = vrot.slane %v1028, %v1040
    %v1042 = vlaneseq
    %v1043 = vshrl.u32 %v1042, 7
    %v1044 = vsub.s32 3, %v1043
    %v1045 = vrot.slane %v1028, %v1044
    %v1046 = vlaneseq
    %v1047 = vshrl.u32 %v1046, 7
    %v1048 = vsub.s32 4, %v1047
    %v1049 = vrot.slane %v1028, %v1048
    %v1050 = vlaneseq
    %v1051 = vshrl.u32 %v1050, 7
    %v1052 = vsub.s32 5, %v1051
    %v1053 = vrot.slane %v1028, %v1052
    %v1060 = vmul.f32 %v992, %v1033
    %v1061 = vmul.f32 %v993, %v1037
    %v1062 = vmul.f32 %v994, %v1041
    %v1063 = vmul.f32 %v995, %v1045
    %v1064 = vmul.f32 %v996, %v1049
    %v1065 = vmul.f32 %v997, %v1053
    %v1066 = vmul.f32 %v998, %v1033
    %v1067 = vmul.f32 %v999, %v1037
    %v1068 = vmul.f32 %v1000, %v1041
    %v1069 = vmul.f32 %v1001, %v1045
    %v1070 = vmul.f32 %v1002, %v1049
    %v1071 = vmul.f32 %v1003, %v1053
    %v1072 = vmul.f32 %v1004, %v1033
    %v1073 = vmul.f32 %v1005, %v1037
    %v1074 = vmul.f32 %v1006, %v1041
    %v1075 = vmul.f32 %v1007, %v1045
    %v1076 = vmul.f32 %v1008, %v1049
    %v1077 = vmul.f32 %v1009, %v1053
    %v1078 = vmul.f32 %v1010, %v1033
    %v1079 = vmul.f32 %v1011, %v1037
    %v1080 = vmul.f32 %v1012, %v1041
    %v1081 = vmul.f32 %v1013, %v1045
    %v1082 = vmul.f32 %v1014, %v1049
    %v1083 = vmul.f32 %v1015, %v1053
    %v1084 = vmul.f32 %v1016, %v1033
    %v1085 = vmul.f32 %v1017, %v1037
    %v1086 = vmul.f32 %v1018, %v1041
    %v1087 = vmul.f32 %v1019, %v1045
    %v1088 = vmul.f32 %v1020, %v1049
    %v1089 = vmul.f32 %v1021, %v1053
    %v1090 = vmul.f32 %v1022, %v1033
    %v1091 = vmul.f32 %v1023, %v1037
    %v1092 = vmul.f32 %v1024, %v1041
    %v1093 = vmul.f32 %v1025, %v1045
    %v1094 = vmul.f32 %v1026, %v1049
    %v1095 = vmul.f32 %v1027, %v1053
    %v1096 = vld [vmem:[#allocation8] sm:$0x3f]
    %v1098 = vlaneseq
    %v1099 = vshrl.u32 %v1098, 7
    %v1100 = vsub.s32 0, %v1099
    %v1101 = vrot.slane %v1096, %v1100
    %v1102 = vlaneseq
    %v1103 = vshrl.u32 %v1102, 7
    %v1104 = vsub.s32 1, %v1103
    %v1105 = vrot.slane %v1096, %v1104
    %v1106 = vlaneseq
    %v1107 = vshrl.u32 %v1106, 7
    %v1108 = vsub.s32 2, %v1107
    %v1109 = vrot.slane %v1096, %v1108
    %v1110 = vlaneseq
    %v1111 = vshrl.u32 %v1110, 7
    %v1112 = vsub.s32 3, %v1111
    %v1113 = vrot.slane %v1096, %v1112
    %v1114 = vlaneseq
    %v1115 = vshrl.u32 %v1114, 7
    %v1116 = vsub.s32 4, %v1115
    %v1117 = vrot.slane %v1096, %v1116
    %v1118 = vlaneseq
    %v1119 = vshrl.u32 %v1118, 7
    %v1120 = vsub.s32 5, %v1119
    %v1121 = vrot.slane %v1096, %v1120
    %v1128 = vadd.f32 %v1060, %v1101
    %v1129 = vadd.f32 %v1061, %v1105
    %v1130 = vadd.f32 %v1062, %v1109
    %v1131 = vadd.f32 %v1063, %v1113
    %v1132 = vadd.f32 %v1064, %v1117
    %v1133 = vadd.f32 %v1065, %v1121
    %v1134 = vadd.f32 %v1066, %v1101
    %v1135 = vadd.f32 %v1067, %v1105
    %v1136 = vadd.f32 %v1068, %v1109
    %v1137 = vadd.f32 %v1069, %v1113
    %v1138 = vadd.f32 %v1070, %v1117
    %v1139 = vadd.f32 %v1071, %v1121
    %v1140 = vadd.f32 %v1072, %v1101
    %v1141 = vadd.f32 %v1073, %v1105
    %v1142 = vadd.f32 %v1074, %v1109
    %v1143 = vadd.f32 %v1075, %v1113
    %v1144 = vadd.f32 %v1076, %v1117
    %v1145 = vadd.f32 %v1077, %v1121
    %v1146 = vadd.f32 %v1078, %v1101
    %v1147 = vadd.f32 %v1079, %v1105
    %v1148 = vadd.f32 %v1080, %v1109
    %v1149 = vadd.f32 %v1081, %v1113
    %v1150 = vadd.f32 %v1082, %v1117
    %v1151 = vadd.f32 %v1083, %v1121
    %v1152 = vadd.f32 %v1084, %v1101
    %v1153 = vadd.f32 %v1085, %v1105
    %v1154 = vadd.f32 %v1086, %v1109
    %v1155 = vadd.f32 %v1087, %v1113
    %v1156 = vadd.f32 %v1088, %v1117
    %v1157 = vadd.f32 %v1089, %v1121
    %v1158 = vadd.f32 %v1090, %v1101
    %v1159 = vadd.f32 %v1091, %v1105
    %v1160 = vadd.f32 %v1092, %v1109
    %v1161 = vadd.f32 %v1093, %v1113
    %v1162 = vadd.f32 %v1094, %v1117
    %v1163 = vadd.f32 %v1095, %v1121
    %v1164 = vmax.f32 %v1128, %v1131
    %v1165 = vmax.f32 %v1129, %v1132
    %v1166 = vmax.f32 %v1130, %v1133
    %v1167 = vmax.f32 %v1134, %v1137
    %v1168 = vmax.f32 %v1135, %v1138
    %v1169 = vmax.f32 %v1136, %v1139
    %v1170 = vmax.f32 %v1140, %v1143
    %v1171 = vmax.f32 %v1141, %v1144
    %v1172 = vmax.f32 %v1142, %v1145
    %v1173 = vmax.f32 %v1146, %v1149
    %v1174 = vmax.f32 %v1147, %v1150
    %v1175 = vmax.f32 %v1148, %v1151
    %v1176 = vmax.f32 %v1152, %v1155
    %v1177 = vmax.f32 %v1153, %v1156
    %v1178 = vmax.f32 %v1154, %v1157
    %v1179 = vmax.f32 %v1158, %v1161
    %v1180 = vmax.f32 %v1159, %v1162
    %v1181 = vmax.f32 %v1160, %v1163
    %v1200 = vcombine.low %v1164, %v1165
    %v1201 = vcombine.high %v1164, %v1165
    %v1202 = vcombine.high %v1166, %v1166
    %v1204 = vunpack.c.l.s4 1983009808
    %v1205 = vunpack.c.0.s8 %v1204
    %v1206 = vlaneseq
    %v1207 = vshrl.u32 %v1206, 7
    %v1208 = vsub.s32 %v1205, %v1207
    %v1209 = vrot.slane %v1200, %v1208
    %v1211 = vunpack.c.l.s4 1983009808
    %v1212 = vunpack.c.0.s8 %v1211
    %v1213 = vlaneseq
    %v1214 = vshrl.u32 %v1213, 7
    %v1215 = vsub.s32 %v1212, %v1214
    %v1216 = vrot.slane %v1201, %v1215
    %v1218 = vunpack.c.l.s4 1983009808
    %v1219 = vunpack.c.0.s8 %v1218
    %v1220 = vlaneseq
    %v1221 = vshrl.u32 %v1220, 7
    %v1222 = vsub.s32 %v1219, %v1221
    %v1223 = vrot.slane %v1166, %v1222
    %v1225 = vunpack.c.l.s4 1983009808
    %v1226 = vunpack.c.0.s8 %v1225
    %v1227 = vlaneseq
    %v1228 = vshrl.u32 %v1227, 7
    %v1229 = vsub.s32 %v1226, %v1228
    %v1230 = vrot.slane %v1202, %v1229
    %v1231 = vcombine.low %v1209, %v1223
    %v1232 = vcombine.high %v1209, %v1223
    %v1233 = vcombine.low %v1216, %v1230
    %v1234 = vcombine.high %v1216, %v1230
    %v1235 = vcombine.low %v1167, %v1168
    %v1236 = vcombine.high %v1167, %v1168
    %v1237 = vcombine.high %v1169, %v1169
    %v1239 = vunpack.c.l.s4 1983009808
    %v1240 = vunpack.c.0.s8 %v1239
    %v1241 = vlaneseq
    %v1242 = vshrl.u32 %v1241, 7
    %v1243 = vsub.s32 %v1240, %v1242
    %v1244 = vrot.slane %v1235, %v1243
    %v1246 = vunpack.c.l.s4 1983009808
    %v1247 = vunpack.c.0.s8 %v1246
    %v1248 = vlaneseq
    %v1249 = vshrl.u32 %v1248, 7
    %v1250 = vsub.s32 %v1247, %v1249
    %v1251 = vrot.slane %v1236, %v1250
    %v1253 = vunpack.c.l.s4 1983009808
    %v1254 = vunpack.c.0.s8 %v1253
    %v1255 = vlaneseq
    %v1256 = vshrl.u32 %v1255, 7
    %v1257 = vsub.s32 %v1254, %v1256
    %v1258 = vrot.slane %v1169, %v1257
    %v1260 = vunpack.c.l.s4 1983009808
    %v1261 = vunpack.c.0.s8 %v1260
    %v1262 = vlaneseq
    %v1263 = vshrl.u32 %v1262, 7
    %v1264 = vsub.s32 %v1261, %v1263
    %v1265 = vrot.slane %v1237, %v1264
    %v1266 = vcombine.low %v1244, %v1258
    %v1267 = vcombine.high %v1244, %v1258
    %v1268 = vcombine.low %v1251, %v1265
    %v1269 = vcombine.high %v1251, %v1265
    %v1270 = vcombine.low %v1170, %v1171
    %v1271 = vcombine.high %v1170, %v1171
    %v1272 = vcombine.high %v1172, %v1172
    %v1274 = vunpack.c.l.s4 1983009808
    %v1275 = vunpack.c.0.s8 %v1274
    %v1276 = vlaneseq
    %v1277 = vshrl.u32 %v1276, 7
    %v1278 = vsub.s32 %v1275, %v1277
    %v1279 = vrot.slane %v1270, %v1278
    %v1281 = vunpack.c.l.s4 1983009808
    %v1282 = vunpack.c.0.s8 %v1281
    %v1283 = vlaneseq
    %v1284 = vshrl.u32 %v1283, 7
    %v1285 = vsub.s32 %v1282, %v1284
    %v1286 = vrot.slane %v1271, %v1285
    %v1288 = vunpack.c.l.s4 1983009808
    %v1289 = vunpack.c.0.s8 %v1288
    %v1290 = vlaneseq
    %v1291 = vshrl.u32 %v1290, 7
    %v1292 = vsub.s32 %v1289, %v1291
    %v1293 = vrot.slane %v1172, %v1292
    %v1295 = vunpack.c.l.s4 1983009808
    %v1296 = vunpack.c.0.s8 %v1295
    %v1297 = vlaneseq
    %v1298 = vshrl.u32 %v1297, 7
    %v1299 = vsub.s32 %v1296, %v1298
    %v1300 = vrot.slane %v1272, %v1299
    %v1301 = vcombine.low %v1279, %v1293
    %v1302 = vcombine.high %v1279, %v1293
    %v1303 = vcombine.low %v1286, %v1300
    %v1304 = vcombine.high %v1286, %v1300
    %v1305 = vcombine.low %v1173, %v1174
    %v1306 = vcombine.high %v1173, %v1174
    %v1307 = vcombine.high %v1175, %v1175
    %v1309 = vunpack.c.l.s4 1983009808
    %v1310 = vunpack.c.0.s8 %v1309
    %v1311 = vlaneseq
    %v1312 = vshrl.u32 %v1311, 7
    %v1313 = vsub.s32 %v1310, %v1312
    %v1314 = vrot.slane %v1305, %v1313
    %v1316 = vunpack.c.l.s4 1983009808
    %v1317 = vunpack.c.0.s8 %v1316
    %v1318 = vlaneseq
    %v1319 = vshrl.u32 %v1318, 7
    %v1320 = vsub.s32 %v1317, %v1319
    %v1321 = vrot.slane %v1306, %v1320
    %v1323 = vunpack.c.l.s4 1983009808
    %v1324 = vunpack.c.0.s8 %v1323
    %v1325 = vlaneseq
    %v1326 = vshrl.u32 %v1325, 7
    %v1327 = vsub.s32 %v1324, %v1326
    %v1328 = vrot.slane %v1175, %v1327
    %v1330 = vunpack.c.l.s4 1983009808
    %v1331 = vunpack.c.0.s8 %v1330
    %v1332 = vlaneseq
    %v1333 = vshrl.u32 %v1332, 7
    %v1334 = vsub.s32 %v1331, %v1333
    %v1335 = vrot.slane %v1307, %v1334
    %v1336 = vcombine.low %v1314, %v1328
    %v1337 = vcombine.high %v1314, %v1328
    %v1338 = vcombine.low %v1321, %v1335
    %v1339 = vcombine.high %v1321, %v1335
    %v1340 = vcombine.low %v1176, %v1177
    %v1341 = vcombine.high %v1176, %v1177
    %v1342 = vcombine.high %v1178, %v1178
    %v1344 = vunpack.c.l.s4 1983009808
    %v1345 = vunpack.c.0.s8 %v1344
    %v1346 = vlaneseq
    %v1347 = vshrl.u32 %v1346, 7
    %v1348 = vsub.s32 %v1345, %v1347
    %v1349 = vrot.slane %v1340, %v1348
    %v1351 = vunpack.c.l.s4 1983009808
    %v1352 = vunpack.c.0.s8 %v1351
    %v1353 = vlaneseq
    %v1354 = vshrl.u32 %v1353, 7
    %v1355 = vsub.s32 %v1352, %v1354
    %v1356 = vrot.slane %v1341, %v1355
    %v1358 = vunpack.c.l.s4 1983009808
    %v1359 = vunpack.c.0.s8 %v1358
    %v1360 = vlaneseq
    %v1361 = vshrl.u32 %v1360, 7
    %v1362 = vsub.s32 %v1359, %v1361
    %v1363 = vrot.slane %v1178, %v1362
    %v1365 = vunpack.c.l.s4 1983009808
    %v1366 = vunpack.c.0.s8 %v1365
    %v1367 = vlaneseq
    %v1368 = vshrl.u32 %v1367, 7
    %v1369 = vsub.s32 %v1366, %v1368
    %v1370 = vrot.slane %v1342, %v1369
    %v1371 = vcombine.low %v1349, %v1363
    %v1372 = vcombine.high %v1349, %v1363
    %v1373 = vcombine.low %v1356, %v1370
    %v1374 = vcombine.high %v1356, %v1370
    %v1375 = vcombine.low %v1179, %v1180
    %v1376 = vcombine.high %v1179, %v1180
    %v1377 = vcombine.high %v1181, %v1181
    %v1379 = vunpack.c.l.s4 1983009808
    %v1380 = vunpack.c.0.s8 %v1379
    %v1381 = vlaneseq
    %v1382 = vshrl.u32 %v1381, 7
    %v1383 = vsub.s32 %v1380, %v1382
    %v1384 = vrot.slane %v1375, %v1383
    %v1386 = vunpack.c.l.s4 1983009808
    %v1387 = vunpack.c.0.s8 %v1386
    %v1388 = vlaneseq
    %v1389 = vshrl.u32 %v1388, 7
    %v1390 = vsub.s32 %v1387, %v1389
    %v1391 = vrot.slane %v1376, %v1390
    %v1393 = vunpack.c.l.s4 1983009808
    %v1394 = vunpack.c.0.s8 %v1393
    %v1395 = vlaneseq
    %v1396 = vshrl.u32 %v1395, 7
    %v1397 = vsub.s32 %v1394, %v1396
    %v1398 = vrot.slane %v1181, %v1397
    %v1400 = vunpack.c.l.s4 1983009808
    %v1401 = vunpack.c.0.s8 %v1400
    %v1402 = vlaneseq
    %v1403 = vshrl.u32 %v1402, 7
    %v1404 = vsub.s32 %v1401, %v1403
    %v1405 = vrot.slane %v1377, %v1404
    %v1406 = vcombine.low %v1384, %v1398
    %v1407 = vcombine.high %v1384, %v1398
    %v1408 = vcombine.low %v1391, %v1405
    %v1409 = vcombine.high %v1391, %v1405
    %v1410 = vcombine.high %v1231, %v1231
    %v1412 = vunpack.c.l.s4 1983009808
    %v1413 = vunpack.c.0.s8 %v1412
    %v1414 = vlaneseq
    %v1415 = vshrl.u32 %v1414, 7
    %v1416 = vsub.s32 %v1413, %v1415
    %v1417 = vrot.slane %v1231, %v1416
    %v1419 = vunpack.c.l.s4 1983009808
    %v1420 = vunpack.c.0.s8 %v1419
    %v1421 = vlaneseq
    %v1422 = vshrl.u32 %v1421, 7
    %v1423 = vsub.s32 %v1420, %v1422
    %v1424 = vrot.slane %v1410, %v1423
    %v1425 = vcombine.high %v1417, %v1417
    %v1426 = vcombine.high %v1232, %v1232
    %v1428 = vunpack.c.l.s4 1983009808
    %v1429 = vunpack.c.0.s8 %v1428
    %v1430 = vlaneseq
    %v1431 = vshrl.u32 %v1430, 7
    %v1432 = vsub.s32 %v1429, %v1431
    %v1433 = vrot.slane %v1232, %v1432
    %v1435 = vunpack.c.l.s4 1983009808
    %v1436 = vunpack.c.0.s8 %v1435
    %v1437 = vlaneseq
    %v1438 = vshrl.u32 %v1437, 7
    %v1439 = vsub.s32 %v1436, %v1438
    %v1440 = vrot.slane %v1426, %v1439
    %v1441 = vcombine.high %v1433, %v1433
    %v1442 = vcombine.high %v1233, %v1233
    %v1444 = vunpack.c.l.s4 1983009808
    %v1445 = vunpack.c.0.s8 %v1444
    %v1446 = vlaneseq
    %v1447 = vshrl.u32 %v1446, 7
    %v1448 = vsub.s32 %v1445, %v1447
    %v1449 = vrot.slane %v1233, %v1448
    %v1451 = vunpack.c.l.s4 1983009808
    %v1452 = vunpack.c.0.s8 %v1451
    %v1453 = vlaneseq
    %v1454 = vshrl.u32 %v1453, 7
    %v1455 = vsub.s32 %v1452, %v1454
    %v1456 = vrot.slane %v1442, %v1455
    %v1457 = vcombine.high %v1449, %v1449
    %v1458 = vcombine.high %v1234, %v1234
    %v1460 = vunpack.c.l.s4 1983009808
    %v1461 = vunpack.c.0.s8 %v1460
    %v1462 = vlaneseq
    %v1463 = vshrl.u32 %v1462, 7
    %v1464 = vsub.s32 %v1461, %v1463
    %v1465 = vrot.slane %v1234, %v1464
    %v1467 = vunpack.c.l.s4 1983009808
    %v1468 = vunpack.c.0.s8 %v1467
    %v1469 = vlaneseq
    %v1470 = vshrl.u32 %v1469, 7
    %v1471 = vsub.s32 %v1468, %v1470
    %v1472 = vrot.slane %v1458, %v1471
    %v1473 = vcombine.high %v1465, %v1465
    %v1474 = vcombine.high %v1266, %v1266
    %v1476 = vunpack.c.l.s4 1983009808
    %v1477 = vunpack.c.0.s8 %v1476
    %v1478 = vlaneseq
    %v1479 = vshrl.u32 %v1478, 7
    %v1480 = vsub.s32 %v1477, %v1479
    %v1481 = vrot.slane %v1266, %v1480
    %v1483 = vunpack.c.l.s4 1983009808
    %v1484 = vunpack.c.0.s8 %v1483
    %v1485 = vlaneseq
    %v1486 = vshrl.u32 %v1485, 7
    %v1487 = vsub.s32 %v1484, %v1486
    %v1488 = vrot.slane %v1474, %v1487
    %v1489 = vcombine.high %v1481, %v1481
    %v1490 = vcombine.high %v1267, %v1267
    %v1492 = vunpack.c.l.s4 1983009808
    %v1493 = vunpack.c.0.s8 %v1492
    %v1494 = vlaneseq
    %v1495 = vshrl.u32 %v1494, 7
    %v1496 = vsub.s32 %v1493, %v1495
    %v1497 = vrot.slane %v1267, %v1496
    %v1499 = vunpack.c.l.s4 1983009808
    %v1500 = vunpack.c.0.s8 %v1499
    %v1501 = vlaneseq
    %v1502 = vshrl.u32 %v1501, 7
    %v1503 = vsub.s32 %v1500, %v1502
    %v1504 = vrot.slane %v1490, %v1503
    %v1505 = vcombine.high %v1497, %v1497
    %v1506 = vcombine.high %v1268, %v1268
    %v1508 = vunpack.c.l.s4 1983009808
    %v1509 = vunpack.c.0.s8 %v1508
    %v1510 = vlaneseq
    %v1511 = vshrl.u32 %v1510, 7
    %v1512 = vsub.s32 %v1509, %v1511
    %v1513 = vrot.slane %v1268, %v1512
    %v1515 = vunpack.c.l.s4 1983009808
    %v1516 = vunpack.c.0.s8 %v1515
    %v1517 = vlaneseq
    %v1518 = vshrl.u32 %v1517, 7
    %v1519 = vsub.s32 %v1516, %v1518
    %v1520 = vrot.slane %v1506, %v1519
    %v1521 = vcombine.high %v1513, %v1513
    %v1522 = vcombine.high %v1269, %v1269
    %v1524 = vunpack.c.l.s4 1983009808
    %v1525 = vunpack.c.0.s8 %v1524
    %v1526 = vlaneseq
    %v1527 = vshrl.u32 %v1526, 7
    %v1528 = vsub.s32 %v1525, %v1527
    %v1529 = vrot.slane %v1269, %v1528
    %v1531 = vunpack.c.l.s4 1983009808
    %v1532 = vunpack.c.0.s8 %v1531
    %v1533 = vlaneseq
    %v1534 = vshrl.u32 %v1533, 7
    %v1535 = vsub.s32 %v1532, %v1534
    %v1536 = vrot.slane %v1522, %v1535
    %v1537 = vcombine.high %v1529, %v1529
    %v1538 = vcombine.high %v1301, %v1301
    %v1540 = vunpack.c.l.s4 1983009808
    %v1541 = vunpack.c.0.s8 %v1540
    %v1542 = vlaneseq
    %v1543 = vshrl.u32 %v1542, 7
    %v1544 = vsub.s32 %v1541, %v1543
    %v1545 = vrot.slane %v1301, %v1544
    %v1547 = vunpack.c.l.s4 1983009808
    %v1548 = vunpack.c.0.s8 %v1547
    %v1549 = vlaneseq
    %v1550 = vshrl.u32 %v1549, 7
    %v1551 = vsub.s32 %v1548, %v1550
    %v1552 = vrot.slane %v1538, %v1551
    %v1553 = vcombine.high %v1545, %v1545
    %v1554 = vcombine.high %v1302, %v1302
    %v1556 = vunpack.c.l.s4 1983009808
    %v1557 = vunpack.c.0.s8 %v1556
    %v1558 = vlaneseq
    %v1559 = vshrl.u32 %v1558, 7
    %v1560 = vsub.s32 %v1557, %v1559
    %v1561 = vrot.slane %v1302, %v1560
    %v1563 = vunpack.c.l.s4 1983009808
    %v1564 = vunpack.c.0.s8 %v1563
    %v1565 = vlaneseq
    %v1566 = vshrl.u32 %v1565, 7
    %v1567 = vsub.s32 %v1564, %v1566
    %v1568 = vrot.slane %v1554, %v1567
    %v1569 = vcombine.high %v1561, %v1561
    %v1570 = vcombine.high %v1303, %v1303
    %v1572 = vunpack.c.l.s4 1983009808
    %v1573 = vunpack.c.0.s8 %v1572
    %v1574 = vlaneseq
    %v1575 = vshrl.u32 %v1574, 7
    %v1576 = vsub.s32 %v1573, %v1575
    %v1577 = vrot.slane %v1303, %v1576
    %v1579 = vunpack.c.l.s4 1983009808
    %v1580 = vunpack.c.0.s8 %v1579
    %v1581 = vlaneseq
    %v1582 = vshrl.u32 %v1581, 7
    %v1583 = vsub.s32 %v1580, %v1582
    %v1584 = vrot.slane %v1570, %v1583
    %v1585 = vcombine.high %v1577, %v1577
    %v1586 = vcombine.high %v1304, %v1304
    %v1588 = vunpack.c.l.s4 1983009808
    %v1589 = vunpack.c.0.s8 %v1588
    %v1590 = vlaneseq
    %v1591 = vshrl.u32 %v1590, 7
    %v1592 = vsub.s32 %v1589, %v1591
    %v1593 = vrot.slane %v1304, %v1592
    %v1595 = vunpack.c.l.s4 1983009808
    %v1596 = vunpack.c.0.s8 %v1595
    %v1597 = vlaneseq
    %v1598 = vshrl.u32 %v1597, 7
    %v1599 = vsub.s32 %v1596, %v1598
    %v1600 = vrot.slane %v1586, %v1599
    %v1601 = vcombine.high %v1593, %v1593
    %v1602 = vcombine.high %v1336, %v1336
    %v1604 = vunpack.c.l.s4 1983009808
    %v1605 = vunpack.c.0.s8 %v1604
    %v1606 = vlaneseq
    %v1607 = vshrl.u32 %v1606, 7
    %v1608 = vsub.s32 %v1605, %v1607
    %v1609 = vrot.slane %v1336, %v1608
    %v1611 = vunpack.c.l.s4 1983009808
    %v1612 = vunpack.c.0.s8 %v1611
    %v1613 = vlaneseq
    %v1614 = vshrl.u32 %v1613, 7
    %v1615 = vsub.s32 %v1612, %v1614
    %v1616 = vrot.slane %v1602, %v1615
    %v1617 = vcombine.high %v1609, %v1609
    %v1618 = vcombine.high %v1337, %v1337
    %v1620 = vunpack.c.l.s4 1983009808
    %v1621 = vunpack.c.0.s8 %v1620
    %v1622 = vlaneseq
    %v1623 = vshrl.u32 %v1622, 7
    %v1624 = vsub.s32 %v1621, %v1623
    %v1625 = vrot.slane %v1337, %v1624
    %v1627 = vunpack.c.l.s4 1983009808
    %v1628 = vunpack.c.0.s8 %v1627
    %v1629 = vlaneseq
    %v1630 = vshrl.u32 %v1629, 7
    %v1631 = vsub.s32 %v1628, %v1630
    %v1632 = vrot.slane %v1618, %v1631
    %v1633 = vcombine.high %v1625, %v1625
    %v1634 = vcombine.high %v1338, %v1338
    %v1636 = vunpack.c.l.s4 1983009808
    %v1637 = vunpack.c.0.s8 %v1636
    %v1638 = vlaneseq
    %v1639 = vshrl.u32 %v1638, 7
    %v1640 = vsub.s32 %v1637, %v1639
    %v1641 = vrot.slane %v1338, %v1640
    %v1643 = vunpack.c.l.s4 1983009808
    %v1644 = vunpack.c.0.s8 %v1643
    %v1645 = vlaneseq
    %v1646 = vshrl.u32 %v1645, 7
    %v1647 = vsub.s32 %v1644, %v1646
    %v1648 = vrot.slane %v1634, %v1647
    %v1649 = vcombine.high %v1641, %v1641
    %v1650 = vcombine.high %v1339, %v1339
    %v1652 = vunpack.c.l.s4 1983009808
    %v1653 = vunpack.c.0.s8 %v1652
    %v1654 = vlaneseq
    %v1655 = vshrl.u32 %v1654, 7
    %v1656 = vsub.s32 %v1653, %v1655
    %v1657 = vrot.slane %v1339, %v1656
    %v1659 = vunpack.c.l.s4 1983009808
    %v1660 = vunpack.c.0.s8 %v1659
    %v1661 = vlaneseq
    %v1662 = vshrl.u32 %v1661, 7
    %v1663 = vsub.s32 %v1660, %v1662
    %v1664 = vrot.slane %v1650, %v1663
    %v1665 = vcombine.high %v1657, %v1657
    %v1666 = vcombine.high %v1371, %v1371
    %v1668 = vunpack.c.l.s4 1983009808
    %v1669 = vunpack.c.0.s8 %v1668
    %v1670 = vlaneseq
    %v1671 = vshrl.u32 %v1670, 7
    %v1672 = vsub.s32 %v1669, %v1671
    %v1673 = vrot.slane %v1371, %v1672
    %v1675 = vunpack.c.l.s4 1983009808
    %v1676 = vunpack.c.0.s8 %v1675
    %v1677 = vlaneseq
    %v1678 = vshrl.u32 %v1677, 7
    %v1679 = vsub.s32 %v1676, %v1678
    %v1680 = vrot.slane %v1666, %v1679
    %v1681 = vcombine.high %v1673, %v1673
    %v1682 = vcombine.high %v1372, %v1372
    %v1684 = vunpack.c.l.s4 1983009808
    %v1685 = vunpack.c.0.s8 %v1684
    %v1686 = vlaneseq
    %v1687 = vshrl.u32 %v1686, 7
    %v1688 = vsub.s32 %v1685, %v1687
    %v1689 = vrot.slane %v1372, %v1688
    %v1691 = vunpack.c.l.s4 1983009808
    %v1692 = vunpack.c.0.s8 %v1691
    %v1693 = vlaneseq
    %v1694 = vshrl.u32 %v1693, 7
    %v1695 = vsub.s32 %v1692, %v1694
    %v1696 = vrot.slane %v1682, %v1695
    %v1697 = vcombine.high %v1689, %v1689
    %v1698 = vcombine.high %v1373, %v1373
    %v1700 = vunpack.c.l.s4 1983009808
    %v1701 = vunpack.c.0.s8 %v1700
    %v1702 = vlaneseq
    %v1703 = vshrl.u32 %v1702, 7
    %v1704 = vsub.s32 %v1701, %v1703
    %v1705 = vrot.slane %v1373, %v1704
    %v1707 = vunpack.c.l.s4 1983009808
    %v1708 = vunpack.c.0.s8 %v1707
    %v1709 = vlaneseq
    %v1710 = vshrl.u32 %v1709, 7
    %v1711 = vsub.s32 %v1708, %v1710
    %v1712 = vrot.slane %v1698, %v1711
    %v1713 = vcombine.high %v1705, %v1705
    %v1714 = vcombine.high %v1374, %v1374
    %v1716 = vunpack.c.l.s4 1983009808
    %v1717 = vunpack.c.0.s8 %v1716
    %v1718 = vlaneseq
    %v1719 = vshrl.u32 %v1718, 7
    %v1720 = vsub.s32 %v1717, %v1719
    %v1721 = vrot.slane %v1374, %v1720
    %v1723 = vunpack.c.l.s4 1983009808
    %v1724 = vunpack.c.0.s8 %v1723
    %v1725 = vlaneseq
    %v1726 = vshrl.u32 %v1725, 7
    %v1727 = vsub.s32 %v1724, %v1726
    %v1728 = vrot.slane %v1714, %v1727
    %v1729 = vcombine.high %v1721, %v1721
    %v1730 = vcombine.high %v1406, %v1406
    %v1732 = vunpack.c.l.s4 1983009808
    %v1733 = vunpack.c.0.s8 %v1732
    %v1734 = vlaneseq
    %v1735 = vshrl.u32 %v1734, 7
    %v1736 = vsub.s32 %v1733, %v1735
    %v1737 = vrot.slane %v1406, %v1736
    %v1739 = vunpack.c.l.s4 1983009808
    %v1740 = vunpack.c.0.s8 %v1739
    %v1741 = vlaneseq
    %v1742 = vshrl.u32 %v1741, 7
    %v1743 = vsub.s32 %v1740, %v1742
    %v1744 = vrot.slane %v1730, %v1743
    %v1745 = vcombine.high %v1737, %v1737
    %v1746 = vcombine.high %v1407, %v1407
    %v1748 = vunpack.c.l.s4 1983009808
    %v1749 = vunpack.c.0.s8 %v1748
    %v1750 = vlaneseq
    %v1751 = vshrl.u32 %v1750, 7
    %v1752 = vsub.s32 %v1749, %v1751
    %v1753 = vrot.slane %v1407, %v1752
    %v1755 = vunpack.c.l.s4 1983009808
    %v1756 = vunpack.c.0.s8 %v1755
    %v1757 = vlaneseq
    %v1758 = vshrl.u32 %v1757, 7
    %v1759 = vsub.s32 %v1756, %v1758
    %v1760 = vrot.slane %v1746, %v1759
    %v1761 = vcombine.high %v1753, %v1753
    %v1762 = vcombine.high %v1408, %v1408
    %v1764 = vunpack.c.l.s4 1983009808
    %v1765 = vunpack.c.0.s8 %v1764
    %v1766 = vlaneseq
    %v1767 = vshrl.u32 %v1766, 7
    %v1768 = vsub.s32 %v1765, %v1767
    %v1769 = vrot.slane %v1408, %v1768
    %v1771 = vunpack.c.l.s4 1983009808
    %v1772 = vunpack.c.0.s8 %v1771
    %v1773 = vlaneseq
    %v1774 = vshrl.u32 %v1773, 7
    %v1775 = vsub.s32 %v1772, %v1774
    %v1776 = vrot.slane %v1762, %v1775
    %v1777 = vcombine.high %v1769, %v1769
    %v1778 = vcombine.high %v1409, %v1409
    %v1780 = vunpack.c.l.s4 1983009808
    %v1781 = vunpack.c.0.s8 %v1780
    %v1782 = vlaneseq
    %v1783 = vshrl.u32 %v1782, 7
    %v1784 = vsub.s32 %v1781, %v1783
    %v1785 = vrot.slane %v1409, %v1784
    %v1787 = vunpack.c.l.s4 1983009808
    %v1788 = vunpack.c.0.s8 %v1787
    %v1789 = vlaneseq
    %v1790 = vshrl.u32 %v1789, 7
    %v1791 = vsub.s32 %v1788, %v1790
    %v1792 = vrot.slane %v1778, %v1791
    %v1793 = vcombine.high %v1785, %v1785
    %vm1866 = vcmask 1041408
    %v1867 = vsel %vm1866, %v1417, -inf
    %v1868 = vrot.slane %v1867, 4
    %v1869 = vmax.f32 %v1867, %v1868
    %v1870 = vrot.slane %v1869, 2
    %v1871 = vmax.f32 %v1869, %v1870
    %v1872 = vrot.slane %v1871, 1
    %v1873 = vmax.f32 %v1871, %v1872
    %v1874 = vsel %vm1866, %v1425, -inf
    %v1875 = vrot.slane %v1874, 4
    %v1876 = vmax.f32 %v1874, %v1875
    %v1877 = vrot.slane %v1876, 2
    %v1878 = vmax.f32 %v1876, %v1877
    %v1879 = vrot.slane %v1878, 1
    %v1880 = vmax.f32 %v1878, %v1879
    %v1881 = vsel %vm1866, %v1424, -inf
    %v1882 = vrot.slane %v1881, 4
    %v1883 = vmax.f32 %v1881, %v1882
    %v1884 = vrot.slane %v1883, 2
    %v1885 = vmax.f32 %v1883, %v1884
    %v1886 = vrot.slane %v1885, 1
    %v1887 = vmax.f32 %v1885, %v1886
    %v1888 = vsel %vm1866, %v1433, -inf
    %v1889 = vrot.slane %v1888, 4
    %v1890 = vmax.f32 %v1888, %v1889
    %v1891 = vrot.slane %v1890, 2
    %v1892 = vmax.f32 %v1890, %v1891
    %v1893 = vrot.slane %v1892, 1
    %v1894 = vmax.f32 %v1892, %v1893
    %v1895 = vsel %vm1866, %v1441, -inf
    %v1896 = vrot.slane %v1895, 4
    %v1897 = vmax.f32 %v1895, %v1896
    %v1898 = vrot.slane %v1897, 2
    %v1899 = vmax.f32 %v1897, %v1898
    %v1900 = vrot.slane %v1899, 1
    %v1901 = vmax.f32 %v1899, %v1900
    %v1902 = vsel %vm1866, %v1440, -inf
    %v1903 = vrot.slane %v1902, 4
    %v1904 = vmax.f32 %v1902, %v1903
    %v1905 = vrot.slane %v1904, 2
    %v1906 = vmax.f32 %v1904, %v1905
    %v1907 = vrot.slane %v1906, 1
    %v1908 = vmax.f32 %v1906, %v1907
    %v1909 = vsel %vm1866, %v1449, -inf
    %v1910 = vrot.slane %v1909, 4
    %v1911 = vmax.f32 %v1909, %v1910
    %v1912 = vrot.slane %v1911, 2
    %v1913 = vmax.f32 %v1911, %v1912
    %v1914 = vrot.slane %v1913, 1
    %v1915 = vmax.f32 %v1913, %v1914
    %v1916 = vsel %vm1866, %v1457, -inf
    %v1917 = vrot.slane %v1916, 4
    %v1918 = vmax.f32 %v1916, %v1917
    %v1919 = vrot.slane %v1918, 2
    %v1920 = vmax.f32 %v1918, %v1919
    %v1921 = vrot.slane %v1920, 1
    %v1922 = vmax.f32 %v1920, %v1921
    %v1923 = vsel %vm1866, %v1456, -inf
    %v1924 = vrot.slane %v1923, 4
    %v1925 = vmax.f32 %v1923, %v1924
    %v1926 = vrot.slane %v1925, 2
    %v1927 = vmax.f32 %v1925, %v1926
    %v1928 = vrot.slane %v1927, 1
    %v1929 = vmax.f32 %v1927, %v1928
    %v1930 = vsel %vm1866, %v1465, -inf
    %v1931 = vrot.slane %v1930, 4
    %v1932 = vmax.f32 %v1930, %v1931
    %v1933 = vrot.slane %v1932, 2
    %v1934 = vmax.f32 %v1932, %v1933
    %v1935 = vrot.slane %v1934, 1
    %v1936 = vmax.f32 %v1934, %v1935
    %v1937 = vsel %vm1866, %v1473, -inf
    %v1938 = vrot.slane %v1937, 4
    %v1939 = vmax.f32 %v1937, %v1938
    %v1940 = vrot.slane %v1939, 2
    %v1941 = vmax.f32 %v1939, %v1940
    %v1942 = vrot.slane %v1941, 1
    %v1943 = vmax.f32 %v1941, %v1942
    %v1944 = vsel %vm1866, %v1472, -inf
    %v1945 = vrot.slane %v1944, 4
    %v1946 = vmax.f32 %v1944, %v1945
    %v1947 = vrot.slane %v1946, 2
    %v1948 = vmax.f32 %v1946, %v1947
    %v1949 = vrot.slane %v1948, 1
    %v1950 = vmax.f32 %v1948, %v1949
    %v1951 = vsel %vm1866, %v1481, -inf
    %v1952 = vrot.slane %v1951, 4
    %v1953 = vmax.f32 %v1951, %v1952
    %v1954 = vrot.slane %v1953, 2
    %v1955 = vmax.f32 %v1953, %v1954
    %v1956 = vrot.slane %v1955, 1
    %v1957 = vmax.f32 %v1955, %v1956
    %v1958 = vsel %vm1866, %v1489, -inf
    %v1959 = vrot.slane %v1958, 4
    %v1960 = vmax.f32 %v1958, %v1959
    %v1961 = vrot.slane %v1960, 2
    %v1962 = vmax.f32 %v1960, %v1961
    %v1963 = vrot.slane %v1962, 1
    %v1964 = vmax.f32 %v1962, %v1963
    %v1965 = vsel %vm1866, %v1488, -inf
    %v1966 = vrot.slane %v1965, 4
    %v1967 = vmax.f32 %v1965, %v1966
    %v1968 = vrot.slane %v1967, 2
    %v1969 = vmax.f32 %v1967, %v1968
    %v1970 = vrot.slane %v1969, 1
    %v1971 = vmax.f32 %v1969, %v1970
    %v1972 = vsel %vm1866, %v1497, -inf
    %v1973 = vrot.slane %v1972, 4
    %v1974 = vmax.f32 %v1972, %v1973
    %v1975 = vrot.slane %v1974, 2
    %v1976 = vmax.f32 %v1974, %v1975
    %v1977 = vrot.slane %v1976, 1
    %v1978 = vmax.f32 %v1976, %v1977
    %v1979 = vsel %vm1866, %v1505, -inf
    %v1980 = vrot.slane %v1979, 4
    %v1981 = vmax.f32 %v1979, %v1980
    %v1982 = vrot.slane %v1981, 2
    %v1983 = vmax.f32 %v1981, %v1982
    %v1984 = vrot.slane %v1983, 1
    %v1985 = vmax.f32 %v1983, %v1984
    %v1986 = vsel %vm1866, %v1504, -inf
    %v1987 = vrot.slane %v1986, 4
    %v1988 = vmax.f32 %v1986, %v1987
    %v1989 = vrot.slane %v1988, 2
    %v1990 = vmax.f32 %v1988, %v1989
    %v1991 = vrot.slane %v1990, 1
    %v1992 = vmax.f32 %v1990, %v1991
    %v1993 = vsel %vm1866, %v1513, -inf
    %v1994 = vrot.slane %v1993, 4
    %v1995 = vmax.f32 %v1993, %v1994
    %v1996 = vrot.slane %v1995, 2
    %v1997 = vmax.f32 %v1995, %v1996
    %v1998 = vrot.slane %v1997, 1
    %v1999 = vmax.f32 %v1997, %v1998
    %v2000 = vsel %vm1866, %v1521, -inf
    %v2001 = vrot.slane %v2000, 4
    %v2002 = vmax.f32 %v2000, %v2001
    %v2003 = vrot.slane %v2002, 2
    %v2004 = vmax.f32 %v2002, %v2003
    %v2005 = vrot.slane %v2004, 1
    %v2006 = vmax.f32 %v2004, %v2005
    %v2007 = vsel %vm1866, %v1520, -inf
    %v2008 = vrot.slane %v2007, 4
    %v2009 = vmax.f32 %v2007, %v2008
    %v2010 = vrot.slane %v2009, 2
    %v2011 = vmax.f32 %v2009, %v2010
    %v2012 = vrot.slane %v2011, 1
    %v2013 = vmax.f32 %v2011, %v2012
    %v2014 = vsel %vm1866, %v1529, -inf
    %v2015 = vrot.slane %v2014, 4
    %v2016 = vmax.f32 %v2014, %v2015
    %v2017 = vrot.slane %v2016, 2
    %v2018 = vmax.f32 %v2016, %v2017
    %v2019 = vrot.slane %v2018, 1
    %v2020 = vmax.f32 %v2018, %v2019
    %v2021 = vsel %vm1866, %v1537, -inf
    %v2022 = vrot.slane %v2021, 4
    %v2023 = vmax.f32 %v2021, %v2022
    %v2024 = vrot.slane %v2023, 2
    %v2025 = vmax.f32 %v2023, %v2024
    %v2026 = vrot.slane %v2025, 1
    %v2027 = vmax.f32 %v2025, %v2026
    %v2028 = vsel %vm1866, %v1536, -inf
    %v2029 = vrot.slane %v2028, 4
    %v2030 = vmax.f32 %v2028, %v2029
    %v2031 = vrot.slane %v2030, 2
    %v2032 = vmax.f32 %v2030, %v2031
    %v2033 = vrot.slane %v2032, 1
    %v2034 = vmax.f32 %v2032, %v2033
    %v2035 = vsel %vm1866, %v1545, -inf
    %v2036 = vrot.slane %v2035, 4
    %v2037 = vmax.f32 %v2035, %v2036
    %v2038 = vrot.slane %v2037, 2
    %v2039 = vmax.f32 %v2037, %v2038
    %v2040 = vrot.slane %v2039, 1
    %v2041 = vmax.f32 %v2039, %v2040
    %v2042 = vsel %vm1866, %v1553, -inf
    %v2043 = vrot.slane %v2042, 4
    %v2044 = vmax.f32 %v2042, %v2043
    %v2045 = vrot.slane %v2044, 2
    %v2046 = vmax.f32 %v2044, %v2045
    %v2047 = vrot.slane %v2046, 1
    %v2048 = vmax.f32 %v2046, %v2047
    %v2049 = vsel %vm1866, %v1552, -inf
    %v2050 = vrot.slane %v2049, 4
    %v2051 = vmax.f32 %v2049, %v2050
    %v2052 = vrot.slane %v2051, 2
    %v2053 = vmax.f32 %v2051, %v2052
    %v2054 = vrot.slane %v2053, 1
    %v2055 = vmax.f32 %v2053, %v2054
    %v2056 = vsel %vm1866, %v1561, -inf
    %v2057 = vrot.slane %v2056, 4
    %v2058 = vmax.f32 %v2056, %v2057
    %v2059 = vrot.slane %v2058, 2
    %v2060 = vmax.f32 %v2058, %v2059
    %v2061 = vrot.slane %v2060, 1
    %v2062 = vmax.f32 %v2060, %v2061
    %v2063 = vsel %vm1866, %v1569, -inf
    %v2064 = vrot.slane %v2063, 4
    %v2065 = vmax.f32 %v2063, %v2064
    %v2066 = vrot.slane %v2065, 2
    %v2067 = vmax.f32 %v2065, %v2066
    %v2068 = vrot.slane %v2067, 1
    %v2069 = vmax.f32 %v2067, %v2068
    %v2070 = vsel %vm1866, %v1568, -inf
    %v2071 = vrot.slane %v2070, 4
    %v2072 = vmax.f32 %v2070, %v2071
    %v2073 = vrot.slane %v2072, 2
    %v2074 = vmax.f32 %v2072, %v2073
    %v2075 = vrot.slane %v2074, 1
    %v2076 = vmax.f32 %v2074, %v2075
    %v2077 = vsel %vm1866, %v1577, -inf
    %v2078 = vrot.slane %v2077, 4
    %v2079 = vmax.f32 %v2077, %v2078
    %v2080 = vrot.slane %v2079, 2
    %v2081 = vmax.f32 %v2079, %v2080
    %v2082 = vrot.slane %v2081, 1
    %v2083 = vmax.f32 %v2081, %v2082
    %v2084 = vsel %vm1866, %v1585, -inf
    %v2085 = vrot.slane %v2084, 4
    %v2086 = vmax.f32 %v2084, %v2085
    %v2087 = vrot.slane %v2086, 2
    %v2088 = vmax.f32 %v2086, %v2087
    %v2089 = vrot.slane %v2088, 1
    %v2090 = vmax.f32 %v2088, %v2089
    %v2091 = vsel %vm1866, %v1584, -inf
    %v2092 = vrot.slane %v2091, 4
    %v2093 = vmax.f32 %v2091, %v2092
    %v2094 = vrot.slane %v2093, 2
    %v2095 = vmax.f32 %v2093, %v2094
    %v2096 = vrot.slane %v2095, 1
    %v2097 = vmax.f32 %v2095, %v2096
    %v2098 = vsel %vm1866, %v1593, -inf
    %v2099 = vrot.slane %v2098, 4
    %v2100 = vmax.f32 %v2098, %v2099
    %v2101 = vrot.slane %v2100, 2
    %v2102 = vmax.f32 %v2100, %v2101
    %v2103 = vrot.slane %v2102, 1
    %v2104 = vmax.f32 %v2102, %v2103
    %v2105 = vsel %vm1866, %v1601, -inf
    %v2106 = vrot.slane %v2105, 4
    %v2107 = vmax.f32 %v2105, %v2106
    %v2108 = vrot.slane %v2107, 2
    %v2109 = vmax.f32 %v2107, %v2108
    %v2110 = vrot.slane %v2109, 1
    %v2111 = vmax.f32 %v2109, %v2110
    %v2112 = vsel %vm1866, %v1600, -inf
    %v2113 = vrot.slane %v2112, 4
    %v2114 = vmax.f32 %v2112, %v2113
    %v2115 = vrot.slane %v2114, 2
    %v2116 = vmax.f32 %v2114, %v2115
    %v2117 = vrot.slane %v2116, 1
    %v2118 = vmax.f32 %v2116, %v2117
    %v2119 = vsel %vm1866, %v1609, -inf
    %v2120 = vrot.slane %v2119, 4
    %v2121 = vmax.f32 %v2119, %v2120
    %v2122 = vrot.slane %v2121, 2
    %v2123 = vmax.f32 %v2121, %v2122
    %v2124 = vrot.slane %v2123, 1
    %v2125 = vmax.f32 %v2123, %v2124
    %v2126 = vsel %vm1866, %v1617, -inf
    %v2127 = vrot.slane %v2126, 4
    %v2128 = vmax.f32 %v2126, %v2127
    %v2129 = vrot.slane %v2128, 2
    %v2130 = vmax.f32 %v2128, %v2129
    %v2131 = vrot.slane %v2130, 1
    %v2132 = vmax.f32 %v2130, %v2131
    %v2133 = vsel %vm1866, %v1616, -inf
    %v2134 = vrot.slane %v2133, 4
    %v2135 = vmax.f32 %v2133, %v2134
    %v2136 = vrot.slane %v2135, 2
    %v2137 = vmax.f32 %v2135, %v2136
    %v2138 = vrot.slane %v2137, 1
    %v2139 = vmax.f32 %v2137, %v2138
    %v2140 = vsel %vm1866, %v1625, -inf
    %v2141 = vrot.slane %v2140, 4
    %v2142 = vmax.f32 %v2140, %v2141
    %v2143 = vrot.slane %v2142, 2
    %v2144 = vmax.f32 %v2142, %v2143
    %v2145 = vrot.slane %v2144, 1
    %v2146 = vmax.f32 %v2144, %v2145
    %v2147 = vsel %vm1866, %v1633, -inf
    %v2148 = vrot.slane %v2147, 4
    %v2149 = vmax.f32 %v2147, %v2148
    %v2150 = vrot.slane %v2149, 2
    %v2151 = vmax.f32 %v2149, %v2150
    %v2152 = vrot.slane %v2151, 1
    %v2153 = vmax.f32 %v2151, %v2152
    %v2154 = vsel %vm1866, %v1632, -inf
    %v2155 = vrot.slane %v2154, 4
    %v2156 = vmax.f32 %v2154, %v2155
    %v2157 = vrot.slane %v2156, 2
    %v2158 = vmax.f32 %v2156, %v2157
    %v2159 = vrot.slane %v2158, 1
    %v2160 = vmax.f32 %v2158, %v2159
    %v2161 = vsel %vm1866, %v1641, -inf
    %v2162 = vrot.slane %v2161, 4
    %v2163 = vmax.f32 %v2161, %v2162
    %v2164 = vrot.slane %v2163, 2
    %v2165 = vmax.f32 %v2163, %v2164
    %v2166 = vrot.slane %v2165, 1
    %v2167 = vmax.f32 %v2165, %v2166
    %v2168 = vsel %vm1866, %v1649, -inf
    %v2169 = vrot.slane %v2168, 4
    %v2170 = vmax.f32 %v2168, %v2169
    %v2171 = vrot.slane %v2170, 2
    %v2172 = vmax.f32 %v2170, %v2171
    %v2173 = vrot.slane %v2172, 1
    %v2174 = vmax.f32 %v2172, %v2173
    %v2175 = vsel %vm1866, %v1648, -inf
    %v2176 = vrot.slane %v2175, 4
    %v2177 = vmax.f32 %v2175, %v2176
    %v2178 = vrot.slane %v2177, 2
    %v2179 = vmax.f32 %v2177, %v2178
    %v2180 = vrot.slane %v2179, 1
    %v2181 = vmax.f32 %v2179, %v2180
    %v2182 = vsel %vm1866, %v1657, -inf
    %v2183 = vrot.slane %v2182, 4
    %v2184 = vmax.f32 %v2182, %v2183
    %v2185 = vrot.slane %v2184, 2
    %v2186 = vmax.f32 %v2184, %v2185
    %v2187 = vrot.slane %v2186, 1
    %v2188 = vmax.f32 %v2186, %v2187
    %v2189 = vsel %vm1866, %v1665, -inf
    %v2190 = vrot.slane %v2189, 4
    %v2191 = vmax.f32 %v2189, %v2190
    %v2192 = vrot.slane %v2191, 2
    %v2193 = vmax.f32 %v2191, %v2192
    %v2194 = vrot.slane %v2193, 1
    %v2195 = vmax.f32 %v2193, %v2194
    %v2196 = vsel %vm1866, %v1664, -inf
    %v2197 = vrot.slane %v2196, 4
    %v2198 = vmax.f32 %v2196, %v2197
    %v2199 = vrot.slane %v2198, 2
    %v2200 = vmax.f32 %v2198, %v2199
    %v2201 = vrot.slane %v2200, 1
    %v2202 = vmax.f32 %v2200, %v2201
    %v2203 = vsel %vm1866, %v1673, -inf
    %v2204 = vrot.slane %v2203, 4
    %v2205 = vmax.f32 %v2203, %v2204
    %v2206 = vrot.slane %v2205, 2
    %v2207 = vmax.f32 %v2205, %v2206
    %v2208 = vrot.slane %v2207, 1
    %v2209 = vmax.f32 %v2207, %v2208
    %v2210 = vsel %vm1866, %v1681, -inf
    %v2211 = vrot.slane %v2210, 4
    %v2212 = vmax.f32 %v2210, %v2211
    %v2213 = vrot.slane %v2212, 2
    %v2214 = vmax.f32 %v2212, %v2213
    %v2215 = vrot.slane %v2214, 1
    %v2216 = vmax.f32 %v2214, %v2215
    %v2217 = vsel %vm1866, %v1680, -inf
    %v2218 = vrot.slane %v2217, 4
    %v2219 = vmax.f32 %v2217, %v2218
    %v2220 = vrot.slane %v2219, 2
    %v2221 = vmax.f32 %v2219, %v2220
    %v2222 = vrot.slane %v2221, 1
    %v2223 = vmax.f32 %v2221, %v2222
    %v2224 = vsel %vm1866, %v1689, -inf
    %v2225 = vrot.slane %v2224, 4
    %v2226 = vmax.f32 %v2224, %v2225
    %v2227 = vrot.slane %v2226, 2
    %v2228 = vmax.f32 %v2226, %v2227
    %v2229 = vrot.slane %v2228, 1
    %v2230 = vmax.f32 %v2228, %v2229
    %v2231 = vsel %vm1866, %v1697, -inf
    %v2232 = vrot.slane %v2231, 4
    %v2233 = vmax.f32 %v2231, %v2232
    %v2234 = vrot.slane %v2233, 2
    %v2235 = vmax.f32 %v2233, %v2234
    %v2236 = vrot.slane %v2235, 1
    %v2237 = vmax.f32 %v2235, %v2236
    %v2238 = vsel %vm1866, %v1696, -inf
    %v2239 = vrot.slane %v2238, 4
    %v2240 = vmax.f32 %v2238, %v2239
    %v2241 = vrot.slane %v2240, 2
    %v2242 = vmax.f32 %v2240, %v2241
    %v2243 = vrot.slane %v2242, 1
    %v2244 = vmax.f32 %v2242, %v2243
    %v2245 = vsel %vm1866, %v1705, -inf
    %v2246 = vrot.slane %v2245, 4
    %v2247 = vmax.f32 %v2245, %v2246
    %v2248 = vrot.slane %v2247, 2
    %v2249 = vmax.f32 %v2247, %v2248
    %v2250 = vrot.slane %v2249, 1
    %v2251 = vmax.f32 %v2249, %v2250
    %v2252 = vsel %vm1866, %v1713, -inf
    %v2253 = vrot.slane %v2252, 4
    %v2254 = vmax.f32 %v2252, %v2253
    %v2255 = vrot.slane %v2254, 2
    %v2256 = vmax.f32 %v2254, %v2255
    %v2257 = vrot.slane %v2256, 1
    %v2258 = vmax.f32 %v2256, %v2257
    %v2259 = vsel %vm1866, %v1712, -inf
    %v2260 = vrot.slane %v2259, 4
    %v2261 = vmax.f32 %v2259, %v2260
    %v2262 = vrot.slane %v2261, 2
    %v2263 = vmax.f32 %v2261, %v2262
    %v2264 = vrot.slane %v2263, 1
    %v2265 = vmax.f32 %v2263, %v2264
    %v2266 = vsel %vm1866, %v1721, -inf
    %v2267 = vrot.slane %v2266, 4
    %v2268 = vmax.f32 %v2266, %v2267
    %v2269 = vrot.slane %v2268, 2
    %v2270 = vmax.f32 %v2268, %v2269
    %v2271 = vrot.slane %v2270, 1
    %v2272 = vmax.f32 %v2270, %v2271
    %v2273 = vsel %vm1866, %v1729, -inf
    %v2274 = vrot.slane %v2273, 4
    %v2275 = vmax.f32 %v2273, %v2274
    %v2276 = vrot.slane %v2275, 2
    %v2277 = vmax.f32 %v2275, %v2276
    %v2278 = vrot.slane %v2277, 1
    %v2279 = vmax.f32 %v2277, %v2278
    %v2280 = vsel %vm1866, %v1728, -inf
    %v2281 = vrot.slane %v2280, 4
    %v2282 = vmax.f32 %v2280, %v2281
    %v2283 = vrot.slane %v2282, 2
    %v2284 = vmax.f32 %v2282, %v2283
    %v2285 = vrot.slane %v2284, 1
    %v2286 = vmax.f32 %v2284, %v2285
    %v2287 = vsel %vm1866, %v1737, -inf
    %v2288 = vrot.slane %v2287, 4
    %v2289 = vmax.f32 %v2287, %v2288
    %v2290 = vrot.slane %v2289, 2
    %v2291 = vmax.f32 %v2289, %v2290
    %v2292 = vrot.slane %v2291, 1
    %v2293 = vmax.f32 %v2291, %v2292
    %v2294 = vsel %vm1866, %v1745, -inf
    %v2295 = vrot.slane %v2294, 4
    %v2296 = vmax.f32 %v2294, %v2295
    %v2297 = vrot.slane %v2296, 2
    %v2298 = vmax.f32 %v2296, %v2297
    %v2299 = vrot.slane %v2298, 1
    %v2300 = vmax.f32 %v2298, %v2299
    %v2301 = vsel %vm1866, %v1744, -inf
    %v2302 = vrot.slane %v2301, 4
    %v2303 = vmax.f32 %v2301, %v2302
    %v2304 = vrot.slane %v2303, 2
    %v2305 = vmax.f32 %v2303, %v2304
    %v2306 = vrot.slane %v2305, 1
    %v2307 = vmax.f32 %v2305, %v2306
    %v2308 = vsel %vm1866, %v1753, -inf
    %v2309 = vrot.slane %v2308, 4
    %v2310 = vmax.f32 %v2308, %v2309
    %v2311 = vrot.slane %v2310, 2
    %v2312 = vmax.f32 %v2310, %v2311
    %v2313 = vrot.slane %v2312, 1
    %v2314 = vmax.f32 %v2312, %v2313
    %v2315 = vsel %vm1866, %v1761, -inf
    %v2316 = vrot.slane %v2315, 4
    %v2317 = vmax.f32 %v2315, %v2316
    %v2318 = vrot.slane %v2317, 2
    %v2319 = vmax.f32 %v2317, %v2318
    %v2320 = vrot.slane %v2319, 1
    %v2321 = vmax.f32 %v2319, %v2320
    %v2322 = vsel %vm1866, %v1760, -inf
    %v2323 = vrot.slane %v2322, 4
    %v2324 = vmax.f32 %v2322, %v2323
    %v2325 = vrot.slane %v2324, 2
    %v2326 = vmax.f32 %v2324, %v2325
    %v2327 = vrot.slane %v2326, 1
    %v2328 = vmax.f32 %v2326, %v2327
    %v2329 = vsel %vm1866, %v1769, -inf
    %v2330 = vrot.slane %v2329, 4
    %v2331 = vmax.f32 %v2329, %v2330
    %v2332 = vrot.slane %v2331, 2
    %v2333 = vmax.f32 %v2331, %v2332
    %v2334 = vrot.slane %v2333, 1
    %v2335 = vmax.f32 %v2333, %v2334
    %v2336 = vsel %vm1866, %v1777, -inf
    %v2337 = vrot.slane %v2336, 4
    %v2338 = vmax.f32 %v2336, %v2337
    %v2339 = vrot.slane %v2338, 2
    %v2340 = vmax.f32 %v2338, %v2339
    %v2341 = vrot.slane %v2340, 1
    %v2342 = vmax.f32 %v2340, %v2341
    %v2343 = vsel %vm1866, %v1776, -inf
    %v2344 = vrot.slane %v2343, 4
    %v2345 = vmax.f32 %v2343, %v2344
    %v2346 = vrot.slane %v2345, 2
    %v2347 = vmax.f32 %v2345, %v2346
    %v2348 = vrot.slane %v2347, 1
    %v2349 = vmax.f32 %v2347, %v2348
    %v2350 = vsel %vm1866, %v1785, -inf
    %v2351 = vrot.slane %v2350, 4
    %v2352 = vmax.f32 %v2350, %v2351
    %v2353 = vrot.slane %v2352, 2
    %v2354 = vmax.f32 %v2352, %v2353
    %v2355 = vrot.slane %v2354, 1
    %v2356 = vmax.f32 %v2354, %v2355
    %v2357 = vsel %vm1866, %v1793, -inf
    %v2358 = vrot.slane %v2357, 4
    %v2359 = vmax.f32 %v2357, %v2358
    %v2360 = vrot.slane %v2359, 2
    %v2361 = vmax.f32 %v2359, %v2360
    %v2362 = vrot.slane %v2361, 1
    %v2363 = vmax.f32 %v2361, %v2362
    %v2364 = vsel %vm1866, %v1792, -inf
    %v2365 = vrot.slane %v2364, 4
    %v2366 = vmax.f32 %v2364, %v2365
    %v2367 = vrot.slane %v2366, 2
    %v2368 = vmax.f32 %v2366, %v2367
    %v2369 = vrot.slane %v2368, 1
    %v2370 = vmax.f32 %v2368, %v2369
    %v2371 = vpack.c.bf16 %v1873, %v1873
    %v2372 = vpack.c.bf16 %v1880, %v1880
    %v2373 = vpack.c.bf16 %v1887, %v1887
    %v2374 = vpack.c.bf16 %v1894, %v1894
    %v2375 = vpack.c.bf16 %v1901, %v1901
    %v2376 = vpack.c.bf16 %v1908, %v1908
    %v2377 = vpack.c.bf16 %v1915, %v1915
    %v2378 = vpack.c.bf16 %v1922, %v1922
    %v2379 = vpack.c.bf16 %v1929, %v1929
    %v2380 = vpack.c.bf16 %v1936, %v1936
    %v2381 = vpack.c.bf16 %v1943, %v1943
    %v2382 = vpack.c.bf16 %v1950, %v1950
    %v2383 = vpack.c.bf16 %v1957, %v1957
    %v2384 = vpack.c.bf16 %v1964, %v1964
    %v2385 = vpack.c.bf16 %v1971, %v1971
    %v2386 = vpack.c.bf16 %v1978, %v1978
    %v2387 = vpack.c.bf16 %v1985, %v1985
    %v2388 = vpack.c.bf16 %v1992, %v1992
    %v2389 = vpack.c.bf16 %v1999, %v1999
    %v2390 = vpack.c.bf16 %v2006, %v2006
    %v2391 = vpack.c.bf16 %v2013, %v2013
    %v2392 = vpack.c.bf16 %v2020, %v2020
    %v2393 = vpack.c.bf16 %v2027, %v2027
    %v2394 = vpack.c.bf16 %v2034, %v2034
    %v2395 = vpack.c.bf16 %v2041, %v2041
    %v2396 = vpack.c.bf16 %v2048, %v2048
    %v2397 = vpack.c.bf16 %v2055, %v2055
    %v2398 = vpack.c.bf16 %v2062, %v2062
    %v2399 = vpack.c.bf16 %v2069, %v2069
    %v2400 = vpack.c.bf16 %v2076, %v2076
    %v2401 = vpack.c.bf16 %v2083, %v2083
    %v2402 = vpack.c.bf16 %v2090, %v2090
    %v2403 = vpack.c.bf16 %v2097, %v2097
    %v2404 = vpack.c.bf16 %v2104, %v2104
    %v2405 = vpack.c.bf16 %v2111, %v2111
    %v2406 = vpack.c.bf16 %v2118, %v2118
    %v2407 = vpack.c.bf16 %v2125, %v2125
    %v2408 = vpack.c.bf16 %v2132, %v2132
    %v2409 = vpack.c.bf16 %v2139, %v2139
    %v2410 = vpack.c.bf16 %v2146, %v2146
    %v2411 = vpack.c.bf16 %v2153, %v2153
    %v2412 = vpack.c.bf16 %v2160, %v2160
    %v2413 = vpack.c.bf16 %v2167, %v2167
    %v2414 = vpack.c.bf16 %v2174, %v2174
    %v2415 = vpack.c.bf16 %v2181, %v2181
    %v2416 = vpack.c.bf16 %v2188, %v2188
    %v2417 = vpack.c.bf16 %v2195, %v2195
    %v2418 = vpack.c.bf16 %v2202, %v2202
    %v2419 = vpack.c.bf16 %v2209, %v2209
    %v2420 = vpack.c.bf16 %v2216, %v2216
    %v2421 = vpack.c.bf16 %v2223, %v2223
    %v2422 = vpack.c.bf16 %v2230, %v2230
    %v2423 = vpack.c.bf16 %v2237, %v2237
    %v2424 = vpack.c.bf16 %v2244, %v2244
    %v2425 = vpack.c.bf16 %v2251, %v2251
    %v2426 = vpack.c.bf16 %v2258, %v2258
    %v2427 = vpack.c.bf16 %v2265, %v2265
    %v2428 = vpack.c.bf16 %v2272, %v2272
    %v2429 = vpack.c.bf16 %v2279, %v2279
    %v2430 = vpack.c.bf16 %v2286, %v2286
    %v2431 = vpack.c.bf16 %v2293, %v2293
    %v2432 = vpack.c.bf16 %v2300, %v2300
    %v2433 = vpack.c.bf16 %v2307, %v2307
    %v2434 = vpack.c.bf16 %v2314, %v2314
    %v2435 = vpack.c.bf16 %v2321, %v2321
    %v2436 = vpack.c.bf16 %v2328, %v2328
    %v2437 = vpack.c.bf16 %v2335, %v2335
    %v2438 = vpack.c.bf16 %v2342, %v2342
    %v2439 = vpack.c.bf16 %v2349, %v2349
    %v2440 = vpack.c.bf16 %v2356, %v2356
    %v2441 = vpack.c.bf16 %v2363, %v2363
    %v2442 = vpack.c.bf16 %v2370, %v2370
    %v2503 = vunpack.c.l.b16 %v2371
    %v2504 = vunpack.c.l.b16 %v2372
    %v2505 = vunpack.c.l.b16 %v2373
    %v2506 = vunpack.c.l.b16 %v2374
    %v2507 = vunpack.c.l.b16 %v2375
    %v2508 = vunpack.c.l.b16 %v2376
    %v2509 = vunpack.c.l.b16 %v2377
    %v2510 = vunpack.c.l.b16 %v2378
    %v2511 = vunpack.c.l.b16 %v2379
    %v2512 = vunpack.c.l.b16 %v2380
    %v2513 = vunpack.c.l.b16 %v2381
    %v2514 = vunpack.c.l.b16 %v2382
    %v2515 = vunpack.c.l.b16 %v2383
    %v2516 = vunpack.c.l.b16 %v2384
    %v2517 = vunpack.c.l.b16 %v2385
    %v2518 = vunpack.c.l.b16 %v2386
    %v2519 = vunpack.c.l.b16 %v2387
    %v2520 = vunpack.c.l.b16 %v2388
    %v2521 = vunpack.c.l.b16 %v2389
    %v2522 = vunpack.c.l.b16 %v2390
    %v2523 = vunpack.c.l.b16 %v2391
    %v2524 = vunpack.c.l.b16 %v2392
    %v2525 = vunpack.c.l.b16 %v2393
    %v2526 = vunpack.c.l.b16 %v2394
    %v2527 = vunpack.c.l.b16 %v2395
    %v2528 = vunpack.c.l.b16 %v2396
    %v2529 = vunpack.c.l.b16 %v2397
    %v2530 = vunpack.c.l.b16 %v2398
    %v2531 = vunpack.c.l.b16 %v2399
    %v2532 = vunpack.c.l.b16 %v2400
    %v2533 = vunpack.c.l.b16 %v2407
    %v2534 = vunpack.c.l.b16 %v2408
    %v2535 = vunpack.c.l.b16 %v2409
    %v2536 = vunpack.c.l.b16 %v2410
    %v2537 = vunpack.c.l.b16 %v2411
    %v2538 = vunpack.c.l.b16 %v2412
    %v2539 = vunpack.c.l.b16 %v2413
    %v2540 = vunpack.c.l.b16 %v2414
    %v2541 = vunpack.c.l.b16 %v2415
    %v2542 = vunpack.c.l.b16 %v2416
    %v2543 = vunpack.c.l.b16 %v2417
    %v2544 = vunpack.c.l.b16 %v2418
    %v2545 = vunpack.c.l.b16 %v2419
    %v2546 = vunpack.c.l.b16 %v2420
    %v2547 = vunpack.c.l.b16 %v2421
    %v2548 = vunpack.c.l.b16 %v2422
    %v2549 = vunpack.c.l.b16 %v2423
    %v2550 = vunpack.c.l.b16 %v2424
    %v2551 = vunpack.c.l.b16 %v2425
    %v2552 = vunpack.c.l.b16 %v2426
    %v2553 = vunpack.c.l.b16 %v2427
    %v2554 = vunpack.c.l.b16 %v2428
    %v2555 = vunpack.c.l.b16 %v2429
    %v2556 = vunpack.c.l.b16 %v2430
    %v2557 = vunpack.c.l.b16 %v2431
    %v2558 = vunpack.c.l.b16 %v2432
    %v2559 = vunpack.c.l.b16 %v2433
    %v2560 = vunpack.c.l.b16 %v2434
    %v2561 = vunpack.c.l.b16 %v2435
    %v2562 = vunpack.c.l.b16 %v2436
    %vm2563 = vcmask 1041409
    %v2564 = vsel %vm2563, %v2506, %v2503
    %vm2565 = vcmask 1042434
    %v2566 = vsel %vm2565, %v2509, %v2564
    %vm2567 = vcmask 1043459
    %v2568 = vsel %vm2567, %v2512, %v2566
    %vm2569 = vcmask 1044484
    %v2570 = vsel %vm2569, %v2515, %v2568
    %vm2571 = vcmask 1045509
    %v2572 = vsel %vm2571, %v2518, %v2570
    %vm2573 = vcmask 1046534
    %v2574 = vsel %vm2573, %v2521, %v2572
    %vm2575 = vcmask 1047559
    %v2576 = vsel %vm2575, %v2524, %v2574
    %v2577 = vsel %vm2563, %v2507, %v2504
    %v2578 = vsel %vm2565, %v2510, %v2577
    %v2579 = vsel %vm2567, %v2513, %v2578
    %v2580 = vsel %vm2569, %v2516, %v2579
    %v2581 = vsel %vm2571, %v2519, %v2580
    %v2582 = vsel %vm2573, %v2522, %v2581
    %v2583 = vsel %vm2575, %v2525, %v2582
    %v2584 = vsel %vm2563, %v2508, %v2505
    %v2585 = vsel %vm2565, %v2511, %v2584
    %v2586 = vsel %vm2567, %v2514, %v2585
    %v2587 = vsel %vm2569, %v2517, %v2586
    %v2588 = vsel %vm2571, %v2520, %v2587
    %v2589 = vsel %vm2573, %v2523, %v2588
    %v2590 = vsel %vm2575, %v2526, %v2589
    %v2591 = vsel %vm2563, %v2530, %v2527
    %v2592 = vsel %vm2563, %v2531, %v2528
    %v2593 = vsel %vm2563, %v2532, %v2529
    %v2594 = vsel %vm2563, %v2536, %v2533
    %v2595 = vsel %vm2565, %v2539, %v2594
    %v2596 = vsel %vm2567, %v2542, %v2595
    %v2597 = vsel %vm2569, %v2545, %v2596
    %v2598 = vsel %vm2571, %v2548, %v2597
    %v2599 = vsel %vm2573, %v2551, %v2598
    %v2600 = vsel %vm2575, %v2554, %v2599
    %v2601 = vsel %vm2563, %v2537, %v2534
    %v2602 = vsel %vm2565, %v2540, %v2601
    %v2603 = vsel %vm2567, %v2543, %v2602
    %v2604 = vsel %vm2569, %v2546, %v2603
    %v2605 = vsel %vm2571, %v2549, %v2604
    %v2606 = vsel %vm2573, %v2552, %v2605
    %v2607 = vsel %vm2575, %v2555, %v2606
    %v2608 = vsel %vm2563, %v2538, %v2535
    %v2609 = vsel %vm2565, %v2541, %v2608
    %v2610 = vsel %vm2567, %v2544, %v2609
    %v2611 = vsel %vm2569, %v2547, %v2610
    %v2612 = vsel %vm2571, %v2550, %v2611
    %v2613 = vsel %vm2573, %v2553, %v2612
    %v2614 = vsel %vm2575, %v2556, %v2613
    %v2615 = vsel %vm2563, %v2560, %v2557
    %v2616 = vsel %vm2563, %v2561, %v2558
    %v2617 = vsel %vm2563, %v2562, %v2559
    %v2618 = vpack.c.b16 %v2591, %v2576
    %v2619 = vpack.c.b16 %v2592, %v2583
    %v2620 = vpack.c.b16 %v2593, %v2590
    %v2621 = vpack.c.b16 %v2615, %v2600
    %v2622 = vpack.c.b16 %v2616, %v2607
    %v2623 = vpack.c.b16 %v2617, %v2614
    %v2630 = vunpack.c.l.b16 %v2401
    %v2631 = vunpack.c.l.b16 %v2402
    %v2632 = vunpack.c.l.b16 %v2403
    %v2633 = vunpack.c.l.b16 %v2437
    %v2634 = vunpack.c.l.b16 %v2438
    %v2635 = vunpack.c.l.b16 %v2439
    %v2636 = vsel %vm2563, %v2509, %v2506
    %v2637 = vsel %vm2565, %v2512, %v2636
    %v2638 = vsel %vm2567, %v2515, %v2637
    %v2639 = vsel %vm2569, %v2518, %v2638
    %v2640 = vsel %vm2571, %v2521, %v2639
    %v2641 = vsel %vm2573, %v2524, %v2640
    %v2642 = vsel %vm2575, %v2527, %v2641
    %v2643 = vsel %vm2563, %v2510, %v2507
    %v2644 = vsel %vm2565, %v2513, %v2643
    %v2645 = vsel %vm2567, %v2516, %v2644
    %v2646 = vsel %vm2569, %v2519, %v2645
    %v2647 = vsel %vm2571, %v2522, %v2646
    %v2648 = vsel %vm2573, %v2525, %v2647
    %v2649 = vsel %vm2575, %v2528, %v2648
    %v2650 = vsel %vm2563, %v2511, %v2508
    %v2651 = vsel %vm2565, %v2514, %v2650
    %v2652 = vsel %vm2567, %v2517, %v2651
    %v2653 = vsel %vm2569, %v2520, %v2652
    %v2654 = vsel %vm2571, %v2523, %v2653
    %v2655 = vsel %vm2573, %v2526, %v2654
    %v2656 = vsel %vm2575, %v2529, %v2655
    %v2657 = vsel %vm2563, %v2630, %v2530
    %v2658 = vsel %vm2563, %v2631, %v2531
    %v2659 = vsel %vm2563, %v2632, %v2532
    %v2660 = vsel %vm2563, %v2539, %v2536
    %v2661 = vsel %vm2565, %v2542, %v2660
    %v2662 = vsel %vm2567, %v2545, %v2661
    %v2663 = vsel %vm2569, %v2548, %v2662
    %v2664 = vsel %vm2571, %v2551, %v2663
    %v2665 = vsel %vm2573, %v2554, %v2664
    %v2666 = vsel %vm2575, %v2557, %v2665
    %v2667 = vsel %vm2563, %v2540, %v2537
    %v2668 = vsel %vm2565, %v2543, %v2667
    %v2669 = vsel %vm2567, %v2546, %v2668
    %v2670 = vsel %vm2569, %v2549, %v2669
    %v2671 = vsel %vm2571, %v2552, %v2670
    %v2672 = vsel %vm2573, %v2555, %v2671
    %v2673 = vsel %vm2575, %v2558, %v2672
    %v2674 = vsel %vm2563, %v2541, %v2538
    %v2675 = vsel %vm2565, %v2544, %v2674
    %v2676 = vsel %vm2567, %v2547, %v2675
    %v2677 = vsel %vm2569, %v2550, %v2676
    %v2678 = vsel %vm2571, %v2553, %v2677
    %v2679 = vsel %vm2573, %v2556, %v2678
    %v2680 = vsel %vm2575, %v2559, %v2679
    %v2681 = vsel %vm2563, %v2633, %v2560
    %v2682 = vsel %vm2563, %v2634, %v2561
    %v2683 = vsel %vm2563, %v2635, %v2562
    %v2684 = vpack.c.b16 %v2657, %v2642
    %v2685 = vpack.c.b16 %v2658, %v2649
    %v2686 = vpack.c.b16 %v2659, %v2656
    %v2687 = vpack.c.b16 %v2681, %v2666
    %v2688 = vpack.c.b16 %v2682, %v2673
    %v2689 = vpack.c.b16 %v2683, %v2680
    %v2696 = vunpack.c.l.b16 %v2404
    %v2697 = vunpack.c.l.b16 %v2405
    %v2698 = vunpack.c.l.b16 %v2406
    %v2699 = vunpack.c.l.b16 %v2440
    %v2700 = vunpack.c.l.b16 %v2441
    %v2701 = vunpack.c.l.b16 %v2442
    %v2702 = vsel %vm2563, %v2512, %v2509
    %v2703 = vsel %vm2565, %v2515, %v2702
    %v2704 = vsel %vm2567, %v2518, %v2703
    %v2705 = vsel %vm2569, %v2521, %v2704
    %v2706 = vsel %vm2571, %v2524, %v2705
    %v2707 = vsel %vm2573, %v2527, %v2706
    %v2708 = vsel %vm2575, %v2530, %v2707
    %v2709 = vsel %vm2563, %v2513, %v2510
    %v2710 = vsel %vm2565, %v2516, %v2709
    %v2711 = vsel %vm2567, %v2519, %v2710
    %v2712 = vsel %vm2569, %v2522, %v2711
    %v2713 = vsel %vm2571, %v2525, %v2712
    %v2714 = vsel %vm2573, %v2528, %v2713
    %v2715 = vsel %vm2575, %v2531, %v2714
    %v2716 = vsel %vm2563, %v2514, %v2511
    %v2717 = vsel %vm2565, %v2517, %v2716
    %v2718 = vsel %vm2567, %v2520, %v2717
    %v2719 = vsel %vm2569, %v2523, %v2718
    %v2720 = vsel %vm2571, %v2526, %v2719
    %v2721 = vsel %vm2573, %v2529, %v2720
    %v2722 = vsel %vm2575, %v2532, %v2721
    %v2723 = vsel %vm2563, %v2696, %v2630
    %v2724 = vsel %vm2563, %v2697, %v2631
    %v2725 = vsel %vm2563, %v2698, %v2632
    %v2726 = vsel %vm2563, %v2542, %v2539
    %v2727 = vsel %vm2565, %v2545, %v2726
    %v2728 = vsel %vm2567, %v2548, %v2727
    %v2729 = vsel %vm2569, %v2551, %v2728
    %v2730 = vsel %vm2571, %v2554, %v2729
    %v2731 = vsel %vm2573, %v2557, %v2730
    %v2732 = vsel %vm2575, %v2560, %v2731
    %v2733 = vsel %vm2563, %v2543, %v2540
    %v2734 = vsel %vm2565, %v2546, %v2733
    %v2735 = vsel %vm2567, %v2549, %v2734
    %v2736 = vsel %vm2569, %v2552, %v2735
    %v2737 = vsel %vm2571, %v2555, %v2736
    %v2738 = vsel %vm2573, %v2558, %v2737
    %v2739 = vsel %vm2575, %v2561, %v2738
    %v2740 = vsel %vm2563, %v2544, %v2541
    %v2741 = vsel %vm2565, %v2547, %v2740
    %v2742 = vsel %vm2567, %v2550, %v2741
    %v2743 = vsel %vm2569, %v2553, %v2742
    %v2744 = vsel %vm2571, %v2556, %v2743
    %v2745 = vsel %vm2573, %v2559, %v2744
    %v2746 = vsel %vm2575, %v2562, %v2745
    %v2747 = vsel %vm2563, %v2699, %v2633
    %v2748 = vsel %vm2563, %v2700, %v2634
    %v2749 = vsel %vm2563, %v2701, %v2635
    %v2750 = vpack.c.b16 %v2723, %v2708
    %v2751 = vpack.c.b16 %v2724, %v2715
    %v2752 = vpack.c.b16 %v2725, %v2722
    %v2753 = vpack.c.b16 %v2747, %v2732
    %v2754 = vpack.c.b16 %v2748, %v2739
    %v2755 = vpack.c.b16 %v2749, %v2746
    %v2756 = vcombine.low %v2618, %v2619
    %v2757 = vcombine.high %v2618, %v2619
    %v2758 = vcombine.low %v2620, %v2684
    %v2759 = vcombine.high %v2620, %v2684
    %v2760 = vcombine.low %v2685, %v2686
    %v2761 = vcombine.high %v2685, %v2686
    %v2762 = vcombine.low %v2750, %v2751
    %v2763 = vcombine.high %v2750, %v2751
    %v2765 = vunpack.c.l.s4 1966171168
    %v2766 = vunpack.c.0.s8 %v2765
    %v2767 = vlaneseq
    %v2768 = vshrl.u32 %v2767, 7
    %v2769 = vsub.s32 %v2766, %v2768
    %v2770 = vrot.slane %v2756, %v2769
    %v2772 = vunpack.c.l.s4 1966171168
    %v2773 = vunpack.c.0.s8 %v2772
    %v2774 = vlaneseq
    %v2775 = vshrl.u32 %v2774, 7
    %v2776 = vsub.s32 %v2773, %v2775
    %v2777 = vrot.slane %v2757, %v2776
    %v2779 = vunpack.c.l.s4 1966171168
    %v2780 = vunpack.c.0.s8 %v2779
    %v2781 = vlaneseq
    %v2782 = vshrl.u32 %v2781, 7
    %v2783 = vsub.s32 %v2780, %v2782
    %v2784 = vrot.slane %v2758, %v2783
    %v2786 = vunpack.c.l.s4 1966171168
    %v2787 = vunpack.c.0.s8 %v2786
    %v2788 = vlaneseq
    %v2789 = vshrl.u32 %v2788, 7
    %v2790 = vsub.s32 %v2787, %v2789
    %v2791 = vrot.slane %v2759, %v2790
    %v2793 = vunpack.c.l.s4 1966171168
    %v2794 = vunpack.c.0.s8 %v2793
    %v2795 = vlaneseq
    %v2796 = vshrl.u32 %v2795, 7
    %v2797 = vsub.s32 %v2794, %v2796
    %v2798 = vrot.slane %v2760, %v2797
    %v2800 = vunpack.c.l.s4 1966171168
    %v2801 = vunpack.c.0.s8 %v2800
    %v2802 = vlaneseq
    %v2803 = vshrl.u32 %v2802, 7
    %v2804 = vsub.s32 %v2801, %v2803
    %v2805 = vrot.slane %v2761, %v2804
    %v2807 = vunpack.c.l.s4 1966171168
    %v2808 = vunpack.c.0.s8 %v2807
    %v2809 = vlaneseq
    %v2810 = vshrl.u32 %v2809, 7
    %v2811 = vsub.s32 %v2808, %v2810
    %v2812 = vrot.slane %v2762, %v2811
    %v2814 = vunpack.c.l.s4 1966171168
    %v2815 = vunpack.c.0.s8 %v2814
    %v2816 = vlaneseq
    %v2817 = vshrl.u32 %v2816, 7
    %v2818 = vsub.s32 %v2815, %v2817
    %v2819 = vrot.slane %v2763, %v2818
    %v2820 = vcombine.low %v2770, %v2784
    %v2821 = vcombine.high %v2770, %v2784
    %v2822 = vcombine.low %v2777, %v2791
    %v2823 = vcombine.low %v2798, %v2812
    %v2824 = vcombine.high %v2798, %v2812
    %v2825 = vcombine.low %v2805, %v2819
    %v2827 = vunpack.c.l.s4 1966171168
    %v2828 = vunpack.c.0.s8 %v2827
    %v2829 = vlaneseq
    %v2830 = vshrl.u32 %v2829, 7
    %v2831 = vsub.s32 %v2828, %v2830
    %v2832 = vrot.slane %v2820, %v2831
    %v2834 = vunpack.c.l.s4 1966171168
    %v2835 = vunpack.c.0.s8 %v2834
    %v2836 = vlaneseq
    %v2837 = vshrl.u32 %v2836, 7
    %v2838 = vsub.s32 %v2835, %v2837
    %v2839 = vrot.slane %v2822, %v2838
    %v2841 = vunpack.c.l.s4 1966171168
    %v2842 = vunpack.c.0.s8 %v2841
    %v2843 = vlaneseq
    %v2844 = vshrl.u32 %v2843, 7
    %v2845 = vsub.s32 %v2842, %v2844
    %v2846 = vrot.slane %v2821, %v2845
    %v2848 = vunpack.c.l.s4 1966171168
    %v2849 = vunpack.c.0.s8 %v2848
    %v2850 = vlaneseq
    %v2851 = vshrl.u32 %v2850, 7
    %v2852 = vsub.s32 %v2849, %v2851
    %v2853 = vrot.slane %v2823, %v2852
    %v2855 = vunpack.c.l.s4 1966171168
    %v2856 = vunpack.c.0.s8 %v2855
    %v2857 = vlaneseq
    %v2858 = vshrl.u32 %v2857, 7
    %v2859 = vsub.s32 %v2856, %v2858
    %v2860 = vrot.slane %v2825, %v2859
    %v2862 = vunpack.c.l.s4 1966171168
    %v2863 = vunpack.c.0.s8 %v2862
    %v2864 = vlaneseq
    %v2865 = vshrl.u32 %v2864, 7
    %v2866 = vsub.s32 %v2863, %v2865
    %v2867 = vrot.slane %v2824, %v2866
    %v2868 = vcombine.low %v2832, %v2853
    %v2869 = vcombine.high %v2832, %v2853
    %v2870 = vcombine.low %v2839, %v2860
    %v2871 = vcombine.low %v2846, %v2867
    %v2872 = vcombine.high %v2846, %v2867
    %v2873 = vcombine.high %v2752, %v2752
    %v2875 = vunpack.c.l.s4 1966171168
    %v2876 = vunpack.c.0.s8 %v2875
    %v2877 = vlaneseq
    %v2878 = vshrl.u32 %v2877, 7
    %v2879 = vsub.s32 %v2876, %v2878
    %v2880 = vrot.slane %v2752, %v2879
    %v2882 = vunpack.c.l.s4 1966171168
    %v2883 = vunpack.c.0.s8 %v2882
    %v2884 = vlaneseq
    %v2885 = vshrl.u32 %v2884, 7
    %v2886 = vsub.s32 %v2883, %v2885
    %v2887 = vrot.slane %v2873, %v2886
    %v2888 = vcombine.high %v2880, %v2880
    %v2890 = vunpack.c.l.s4 1966171168
    %v2891 = vunpack.c.0.s8 %v2890
    %v2892 = vlaneseq
    %v2893 = vshrl.u32 %v2892, 7
    %v2894 = vsub.s32 %v2891, %v2893
    %v2895 = vrot.slane %v2880, %v2894
    %v2897 = vunpack.c.l.s4 1966171168
    %v2898 = vunpack.c.0.s8 %v2897
    %v2899 = vlaneseq
    %v2900 = vshrl.u32 %v2899, 7
    %v2901 = vsub.s32 %v2898, %v2900
    %v2902 = vrot.slane %v2887, %v2901
    %v2904 = vunpack.c.l.s4 1966171168
    %v2905 = vunpack.c.0.s8 %v2904
    %v2906 = vlaneseq
    %v2907 = vshrl.u32 %v2906, 7
    %v2908 = vsub.s32 %v2905, %v2907
    %v2909 = vrot.slane %v2888, %v2908
    %v2910 = vcombine.high %v2895, %v2895
    %v2911 = vcombine.high %v2909, %v2909
    %v2912 = vcombine.low %v2621, %v2622
    %v2913 = vcombine.high %v2621, %v2622
    %v2914 = vcombine.low %v2623, %v2687
    %v2915 = vcombine.high %v2623, %v2687
    %v2916 = vcombine.low %v2688, %v2689
    %v2917 = vcombine.high %v2688, %v2689
    %v2918 = vcombine.low %v2753, %v2754
    %v2919 = vcombine.high %v2753, %v2754
    %v2921 = vunpack.c.l.s4 1966171168
    %v2922 = vunpack.c.0.s8 %v2921
    %v2923 = vlaneseq
    %v2924 = vshrl.u32 %v2923, 7
    %v2925 = vsub.s32 %v2922, %v2924
    %v2926 = vrot.slane %v2912, %v2925
    %v2928 = vunpack.c.l.s4 1966171168
    %v2929 = vunpack.c.0.s8 %v2928
    %v2930 = vlaneseq
    %v2931 = vshrl.u32 %v2930, 7
    %v2932 = vsub.s32 %v2929, %v2931
    %v2933 = vrot.slane %v2913, %v2932
    %v2935 = vunpack.c.l.s4 1966171168
    %v2936 = vunpack.c.0.s8 %v2935
    %v2937 = vlaneseq
    %v2938 = vshrl.u32 %v2937, 7
    %v2939 = vsub.s32 %v2936, %v2938
    %v2940 = vrot.slane %v2914, %v2939
    %v2942 = vunpack.c.l.s4 1966171168
    %v2943 = vunpack.c.0.s8 %v2942
    %v2944 = vlaneseq
    %v2945 = vshrl.u32 %v2944, 7
    %v2946 = vsub.s32 %v2943, %v2945
    %v2947 = vrot.slane %v2915, %v2946
    %v2949 = vunpack.c.l.s4 1966171168
    %v2950 = vunpack.c.0.s8 %v2949
    %v2951 = vlaneseq
    %v2952 = vshrl.u32 %v2951, 7
    %v2953 = vsub.s32 %v2950, %v2952
    %v2954 = vrot.slane %v2916, %v2953
    %v2956 = vunpack.c.l.s4 1966171168
    %v2957 = vunpack.c.0.s8 %v2956
    %v2958 = vlaneseq
    %v2959 = vshrl.u32 %v2958, 7
    %v2960 = vsub.s32 %v2957, %v2959
    %v2961 = vrot.slane %v2917, %v2960
    %v2963 = vunpack.c.l.s4 1966171168
    %v2964 = vunpack.c.0.s8 %v2963
    %v2965 = vlaneseq
    %v2966 = vshrl.u32 %v2965, 7
    %v2967 = vsub.s32 %v2964, %v2966
    %v2968 = vrot.slane %v2918, %v2967
    %v2970 = vunpack.c.l.s4 1966171168
    %v2971 = vunpack.c.0.s8 %v2970
    %v2972 = vlaneseq
    %v2973 = vshrl.u32 %v2972, 7
    %v2974 = vsub.s32 %v2971, %v2973
    %v2975 = vrot.slane %v2919, %v2974
    %v2976 = vcombine.low %v2926, %v2940
    %v2977 = vcombine.high %v2926, %v2940
    %v2978 = vcombine.low %v2933, %v2947
    %v2979 = vcombine.low %v2954, %v2968
    %v2980 = vcombine.high %v2954, %v2968
    %v2981 = vcombine.low %v2961, %v2975
    %v2983 = vunpack.c.l.s4 1966171168
    %v2984 = vunpack.c.0.s8 %v2983
    %v2985 = vlaneseq
    %v2986 = vshrl.u32 %v2985, 7
    %v2987 = vsub.s32 %v2984, %v2986
    %v2988 = vrot.slane %v2976, %v2987
    %v2990 = vunpack.c.l.s4 1966171168
    %v2991 = vunpack.c.0.s8 %v2990
    %v2992 = vlaneseq
    %v2993 = vshrl.u32 %v2992, 7
    %v2994 = vsub.s32 %v2991, %v2993
    %v2995 = vrot.slane %v2978, %v2994
    %v2997 = vunpack.c.l.s4 1966171168
    %v2998 = vunpack.c.0.s8 %v2997
    %v2999 = vlaneseq
    %v3000 = vshrl.u32 %v2999, 7
    %v3001 = vsub.s32 %v2998, %v3000
    %v3002 = vrot.slane %v2977, %v3001
    %v3004 = vunpack.c.l.s4 1966171168
    %v3005 = vunpack.c.0.s8 %v3004
    %v3006 = vlaneseq
    %v3007 = vshrl.u32 %v3006, 7
    %v3008 = vsub.s32 %v3005, %v3007
    %v3009 = vrot.slane %v2979, %v3008
    %v3011 = vunpack.c.l.s4 1966171168
    %v3012 = vunpack.c.0.s8 %v3011
    %v3013 = vlaneseq
    %v3014 = vshrl.u32 %v3013, 7
    %v3015 = vsub.s32 %v3012, %v3014
    %v3016 = vrot.slane %v2981, %v3015
    %v3018 = vunpack.c.l.s4 1966171168
    %v3019 = vunpack.c.0.s8 %v3018
    %v3020 = vlaneseq
    %v3021 = vshrl.u32 %v3020, 7
    %v3022 = vsub.s32 %v3019, %v3021
    %v3023 = vrot.slane %v2980, %v3022
    %v3024 = vcombine.low %v2988, %v3009
    %v3025 = vcombine.high %v2988, %v3009
    %v3026 = vcombine.low %v2995, %v3016
    %v3027 = vcombine.low %v3002, %v3023
    %v3028 = vcombine.high %v3002, %v3023
    %v3029 = vcombine.high %v2755, %v2755
    %v3031 = vunpack.c.l.s4 1966171168
    %v3032 = vunpack.c.0.s8 %v3031
    %v3033 = vlaneseq
    %v3034 = vshrl.u32 %v3033, 7
    %v3035 = vsub.s32 %v3032, %v3034
    %v3036 = vrot.slane %v2755, %v3035
    %v3038 = vunpack.c.l.s4 1966171168
    %v3039 = vunpack.c.0.s8 %v3038
    %v3040 = vlaneseq
    %v3041 = vshrl.u32 %v3040, 7
    %v3042 = vsub.s32 %v3039, %v3041
    %v3043 = vrot.slane %v3029, %v3042
    %v3044 = vcombine.high %v3036, %v3036
    %v3046 = vunpack.c.l.s4 1966171168
    %v3047 = vunpack.c.0.s8 %v3046
    %v3048 = vlaneseq
    %v3049 = vshrl.u32 %v3048, 7
    %v3050 = vsub.s32 %v3047, %v3049
    %v3051 = vrot.slane %v3036, %v3050
    %v3053 = vunpack.c.l.s4 1966171168
    %v3054 = vunpack.c.0.s8 %v3053
    %v3055 = vlaneseq
    %v3056 = vshrl.u32 %v3055, 7
    %v3057 = vsub.s32 %v3054, %v3056
    %v3058 = vrot.slane %v3043, %v3057
    %v3060 = vunpack.c.l.s4 1966171168
    %v3061 = vunpack.c.0.s8 %v3060
    %v3062 = vlaneseq
    %v3063 = vshrl.u32 %v3062, 7
    %v3064 = vsub.s32 %v3061, %v3063
    %v3065 = vrot.slane %v3044, %v3064
    %v3066 = vcombine.high %v3051, %v3051
    %v3067 = vcombine.high %v3065, %v3065
    %v3068 = vld [vmem:[#allocation10] sm:$0xff]
    %v3069 = vld [vmem:[#allocation10 + $0x8] sm:$0xff]
    %v3070 = vld [vmem:[#allocation10 + $0x10] sm:$0xff]
    %v3071 = vld [vmem:[#allocation10 + $0x18] sm:$0xff]
    %v3072 = vld [vmem:[#allocation10 + $0x20] sm:$0xff]
    %v3073 = vld [vmem:[#allocation10 + $0x28] sm:$0xff]
    %v3074 = vld [vmem:[#allocation10 + $0x30] sm:$0xff]
    %v3075 = vld [vmem:[#allocation10 + $0x38] sm:$0xff]
    %v3076 = vld [vmem:[#allocation10 + $0x40] sm:$0xff]
    %v3077 = vld [vmem:[#allocation10 + $0x48] sm:$0xff]
    %v3078 = vld [vmem:[#allocation10 + $0x50] sm:$0xff]
    %v3079 = vld [vmem:[#allocation10 + $0x58] sm:$0xff]
    %v3080 = vld [vmem:[#allocation10 + $0x60] sm:$0xff]
    %v3081 = vld [vmem:[#allocation10 + $0x68] sm:$0xff]
    %v3082 = vld [vmem:[#allocation10 + $0x70] sm:$0xff]
    %v3083 = vld [vmem:[#allocation10 + $0x78] sm:$0xff]
    %v3084 = vld [vmem:[#allocation10 + $0x80] sm:$0xff]
    %v3085 = vld [vmem:[#allocation10 + $0x88] sm:$0xff]
    %v3086 = vld [vmem:[#allocation10 + $0x90] sm:$0xff]
    %v3087 = vld [vmem:[#allocation10 + $0x98] sm:$0xff]
    %v3088 = vld [vmem:[#allocation10 + $0xa0] sm:$0xff]
    %v3089 = vld [vmem:[#allocation10 + $0xa8] sm:$0xff]
    %v3090 = vld [vmem:[#allocation10 + $0xb0] sm:$0xff]
    %v3091 = vld [vmem:[#allocation10 + $0xb8] sm:$0xff]
    %v3092 = vld [vmem:[#allocation10 + $0xc0] sm:$0xff]
    %v3093 = vld [vmem:[#allocation10 + $0xc8] sm:$0xff]
    %v3094 = vld [vmem:[#allocation10 + $0xd0] sm:$0xff]
    %v3095 = vld [vmem:[#allocation10 + $0xd8] sm:$0xff]
    %v3096 = vld [vmem:[#allocation10 + $0xe0] sm:$0xff]
    %v3097 = vld [vmem:[#allocation10 + $0xe8] sm:$0xff]
    %v3098 = vld [vmem:[#allocation10 + $0xf0] sm:$0xff]
    %v3099 = vld [vmem:[#allocation10 + $0xf8] sm:$0xff]
    %v3100 = vld [vmem:[#allocation10 + $0x100] sm:$0xff]
    %v3101 = vld [vmem:[#allocation10 + $0x108] sm:$0xff]
    %v3102 = vld [vmem:[#allocation10 + $0x110] sm:$0xff]
    %v3103 = vld [vmem:[#allocation10 + $0x118] sm:$0xff]
    %v3104 = vld [vmem:[#allocation10 + $0x120] sm:$0xff]
    %v3105 = vld [vmem:[#allocation10 + $0x128] sm:$0xff]
    %v3106 = vld [vmem:[#allocation10 + $0x130] sm:$0xff]
    %v3107 = vld [vmem:[#allocation10 + $0x138] sm:$0xff]
    %v3108 = vld [vmem:[#allocation10 + $0x140] sm:$0xff]
    %v3109 = vld [vmem:[#allocation10 + $0x148] sm:$0xff]
    %v3110 = vld [vmem:[#allocation10 + $0x150] sm:$0xff]
    %v3111 = vld [vmem:[#allocation10 + $0x158] sm:$0xff]
    %v3112 = vld [vmem:[#allocation10 + $0x160] sm:$0xff]
    %v3113 = vld [vmem:[#allocation10 + $0x168] sm:$0xff]
    %v3114 = vld [vmem:[#allocation10 + $0x170] sm:$0xff]
    %v3115 = vld [vmem:[#allocation10 + $0x178] sm:$0xff]
    %v3116 = vld [vmem:[#allocation10 + $0x180] sm:$0xff]
    %v3117 = vld [vmem:[#allocation10 + $0x188] sm:$0xff]
    %v3118 = vld [vmem:[#allocation10 + $0x190] sm:$0xff]
    %v3119 = vld [vmem:[#allocation10 + $0x198] sm:$0xff]
    %v3120 = vld [vmem:[#allocation10 + $0x1a0] sm:$0xff]
    %v3121 = vld [vmem:[#allocation10 + $0x1a8] sm:$0xff]
    %v3122 = vld [vmem:[#allocation10 + $0x1b0] sm:$0xff]
    %v3123 = vld [vmem:[#allocation10 + $0x1b8] sm:$0xff]
    %v3124 = vld [vmem:[#allocation10 + $0x1c0] sm:$0xff]
    %v3125 = vld [vmem:[#allocation10 + $0x1c8] sm:$0xff]
    %v3126 = vld [vmem:[#allocation10 + $0x1d0] sm:$0xff]
    %v3127 = vld [vmem:[#allocation10 + $0x1d8] sm:$0xff]
    %v3128 = vld [vmem:[#allocation10 + $0x1e0] sm:$0xff]
    %v3129 = vld [vmem:[#allocation10 + $0x1e8] sm:$0xff]
    %v3130 = vld [vmem:[#allocation10 + $0x1f0] sm:$0xff]
    %v3131 = vld [vmem:[#allocation10 + $0x1f8] sm:$0xff]
    %v3132 = vld [vmem:[#allocation10 + $0x200] sm:$0xff]
    %v3133 = vld [vmem:[#allocation10 + $0x208] sm:$0xff]
    %v3134 = vld [vmem:[#allocation10 + $0x210] sm:$0xff]
    %v3135 = vld [vmem:[#allocation10 + $0x218] sm:$0xff]
    %v3136 = vld [vmem:[#allocation10 + $0x220] sm:$0xff]
    %v3137 = vld [vmem:[#allocation10 + $0x228] sm:$0xff]
    %v3138 = vld [vmem:[#allocation10 + $0x230] sm:$0xff]
    %v3139 = vld [vmem:[#allocation10 + $0x238] sm:$0xff]
    %v3140 = vld [vmem:[#allocation10 + $0x240] sm:$0xff]
    %v3141 = vld [vmem:[#allocation10 + $0x248] sm:$0xff]
    %v3142 = vld [vmem:[#allocation10 + $0x250] sm:$0xff]
    %v3143 = vld [vmem:[#allocation10 + $0x258] sm:$0xff]
    %v3144 = vld [vmem:[#allocation10 + $0x260] sm:$0xff]
    %v3145 = vld [vmem:[#allocation10 + $0x268] sm:$0xff]
    %v3146 = vld [vmem:[#allocation10 + $0x270] sm:$0xff]
    %v3147 = vld [vmem:[#allocation10 + $0x278] sm:$0xff]
    %v3148 = vld [vmem:[#allocation10 + $0x280] sm:$0xff]
    %v3149 = vld [vmem:[#allocation10 + $0x288] sm:$0xff]
    %v3150 = vld [vmem:[#allocation10 + $0x290] sm:$0xff]
    %v3151 = vld [vmem:[#allocation10 + $0x298] sm:$0xff]
    %v3152 = vld [vmem:[#allocation10 + $0x2a0] sm:$0xff]
    %v3153 = vld [vmem:[#allocation10 + $0x2a8] sm:$0xff]
    %v3154 = vld [vmem:[#allocation10 + $0x2b0] sm:$0xff]
    %v3155 = vld [vmem:[#allocation10 + $0x2b8] sm:$0xff]
    %v3156 = vld [vmem:[#allocation10 + $0x2c0] sm:$0xff]
    %v3157 = vld [vmem:[#allocation10 + $0x2c8] sm:$0xff]
    %v3158 = vld [vmem:[#allocation10 + $0x2d0] sm:$0xff]
    %v3159 = vld [vmem:[#allocation10 + $0x2d8] sm:$0xff]
    %v3160 = vld [vmem:[#allocation10 + $0x2e0] sm:$0xff]
    %v3161 = vld [vmem:[#allocation10 + $0x2e8] sm:$0xff]
    %v3162 = vld [vmem:[#allocation10 + $0x2f0] sm:$0xff]
    %v3163 = vld [vmem:[#allocation10 + $0x2f8] sm:$0xff]
    %v3164 = vld [vmem:[#allocation10 + $0x300] sm:$0xff]
    %v3165 = vld [vmem:[#allocation10 + $0x308] sm:$0xff]
    %v3166 = vld [vmem:[#allocation10 + $0x310] sm:$0xff]
    %v3167 = vld [vmem:[#allocation10 + $0x318] sm:$0xff]
    %v3168 = vld [vmem:[#allocation10 + $0x320] sm:$0xff]
    %v3169 = vld [vmem:[#allocation10 + $0x328] sm:$0xff]
    %v3170 = vld [vmem:[#allocation10 + $0x330] sm:$0xff]
    %v3171 = vld [vmem:[#allocation10 + $0x338] sm:$0xff]
    %v3172 = vld [vmem:[#allocation10 + $0x340] sm:$0xff]
    %v3173 = vld [vmem:[#allocation10 + $0x348] sm:$0xff]
    %v3174 = vld [vmem:[#allocation10 + $0x350] sm:$0xff]
    %v3175 = vld [vmem:[#allocation10 + $0x358] sm:$0xff]
    %v3176 = vld [vmem:[#allocation10 + $0x360] sm:$0xff]
    %v3177 = vld [vmem:[#allocation10 + $0x368] sm:$0xff]
    %v3178 = vld [vmem:[#allocation10 + $0x370] sm:$0xff]
    %v3179 = vld [vmem:[#allocation10 + $0x378] sm:$0xff]
    %v3180 = vld [vmem:[#allocation10 + $0x380] sm:$0xff]
    %v3181 = vld [vmem:[#allocation10 + $0x388] sm:$0xff]
    %v3182 = vld [vmem:[#allocation10 + $0x390] sm:$0xff]
    %v3183 = vld [vmem:[#allocation10 + $0x398] sm:$0xff]
    %v3184 = vld [vmem:[#allocation10 + $0x3a0] sm:$0xff]
    %v3185 = vld [vmem:[#allocation10 + $0x3a8] sm:$0xff]
    %v3186 = vld [vmem:[#allocation10 + $0x3b0] sm:$0xff]
    %v3187 = vld [vmem:[#allocation10 + $0x3b8] sm:$0xff]
    %v3188 = vld [vmem:[#allocation10 + $0x3c0] sm:$0xff]
    %v3189 = vld [vmem:[#allocation10 + $0x3c8] sm:$0xff]
    %v3190 = vld [vmem:[#allocation10 + $0x3d0] sm:$0xff]
    %v3191 = vld [vmem:[#allocation10 + $0x3d8] sm:$0xff]
    %v3192 = vld [vmem:[#allocation10 + $0x3e0] sm:$0xff]
    %v3193 = vld [vmem:[#allocation10 + $0x3e8] sm:$0xff]
    %v3194 = vld [vmem:[#allocation10 + $0x3f0] sm:$0xff]
    %v3195 = vld [vmem:[#allocation10 + $0x3f8] sm:$0xff]
    %v3196 = vld [vmem:[#allocation10 + $0x400] sm:$0xff]
    %v3197 = vld [vmem:[#allocation10 + $0x408] sm:$0xff]
    %v3198 = vld [vmem:[#allocation10 + $0x410] sm:$0xff]
    %v3199 = vld [vmem:[#allocation10 + $0x418] sm:$0xff]
    %v3200 = vld [vmem:[#allocation10 + $0x420] sm:$0xff]
    %v3201 = vld [vmem:[#allocation10 + $0x428] sm:$0xff]
    %v3202 = vld [vmem:[#allocation10 + $0x430] sm:$0xff]
    %v3203 = vld [vmem:[#allocation10 + $0x438] sm:$0xff]
    %v3204 = vld [vmem:[#allocation10 + $0x440] sm:$0xff]
    %v3205 = vld [vmem:[#allocation10 + $0x448] sm:$0xff]
    %v3206 = vld [vmem:[#allocation10 + $0x450] sm:$0xff]
    %v3207 = vld [vmem:[#allocation10 + $0x458] sm:$0xff]
    %v3208 = vld [vmem:[#allocation10 + $0x460] sm:$0xff]
    %v3209 = vld [vmem:[#allocation10 + $0x468] sm:$0xff]
    %v3210 = vld [vmem:[#allocation10 + $0x470] sm:$0xff]
    %v3211 = vld [vmem:[#allocation10 + $0x478] sm:$0xff]
    %v3212 = vld [vmem:[#allocation10 + $0x480] sm:$0xff]
    %v3213 = vld [vmem:[#allocation10 + $0x488] sm:$0xff]
    %v3214 = vld [vmem:[#allocation10 + $0x490] sm:$0xff]
    %v3215 = vld [vmem:[#allocation10 + $0x498] sm:$0xff]
    %v3216 = vld [vmem:[#allocation10 + $0x4a0] sm:$0xff]
    %v3217 = vld [vmem:[#allocation10 + $0x4a8] sm:$0xff]
    %v3218 = vld [vmem:[#allocation10 + $0x4b0] sm:$0xff]
    %v3219 = vld [vmem:[#allocation10 + $0x4b8] sm:$0xff]
    %v3220 = vld [vmem:[#allocation10 + $0x4c0] sm:$0xff]
    %v3221 = vld [vmem:[#allocation10 + $0x4c8] sm:$0xff]
    %v3222 = vld [vmem:[#allocation10 + $0x4d0] sm:$0xff]
    %v3223 = vld [vmem:[#allocation10 + $0x4d8] sm:$0xff]
    %v3224 = vld [vmem:[#allocation10 + $0x4e0] sm:$0xff]
    %v3225 = vld [vmem:[#allocation10 + $0x4e8] sm:$0xff]
    %v3226 = vld [vmem:[#allocation10 + $0x4f0] sm:$0xff]
    %v3227 = vld [vmem:[#allocation10 + $0x4f8] sm:$0xff]
    %v3228 = vld [vmem:[#allocation10 + $0x500] sm:$0xff]
    %v3229 = vld [vmem:[#allocation10 + $0x508] sm:$0xff]
    %v3230 = vld [vmem:[#allocation10 + $0x510] sm:$0xff]
    %v3231 = vld [vmem:[#allocation10 + $0x518] sm:$0xff]
    %v3232 = vld [vmem:[#allocation10 + $0x520] sm:$0xff]
    %v3233 = vld [vmem:[#allocation10 + $0x528] sm:$0xff]
    %v3234 = vld [vmem:[#allocation10 + $0x530] sm:$0xff]
    %v3235 = vld [vmem:[#allocation10 + $0x538] sm:$0xff]
    %v3236 = vld [vmem:[#allocation10 + $0x540] sm:$0xff]
    %v3237 = vld [vmem:[#allocation10 + $0x548] sm:$0xff]
    %v3238 = vld [vmem:[#allocation10 + $0x550] sm:$0xff]
    %v3239 = vld [vmem:[#allocation10 + $0x558] sm:$0xff]
    %v3240 = vld [vmem:[#allocation10 + $0x560] sm:$0xff]
    %v3241 = vld [vmem:[#allocation10 + $0x568] sm:$0xff]
    %v3242 = vld [vmem:[#allocation10 + $0x570] sm:$0xff]
    %v3243 = vld [vmem:[#allocation10 + $0x578] sm:$0xff]
    %v3244 = vld [vmem:[#allocation10 + $0x580] sm:$0xff]
    %v3245 = vld [vmem:[#allocation10 + $0x588] sm:$0xff]
    %v3246 = vld [vmem:[#allocation10 + $0x590] sm:$0xff]
    %v3247 = vld [vmem:[#allocation10 + $0x598] sm:$0xff]
    %v3248 = vld [vmem:[#allocation10 + $0x5a0] sm:$0xff]
    %v3249 = vld [vmem:[#allocation10 + $0x5a8] sm:$0xff]
    %v3250 = vld [vmem:[#allocation10 + $0x5b0] sm:$0xff]
    %v3251 = vld [vmem:[#allocation10 + $0x5b8] sm:$0xff]
    %v3252 = vld [vmem:[#allocation10 + $0x5c0] sm:$0xff]
    %v3253 = vld [vmem:[#allocation10 + $0x5c8] sm:$0xff]
    %v3254 = vld [vmem:[#allocation10 + $0x5d0] sm:$0xff]
    %v3255 = vld [vmem:[#allocation10 + $0x5d8] sm:$0xff]
    %v3256 = vld [vmem:[#allocation10 + $0x5e0] sm:$0xff]
    %v3257 = vld [vmem:[#allocation10 + $0x5e8] sm:$0xff]
    %v3258 = vld [vmem:[#allocation10 + $0x5f0] sm:$0xff]
    %v3259 = vld [vmem:[#allocation10 + $0x5f8] sm:$0xff]
    %v3260 = vld [vmem:[#allocation10 + $0x600] sm:$0xff]
    %v3261 = vld [vmem:[#allocation10 + $0x608] sm:$0xff]
    %v3262 = vld [vmem:[#allocation10 + $0x610] sm:$0xff]
    %v3263 = vld [vmem:[#allocation10 + $0x618] sm:$0xff]
    %v3264 = vld [vmem:[#allocation10 + $0x620] sm:$0xff]
    %v3265 = vld [vmem:[#allocation10 + $0x628] sm:$0xff]
    %v3266 = vld [vmem:[#allocation10 + $0x630] sm:$0xff]
    %v3267 = vld [vmem:[#allocation10 + $0x638] sm:$0xff]
    %v3268 = vld [vmem:[#allocation10 + $0x640] sm:$0xff]
    %v3269 = vld [vmem:[#allocation10 + $0x648] sm:$0xff]
    %v3270 = vld [vmem:[#allocation10 + $0x650] sm:$0xff]
    %v3271 = vld [vmem:[#allocation10 + $0x658] sm:$0xff]
    %v3272 = vld [vmem:[#allocation10 + $0x660] sm:$0xff]
    %v3273 = vld [vmem:[#allocation10 + $0x668] sm:$0xff]
    %v3274 = vld [vmem:[#allocation10 + $0x670] sm:$0xff]
    %v3275 = vld [vmem:[#allocation10 + $0x678] sm:$0xff]
    %v3276 = vld [vmem:[#allocation10 + $0x680] sm:$0xff]
    %v3277 = vld [vmem:[#allocation10 + $0x688] sm:$0xff]
    %v3278 = vld [vmem:[#allocation10 + $0x690] sm:$0xff]
    %v3279 = vld [vmem:[#allocation10 + $0x698] sm:$0xff]
    %v3280 = vld [vmem:[#allocation10 + $0x6a0] sm:$0xff]
    %v3281 = vld [vmem:[#allocation10 + $0x6a8] sm:$0xff]
    %v3282 = vld [vmem:[#allocation10 + $0x6b0] sm:$0xff]
    %v3283 = vld [vmem:[#allocation10 + $0x6b8] sm:$0xff]
    %v3284 = vld [vmem:[#allocation10 + $0x6c0] sm:$0xff]
    %v3285 = vld [vmem:[#allocation10 + $0x6c8] sm:$0xff]
    %v3286 = vld [vmem:[#allocation10 + $0x6d0] sm:$0xff]
    %v3287 = vld [vmem:[#allocation10 + $0x6d8] sm:$0xff]
    %v3288 = vld [vmem:[#allocation10 + $0x6e0] sm:$0xff]
    %v3289 = vld [vmem:[#allocation10 + $0x6e8] sm:$0xff]
    %v3290 = vld [vmem:[#allocation10 + $0x6f0] sm:$0xff]
    %v3291 = vld [vmem:[#allocation10 + $0x6f8] sm:$0xff]
    %v3292 = vld [vmem:[#allocation10 + $0x700] sm:$0xff]
    %v3293 = vld [vmem:[#allocation10 + $0x708] sm:$0xff]
    %v3294 = vld [vmem:[#allocation10 + $0x710] sm:$0xff]
    %v3295 = vld [vmem:[#allocation10 + $0x718] sm:$0xff]
    %v3296 = vld [vmem:[#allocation10 + $0x720] sm:$0xff]
    %v3297 = vld [vmem:[#allocation10 + $0x728] sm:$0xff]
    %v3298 = vld [vmem:[#allocation10 + $0x730] sm:$0xff]
    %v3299 = vld [vmem:[#allocation10 + $0x738] sm:$0xff]
    %v3300 = vld [vmem:[#allocation10 + $0x740] sm:$0xff]
    %v3301 = vld [vmem:[#allocation10 + $0x748] sm:$0xff]
    %v3302 = vld [vmem:[#allocation10 + $0x750] sm:$0xff]
    %v3303 = vld [vmem:[#allocation10 + $0x758] sm:$0xff]
    %v3304 = vld [vmem:[#allocation10 + $0x760] sm:$0xff]
    %v3305 = vld [vmem:[#allocation10 + $0x768] sm:$0xff]
    %v3306 = vld [vmem:[#allocation10 + $0x770] sm:$0xff]
    %v3307 = vld [vmem:[#allocation10 + $0x778] sm:$0xff]
    %v3308 = vld [vmem:[#allocation10 + $0x780] sm:$0xff]
    %v3309 = vld [vmem:[#allocation10 + $0x788] sm:$0xff]
    %v3310 = vld [vmem:[#allocation10 + $0x790] sm:$0xff]
    %v3311 = vld [vmem:[#allocation10 + $0x798] sm:$0xff]
    %v3312 = vld [vmem:[#allocation10 + $0x7a0] sm:$0xff]
    %v3313 = vld [vmem:[#allocation10 + $0x7a8] sm:$0xff]
    %v3314 = vld [vmem:[#allocation10 + $0x7b0] sm:$0xff]
    %v3315 = vld [vmem:[#allocation10 + $0x7b8] sm:$0xff]
    %v3316 = vld [vmem:[#allocation10 + $0x7c0] sm:$0xff]
    %v3317 = vld [vmem:[#allocation10 + $0x7c8] sm:$0xff]
    %v3318 = vld [vmem:[#allocation10 + $0x7d0] sm:$0xff]
    %v3319 = vld [vmem:[#allocation10 + $0x7d8] sm:$0xff]
    %v3320 = vld [vmem:[#allocation10 + $0x7e0] sm:$0xff]
    %v3321 = vld [vmem:[#allocation10 + $0x7e8] sm:$0xff]
    %v3322 = vld [vmem:[#allocation10 + $0x7f0] sm:$0xff]
    %v3323 = vld [vmem:[#allocation10 + $0x7f8] sm:$0xff]
    %v3324 = vld [vmem:[#allocation10 + $0x800] sm:$0xff]
    %v3325 = vld [vmem:[#allocation10 + $0x808] sm:$0xff]
    %v3326 = vld [vmem:[#allocation10 + $0x810] sm:$0xff]
    %v3327 = vld [vmem:[#allocation10 + $0x818] sm:$0xff]
    %v3328 = vld [vmem:[#allocation10 + $0x820] sm:$0xff]
    %v3329 = vld [vmem:[#allocation10 + $0x828] sm:$0xff]
    %v3330 = vld [vmem:[#allocation10 + $0x830] sm:$0xff]
    %v3331 = vld [vmem:[#allocation10 + $0x838] sm:$0xff]
    %v3332 = vld [vmem:[#allocation10 + $0x840] sm:$0xff]
    %v3333 = vld [vmem:[#allocation10 + $0x848] sm:$0xff]
    %v3334 = vld [vmem:[#allocation10 + $0x850] sm:$0xff]
    %v3335 = vld [vmem:[#allocation10 + $0x858] sm:$0xff]
    %v3336 = vld [vmem:[#allocation10 + $0x860] sm:$0xff]
    %v3337 = vld [vmem:[#allocation10 + $0x868] sm:$0xff]
    %v3338 = vld [vmem:[#allocation10 + $0x870] sm:$0xff]
    %v3339 = vld [vmem:[#allocation10 + $0x878] sm:$0xff]
    %v3340 = vld [vmem:[#allocation10 + $0x880] sm:$0xff]
    %v3341 = vld [vmem:[#allocation10 + $0x888] sm:$0xff]
    %v3342 = vld [vmem:[#allocation10 + $0x890] sm:$0xff]
    %v3343 = vld [vmem:[#allocation10 + $0x898] sm:$0xff]
    %v3344 = vld [vmem:[#allocation10 + $0x8a0] sm:$0xff]
    %v3345 = vld [vmem:[#allocation10 + $0x8a8] sm:$0xff]
    %v3346 = vld [vmem:[#allocation10 + $0x8b0] sm:$0xff]
    %v3347 = vld [vmem:[#allocation10 + $0x8b8] sm:$0xff]
    %v3348 = vld [vmem:[#allocation10 + $0x8c0] sm:$0xff]
    %v3349 = vld [vmem:[#allocation10 + $0x8c8] sm:$0xff]
    %v3350 = vld [vmem:[#allocation10 + $0x8d0] sm:$0xff]
    %v3351 = vld [vmem:[#allocation10 + $0x8d8] sm:$0xff]
    %v3352 = vld [vmem:[#allocation10 + $0x8e0] sm:$0xff]
    %v3353 = vld [vmem:[#allocation10 + $0x8e8] sm:$0xff]
    %v3354 = vld [vmem:[#allocation10 + $0x8f0] sm:$0xff]
    %v3355 = vld [vmem:[#allocation10 + $0x8f8] sm:$0xff]
    %v3356 = vld [vmem:[#allocation10 + $0x900] sm:$0xff]
    %v3357 = vld [vmem:[#allocation10 + $0x908] sm:$0xff]
    %v3358 = vld [vmem:[#allocation10 + $0x910] sm:$0xff]
    %v3359 = vld [vmem:[#allocation10 + $0x918] sm:$0xff]
    %v3360 = vld [vmem:[#allocation10 + $0x920] sm:$0xff]
    %v3361 = vld [vmem:[#allocation10 + $0x928] sm:$0xff]
    %v3362 = vld [vmem:[#allocation10 + $0x930] sm:$0xff]
    %v3363 = vld [vmem:[#allocation10 + $0x938] sm:$0xff]
    %v3364 = vld [vmem:[#allocation10 + $0x940] sm:$0xff]
    %v3365 = vld [vmem:[#allocation10 + $0x948] sm:$0xff]
    %v3366 = vld [vmem:[#allocation10 + $0x950] sm:$0xff]
    %v3367 = vld [vmem:[#allocation10 + $0x958] sm:$0xff]
    %v3368 = vld [vmem:[#allocation10 + $0x960] sm:$0xff]
    %v3369 = vld [vmem:[#allocation10 + $0x968] sm:$0xff]
    %v3370 = vld [vmem:[#allocation10 + $0x970] sm:$0xff]
    %v3371 = vld [vmem:[#allocation10 + $0x978] sm:$0xff]
    %v3372 = vld [vmem:[#allocation10 + $0x980] sm:$0xff]
    %v3373 = vld [vmem:[#allocation10 + $0x988] sm:$0xff]
    %v3374 = vld [vmem:[#allocation10 + $0x990] sm:$0xff]
    %v3375 = vld [vmem:[#allocation10 + $0x998] sm:$0xff]
    %v3376 = vld [vmem:[#allocation10 + $0x9a0] sm:$0xff]
    %v3377 = vld [vmem:[#allocation10 + $0x9a8] sm:$0xff]
    %v3378 = vld [vmem:[#allocation10 + $0x9b0] sm:$0xff]
    %v3379 = vld [vmem:[#allocation10 + $0x9b8] sm:$0xff]
    %v3380 = vld [vmem:[#allocation10 + $0x9c0] sm:$0xff]
    %v3381 = vld [vmem:[#allocation10 + $0x9c8] sm:$0xff]
    %v3382 = vld [vmem:[#allocation10 + $0x9d0] sm:$0xff]
    %v3383 = vld [vmem:[#allocation10 + $0x9d8] sm:$0xff]
    %v3384 = vld [vmem:[#allocation10 + $0x9e0] sm:$0xff]
    %v3385 = vld [vmem:[#allocation10 + $0x9e8] sm:$0xff]
    %v3386 = vld [vmem:[#allocation10 + $0x9f0] sm:$0xff]
    %v3387 = vld [vmem:[#allocation10 + $0x9f8] sm:$0xff]
    %v3388 = vld [vmem:[#allocation10 + $0xa00] sm:$0xff]
    %v3389 = vld [vmem:[#allocation10 + $0xa08] sm:$0xff]
    %v3390 = vld [vmem:[#allocation10 + $0xa10] sm:$0xff]
    %v3391 = vld [vmem:[#allocation10 + $0xa18] sm:$0xff]
    %v3392 = vld [vmem:[#allocation10 + $0xa20] sm:$0xff]
    %v3393 = vld [vmem:[#allocation10 + $0xa28] sm:$0xff]
    %v3394 = vld [vmem:[#allocation10 + $0xa30] sm:$0xff]
    %v3395 = vld [vmem:[#allocation10 + $0xa38] sm:$0xff]
    %v3396 = vld [vmem:[#allocation10 + $0xa40] sm:$0xff]
    %v3397 = vld [vmem:[#allocation10 + $0xa48] sm:$0xff]
    %v3398 = vld [vmem:[#allocation10 + $0xa50] sm:$0xff]
    %v3399 = vld [vmem:[#allocation10 + $0xa58] sm:$0xff]
    %v3400 = vld [vmem:[#allocation10 + $0xa60] sm:$0xff]
    %v3401 = vld [vmem:[#allocation10 + $0xa68] sm:$0xff]
    %v3402 = vld [vmem:[#allocation10 + $0xa70] sm:$0xff]
    %v3403 = vld [vmem:[#allocation10 + $0xa78] sm:$0xff]
    %v3404 = vld [vmem:[#allocation10 + $0xa80] sm:$0xff]
    %v3405 = vld [vmem:[#allocation10 + $0xa88] sm:$0xff]
    %v3406 = vld [vmem:[#allocation10 + $0xa90] sm:$0xff]
    %v3407 = vld [vmem:[#allocation10 + $0xa98] sm:$0xff]
    %v3408 = vld [vmem:[#allocation10 + $0xaa0] sm:$0xff]
    %v3409 = vld [vmem:[#allocation10 + $0xaa8] sm:$0xff]
    %v3410 = vld [vmem:[#allocation10 + $0xab0] sm:$0xff]
    %v3411 = vld [vmem:[#allocation10 + $0xab8] sm:$0xff]
    %v3412 = vld [vmem:[#allocation10 + $0xac0] sm:$0xff]
    %v3413 = vld [vmem:[#allocation10 + $0xac8] sm:$0xff]
    %v3414 = vld [vmem:[#allocation10 + $0xad0] sm:$0xff]
    %v3415 = vld [vmem:[#allocation10 + $0xad8] sm:$0xff]
    %v3416 = vld [vmem:[#allocation10 + $0xae0] sm:$0xff]
    %v3417 = vld [vmem:[#allocation10 + $0xae8] sm:$0xff]
    %v3418 = vld [vmem:[#allocation10 + $0xaf0] sm:$0xff]
    %v3419 = vld [vmem:[#allocation10 + $0xaf8] sm:$0xff]
    %v3420 = vld [vmem:[#allocation10 + $0xb00] sm:$0xff]
    %v3421 = vld [vmem:[#allocation10 + $0xb08] sm:$0xff]
    %v3422 = vld [vmem:[#allocation10 + $0xb10] sm:$0xff]
    %v3423 = vld [vmem:[#allocation10 + $0xb18] sm:$0xff]
    %v3424 = vld [vmem:[#allocation10 + $0xb20] sm:$0xff]
    %v3425 = vld [vmem:[#allocation10 + $0xb28] sm:$0xff]
    %v3426 = vld [vmem:[#allocation10 + $0xb30] sm:$0xff]
    %v3427 = vld [vmem:[#allocation10 + $0xb38] sm:$0xff]
    %v3428 = vld [vmem:[#allocation10 + $0xb40] sm:$0xff]
    %v3429 = vld [vmem:[#allocation10 + $0xb48] sm:$0xff]
    %v3430 = vld [vmem:[#allocation10 + $0xb50] sm:$0xff]
    %v3431 = vld [vmem:[#allocation10 + $0xb58] sm:$0xff]
    %v3432 = vld [vmem:[#allocation10 + $0xb60] sm:$0xff]
    %v3433 = vld [vmem:[#allocation10 + $0xb68] sm:$0xff]
    %v3434 = vld [vmem:[#allocation10 + $0xb70] sm:$0xff]
    %v3435 = vld [vmem:[#allocation10 + $0xb78] sm:$0xff]
    %v3436 = vld [vmem:[#allocation10 + $0xb80] sm:$0xff]
    %v3437 = vld [vmem:[#allocation10 + $0xb88] sm:$0xff]
    %v3438 = vld [vmem:[#allocation10 + $0xb90] sm:$0xff]
    %v3439 = vld [vmem:[#allocation10 + $0xb98] sm:$0xff]
    %v3440 = vld [vmem:[#allocation10 + $0xba0] sm:$0xff]
    %v3441 = vld [vmem:[#allocation10 + $0xba8] sm:$0xff]
    %v3442 = vld [vmem:[#allocation10 + $0xbb0] sm:$0xff]
    %v3443 = vld [vmem:[#allocation10 + $0xbb8] sm:$0xff]
    %v3444 = vld [vmem:[#allocation10 + $0xbc0] sm:$0xff]
    %v3445 = vld [vmem:[#allocation10 + $0xbc8] sm:$0xff]
    %v3446 = vld [vmem:[#allocation10 + $0xbd0] sm:$0xff]
    %v3447 = vld [vmem:[#allocation10 + $0xbd8] sm:$0xff]
    %v3448 = vld [vmem:[#allocation10 + $0xbe0] sm:$0xff]
    %v3449 = vld [vmem:[#allocation10 + $0xbe8] sm:$0xff]
    %v3450 = vld [vmem:[#allocation10 + $0xbf0] sm:$0xff]
    %v3451 = vld [vmem:[#allocation10 + $0xbf8] sm:$0xff]
    %v3452 = vld [vmem:[#allocation10 + $0xc00] sm:$0xff]
    %v3453 = vld [vmem:[#allocation10 + $0xc08] sm:$0xff]
    %v3454 = vld [vmem:[#allocation10 + $0xc10] sm:$0xff]
    %v3455 = vld [vmem:[#allocation10 + $0xc18] sm:$0xff]
    %v3456 = vld [vmem:[#allocation10 + $0xc20] sm:$0xff]
    %v3457 = vld [vmem:[#allocation10 + $0xc28] sm:$0xff]
    %v3458 = vld [vmem:[#allocation10 + $0xc30] sm:$0xff]
    %v3459 = vld [vmem:[#allocation10 + $0xc38] sm:$0xff]
    %v3460 = vld [vmem:[#allocation10 + $0xc40] sm:$0xff]
    %v3461 = vld [vmem:[#allocation10 + $0xc48] sm:$0xff]
    %v3462 = vld [vmem:[#allocation10 + $0xc50] sm:$0xff]
    %v3463 = vld [vmem:[#allocation10 + $0xc58] sm:$0xff]
    %v3464 = vld [vmem:[#allocation10 + $0xc60] sm:$0xff]
    %v3465 = vld [vmem:[#allocation10 + $0xc68] sm:$0xff]
    %v3466 = vld [vmem:[#allocation10 + $0xc70] sm:$0xff]
    %v3467 = vld [vmem:[#allocation10 + $0xc78] sm:$0xff]
    %v3468 = vld [vmem:[#allocation10 + $0xc80] sm:$0xff]
    %v3469 = vld [vmem:[#allocation10 + $0xc88] sm:$0xff]
    %v3470 = vld [vmem:[#allocation10 + $0xc90] sm:$0xff]
    %v3471 = vld [vmem:[#allocation10 + $0xc98] sm:$0xff]
    %v3472 = vld [vmem:[#allocation10 + $0xca0] sm:$0xff]
    %v3473 = vld [vmem:[#allocation10 + $0xca8] sm:$0xff]
    %v3474 = vld [vmem:[#allocation10 + $0xcb0] sm:$0xff]
    %v3475 = vld [vmem:[#allocation10 + $0xcb8] sm:$0xff]
    %v3476 = vld [vmem:[#allocation10 + $0xcc0] sm:$0xff]
    %v3477 = vld [vmem:[#allocation10 + $0xcc8] sm:$0xff]
    %v3478 = vld [vmem:[#allocation10 + $0xcd0] sm:$0xff]
    %v3479 = vld [vmem:[#allocation10 + $0xcd8] sm:$0xff]
    %v3480 = vld [vmem:[#allocation10 + $0xce0] sm:$0xff]
    %v3481 = vld [vmem:[#allocation10 + $0xce8] sm:$0xff]
    %v3482 = vld [vmem:[#allocation10 + $0xcf0] sm:$0xff]
    %v3483 = vld [vmem:[#allocation10 + $0xcf8] sm:$0xff]
    %v3484 = vld [vmem:[#allocation10 + $0xd00] sm:$0xff]
    %v3485 = vld [vmem:[#allocation10 + $0xd08] sm:$0xff]
    %v3486 = vld [vmem:[#allocation10 + $0xd10] sm:$0xff]
    %v3487 = vld [vmem:[#allocation10 + $0xd18] sm:$0xff]
    %v3488 = vld [vmem:[#allocation10 + $0xd20] sm:$0xff]
    %v3489 = vld [vmem:[#allocation10 + $0xd28] sm:$0xff]
    %v3490 = vld [vmem:[#allocation10 + $0xd30] sm:$0xff]
    %v3491 = vld [vmem:[#allocation10 + $0xd38] sm:$0xff]
    %v3492 = vld [vmem:[#allocation10 + $0xd40] sm:$0xff]
    %v3493 = vld [vmem:[#allocation10 + $0xd48] sm:$0xff]
    %v3494 = vld [vmem:[#allocation10 + $0xd50] sm:$0xff]
    %v3495 = vld [vmem:[#allocation10 + $0xd58] sm:$0xff]
    %v3496 = vld [vmem:[#allocation10 + $0xd60] sm:$0xff]
    %v3497 = vld [vmem:[#allocation10 + $0xd68] sm:$0xff]
    %v3498 = vld [vmem:[#allocation10 + $0xd70] sm:$0xff]
    %v3499 = vld [vmem:[#allocation10 + $0xd78] sm:$0xff]
    %v3500 = vld [vmem:[#allocation11] sm:$0x3f]
    %v3502 = vlaneseq
    %v3503 = vshrl.u32 %v3502, 7
    %v3504 = vsub.s32 0, %v3503
    %v3505 = vrot.slane %v3500, %v3504
    %v3506 = vlaneseq
    %v3507 = vshrl.u32 %v3506, 7
    %v3508 = vsub.s32 1, %v3507
    %v3509 = vrot.slane %v3500, %v3508
    %v3510 = vlaneseq
    %v3511 = vshrl.u32 %v3510, 7
    %v3512 = vsub.s32 2, %v3511
    %v3513 = vrot.slane %v3500, %v3512
    %v3514 = vlaneseq
    %v3515 = vshrl.u32 %v3514, 7
    %v3516 = vsub.s32 3, %v3515
    %v3517 = vrot.slane %v3500, %v3516
    %v3518 = vlaneseq
    %v3519 = vshrl.u32 %v3518, 7
    %v3520 = vsub.s32 4, %v3519
    %v3521 = vrot.slane %v3500, %v3520
    %v3522 = vlaneseq
    %v3523 = vshrl.u32 %v3522, 7
    %v3524 = vsub.s32 5, %v3523
    %v3525 = vrot.slane %v3500, %v3524
    %v3532 = vcombine.low %v2868, %v2871
    %v3533 = vcombine.high %v2868, %v2871
    %v3534 = vcombine.low %v2869, %v2872
    %v3535 = vcombine.high %v2869, %v2872
    %v3536 = vcombine.low %v2870, %v3024
    %v3537 = vcombine.high %v2870, %v3024
    %v3538 = vcombine.low %v3027, %v3025
    %v3539 = vcombine.high %v3027, %v3025
    %v3541 = vunpack.c.l.s4 1966171168
    %v3542 = vunpack.c.0.s8 %v3541
    %v3543 = vlaneseq
    %v3544 = vshrl.u32 %v3543, 7
    %v3545 = vsub.s32 %v3542, %v3544
    %v3546 = vrot.slane %v3532, %v3545
    %v3548 = vunpack.c.l.s4 1966171168
    %v3549 = vunpack.c.0.s8 %v3548
    %v3550 = vlaneseq
    %v3551 = vshrl.u32 %v3550, 7
    %v3552 = vsub.s32 %v3549, %v3551
    %v3553 = vrot.slane %v3533, %v3552
    %v3555 = vunpack.c.l.s4 1966171168
    %v3556 = vunpack.c.0.s8 %v3555
    %v3557 = vlaneseq
    %v3558 = vshrl.u32 %v3557, 7
    %v3559 = vsub.s32 %v3556, %v3558
    %v3560 = vrot.slane %v3534, %v3559
    %v3562 = vunpack.c.l.s4 1966171168
    %v3563 = vunpack.c.0.s8 %v3562
    %v3564 = vlaneseq
    %v3565 = vshrl.u32 %v3564, 7
    %v3566 = vsub.s32 %v3563, %v3565
    %v3567 = vrot.slane %v3535, %v3566
    %v3569 = vunpack.c.l.s4 1966171168
    %v3570 = vunpack.c.0.s8 %v3569
    %v3571 = vlaneseq
    %v3572 = vshrl.u32 %v3571, 7
    %v3573 = vsub.s32 %v3570, %v3572
    %v3574 = vrot.slane %v3536, %v3573
    %v3576 = vunpack.c.l.s4 1966171168
    %v3577 = vunpack.c.0.s8 %v3576
    %v3578 = vlaneseq
    %v3579 = vshrl.u32 %v3578, 7
    %v3580 = vsub.s32 %v3577, %v3579
    %v3581 = vrot.slane %v3537, %v3580
    %v3583 = vunpack.c.l.s4 1966171168
    %v3584 = vunpack.c.0.s8 %v3583
    %v3585 = vlaneseq
    %v3586 = vshrl.u32 %v3585, 7
    %v3587 = vsub.s32 %v3584, %v3586
    %v3588 = vrot.slane %v3538, %v3587
    %v3590 = vunpack.c.l.s4 1966171168
    %v3591 = vunpack.c.0.s8 %v3590
    %v3592 = vlaneseq
    %v3593 = vshrl.u32 %v3592, 7
    %v3594 = vsub.s32 %v3591, %v3593
    %v3595 = vrot.slane %v3539, %v3594
    %v3596 = vcombine.low %v3546, %v3560
    %v3597 = vcombine.high %v3546, %v3560
    %v3598 = vcombine.low %v3553, %v3567
    %v3599 = vcombine.high %v3553, %v3567
    %v3600 = vcombine.low %v3574, %v3588
    %v3601 = vcombine.high %v3574, %v3588
    %v3602 = vcombine.low %v3581, %v3595
    %v3603 = vcombine.high %v3581, %v3595
    %v3605 = vunpack.c.l.s4 1966171168
    %v3606 = vunpack.c.0.s8 %v3605
    %v3607 = vlaneseq
    %v3608 = vshrl.u32 %v3607, 7
    %v3609 = vsub.s32 %v3606, %v3608
    %v3610 = vrot.slane %v3596, %v3609
    %v3612 = vunpack.c.l.s4 1966171168
    %v3613 = vunpack.c.0.s8 %v3612
    %v3614 = vlaneseq
    %v3615 = vshrl.u32 %v3614, 7
    %v3616 = vsub.s32 %v3613, %v3615
    %v3617 = vrot.slane %v3598, %v3616
    %v3619 = vunpack.c.l.s4 1966171168
    %v3620 = vunpack.c.0.s8 %v3619
    %v3621 = vlaneseq
    %v3622 = vshrl.u32 %v3621, 7
    %v3623 = vsub.s32 %v3620, %v3622
    %v3624 = vrot.slane %v3597, %v3623
    %v3626 = vunpack.c.l.s4 1966171168
    %v3627 = vunpack.c.0.s8 %v3626
    %v3628 = vlaneseq
    %v3629 = vshrl.u32 %v3628, 7
    %v3630 = vsub.s32 %v3627, %v3629
    %v3631 = vrot.slane %v3599, %v3630
    %v3633 = vunpack.c.l.s4 1966171168
    %v3634 = vunpack.c.0.s8 %v3633
    %v3635 = vlaneseq
    %v3636 = vshrl.u32 %v3635, 7
    %v3637 = vsub.s32 %v3634, %v3636
    %v3638 = vrot.slane %v3600, %v3637
    %v3640 = vunpack.c.l.s4 1966171168
    %v3641 = vunpack.c.0.s8 %v3640
    %v3642 = vlaneseq
    %v3643 = vshrl.u32 %v3642, 7
    %v3644 = vsub.s32 %v3641, %v3643
    %v3645 = vrot.slane %v3602, %v3644
    %v3647 = vunpack.c.l.s4 1966171168
    %v3648 = vunpack.c.0.s8 %v3647
    %v3649 = vlaneseq
    %v3650 = vshrl.u32 %v3649, 7
    %v3651 = vsub.s32 %v3648, %v3650
    %v3652 = vrot.slane %v3601, %v3651
    %v3654 = vunpack.c.l.s4 1966171168
    %v3655 = vunpack.c.0.s8 %v3654
    %v3656 = vlaneseq
    %v3657 = vshrl.u32 %v3656, 7
    %v3658 = vsub.s32 %v3655, %v3657
    %v3659 = vrot.slane %v3603, %v3658
    %v3660 = vcombine.low %v3610, %v3638
    %v3661 = vcombine.high %v3610, %v3638
    %v3662 = vcombine.low %v3617, %v3645
    %v3663 = vcombine.high %v3617, %v3645
    %v3664 = vcombine.low %v3624, %v3652
    %v3665 = vcombine.high %v3624, %v3652
    %v3666 = vcombine.low %v3631, %v3659
    %v3667 = vcombine.high %v3631, %v3659
    %v3668 = vcombine.low %v2895, %v2909
    %v3669 = vcombine.low %v2910, %v2911
    %v3670 = vcombine.low %v2902, %v3051
    %v3671 = vcombine.low %v3065, %v3066
    %v3673 = vunpack.c.l.s4 1966171168
    %v3674 = vunpack.c.0.s8 %v3673
    %v3675 = vlaneseq
    %v3676 = vshrl.u32 %v3675, 7
    %v3677 = vsub.s32 %v3674, %v3676
    %v3678 = vrot.slane %v3668, %v3677
    %v3680 = vunpack.c.l.s4 1966171168
    %v3681 = vunpack.c.0.s8 %v3680
    %v3682 = vlaneseq
    %v3683 = vshrl.u32 %v3682, 7
    %v3684 = vsub.s32 %v3681, %v3683
    %v3685 = vrot.slane %v3669, %v3684
    %v3687 = vunpack.c.l.s4 1966171168
    %v3688 = vunpack.c.0.s8 %v3687
    %v3689 = vlaneseq
    %v3690 = vshrl.u32 %v3689, 7
    %v3691 = vsub.s32 %v3688, %v3690
    %v3692 = vrot.slane %v3670, %v3691
    %v3694 = vunpack.c.l.s4 1966171168
    %v3695 = vunpack.c.0.s8 %v3694
    %v3696 = vlaneseq
    %v3697 = vshrl.u32 %v3696, 7
    %v3698 = vsub.s32 %v3695, %v3697
    %v3699 = vrot.slane %v3671, %v3698
    %v3700 = vcombine.low %v3678, %v3685
    %v3701 = vcombine.low %v3692, %v3699
    %v3703 = vunpack.c.l.s4 1966171168
    %v3704 = vunpack.c.0.s8 %v3703
    %v3705 = vlaneseq
    %v3706 = vshrl.u32 %v3705, 7
    %v3707 = vsub.s32 %v3704, %v3706
    %v3708 = vrot.slane %v3700, %v3707
    %v3710 = vunpack.c.l.s4 1966171168
    %v3711 = vunpack.c.0.s8 %v3710
    %v3712 = vlaneseq
    %v3713 = vshrl.u32 %v3712, 7
    %v3714 = vsub.s32 %v3711, %v3713
    %v3715 = vrot.slane %v3701, %v3714
    %v3716 = vcombine.low %v3708, %v3715
    %v3717 = vcombine.low %v3028, %v3026
    %v3718 = vcombine.high %v3028, %v3026
    %v3720 = vunpack.c.l.s4 1966171168
    %v3721 = vunpack.c.0.s8 %v3720
    %v3722 = vlaneseq
    %v3723 = vshrl.u32 %v3722, 7
    %v3724 = vsub.s32 %v3721, %v3723
    %v3725 = vrot.slane %v3717, %v3724
    %v3727 = vunpack.c.l.s4 1966171168
    %v3728 = vunpack.c.0.s8 %v3727
    %v3729 = vlaneseq
    %v3730 = vshrl.u32 %v3729, 7
    %v3731 = vsub.s32 %v3728, %v3730
    %v3732 = vrot.slane %v3718, %v3731
    %v3733 = vcombine.high %v3725, %v3725
    %v3734 = vcombine.high %v3732, %v3732
    %v3736 = vunpack.c.l.s4 1966171168
    %v3737 = vunpack.c.0.s8 %v3736
    %v3738 = vlaneseq
    %v3739 = vshrl.u32 %v3738, 7
    %v3740 = vsub.s32 %v3737, %v3739
    %v3741 = vrot.slane %v3725, %v3740
    %v3743 = vunpack.c.l.s4 1966171168
    %v3744 = vunpack.c.0.s8 %v3743
    %v3745 = vlaneseq
    %v3746 = vshrl.u32 %v3745, 7
    %v3747 = vsub.s32 %v3744, %v3746
    %v3748 = vrot.slane %v3732, %v3747
    %v3750 = vunpack.c.l.s4 1966171168
    %v3751 = vunpack.c.0.s8 %v3750
    %v3752 = vlaneseq
    %v3753 = vshrl.u32 %v3752, 7
    %v3754 = vsub.s32 %v3751, %v3753
    %v3755 = vrot.slane %v3733, %v3754
    %v3757 = vunpack.c.l.s4 1966171168
    %v3758 = vunpack.c.0.s8 %v3757
    %v3759 = vlaneseq
    %v3760 = vshrl.u32 %v3759, 7
    %v3761 = vsub.s32 %v3758, %v3760
    %v3762 = vrot.slane %v3734, %v3761
    %v3763 = vcombine.high %v3741, %v3741
    %v3764 = vcombine.high %v3748, %v3748
    %v3765 = vcombine.high %v3755, %v3755
    %v3766 = vcombine.high %v3762, %v3762
    %v3767 = vcombine.low %v3067, %v3058
    %v3769 = vunpack.c.l.s4 1966171168
    %v3770 = vunpack.c.0.s8 %v3769
    %v3771 = vlaneseq
    %v3772 = vshrl.u32 %v3771, 7
    %v3773 = vsub.s32 %v3770, %v3772
    %v3774 = vrot.slane %v3767, %v3773
    %v3776 = vunpack.c.l.s4 1966171168
    %v3777 = vunpack.c.0.s8 %v3776
    %v3778 = vlaneseq
    %v3779 = vshrl.u32 %v3778, 7
    %v3780 = vsub.s32 %v3777, %v3779
    %v3781 = vrot.slane %v3774, %v3780
    %v4232 = vunpack.c.l.b16 %v3068
    %v4233 = vunpack.c.h.b16 %v3068
    %v4234 = vunpack.c.l.b16 %v3069
    %v4235 = vunpack.c.h.b16 %v3069
    %v4236 = vunpack.c.l.b16 %v3070
    %v4237 = vunpack.c.h.b16 %v3070
    %v4238 = vunpack.c.l.b16 %v3071
    %v4239 = vunpack.c.h.b16 %v3071
    %v4240 = vunpack.c.l.b16 %v3072
    %v4241 = vunpack.c.h.b16 %v3072
    %v4242 = vunpack.c.l.b16 %v3073
    %v4243 = vunpack.c.h.b16 %v3073
    %v4244 = vunpack.c.l.b16 %v3074
    %v4245 = vunpack.c.h.b16 %v3074
    %v4246 = vunpack.c.l.b16 %v3075
    %v4247 = vunpack.c.h.b16 %v3075
    %v4248 = vunpack.c.l.b16 %v3076
    %v4249 = vunpack.c.h.b16 %v3076
    %v4250 = vunpack.c.l.b16 %v3077
    %v4251 = vunpack.c.h.b16 %v3077
    %v4252 = vunpack.c.l.b16 %v3078
    %v4253 = vunpack.c.h.b16 %v3078
    %v4254 = vunpack.c.l.b16 %v3079
    %v4255 = vunpack.c.h.b16 %v3079
    %v4256 = vunpack.c.l.b16 %v3080
    %v4257 = vunpack.c.h.b16 %v3080
    %v4258 = vunpack.c.l.b16 %v3081
    %v4259 = vunpack.c.h.b16 %v3081
    %v4260 = vunpack.c.l.b16 %v3082
    %v4261 = vunpack.c.h.b16 %v3082
    %v4262 = vunpack.c.l.b16 %v3083
    %v4263 = vunpack.c.h.b16 %v3083
    %v4264 = vunpack.c.l.b16 %v3084
    %v4265 = vunpack.c.h.b16 %v3084
    %v4266 = vunpack.c.l.b16 %v3085
    %v4267 = vunpack.c.h.b16 %v3085
    %v4268 = vunpack.c.l.b16 %v3086
    %v4269 = vunpack.c.h.b16 %v3086
    %v4270 = vunpack.c.l.b16 %v3087
    %v4271 = vunpack.c.h.b16 %v3087
    %v4272 = vunpack.c.l.b16 %v3088
    %v4273 = vunpack.c.h.b16 %v3088
    %v4274 = vunpack.c.l.b16 %v3089
    %v4275 = vunpack.c.h.b16 %v3089
    %v4276 = vunpack.c.l.b16 %v3090
    %v4277 = vunpack.c.h.b16 %v3090
    %v4278 = vunpack.c.l.b16 %v3091
    %v4279 = vunpack.c.h.b16 %v3091
    %v4280 = vunpack.c.l.b16 %v3092
    %v4281 = vunpack.c.h.b16 %v3092
    %v4282 = vunpack.c.l.b16 %v3093
    %v4283 = vunpack.c.h.b16 %v3093
    %v4284 = vunpack.c.l.b16 %v3094
    %v4285 = vunpack.c.h.b16 %v3094
    %v4286 = vunpack.c.l.b16 %v3095
    %v4287 = vunpack.c.h.b16 %v3095
    %v4288 = vunpack.c.l.b16 %v3096
    %v4289 = vunpack.c.h.b16 %v3096
    %v4290 = vunpack.c.l.b16 %v3097
    %v4291 = vunpack.c.h.b16 %v3097
    %v4292 = vunpack.c.l.b16 %v3098
    %v4293 = vunpack.c.h.b16 %v3098
    %v4294 = vunpack.c.l.b16 %v3099
    %v4295 = vunpack.c.h.b16 %v3099
    %v4296 = vunpack.c.l.b16 %v3100
    %v4297 = vunpack.c.h.b16 %v3100
    %v4298 = vunpack.c.l.b16 %v3101
    %v4299 = vunpack.c.h.b16 %v3101
    %v4300 = vunpack.c.l.b16 %v3102
    %v4301 = vunpack.c.h.b16 %v3102
    %v4302 = vunpack.c.l.b16 %v3103
    %v4303 = vunpack.c.h.b16 %v3103
    %v4304 = vunpack.c.l.b16 %v3104
    %v4305 = vunpack.c.h.b16 %v3104
    %v4306 = vunpack.c.l.b16 %v3105
    %v4307 = vunpack.c.h.b16 %v3105
    %v4308 = vunpack.c.l.b16 %v3106
    %v4309 = vunpack.c.h.b16 %v3106
    %v4310 = vunpack.c.l.b16 %v3107
    %v4311 = vunpack.c.h.b16 %v3107
    %v4312 = vunpack.c.l.b16 %v3108
    %v4313 = vunpack.c.h.b16 %v3108
    %v4314 = vunpack.c.l.b16 %v3109
    %v4315 = vunpack.c.h.b16 %v3109
    %v4316 = vunpack.c.l.b16 %v3110
    %v4317 = vunpack.c.h.b16 %v3110
    %v4318 = vunpack.c.l.b16 %v3111
    %v4319 = vunpack.c.h.b16 %v3111
    %v4320 = vunpack.c.l.b16 %v3112
    %v4321 = vunpack.c.h.b16 %v3112
    %v4322 = vunpack.c.l.b16 %v3113
    %v4323 = vunpack.c.h.b16 %v3113
    %v4324 = vunpack.c.l.b16 %v3114
    %v4325 = vunpack.c.h.b16 %v3114
    %v4326 = vunpack.c.l.b16 %v3115
    %v4327 = vunpack.c.h.b16 %v3115
    %v4328 = vunpack.c.l.b16 %v3116
    %v4329 = vunpack.c.h.b16 %v3116
    %v4330 = vunpack.c.l.b16 %v3117
    %v4331 = vunpack.c.h.b16 %v3117
    %v4332 = vunpack.c.l.b16 %v3118
    %v4333 = vunpack.c.h.b16 %v3118
    %v4334 = vunpack.c.l.b16 %v3119
    %v4335 = vunpack.c.h.b16 %v3119
    %v4336 = vunpack.c.l.b16 %v3120
    %v4337 = vunpack.c.h.b16 %v3120
    %v4338 = vunpack.c.l.b16 %v3121
    %v4339 = vunpack.c.h.b16 %v3121
    %v4340 = vunpack.c.l.b16 %v3122
    %v4341 = vunpack.c.h.b16 %v3122
    %v4342 = vunpack.c.l.b16 %v3123
    %v4343 = vunpack.c.h.b16 %v3123
    %v4344 = vunpack.c.l.b16 %v3124
    %v4345 = vunpack.c.h.b16 %v3124
    %v4346 = vunpack.c.l.b16 %v3125
    %v4347 = vunpack.c.h.b16 %v3125
    %v4348 = vunpack.c.l.b16 %v3126
    %v4349 = vunpack.c.h.b16 %v3126
    %v4350 = vunpack.c.l.b16 %v3127
    %v4351 = vunpack.c.h.b16 %v3127
    %v4352 = vunpack.c.l.b16 %v3128
    %v4353 = vunpack.c.h.b16 %v3128
    %v4354 = vunpack.c.l.b16 %v3129
    %v4355 = vunpack.c.h.b16 %v3129
    %v4356 = vunpack.c.l.b16 %v3130
    %v4357 = vunpack.c.h.b16 %v3130
    %v4358 = vunpack.c.l.b16 %v3131
    %v4359 = vunpack.c.h.b16 %v3131
    %v4360 = vunpack.c.l.b16 %v3132
    %v4361 = vunpack.c.h.b16 %v3132
    %v4362 = vunpack.c.l.b16 %v3133
    %v4363 = vunpack.c.h.b16 %v3133
    %v4364 = vunpack.c.l.b16 %v3134
    %v4365 = vunpack.c.h.b16 %v3134
    %v4366 = vunpack.c.l.b16 %v3135
    %v4367 = vunpack.c.h.b16 %v3135
    %v4368 = vunpack.c.l.b16 %v3136
    %v4369 = vunpack.c.h.b16 %v3136
    %v4370 = vunpack.c.l.b16 %v3137
    %v4371 = vunpack.c.h.b16 %v3137
    %v4372 = vunpack.c.l.b16 %v3138
    %v4373 = vunpack.c.h.b16 %v3138
    %v4374 = vunpack.c.l.b16 %v3139
    %v4375 = vunpack.c.h.b16 %v3139
    %v4376 = vunpack.c.l.b16 %v3140
    %v4377 = vunpack.c.h.b16 %v3140
    %v4378 = vunpack.c.l.b16 %v3141
    %v4379 = vunpack.c.h.b16 %v3141
    %v4380 = vunpack.c.l.b16 %v3142
    %v4381 = vunpack.c.h.b16 %v3142
    %v4382 = vunpack.c.l.b16 %v3143
    %v4383 = vunpack.c.h.b16 %v3143
    %v4384 = vunpack.c.l.b16 %v3144
    %v4385 = vunpack.c.h.b16 %v3144
    %v4386 = vunpack.c.l.b16 %v3145
    %v4387 = vunpack.c.h.b16 %v3145
    %v4388 = vunpack.c.l.b16 %v3146
    %v4389 = vunpack.c.h.b16 %v3146
    %v4390 = vunpack.c.l.b16 %v3147
    %v4391 = vunpack.c.h.b16 %v3147
    %v4392 = vunpack.c.l.b16 %v3148
    %v4393 = vunpack.c.h.b16 %v3148
    %v4394 = vunpack.c.l.b16 %v3149
    %v4395 = vunpack.c.h.b16 %v3149
    %v4396 = vunpack.c.l.b16 %v3150
    %v4397 = vunpack.c.h.b16 %v3150
    %v4398 = vunpack.c.l.b16 %v3151
    %v4399 = vunpack.c.h.b16 %v3151
    %v4400 = vunpack.c.l.b16 %v3152
    %v4401 = vunpack.c.h.b16 %v3152
    %v4402 = vunpack.c.l.b16 %v3153
    %v4403 = vunpack.c.h.b16 %v3153
    %v4404 = vunpack.c.l.b16 %v3154
    %v4405 = vunpack.c.h.b16 %v3154
    %v4406 = vunpack.c.l.b16 %v3155
    %v4407 = vunpack.c.h.b16 %v3155
    %v4408 = vunpack.c.l.b16 %v3156
    %v4409 = vunpack.c.h.b16 %v3156
    %v4410 = vunpack.c.l.b16 %v3157
    %v4411 = vunpack.c.h.b16 %v3157
    %v4412 = vunpack.c.l.b16 %v3158
    %v4413 = vunpack.c.h.b16 %v3158
    %v4414 = vunpack.c.l.b16 %v3159
    %v4415 = vunpack.c.h.b16 %v3159
    %v4416 = vunpack.c.l.b16 %v3160
    %v4417 = vunpack.c.h.b16 %v3160
    %v4418 = vunpack.c.l.b16 %v3161
    %v4419 = vunpack.c.h.b16 %v3161
    %v4420 = vunpack.c.l.b16 %v3162
    %v4421 = vunpack.c.h.b16 %v3162
    %v4422 = vunpack.c.l.b16 %v3163
    %v4423 = vunpack.c.h.b16 %v3163
    %v4424 = vunpack.c.l.b16 %v3164
    %v4425 = vunpack.c.h.b16 %v3164
    %v4426 = vunpack.c.l.b16 %v3165
    %v4427 = vunpack.c.h.b16 %v3165
    %v4428 = vunpack.c.l.b16 %v3166
    %v4429 = vunpack.c.h.b16 %v3166
    %v4430 = vunpack.c.l.b16 %v3167
    %v4431 = vunpack.c.h.b16 %v3167
    %v4432 = vunpack.c.l.b16 %v3168
    %v4433 = vunpack.c.h.b16 %v3168
    %v4434 = vunpack.c.l.b16 %v3169
    %v4435 = vunpack.c.h.b16 %v3169
    %v4436 = vunpack.c.l.b16 %v3170
    %v4437 = vunpack.c.h.b16 %v3170
    %v4438 = vunpack.c.l.b16 %v3171
    %v4439 = vunpack.c.h.b16 %v3171
    %v4440 = vunpack.c.l.b16 %v3172
    %v4441 = vunpack.c.h.b16 %v3172
    %v4442 = vunpack.c.l.b16 %v3173
    %v4443 = vunpack.c.h.b16 %v3173
    %v4444 = vunpack.c.l.b16 %v3174
    %v4445 = vunpack.c.h.b16 %v3174
    %v4446 = vunpack.c.l.b16 %v3175
    %v4447 = vunpack.c.h.b16 %v3175
    %v4448 = vunpack.c.l.b16 %v3176
    %v4449 = vunpack.c.h.b16 %v3176
    %v4450 = vunpack.c.l.b16 %v3177
    %v4451 = vunpack.c.h.b16 %v3177
    %v4452 = vunpack.c.l.b16 %v3178
    %v4453 = vunpack.c.h.b16 %v3178
    %v4454 = vunpack.c.l.b16 %v3179
    %v4455 = vunpack.c.h.b16 %v3179
    %v4456 = vunpack.c.l.b16 %v3180
    %v4457 = vunpack.c.h.b16 %v3180
    %v4458 = vunpack.c.l.b16 %v3181
    %v4459 = vunpack.c.h.b16 %v3181
    %v4460 = vunpack.c.l.b16 %v3182
    %v4461 = vunpack.c.h.b16 %v3182
    %v4462 = vunpack.c.l.b16 %v3183
    %v4463 = vunpack.c.h.b16 %v3183
    %v4464 = vunpack.c.l.b16 %v3184
    %v4465 = vunpack.c.h.b16 %v3184
    %v4466 = vunpack.c.l.b16 %v3185
    %v4467 = vunpack.c.h.b16 %v3185
    %v4468 = vunpack.c.l.b16 %v3186
    %v4469 = vunpack.c.h.b16 %v3186
    %v4470 = vunpack.c.l.b16 %v3187
    %v4471 = vunpack.c.h.b16 %v3187
    %v4472 = vunpack.c.l.b16 %v3188
    %v4473 = vunpack.c.h.b16 %v3188
    %v4474 = vunpack.c.l.b16 %v3189
    %v4475 = vunpack.c.h.b16 %v3189
    %v4476 = vunpack.c.l.b16 %v3190
    %v4477 = vunpack.c.h.b16 %v3190
    %v4478 = vunpack.c.l.b16 %v3191
    %v4479 = vunpack.c.h.b16 %v3191
    %v4480 = vunpack.c.l.b16 %v3192
    %v4481 = vunpack.c.h.b16 %v3192
    %v4482 = vunpack.c.l.b16 %v3193
    %v4483 = vunpack.c.h.b16 %v3193
    %v4484 = vunpack.c.l.b16 %v3194
    %v4485 = vunpack.c.h.b16 %v3194
    %v4486 = vunpack.c.l.b16 %v3195
    %v4487 = vunpack.c.h.b16 %v3195
    %v4488 = vunpack.c.l.b16 %v3196
    %v4489 = vunpack.c.h.b16 %v3196
    %v4490 = vunpack.c.l.b16 %v3197
    %v4491 = vunpack.c.h.b16 %v3197
    %v4492 = vunpack.c.l.b16 %v3198
    %v4493 = vunpack.c.h.b16 %v3198
    %v4494 = vunpack.c.l.b16 %v3199
    %v4495 = vunpack.c.h.b16 %v3199
    %v4496 = vunpack.c.l.b16 %v3200
    %v4497 = vunpack.c.h.b16 %v3200
    %v4498 = vunpack.c.l.b16 %v3201
    %v4499 = vunpack.c.h.b16 %v3201
    %v4500 = vunpack.c.l.b16 %v3202
    %v4501 = vunpack.c.h.b16 %v3202
    %v4502 = vunpack.c.l.b16 %v3203
    %v4503 = vunpack.c.h.b16 %v3203
    %v4504 = vunpack.c.l.b16 %v3204
    %v4505 = vunpack.c.h.b16 %v3204
    %v4506 = vunpack.c.l.b16 %v3205
    %v4507 = vunpack.c.h.b16 %v3205
    %v4508 = vunpack.c.l.b16 %v3206
    %v4509 = vunpack.c.h.b16 %v3206
    %v4510 = vunpack.c.l.b16 %v3207
    %v4511 = vunpack.c.h.b16 %v3207
    %v4512 = vunpack.c.l.b16 %v3208
    %v4513 = vunpack.c.h.b16 %v3208
    %v4514 = vunpack.c.l.b16 %v3209
    %v4515 = vunpack.c.h.b16 %v3209
    %v4516 = vunpack.c.l.b16 %v3210
    %v4517 = vunpack.c.h.b16 %v3210
    %v4518 = vunpack.c.l.b16 %v3211
    %v4519 = vunpack.c.h.b16 %v3211
    %v4520 = vunpack.c.l.b16 %v3212
    %v4521 = vunpack.c.h.b16 %v3212
    %v4522 = vunpack.c.l.b16 %v3213
    %v4523 = vunpack.c.h.b16 %v3213
    %v4524 = vunpack.c.l.b16 %v3214
    %v4525 = vunpack.c.h.b16 %v3214
    %v4526 = vunpack.c.l.b16 %v3215
    %v4527 = vunpack.c.h.b16 %v3215
    %v4528 = vunpack.c.l.b16 %v3216
    %v4529 = vunpack.c.h.b16 %v3216
    %v4530 = vunpack.c.l.b16 %v3217
    %v4531 = vunpack.c.h.b16 %v3217
    %v4532 = vunpack.c.l.b16 %v3218
    %v4533 = vunpack.c.h.b16 %v3218
    %v4534 = vunpack.c.l.b16 %v3219
    %v4535 = vunpack.c.h.b16 %v3219
    %v4536 = vunpack.c.l.b16 %v3220
    %v4537 = vunpack.c.h.b16 %v3220
    %v4538 = vunpack.c.l.b16 %v3221
    %v4539 = vunpack.c.h.b16 %v3221
    %v4540 = vunpack.c.l.b16 %v3222
    %v4541 = vunpack.c.h.b16 %v3222
    %v4542 = vunpack.c.l.b16 %v3223
    %v4543 = vunpack.c.h.b16 %v3223
    %v4544 = vunpack.c.l.b16 %v3224
    %v4545 = vunpack.c.h.b16 %v3224
    %v4546 = vunpack.c.l.b16 %v3225
    %v4547 = vunpack.c.h.b16 %v3225
    %v4548 = vunpack.c.l.b16 %v3226
    %v4549 = vunpack.c.h.b16 %v3226
    %v4550 = vunpack.c.l.b16 %v3227
    %v4551 = vunpack.c.h.b16 %v3227
    %v4552 = vunpack.c.l.b16 %v3228
    %v4553 = vunpack.c.h.b16 %v3228
    %v4554 = vunpack.c.l.b16 %v3229
    %v4555 = vunpack.c.h.b16 %v3229
    %v4556 = vunpack.c.l.b16 %v3230
    %v4557 = vunpack.c.h.b16 %v3230
    %v4558 = vunpack.c.l.b16 %v3231
    %v4559 = vunpack.c.h.b16 %v3231
    %v4560 = vunpack.c.l.b16 %v3232
    %v4561 = vunpack.c.h.b16 %v3232
    %v4562 = vunpack.c.l.b16 %v3233
    %v4563 = vunpack.c.h.b16 %v3233
    %v4564 = vunpack.c.l.b16 %v3234
    %v4565 = vunpack.c.h.b16 %v3234
    %v4566 = vunpack.c.l.b16 %v3235
    %v4567 = vunpack.c.h.b16 %v3235
    %v4568 = vunpack.c.l.b16 %v3236
    %v4569 = vunpack.c.h.b16 %v3236
    %v4570 = vunpack.c.l.b16 %v3237
    %v4571 = vunpack.c.h.b16 %v3237
    %v4572 = vunpack.c.l.b16 %v3238
    %v4573 = vunpack.c.h.b16 %v3238
    %v4574 = vunpack.c.l.b16 %v3239
    %v4575 = vunpack.c.h.b16 %v3239
    %v4576 = vunpack.c.l.b16 %v3240
    %v4577 = vunpack.c.h.b16 %v3240
    %v4578 = vunpack.c.l.b16 %v3241
    %v4579 = vunpack.c.h.b16 %v3241
    %v4580 = vunpack.c.l.b16 %v3242
    %v4581 = vunpack.c.h.b16 %v3242
    %v4582 = vunpack.c.l.b16 %v3243
    %v4583 = vunpack.c.h.b16 %v3243
    %v4584 = vunpack.c.l.b16 %v3244
    %v4585 = vunpack.c.h.b16 %v3244
    %v4586 = vunpack.c.l.b16 %v3245
    %v4587 = vunpack.c.h.b16 %v3245
    %v4588 = vunpack.c.l.b16 %v3246
    %v4589 = vunpack.c.h.b16 %v3246
    %v4590 = vunpack.c.l.b16 %v3247
    %v4591 = vunpack.c.h.b16 %v3247
    %v4592 = vunpack.c.l.b16 %v3248
    %v4593 = vunpack.c.h.b16 %v3248
    %v4594 = vunpack.c.l.b16 %v3249
    %v4595 = vunpack.c.h.b16 %v3249
    %v4596 = vunpack.c.l.b16 %v3250
    %v4597 = vunpack.c.h.b16 %v3250
    %v4598 = vunpack.c.l.b16 %v3251
    %v4599 = vunpack.c.h.b16 %v3251
    %v4600 = vunpack.c.l.b16 %v3252
    %v4601 = vunpack.c.h.b16 %v3252
    %v4602 = vunpack.c.l.b16 %v3253
    %v4603 = vunpack.c.h.b16 %v3253
    %v4604 = vunpack.c.l.b16 %v3254
    %v4605 = vunpack.c.h.b16 %v3254
    %v4606 = vunpack.c.l.b16 %v3255
    %v4607 = vunpack.c.h.b16 %v3255
    %v4608 = vunpack.c.l.b16 %v3256
    %v4609 = vunpack.c.h.b16 %v3256
    %v4610 = vunpack.c.l.b16 %v3257
    %v4611 = vunpack.c.h.b16 %v3257
    %v4612 = vunpack.c.l.b16 %v3258
    %v4613 = vunpack.c.h.b16 %v3258
    %v4614 = vunpack.c.l.b16 %v3259
    %v4615 = vunpack.c.h.b16 %v3259
    %v4616 = vunpack.c.l.b16 %v3260
    %v4617 = vunpack.c.h.b16 %v3260
    %v4618 = vunpack.c.l.b16 %v3261
    %v4619 = vunpack.c.h.b16 %v3261
    %v4620 = vunpack.c.l.b16 %v3262
    %v4621 = vunpack.c.h.b16 %v3262
    %v4622 = vunpack.c.l.b16 %v3263
    %v4623 = vunpack.c.h.b16 %v3263
    %v4624 = vunpack.c.l.b16 %v3264
    %v4625 = vunpack.c.h.b16 %v3264
    %v4626 = vunpack.c.l.b16 %v3265
    %v4627 = vunpack.c.h.b16 %v3265
    %v4628 = vunpack.c.l.b16 %v3266
    %v4629 = vunpack.c.h.b16 %v3266
    %v4630 = vunpack.c.l.b16 %v3267
    %v4631 = vunpack.c.h.b16 %v3267
    %v4632 = vunpack.c.l.b16 %v3268
    %v4633 = vunpack.c.h.b16 %v3268
    %v4634 = vunpack.c.l.b16 %v3269
    %v4635 = vunpack.c.h.b16 %v3269
    %v4636 = vunpack.c.l.b16 %v3270
    %v4637 = vunpack.c.h.b16 %v3270
    %v4638 = vunpack.c.l.b16 %v3271
    %v4639 = vunpack.c.h.b16 %v3271
    %v4640 = vunpack.c.l.b16 %v3272
    %v4641 = vunpack.c.h.b16 %v3272
    %v4642 = vunpack.c.l.b16 %v3273
    %v4643 = vunpack.c.h.b16 %v3273
    %v4644 = vunpack.c.l.b16 %v3274
    %v4645 = vunpack.c.h.b16 %v3274
    %v4646 = vunpack.c.l.b16 %v3275
    %v4647 = vunpack.c.h.b16 %v3275
    %v4648 = vunpack.c.l.b16 %v3276
    %v4649 = vunpack.c.h.b16 %v3276
    %v4650 = vunpack.c.l.b16 %v3277
    %v4651 = vunpack.c.h.b16 %v3277
    %v4652 = vunpack.c.l.b16 %v3278
    %v4653 = vunpack.c.h.b16 %v3278
    %v4654 = vunpack.c.l.b16 %v3279
    %v4655 = vunpack.c.h.b16 %v3279
    %v4656 = vunpack.c.l.b16 %v3280
    %v4657 = vunpack.c.h.b16 %v3280
    %v4658 = vunpack.c.l.b16 %v3281
    %v4659 = vunpack.c.h.b16 %v3281
    %v4660 = vunpack.c.l.b16 %v3282
    %v4661 = vunpack.c.h.b16 %v3282
    %v4662 = vunpack.c.l.b16 %v3283
    %v4663 = vunpack.c.h.b16 %v3283
    %v4664 = vunpack.c.l.b16 %v3284
    %v4665 = vunpack.c.h.b16 %v3284
    %v4666 = vunpack.c.l.b16 %v3285
    %v4667 = vunpack.c.h.b16 %v3285
    %v4668 = vunpack.c.l.b16 %v3286
    %v4669 = vunpack.c.h.b16 %v3286
    %v4670 = vunpack.c.l.b16 %v3287
    %v4671 = vunpack.c.h.b16 %v3287
    %v4672 = vunpack.c.l.b16 %v3288
    %v4673 = vunpack.c.h.b16 %v3288
    %v4674 = vunpack.c.l.b16 %v3289
    %v4675 = vunpack.c.h.b16 %v3289
    %v4676 = vunpack.c.l.b16 %v3290
    %v4677 = vunpack.c.h.b16 %v3290
    %v4678 = vunpack.c.l.b16 %v3291
    %v4679 = vunpack.c.h.b16 %v3291
    %v4680 = vunpack.c.l.b16 %v3292
    %v4681 = vunpack.c.h.b16 %v3292
    %v4682 = vunpack.c.l.b16 %v3293
    %v4683 = vunpack.c.h.b16 %v3293
    %v4684 = vunpack.c.l.b16 %v3294
    %v4685 = vunpack.c.h.b16 %v3294
    %v4686 = vunpack.c.l.b16 %v3295
    %v4687 = vunpack.c.h.b16 %v3295
    %v4688 = vunpack.c.l.b16 %v3296
    %v4689 = vunpack.c.h.b16 %v3296
    %v4690 = vunpack.c.l.b16 %v3297
    %v4691 = vunpack.c.h.b16 %v3297
    %v4692 = vunpack.c.l.b16 %v3298
    %v4693 = vunpack.c.h.b16 %v3298
    %v4694 = vunpack.c.l.b16 %v3299
    %v4695 = vunpack.c.h.b16 %v3299
    %v4696 = vunpack.c.l.b16 %v3300
    %v4697 = vunpack.c.h.b16 %v3300
    %v4698 = vunpack.c.l.b16 %v3301
    %v4699 = vunpack.c.h.b16 %v3301
    %v4700 = vunpack.c.l.b16 %v3302
    %v4701 = vunpack.c.h.b16 %v3302
    %v4702 = vunpack.c.l.b16 %v3303
    %v4703 = vunpack.c.h.b16 %v3303
    %v4704 = vunpack.c.l.b16 %v3304
    %v4705 = vunpack.c.h.b16 %v3304
    %v4706 = vunpack.c.l.b16 %v3305
    %v4707 = vunpack.c.h.b16 %v3305
    %v4708 = vunpack.c.l.b16 %v3306
    %v4709 = vunpack.c.h.b16 %v3306
    %v4710 = vunpack.c.l.b16 %v3307
    %v4711 = vunpack.c.h.b16 %v3307
    %v4712 = vunpack.c.l.b16 %v3308
    %v4713 = vunpack.c.h.b16 %v3308
    %v4714 = vunpack.c.l.b16 %v3309
    %v4715 = vunpack.c.h.b16 %v3309
    %v4716 = vunpack.c.l.b16 %v3310
    %v4717 = vunpack.c.h.b16 %v3310
    %v4718 = vunpack.c.l.b16 %v3311
    %v4719 = vunpack.c.h.b16 %v3311
    %v4720 = vunpack.c.l.b16 %v3312
    %v4721 = vunpack.c.h.b16 %v3312
    %v4722 = vunpack.c.l.b16 %v3313
    %v4723 = vunpack.c.h.b16 %v3313
    %v4724 = vunpack.c.l.b16 %v3314
    %v4725 = vunpack.c.h.b16 %v3314
    %v4726 = vunpack.c.l.b16 %v3315
    %v4727 = vunpack.c.h.b16 %v3315
    %v4728 = vunpack.c.l.b16 %v3316
    %v4729 = vunpack.c.h.b16 %v3316
    %v4730 = vunpack.c.l.b16 %v3317
    %v4731 = vunpack.c.h.b16 %v3317
    %v4732 = vunpack.c.l.b16 %v3318
    %v4733 = vunpack.c.h.b16 %v3318
    %v4734 = vunpack.c.l.b16 %v3319
    %v4735 = vunpack.c.h.b16 %v3319
    %v4736 = vunpack.c.l.b16 %v3320
    %v4737 = vunpack.c.h.b16 %v3320
    %v4738 = vunpack.c.l.b16 %v3321
    %v4739 = vunpack.c.h.b16 %v3321
    %v4740 = vunpack.c.l.b16 %v3322
    %v4741 = vunpack.c.h.b16 %v3322
    %v4742 = vunpack.c.l.b16 %v3323
    %v4743 = vunpack.c.h.b16 %v3323
    %v4744 = vunpack.c.l.b16 %v3324
    %v4745 = vunpack.c.h.b16 %v3324
    %v4746 = vunpack.c.l.b16 %v3325
    %v4747 = vunpack.c.h.b16 %v3325
    %v4748 = vunpack.c.l.b16 %v3326
    %v4749 = vunpack.c.h.b16 %v3326
    %v4750 = vunpack.c.l.b16 %v3327
    %v4751 = vunpack.c.h.b16 %v3327
    %v4752 = vunpack.c.l.b16 %v3328
    %v4753 = vunpack.c.h.b16 %v3328
    %v4754 = vunpack.c.l.b16 %v3329
    %v4755 = vunpack.c.h.b16 %v3329
    %v4756 = vunpack.c.l.b16 %v3330
    %v4757 = vunpack.c.h.b16 %v3330
    %v4758 = vunpack.c.l.b16 %v3331
    %v4759 = vunpack.c.h.b16 %v3331
    %v4760 = vunpack.c.l.b16 %v3332
    %v4761 = vunpack.c.h.b16 %v3332
    %v4762 = vunpack.c.l.b16 %v3333
    %v4763 = vunpack.c.h.b16 %v3333
    %v4764 = vunpack.c.l.b16 %v3334
    %v4765 = vunpack.c.h.b16 %v3334
    %v4766 = vunpack.c.l.b16 %v3335
    %v4767 = vunpack.c.h.b16 %v3335
    %v4768 = vunpack.c.l.b16 %v3336
    %v4769 = vunpack.c.h.b16 %v3336
    %v4770 = vunpack.c.l.b16 %v3337
    %v4771 = vunpack.c.h.b16 %v3337
    %v4772 = vunpack.c.l.b16 %v3338
    %v4773 = vunpack.c.h.b16 %v3338
    %v4774 = vunpack.c.l.b16 %v3339
    %v4775 = vunpack.c.h.b16 %v3339
    %v4776 = vunpack.c.l.b16 %v3340
    %v4777 = vunpack.c.h.b16 %v3340
    %v4778 = vunpack.c.l.b16 %v3341
    %v4779 = vunpack.c.h.b16 %v3341
    %v4780 = vunpack.c.l.b16 %v3342
    %v4781 = vunpack.c.h.b16 %v3342
    %v4782 = vunpack.c.l.b16 %v3343
    %v4783 = vunpack.c.h.b16 %v3343
    %v4784 = vunpack.c.l.b16 %v3344
    %v4785 = vunpack.c.h.b16 %v3344
    %v4786 = vunpack.c.l.b16 %v3345
    %v4787 = vunpack.c.h.b16 %v3345
    %v4788 = vunpack.c.l.b16 %v3346
    %v4789 = vunpack.c.h.b16 %v3346
    %v4790 = vunpack.c.l.b16 %v3347
    %v4791 = vunpack.c.h.b16 %v3347
    %v4792 = vunpack.c.l.b16 %v3348
    %v4793 = vunpack.c.h.b16 %v3348
    %v4794 = vunpack.c.l.b16 %v3349
    %v4795 = vunpack.c.h.b16 %v3349
    %v4796 = vunpack.c.l.b16 %v3350
    %v4797 = vunpack.c.h.b16 %v3350
    %v4798 = vunpack.c.l.b16 %v3351
    %v4799 = vunpack.c.h.b16 %v3351
    %v4800 = vunpack.c.l.b16 %v3352
    %v4801 = vunpack.c.h.b16 %v3352
    %v4802 = vunpack.c.l.b16 %v3353
    %v4803 = vunpack.c.h.b16 %v3353
    %v4804 = vunpack.c.l.b16 %v3354
    %v4805 = vunpack.c.h.b16 %v3354
    %v4806 = vunpack.c.l.b16 %v3355
    %v4807 = vunpack.c.h.b16 %v3355
    %v4808 = vunpack.c.l.b16 %v3356
    %v4809 = vunpack.c.h.b16 %v3356
    %v4810 = vunpack.c.l.b16 %v3357
    %v4811 = vunpack.c.h.b16 %v3357
    %v4812 = vunpack.c.l.b16 %v3358
    %v4813 = vunpack.c.h.b16 %v3358
    %v4814 = vunpack.c.l.b16 %v3359
    %v4815 = vunpack.c.h.b16 %v3359
    %v4816 = vunpack.c.l.b16 %v3360
    %v4817 = vunpack.c.h.b16 %v3360
    %v4818 = vunpack.c.l.b16 %v3361
    %v4819 = vunpack.c.h.b16 %v3361
    %v4820 = vunpack.c.l.b16 %v3362
    %v4821 = vunpack.c.h.b16 %v3362
    %v4822 = vunpack.c.l.b16 %v3363
    %v4823 = vunpack.c.h.b16 %v3363
    %v4824 = vunpack.c.l.b16 %v3364
    %v4825 = vunpack.c.h.b16 %v3364
    %v4826 = vunpack.c.l.b16 %v3365
    %v4827 = vunpack.c.h.b16 %v3365
    %v4828 = vunpack.c.l.b16 %v3366
    %v4829 = vunpack.c.h.b16 %v3366
    %v4830 = vunpack.c.l.b16 %v3367
    %v4831 = vunpack.c.h.b16 %v3367
    %v4832 = vunpack.c.l.b16 %v3368
    %v4833 = vunpack.c.h.b16 %v3368
    %v4834 = vunpack.c.l.b16 %v3369
    %v4835 = vunpack.c.h.b16 %v3369
    %v4836 = vunpack.c.l.b16 %v3370
    %v4837 = vunpack.c.h.b16 %v3370
    %v4838 = vunpack.c.l.b16 %v3371
    %v4839 = vunpack.c.h.b16 %v3371
    %v4840 = vunpack.c.l.b16 %v3372
    %v4841 = vunpack.c.h.b16 %v3372
    %v4842 = vunpack.c.l.b16 %v3373
    %v4843 = vunpack.c.h.b16 %v3373
    %v4844 = vunpack.c.l.b16 %v3374
    %v4845 = vunpack.c.h.b16 %v3374
    %v4846 = vunpack.c.l.b16 %v3375
    %v4847 = vunpack.c.h.b16 %v3375
    %v4848 = vunpack.c.l.b16 %v3376
    %v4849 = vunpack.c.h.b16 %v3376
    %v4850 = vunpack.c.l.b16 %v3377
    %v4851 = vunpack.c.h.b16 %v3377
    %v4852 = vunpack.c.l.b16 %v3378
    %v4853 = vunpack.c.h.b16 %v3378
    %v4854 = vunpack.c.l.b16 %v3379
    %v4855 = vunpack.c.h.b16 %v3379
    %v4856 = vunpack.c.l.b16 %v3380
    %v4857 = vunpack.c.h.b16 %v3380
    %v4858 = vunpack.c.l.b16 %v3381
    %v4859 = vunpack.c.h.b16 %v3381
    %v4860 = vunpack.c.l.b16 %v3382
    %v4861 = vunpack.c.h.b16 %v3382
    %v4862 = vunpack.c.l.b16 %v3383
    %v4863 = vunpack.c.h.b16 %v3383
    %v4864 = vunpack.c.l.b16 %v3384
    %v4865 = vunpack.c.h.b16 %v3384
    %v4866 = vunpack.c.l.b16 %v3385
    %v4867 = vunpack.c.h.b16 %v3385
    %v4868 = vunpack.c.l.b16 %v3386
    %v4869 = vunpack.c.h.b16 %v3386
    %v4870 = vunpack.c.l.b16 %v3387
    %v4871 = vunpack.c.h.b16 %v3387
    %v4872 = vunpack.c.l.b16 %v3388
    %v4873 = vunpack.c.h.b16 %v3388
    %v4874 = vunpack.c.l.b16 %v3389
    %v4875 = vunpack.c.h.b16 %v3389
    %v4876 = vunpack.c.l.b16 %v3390
    %v4877 = vunpack.c.h.b16 %v3390
    %v4878 = vunpack.c.l.b16 %v3391
    %v4879 = vunpack.c.h.b16 %v3391
    %v4880 = vunpack.c.l.b16 %v3392
    %v4881 = vunpack.c.h.b16 %v3392
    %v4882 = vunpack.c.l.b16 %v3393
    %v4883 = vunpack.c.h.b16 %v3393
    %v4884 = vunpack.c.l.b16 %v3394
    %v4885 = vunpack.c.h.b16 %v3394
    %v4886 = vunpack.c.l.b16 %v3395
    %v4887 = vunpack.c.h.b16 %v3395
    %v4888 = vunpack.c.l.b16 %v3396
    %v4889 = vunpack.c.h.b16 %v3396
    %v4890 = vunpack.c.l.b16 %v3397
    %v4891 = vunpack.c.h.b16 %v3397
    %v4892 = vunpack.c.l.b16 %v3398
    %v4893 = vunpack.c.h.b16 %v3398
    %v4894 = vunpack.c.l.b16 %v3399
    %v4895 = vunpack.c.h.b16 %v3399
    %v4896 = vunpack.c.l.b16 %v3400
    %v4897 = vunpack.c.h.b16 %v3400
    %v4898 = vunpack.c.l.b16 %v3401
    %v4899 = vunpack.c.h.b16 %v3401
    %v4900 = vunpack.c.l.b16 %v3402
    %v4901 = vunpack.c.h.b16 %v3402
    %v4902 = vunpack.c.l.b16 %v3403
    %v4903 = vunpack.c.h.b16 %v3403
    %v4904 = vunpack.c.l.b16 %v3404
    %v4905 = vunpack.c.h.b16 %v3404
    %v4906 = vunpack.c.l.b16 %v3405
    %v4907 = vunpack.c.h.b16 %v3405
    %v4908 = vunpack.c.l.b16 %v3406
    %v4909 = vunpack.c.h.b16 %v3406
    %v4910 = vunpack.c.l.b16 %v3407
    %v4911 = vunpack.c.h.b16 %v3407
    %v4912 = vunpack.c.l.b16 %v3408
    %v4913 = vunpack.c.h.b16 %v3408
    %v4914 = vunpack.c.l.b16 %v3409
    %v4915 = vunpack.c.h.b16 %v3409
    %v4916 = vunpack.c.l.b16 %v3410
    %v4917 = vunpack.c.h.b16 %v3410
    %v4918 = vunpack.c.l.b16 %v3411
    %v4919 = vunpack.c.h.b16 %v3411
    %v4920 = vunpack.c.l.b16 %v3412
    %v4921 = vunpack.c.h.b16 %v3412
    %v4922 = vunpack.c.l.b16 %v3413
    %v4923 = vunpack.c.h.b16 %v3413
    %v4924 = vunpack.c.l.b16 %v3414
    %v4925 = vunpack.c.h.b16 %v3414
    %v4926 = vunpack.c.l.b16 %v3415
    %v4927 = vunpack.c.h.b16 %v3415
    %v4928 = vunpack.c.l.b16 %v3416
    %v4929 = vunpack.c.h.b16 %v3416
    %v4930 = vunpack.c.l.b16 %v3417
    %v4931 = vunpack.c.h.b16 %v3417
    %v4932 = vunpack.c.l.b16 %v3418
    %v4933 = vunpack.c.h.b16 %v3418
    %v4934 = vunpack.c.l.b16 %v3419
    %v4935 = vunpack.c.h.b16 %v3419
    %v4936 = vunpack.c.l.b16 %v3420
    %v4937 = vunpack.c.h.b16 %v3420
    %v4938 = vunpack.c.l.b16 %v3421
    %v4939 = vunpack.c.h.b16 %v3421
    %v4940 = vunpack.c.l.b16 %v3422
    %v4941 = vunpack.c.h.b16 %v3422
    %v4942 = vunpack.c.l.b16 %v3423
    %v4943 = vunpack.c.h.b16 %v3423
    %v4944 = vunpack.c.l.b16 %v3424
    %v4945 = vunpack.c.h.b16 %v3424
    %v4946 = vunpack.c.l.b16 %v3425
    %v4947 = vunpack.c.h.b16 %v3425
    %v4948 = vunpack.c.l.b16 %v3426
    %v4949 = vunpack.c.h.b16 %v3426
    %v4950 = vunpack.c.l.b16 %v3427
    %v4951 = vunpack.c.h.b16 %v3427
    %v4952 = vunpack.c.l.b16 %v3428
    %v4953 = vunpack.c.h.b16 %v3428
    %v4954 = vunpack.c.l.b16 %v3429
    %v4955 = vunpack.c.h.b16 %v3429
    %v4956 = vunpack.c.l.b16 %v3430
    %v4957 = vunpack.c.h.b16 %v3430
    %v4958 = vunpack.c.l.b16 %v3431
    %v4959 = vunpack.c.h.b16 %v3431
    %v4960 = vunpack.c.l.b16 %v3432
    %v4961 = vunpack.c.h.b16 %v3432
    %v4962 = vunpack.c.l.b16 %v3433
    %v4963 = vunpack.c.h.b16 %v3433
    %v4964 = vunpack.c.l.b16 %v3434
    %v4965 = vunpack.c.h.b16 %v3434
    %v4966 = vunpack.c.l.b16 %v3435
    %v4967 = vunpack.c.h.b16 %v3435
    %v4968 = vunpack.c.l.b16 %v3436
    %v4969 = vunpack.c.h.b16 %v3436
    %v4970 = vunpack.c.l.b16 %v3437
    %v4971 = vunpack.c.h.b16 %v3437
    %v4972 = vunpack.c.l.b16 %v3438
    %v4973 = vunpack.c.h.b16 %v3438
    %v4974 = vunpack.c.l.b16 %v3439
    %v4975 = vunpack.c.h.b16 %v3439
    %v4976 = vunpack.c.l.b16 %v3440
    %v4977 = vunpack.c.h.b16 %v3440
    %v4978 = vunpack.c.l.b16 %v3441
    %v4979 = vunpack.c.h.b16 %v3441
    %v4980 = vunpack.c.l.b16 %v3442
    %v4981 = vunpack.c.h.b16 %v3442
    %v4982 = vunpack.c.l.b16 %v3443
    %v4983 = vunpack.c.h.b16 %v3443
    %v4984 = vunpack.c.l.b16 %v3444
    %v4985 = vunpack.c.h.b16 %v3444
    %v4986 = vunpack.c.l.b16 %v3445
    %v4987 = vunpack.c.h.b16 %v3445
    %v4988 = vunpack.c.l.b16 %v3446
    %v4989 = vunpack.c.h.b16 %v3446
    %v4990 = vunpack.c.l.b16 %v3447
    %v4991 = vunpack.c.h.b16 %v3447
    %v4992 = vunpack.c.l.b16 %v3448
    %v4993 = vunpack.c.h.b16 %v3448
    %v4994 = vunpack.c.l.b16 %v3449
    %v4995 = vunpack.c.h.b16 %v3449
    %v4996 = vunpack.c.l.b16 %v3450
    %v4997 = vunpack.c.h.b16 %v3450
    %v4998 = vunpack.c.l.b16 %v3451
    %v4999 = vunpack.c.h.b16 %v3451
    %v5000 = vunpack.c.l.b16 %v3452
    %v5001 = vunpack.c.h.b16 %v3452
    %v5002 = vunpack.c.l.b16 %v3453
    %v5003 = vunpack.c.h.b16 %v3453
    %v5004 = vunpack.c.l.b16 %v3454
    %v5005 = vunpack.c.h.b16 %v3454
    %v5006 = vunpack.c.l.b16 %v3455
    %v5007 = vunpack.c.h.b16 %v3455
    %v5008 = vunpack.c.l.b16 %v3456
    %v5009 = vunpack.c.h.b16 %v3456
    %v5010 = vunpack.c.l.b16 %v3457
    %v5011 = vunpack.c.h.b16 %v3457
    %v5012 = vunpack.c.l.b16 %v3458
    %v5013 = vunpack.c.h.b16 %v3458
    %v5014 = vunpack.c.l.b16 %v3459
    %v5015 = vunpack.c.h.b16 %v3459
    %v5016 = vunpack.c.l.b16 %v3460
    %v5017 = vunpack.c.h.b16 %v3460
    %v5018 = vunpack.c.l.b16 %v3461
    %v5019 = vunpack.c.h.b16 %v3461
    %v5020 = vunpack.c.l.b16 %v3462
    %v5021 = vunpack.c.h.b16 %v3462
    %v5022 = vunpack.c.l.b16 %v3463
    %v5023 = vunpack.c.h.b16 %v3463
    %v5024 = vunpack.c.l.b16 %v3464
    %v5025 = vunpack.c.h.b16 %v3464
    %v5026 = vunpack.c.l.b16 %v3465
    %v5027 = vunpack.c.h.b16 %v3465
    %v5028 = vunpack.c.l.b16 %v3466
    %v5029 = vunpack.c.h.b16 %v3466
    %v5030 = vunpack.c.l.b16 %v3467
    %v5031 = vunpack.c.h.b16 %v3467
    %v5032 = vunpack.c.l.b16 %v3468
    %v5033 = vunpack.c.h.b16 %v3468
    %v5034 = vunpack.c.l.b16 %v3469
    %v5035 = vunpack.c.h.b16 %v3469
    %v5036 = vunpack.c.l.b16 %v3470
    %v5037 = vunpack.c.h.b16 %v3470
    %v5038 = vunpack.c.l.b16 %v3471
    %v5039 = vunpack.c.h.b16 %v3471
    %v5040 = vunpack.c.l.b16 %v3472
    %v5041 = vunpack.c.h.b16 %v3472
    %v5042 = vunpack.c.l.b16 %v3473
    %v5043 = vunpack.c.h.b16 %v3473
    %v5044 = vunpack.c.l.b16 %v3474
    %v5045 = vunpack.c.h.b16 %v3474
    %v5046 = vunpack.c.l.b16 %v3475
    %v5047 = vunpack.c.h.b16 %v3475
    %v5048 = vunpack.c.l.b16 %v3476
    %v5049 = vunpack.c.h.b16 %v3476
    %v5050 = vunpack.c.l.b16 %v3477
    %v5051 = vunpack.c.h.b16 %v3477
    %v5052 = vunpack.c.l.b16 %v3478
    %v5053 = vunpack.c.h.b16 %v3478
    %v5054 = vunpack.c.l.b16 %v3479
    %v5055 = vunpack.c.h.b16 %v3479
    %v5056 = vunpack.c.l.b16 %v3480
    %v5057 = vunpack.c.h.b16 %v3480
    %v5058 = vunpack.c.l.b16 %v3481
    %v5059 = vunpack.c.h.b16 %v3481
    %v5060 = vunpack.c.l.b16 %v3482
    %v5061 = vunpack.c.h.b16 %v3482
    %v5062 = vunpack.c.l.b16 %v3483
    %v5063 = vunpack.c.h.b16 %v3483
    %v5064 = vunpack.c.l.b16 %v3484
    %v5065 = vunpack.c.h.b16 %v3484
    %v5066 = vunpack.c.l.b16 %v3485
    %v5067 = vunpack.c.h.b16 %v3485
    %v5068 = vunpack.c.l.b16 %v3486
    %v5069 = vunpack.c.h.b16 %v3486
    %v5070 = vunpack.c.l.b16 %v3487
    %v5071 = vunpack.c.h.b16 %v3487
    %v5072 = vunpack.c.l.b16 %v3488
    %v5073 = vunpack.c.h.b16 %v3488
    %v5074 = vunpack.c.l.b16 %v3489
    %v5075 = vunpack.c.h.b16 %v3489
    %v5076 = vunpack.c.l.b16 %v3490
    %v5077 = vunpack.c.h.b16 %v3490
    %v5078 = vunpack.c.l.b16 %v3491
    %v5079 = vunpack.c.h.b16 %v3491
    %v5080 = vunpack.c.l.b16 %v3492
    %v5081 = vunpack.c.h.b16 %v3492
    %v5082 = vunpack.c.l.b16 %v3493
    %v5083 = vunpack.c.h.b16 %v3493
    %v5084 = vunpack.c.l.b16 %v3494
    %v5085 = vunpack.c.h.b16 %v3494
    %v5086 = vunpack.c.l.b16 %v3495
    %v5087 = vunpack.c.h.b16 %v3495
    %v5088 = vunpack.c.l.b16 %v3496
    %v5089 = vunpack.c.h.b16 %v3496
    %v5090 = vunpack.c.l.b16 %v3497
    %v5091 = vunpack.c.h.b16 %v3497
    %v5092 = vunpack.c.l.b16 %v3498
    %v5093 = vunpack.c.h.b16 %v3498
    %v5094 = vunpack.c.l.b16 %v3499
    %v5095 = vunpack.c.h.b16 %v3499
    %v5096 = vpack.c.b16 %v4238, %v4232
    %v5097 = vpack.c.b16 %v4239, %v4233
    %v5098 = vpack.c.b16 %v4240, %v4234
    %v5099 = vpack.c.b16 %v4241, %v4235
    %v5100 = vpack.c.b16 %v4242, %v4236
    %v5101 = vpack.c.b16 %v4243, %v4237
    %v5102 = vpack.c.b16 %v4250, %v4244
    %v5103 = vpack.c.b16 %v4251, %v4245
    %v5104 = vpack.c.b16 %v4252, %v4246
    %v5105 = vpack.c.b16 %v4253, %v4247
    %v5106 = vpack.c.b16 %v4254, %v4248
    %v5107 = vpack.c.b16 %v4255, %v4249
    %v5108 = vpack.c.b16 %v4262, %v4256
    %v5109 = vpack.c.b16 %v4263, %v4257
    %v5110 = vpack.c.b16 %v4264, %v4258
    %v5111 = vpack.c.b16 %v4265, %v4259
    %v5112 = vpack.c.b16 %v4266, %v4260
    %v5113 = vpack.c.b16 %v4267, %v4261
    %v5114 = vpack.c.b16 %v4274, %v4268
    %v5115 = vpack.c.b16 %v4275, %v4269
    %v5116 = vpack.c.b16 %v4276, %v4270
    %v5117 = vpack.c.b16 %v4277, %v4271
    %v5118 = vpack.c.b16 %v4278, %v4272
    %v5119 = vpack.c.b16 %v4279, %v4273
    %v5120 = vpack.c.b16 %v4286, %v4280
    %v5121 = vpack.c.b16 %v4287, %v4281
    %v5122 = vpack.c.b16 %v4288, %v4282
    %v5123 = vpack.c.b16 %v4289, %v4283
    %v5124 = vpack.c.b16 %v4290, %v4284
    %v5125 = vpack.c.b16 %v4291, %v4285
    %v5126 = vpack.c.b16 %v4298, %v4292
    %v5127 = vpack.c.b16 %v4299, %v4293
    %v5128 = vpack.c.b16 %v4300, %v4294
    %v5129 = vpack.c.b16 %v4301, %v4295
    %v5130 = vpack.c.b16 %v4302, %v4296
    %v5131 = vpack.c.b16 %v4303, %v4297
    %v5132 = vpack.c.b16 %v4310, %v4304
    %v5133 = vpack.c.b16 %v4311, %v4305
    %v5134 = vpack.c.b16 %v4312, %v4306
    %v5135 = vpack.c.b16 %v4313, %v4307
    %v5136 = vpack.c.b16 %v4314, %v4308
    %v5137 = vpack.c.b16 %v4315, %v4309
    %v5138 = vpack.c.b16 %v4322, %v4316
    %v5139 = vpack.c.b16 %v4323, %v4317
    %v5140 = vpack.c.b16 %v4324, %v4318
    %v5141 = vpack.c.b16 %v4325, %v4319
    %v5142 = vpack.c.b16 %v4326, %v4320
    %v5143 = vpack.c.b16 %v4327, %v4321
    %v5144 = vpack.c.b16 %v4334, %v4328
    %v5145 = vpack.c.b16 %v4335, %v4329
    %v5146 = vpack.c.b16 %v4336, %v4330
    %v5147 = vpack.c.b16 %v4337, %v4331
    %v5148 = vpack.c.b16 %v4338, %v4332
    %v5149 = vpack.c.b16 %v4339, %v4333
    %v5150 = vpack.c.b16 %v4346, %v4340
    %v5151 = vpack.c.b16 %v4347, %v4341
    %v5152 = vpack.c.b16 %v4348, %v4342
    %v5153 = vpack.c.b16 %v4349, %v4343
    %v5154 = vpack.c.b16 %v4350, %v4344
    %v5155 = vpack.c.b16 %v4351, %v4345
    %v5156 = vpack.c.b16 %v4358, %v4352
    %v5157 = vpack.c.b16 %v4359, %v4353
    %v5158 = vpack.c.b16 %v4360, %v4354
    %v5159 = vpack.c.b16 %v4361, %v4355
    %v5160 = vpack.c.b16 %v4362, %v4356
    %v5161 = vpack.c.b16 %v4363, %v4357
    %v5162 = vpack.c.b16 %v4370, %v4364
    %v5163 = vpack.c.b16 %v4371, %v4365
    %v5164 = vpack.c.b16 %v4372, %v4366
    %v5165 = vpack.c.b16 %v4373, %v4367
    %v5166 = vpack.c.b16 %v4374, %v4368
    %v5167 = vpack.c.b16 %v4375, %v4369
    %v5168 = vpack.c.b16 %v4382, %v4376
    %v5169 = vpack.c.b16 %v4383, %v4377
    %v5170 = vpack.c.b16 %v4384, %v4378
    %v5171 = vpack.c.b16 %v4385, %v4379
    %v5172 = vpack.c.b16 %v4386, %v4380
    %v5173 = vpack.c.b16 %v4387, %v4381
    %v5174 = vpack.c.b16 %v4394, %v4388
    %v5175 = vpack.c.b16 %v4395, %v4389
    %v5176 = vpack.c.b16 %v4396, %v4390
    %v5177 = vpack.c.b16 %v4397, %v4391
    %v5178 = vpack.c.b16 %v4398, %v4392
    %v5179 = vpack.c.b16 %v4399, %v4393
    %v5180 = vpack.c.b16 %v4406, %v4400
    %v5181 = vpack.c.b16 %v4407, %v4401
    %v5182 = vpack.c.b16 %v4408, %v4402
    %v5183 = vpack.c.b16 %v4409, %v4403
    %v5184 = vpack.c.b16 %v4410, %v4404
    %v5185 = vpack.c.b16 %v4411, %v4405
    %v5186 = vpack.c.b16 %v4418, %v4412
    %v5187 = vpack.c.b16 %v4419, %v4413
    %v5188 = vpack.c.b16 %v4420, %v4414
    %v5189 = vpack.c.b16 %v4421, %v4415
    %v5190 = vpack.c.b16 %v4422, %v4416
    %v5191 = vpack.c.b16 %v4423, %v4417
    %v5192 = vpack.c.b16 %v4430, %v4424
    %v5193 = vpack.c.b16 %v4431, %v4425
    %v5194 = vpack.c.b16 %v4432, %v4426
    %v5195 = vpack.c.b16 %v4433, %v4427
    %v5196 = vpack.c.b16 %v4434, %v4428
    %v5197 = vpack.c.b16 %v4435, %v4429
    %v5198 = vpack.c.b16 %v4442, %v4436
    %v5199 = vpack.c.b16 %v4443, %v4437
    %v5200 = vpack.c.b16 %v4444, %v4438
    %v5201 = vpack.c.b16 %v4445, %v4439
    %v5202 = vpack.c.b16 %v4446, %v4440
    %v5203 = vpack.c.b16 %v4447, %v4441
    %v5204 = vpack.c.b16 %v4454, %v4448
    %v5205 = vpack.c.b16 %v4455, %v4449
    %v5206 = vpack.c.b16 %v4456, %v4450
    %v5207 = vpack.c.b16 %v4457, %v4451
    %v5208 = vpack.c.b16 %v4458, %v4452
    %v5209 = vpack.c.b16 %v4459, %v4453
    %v5210 = vpack.c.b16 %v4466, %v4460
    %v5211 = vpack.c.b16 %v4467, %v4461
    %v5212 = vpack.c.b16 %v4468, %v4462
    %v5213 = vpack.c.b16 %v4469, %v4463
    %v5214 = vpack.c.b16 %v4470, %v4464
    %v5215 = vpack.c.b16 %v4471, %v4465
    %v5216 = vpack.c.b16 %v4478, %v4472
    %v5217 = vpack.c.b16 %v4479, %v4473
    %v5218 = vpack.c.b16 %v4480, %v4474
    %v5219 = vpack.c.b16 %v4481, %v4475
    %v5220 = vpack.c.b16 %v4482, %v4476
    %v5221 = vpack.c.b16 %v4483, %v4477
    %v5222 = vpack.c.b16 %v4490, %v4484
    %v5223 = vpack.c.b16 %v4491, %v4485
    %v5224 = vpack.c.b16 %v4492, %v4486
    %v5225 = vpack.c.b16 %v4493, %v4487
    %v5226 = vpack.c.b16 %v4494, %v4488
    %v5227 = vpack.c.b16 %v4495, %v4489
    %v5228 = vpack.c.b16 %v4502, %v4496
    %v5229 = vpack.c.b16 %v4503, %v4497
    %v5230 = vpack.c.b16 %v4504, %v4498
    %v5231 = vpack.c.b16 %v4505, %v4499
    %v5232 = vpack.c.b16 %v4506, %v4500
    %v5233 = vpack.c.b16 %v4507, %v4501
    %v5234 = vpack.c.b16 %v4514, %v4508
    %v5235 = vpack.c.b16 %v4515, %v4509
    %v5236 = vpack.c.b16 %v4516, %v4510
    %v5237 = vpack.c.b16 %v4517, %v4511
    %v5238 = vpack.c.b16 %v4518, %v4512
    %v5239 = vpack.c.b16 %v4519, %v4513
    %v5240 = vpack.c.b16 %v4526, %v4520
    %v5241 = vpack.c.b16 %v4527, %v4521
    %v5242 = vpack.c.b16 %v4528, %v4522
    %v5243 = vpack.c.b16 %v4529, %v4523
    %v5244 = vpack.c.b16 %v4530, %v4524
    %v5245 = vpack.c.b16 %v4531, %v4525
    %v5246 = vpack.c.b16 %v4538, %v4532
    %v5247 = vpack.c.b16 %v4539, %v4533
    %v5248 = vpack.c.b16 %v4540, %v4534
    %v5249 = vpack.c.b16 %v4541, %v4535
    %v5250 = vpack.c.b16 %v4542, %v4536
    %v5251 = vpack.c.b16 %v4543, %v4537
    %v5252 = vpack.c.b16 %v4550, %v4544
    %v5253 = vpack.c.b16 %v4551, %v4545
    %v5254 = vpack.c.b16 %v4552, %v4546
    %v5255 = vpack.c.b16 %v4553, %v4547
    %v5256 = vpack.c.b16 %v4554, %v4548
    %v5257 = vpack.c.b16 %v4555, %v4549
    %v5258 = vpack.c.b16 %v4562, %v4556
    %v5259 = vpack.c.b16 %v4563, %v4557
    %v5260 = vpack.c.b16 %v4564, %v4558
    %v5261 = vpack.c.b16 %v4565, %v4559
    %v5262 = vpack.c.b16 %v4566, %v4560
    %v5263 = vpack.c.b16 %v4567, %v4561
    %v5264 = vpack.c.b16 %v4574, %v4568
    %v5265 = vpack.c.b16 %v4575, %v4569
    %v5266 = vpack.c.b16 %v4576, %v4570
    %v5267 = vpack.c.b16 %v4577, %v4571
    %v5268 = vpack.c.b16 %v4578, %v4572
    %v5269 = vpack.c.b16 %v4579, %v4573
    %v5270 = vpack.c.b16 %v4586, %v4580
    %v5271 = vpack.c.b16 %v4587, %v4581
    %v5272 = vpack.c.b16 %v4588, %v4582
    %v5273 = vpack.c.b16 %v4589, %v4583
    %v5274 = vpack.c.b16 %v4590, %v4584
    %v5275 = vpack.c.b16 %v4591, %v4585
    %v5276 = vpack.c.b16 %v4598, %v4592
    %v5277 = vpack.c.b16 %v4599, %v4593
    %v5278 = vpack.c.b16 %v4600, %v4594
    %v5279 = vpack.c.b16 %v4601, %v4595
    %v5280 = vpack.c.b16 %v4602, %v4596
    %v5281 = vpack.c.b16 %v4603, %v4597
    %v5282 = vpack.c.b16 %v4610, %v4604
    %v5283 = vpack.c.b16 %v4611, %v4605
    %v5284 = vpack.c.b16 %v4612, %v4606
    %v5285 = vpack.c.b16 %v4613, %v4607
    %v5286 = vpack.c.b16 %v4614, %v4608
    %v5287 = vpack.c.b16 %v4615, %v4609
    %v5288 = vpack.c.b16 %v4622, %v4616
    %v5289 = vpack.c.b16 %v4623, %v4617
    %v5290 = vpack.c.b16 %v4624, %v4618
    %v5291 = vpack.c.b16 %v4625, %v4619
    %v5292 = vpack.c.b16 %v4626, %v4620
    %v5293 = vpack.c.b16 %v4627, %v4621
    %v5294 = vpack.c.b16 %v4634, %v4628
    %v5295 = vpack.c.b16 %v4635, %v4629
    %v5296 = vpack.c.b16 %v4636, %v4630
    %v5297 = vpack.c.b16 %v4637, %v4631
    %v5298 = vpack.c.b16 %v4638, %v4632
    %v5299 = vpack.c.b16 %v4639, %v4633
    %v5300 = vpack.c.b16 %v4646, %v4640
    %v5301 = vpack.c.b16 %v4647, %v4641
    %v5302 = vpack.c.b16 %v4648, %v4642
    %v5303 = vpack.c.b16 %v4649, %v4643
    %v5304 = vpack.c.b16 %v4650, %v4644
    %v5305 = vpack.c.b16 %v4651, %v4645
    %v5306 = vpack.c.b16 %v4658, %v4652
    %v5307 = vpack.c.b16 %v4659, %v4653
    %v5308 = vpack.c.b16 %v4660, %v4654
    %v5309 = vpack.c.b16 %v4661, %v4655
    %v5310 = vpack.c.b16 %v4662, %v4656
    %v5311 = vpack.c.b16 %v4663, %v4657
    %v5312 = vpack.c.b16 %v4670, %v4664
    %v5313 = vpack.c.b16 %v4671, %v4665
    %v5314 = vpack.c.b16 %v4672, %v4666
    %v5315 = vpack.c.b16 %v4673, %v4667
    %v5316 = vpack.c.b16 %v4674, %v4668
    %v5317 = vpack.c.b16 %v4675, %v4669
    %v5318 = vpack.c.b16 %v4682, %v4676
    %v5319 = vpack.c.b16 %v4683, %v4677
    %v5320 = vpack.c.b16 %v4684, %v4678
    %v5321 = vpack.c.b16 %v4685, %v4679
    %v5322 = vpack.c.b16 %v4686, %v4680
    %v5323 = vpack.c.b16 %v4687, %v4681
    %v5324 = vpack.c.b16 %v4694, %v4688
    %v5325 = vpack.c.b16 %v4695, %v4689
    %v5326 = vpack.c.b16 %v4696, %v4690
    %v5327 = vpack.c.b16 %v4697, %v4691
    %v5328 = vpack.c.b16 %v4698, %v4692
    %v5329 = vpack.c.b16 %v4699, %v4693
    %v5330 = vpack.c.b16 %v4706, %v4700
    %v5331 = vpack.c.b16 %v4707, %v4701
    %v5332 = vpack.c.b16 %v4708, %v4702
    %v5333 = vpack.c.b16 %v4709, %v4703
    %v5334 = vpack.c.b16 %v4710, %v4704
    %v5335 = vpack.c.b16 %v4711, %v4705
    %v5336 = vpack.c.b16 %v4718, %v4712
    %v5337 = vpack.c.b16 %v4719, %v4713
    %v5338 = vpack.c.b16 %v4720, %v4714
    %v5339 = vpack.c.b16 %v4721, %v4715
    %v5340 = vpack.c.b16 %v4722, %v4716
    %v5341 = vpack.c.b16 %v4723, %v4717
    %v5342 = vpack.c.b16 %v4730, %v4724
    %v5343 = vpack.c.b16 %v4731, %v4725
    %v5344 = vpack.c.b16 %v4732, %v4726
    %v5345 = vpack.c.b16 %v4733, %v4727
    %v5346 = vpack.c.b16 %v4734, %v4728
    %v5347 = vpack.c.b16 %v4735, %v4729
    %v5348 = vpack.c.b16 %v4742, %v4736
    %v5349 = vpack.c.b16 %v4743, %v4737
    %v5350 = vpack.c.b16 %v4744, %v4738
    %v5351 = vpack.c.b16 %v4745, %v4739
    %v5352 = vpack.c.b16 %v4746, %v4740
    %v5353 = vpack.c.b16 %v4747, %v4741
    %v5354 = vpack.c.b16 %v4754, %v4748
    %v5355 = vpack.c.b16 %v4755, %v4749
    %v5356 = vpack.c.b16 %v4756, %v4750
    %v5357 = vpack.c.b16 %v4757, %v4751
    %v5358 = vpack.c.b16 %v4758, %v4752
    %v5359 = vpack.c.b16 %v4759, %v4753
    %v5360 = vpack.c.b16 %v4766, %v4760
    %v5361 = vpack.c.b16 %v4767, %v4761
    %v5362 = vpack.c.b16 %v4768, %v4762
    %v5363 = vpack.c.b16 %v4769, %v4763
    %v5364 = vpack.c.b16 %v4770, %v4764
    %v5365 = vpack.c.b16 %v4771, %v4765
    %v5366 = vpack.c.b16 %v4778, %v4772
    %v5367 = vpack.c.b16 %v4779, %v4773
    %v5368 = vpack.c.b16 %v4780, %v4774
    %v5369 = vpack.c.b16 %v4781, %v4775
    %v5370 = vpack.c.b16 %v4782, %v4776
    %v5371 = vpack.c.b16 %v4783, %v4777
    %v5372 = vpack.c.b16 %v4790, %v4784
    %v5373 = vpack.c.b16 %v4791, %v4785
    %v5374 = vpack.c.b16 %v4792, %v4786
    %v5375 = vpack.c.b16 %v4793, %v4787
    %v5376 = vpack.c.b16 %v4794, %v4788
    %v5377 = vpack.c.b16 %v4795, %v4789
    %v5378 = vpack.c.b16 %v4802, %v4796
    %v5379 = vpack.c.b16 %v4803, %v4797
    %v5380 = vpack.c.b16 %v4804, %v4798
    %v5381 = vpack.c.b16 %v4805, %v4799
    %v5382 = vpack.c.b16 %v4806, %v4800
    %v5383 = vpack.c.b16 %v4807, %v4801
    %v5384 = vpack.c.b16 %v4814, %v4808
    %v5385 = vpack.c.b16 %v4815, %v4809
    %v5386 = vpack.c.b16 %v4816, %v4810
    %v5387 = vpack.c.b16 %v4817, %v4811
    %v5388 = vpack.c.b16 %v4818, %v4812
    %v5389 = vpack.c.b16 %v4819, %v4813
    %v5390 = vpack.c.b16 %v4826, %v4820
    %v5391 = vpack.c.b16 %v4827, %v4821
    %v5392 = vpack.c.b16 %v4828, %v4822
    %v5393 = vpack.c.b16 %v4829, %v4823
    %v5394 = vpack.c.b16 %v4830, %v4824
    %v5395 = vpack.c.b16 %v4831, %v4825
    %v5396 = vpack.c.b16 %v4838, %v4832
    %v5397 = vpack.c.b16 %v4839, %v4833
    %v5398 = vpack.c.b16 %v4840, %v4834
    %v5399 = vpack.c.b16 %v4841, %v4835
    %v5400 = vpack.c.b16 %v4842, %v4836
    %v5401 = vpack.c.b16 %v4843, %v4837
    %v5402 = vpack.c.b16 %v4850, %v4844
    %v5403 = vpack.c.b16 %v4851, %v4845
    %v5404 = vpack.c.b16 %v4852, %v4846
    %v5405 = vpack.c.b16 %v4853, %v4847
    %v5406 = vpack.c.b16 %v4854, %v4848
    %v5407 = vpack.c.b16 %v4855, %v4849
    %v5408 = vpack.c.b16 %v4862, %v4856
    %v5409 = vpack.c.b16 %v4863, %v4857
    %v5410 = vpack.c.b16 %v4864, %v4858
    %v5411 = vpack.c.b16 %v4865, %v4859
    %v5412 = vpack.c.b16 %v4866, %v4860
    %v5413 = vpack.c.b16 %v4867, %v4861
    %v5414 = vpack.c.b16 %v4874, %v4868
    %v5415 = vpack.c.b16 %v4875, %v4869
    %v5416 = vpack.c.b16 %v4876, %v4870
    %v5417 = vpack.c.b16 %v4877, %v4871
    %v5418 = vpack.c.b16 %v4878, %v4872
    %v5419 = vpack.c.b16 %v4879, %v4873
    %v5420 = vpack.c.b16 %v4886, %v4880
    %v5421 = vpack.c.b16 %v4887, %v4881
    %v5422 = vpack.c.b16 %v4888, %v4882
    %v5423 = vpack.c.b16 %v4889, %v4883
    %v5424 = vpack.c.b16 %v4890, %v4884
    %v5425 = vpack.c.b16 %v4891, %v4885
    %v5426 = vpack.c.b16 %v4898, %v4892
    %v5427 = vpack.c.b16 %v4899, %v4893
    %v5428 = vpack.c.b16 %v4900, %v4894
    %v5429 = vpack.c.b16 %v4901, %v4895
    %v5430 = vpack.c.b16 %v4902, %v4896
    %v5431 = vpack.c.b16 %v4903, %v4897
    %v5432 = vpack.c.b16 %v4910, %v4904
    %v5433 = vpack.c.b16 %v4911, %v4905
    %v5434 = vpack.c.b16 %v4912, %v4906
    %v5435 = vpack.c.b16 %v4913, %v4907
    %v5436 = vpack.c.b16 %v4914, %v4908
    %v5437 = vpack.c.b16 %v4915, %v4909
    %v5438 = vpack.c.b16 %v4922, %v4916
    %v5439 = vpack.c.b16 %v4923, %v4917
    %v5440 = vpack.c.b16 %v4924, %v4918
    %v5441 = vpack.c.b16 %v4925, %v4919
    %v5442 = vpack.c.b16 %v4926, %v4920
    %v5443 = vpack.c.b16 %v4927, %v4921
    %v5444 = vpack.c.b16 %v4934, %v4928
    %v5445 = vpack.c.b16 %v4935, %v4929
    %v5446 = vpack.c.b16 %v4936, %v4930
    %v5447 = vpack.c.b16 %v4937, %v4931
    %v5448 = vpack.c.b16 %v4938, %v4932
    %v5449 = vpack.c.b16 %v4939, %v4933
    %v5450 = vpack.c.b16 %v4946, %v4940
    %v5451 = vpack.c.b16 %v4947, %v4941
    %v5452 = vpack.c.b16 %v4948, %v4942
    %v5453 = vpack.c.b16 %v4949, %v4943
    %v5454 = vpack.c.b16 %v4950, %v4944
    %v5455 = vpack.c.b16 %v4951, %v4945
    %v5456 = vpack.c.b16 %v4958, %v4952
    %v5457 = vpack.c.b16 %v4959, %v4953
    %v5458 = vpack.c.b16 %v4960, %v4954
    %v5459 = vpack.c.b16 %v4961, %v4955
    %v5460 = vpack.c.b16 %v4962, %v4956
    %v5461 = vpack.c.b16 %v4963, %v4957
    %v5462 = vpack.c.b16 %v4970, %v4964
    %v5463 = vpack.c.b16 %v4971, %v4965
    %v5464 = vpack.c.b16 %v4972, %v4966
    %v5465 = vpack.c.b16 %v4973, %v4967
    %v5466 = vpack.c.b16 %v4974, %v4968
    %v5467 = vpack.c.b16 %v4975, %v4969
    %v5468 = vpack.c.b16 %v4982, %v4976
    %v5469 = vpack.c.b16 %v4983, %v4977
    %v5470 = vpack.c.b16 %v4984, %v4978
    %v5471 = vpack.c.b16 %v4985, %v4979
    %v5472 = vpack.c.b16 %v4986, %v4980
    %v5473 = vpack.c.b16 %v4987, %v4981
    %v5474 = vpack.c.b16 %v4994, %v4988
    %v5475 = vpack.c.b16 %v4995, %v4989
    %v5476 = vpack.c.b16 %v4996, %v4990
    %v5477 = vpack.c.b16 %v4997, %v4991
    %v5478 = vpack.c.b16 %v4998, %v4992
    %v5479 = vpack.c.b16 %v4999, %v4993
    %v5480 = vpack.c.b16 %v5006, %v5000
    %v5481 = vpack.c.b16 %v5007, %v5001
    %v5482 = vpack.c.b16 %v5008, %v5002
    %v5483 = vpack.c.b16 %v5009, %v5003
    %v5484 = vpack.c.b16 %v5010, %v5004
    %v5485 = vpack.c.b16 %v5011, %v5005
    %v5486 = vpack.c.b16 %v5018, %v5012
    %v5487 = vpack.c.b16 %v5019, %v5013
    %v5488 = vpack.c.b16 %v5020, %v5014
    %v5489 = vpack.c.b16 %v5021, %v5015
    %v5490 = vpack.c.b16 %v5022, %v5016
    %v5491 = vpack.c.b16 %v5023, %v5017
    %v5492 = vpack.c.b16 %v5030, %v5024
    %v5493 = vpack.c.b16 %v5031, %v5025
    %v5494 = vpack.c.b16 %v5032, %v5026
    %v5495 = vpack.c.b16 %v5033, %v5027
    %v5496 = vpack.c.b16 %v5034, %v5028
    %v5497 = vpack.c.b16 %v5035, %v5029
    %v5498 = vpack.c.b16 %v5042, %v5036
    %v5499 = vpack.c.b16 %v5043, %v5037
    %v5500 = vpack.c.b16 %v5044, %v5038
    %v5501 = vpack.c.b16 %v5045, %v5039
    %v5502 = vpack.c.b16 %v5046, %v5040
    %v5503 = vpack.c.b16 %v5047, %v5041
    %v5504 = vpack.c.b16 %v5054, %v5048
    %v5505 = vpack.c.b16 %v5055, %v5049
    %v5506 = vpack.c.b16 %v5056, %v5050
    %v5507 = vpack.c.b16 %v5057, %v5051
    %v5508 = vpack.c.b16 %v5058, %v5052
    %v5509 = vpack.c.b16 %v5059, %v5053
    %v5510 = vpack.c.b16 %v5066, %v5060
    %v5511 = vpack.c.b16 %v5067, %v5061
    %v5512 = vpack.c.b16 %v5068, %v5062
    %v5513 = vpack.c.b16 %v5069, %v5063
    %v5514 = vpack.c.b16 %v5070, %v5064
    %v5515 = vpack.c.b16 %v5071, %v5065
    %v5516 = vpack.c.b16 %v5078, %v5072
    %v5517 = vpack.c.b16 %v5079, %v5073
    %v5518 = vpack.c.b16 %v5080, %v5074
    %v5519 = vpack.c.b16 %v5081, %v5075
    %v5520 = vpack.c.b16 %v5082, %v5076
    %v5521 = vpack.c.b16 %v5083, %v5077
    %v5522 = vpack.c.b16 %v5090, %v5084
    %v5523 = vpack.c.b16 %v5091, %v5085
    %v5524 = vpack.c.b16 %v5092, %v5086
    %v5525 = vpack.c.b16 %v5093, %v5087
    %v5526 = vpack.c.b16 %v5094, %v5088
    %v5527 = vpack.c.b16 %v5095, %v5089
    %5960 = vmatprep.subr.bf16.mxu0 %v5097
    %5961 = vmatpush1.bf16.msra.mxu0 %v5096
    %5962 = vmatprep.subr.bf16.mxu0 %v5103
    %5963 = vmatpush1.bf16.msra.mxu0 %v5102
    %5964 = vmatprep.subr.bf16.mxu0 %v5109
    %5965 = vmatpush1.bf16.msra.mxu0 %v5108
    %5966 = vmatprep.subr.bf16.mxu0 %v5115
    %5967 = vmatpush1.bf16.msra.mxu0 %v5114
    %5968 = vmatprep.subr.bf16.mxu0 %v5121
    %5969 = vmatpush1.bf16.msra.mxu0 %v5120
    %5970 = vmatprep.subr.bf16.mxu0 %v5127
    %5971 = vmatpush1.bf16.msra.mxu0 %v5126
    %5972 = vmatprep.subr.bf16.mxu0 %v5133
    %5973 = vmatpush1.bf16.msra.mxu0 %v5132
    %5974 = vmatprep.subr.bf16.mxu0 %v5139
    %5975 = vmatpush1.bf16.msra.mxu0 %v5138
    %5976 = vmatprep.subr.bf16.mxu0 %v5145
    %5977 = vmatpush1.bf16.msra.mxu0 %v5144
    %5978 = vmatprep.subr.bf16.mxu0 %v5151
    %5979 = vmatpush1.bf16.msra.mxu0 %v5150
    %5980 = vmatprep.subr.bf16.mxu0 %v5157
    %5981 = vmatpush1.bf16.msra.mxu0 %v5156
    %5982 = vmatprep.subr.bf16.mxu0 %v5163
    %5983 = vmatpush1.bf16.msra.mxu0 %v5162
    %5984 = vmatprep.subr.bf16.mxu0 %v5169
    %5985 = vmatpush1.bf16.msra.mxu0 %v5168
    %5986 = vmatprep.subr.bf16.mxu0 %v5175
    %5987 = vmatpush1.bf16.msra.mxu0 %v5174
    %5988 = vmatprep.subr.bf16.mxu0 %v5181
    %5989 = vmatpush1.bf16.msra.mxu0 %v5180
    %5990 = vmatprep.subr.bf16.mxu0 %v5187
    %5991 = vmatpush1.bf16.msra.mxu0 %v5186
    %5992 = vmatprep.mubr.bf16.mxu0 %v3664
    %5993 = vmatmul.mubr.bf16.gmra.mrb[0].mxu0 %v3660
    %v5994 = vpop.f32.mrb[0].mxu0
    %v5995 = vadd.f32 %v3505, %v5994
    %v5996 = vpop.f32.mrb[0].mxu0
    %v5997 = vadd.f32 %v3509, %v5996
    %v5998 = vpop.f32.mrb[0].mxu0
    %v5999 = vadd.f32 %v3505, %v5998
    %v6000 = vpop.f32.mrb[0].mxu0
    %v6001 = vadd.f32 %v3509, %v6000
    %6002 = vmatprep.mubr.bf16.mxu0 %v3755
    %6003 = vmatmul.mubr.bf16.gmra.mrb[0].mxu0 %v3741
    %v6004 = vpop.f32.mrb[0].mxu0
    %v6005 = vadd.f32 %v3505, %v6004
    %v6006 = vpop.f32.mrb[0].mxu0
    %v6007 = vadd.f32 %v3509, %v6006
    %v6008 = vpop.f32.mrb[0].mxu0
    %v6009 = vpop.f32.mrb[0].mxu0
    %6010 = vdwg.mxu0
    %6011 = vmatprep.subr.bf16.mxu0 %v5193
    %6012 = vmatpush1.bf16.msra.mxu0 %v5192
    %6013 = vmatprep.subr.bf16.mxu0 %v5199
    %6014 = vmatpush1.bf16.msra.mxu0 %v5198
    %6015 = vmatprep.subr.bf16.mxu0 %v5205
    %6016 = vmatpush1.bf16.msra.mxu0 %v5204
    %6017 = vmatprep.subr.bf16.mxu0 %v5211
    %6018 = vmatpush1.bf16.msra.mxu0 %v5210
    %6019 = vmatprep.subr.bf16.mxu0 %v5217
    %6020 = vmatpush1.bf16.msra.mxu0 %v5216
    %6021 = vmatprep.subr.bf16.mxu0 %v5223
    %6022 = vmatpush1.bf16.msra.mxu0 %v5222
    %6023 = vmatprep.subr.bf16.mxu0 %v5229
    %6024 = vmatpush1.bf16.msra.mxu0 %v5228
    %6025 = vmatprep.subr.bf16.mxu0 %v5235
    %6026 = vmatpush1.bf16.msra.mxu0 %v5234
    %6027 = vmatprep.subr.bf16.mxu0 %v5241
    %6028 = vmatpush1.bf16.msra.mxu0 %v5240
    %6029 = vmatprep.subr.bf16.mxu0 %v5247
    %6030 = vmatpush1.bf16.msra.mxu0 %v5246
    %6031 = vmatprep.subr.bf16.mxu0 %v5253
    %6032 = vmatpush1.bf16.msra.mxu0 %v5252
    %6033 = vmatprep.subr.bf16.mxu0 %v5259
    %6034 = vmatpush1.bf16.msra.mxu0 %v5258
    %6035 = vmatprep.subr.bf16.mxu0 %v5265
    %6036 = vmatpush1.bf16.msra.mxu0 %v5264
    %6037 = vmatprep.subr.bf16.mxu0 %v5271
    %6038 = vmatpush1.bf16.msra.mxu0 %v5270
    %6039 = vmatprep.subr.bf16.mxu0 %v5277
    %6040 = vmatpush1.bf16.msra.mxu0 %v5276
    %6041 = vmatprep.subr.bf16.mxu0 %v5283
    %6042 = vmatpush1.bf16.msra.mxu0 %v5282
    %6043 = vmatprep.mubr.bf16.mxu0 %v3665
    %6044 = vmatmul.mubr.bf16.gmra.mrb[0].mxu0 %v3661
    %v6045 = vpop.f32.mrb[0].mxu0
    %v6046 = vadd.f32 %v5995, %v6045
    %v6047 = vpop.f32.mrb[0].mxu0
    %v6048 = vadd.f32 %v5997, %v6047
    %v6049 = vpop.f32.mrb[0].mxu0
    %v6050 = vadd.f32 %v5999, %v6049
    %v6051 = vpop.f32.mrb[0].mxu0
    %v6052 = vadd.f32 %v6001, %v6051
    %6053 = vmatprep.mubr.bf16.mxu0 %v3765
    %6054 = vmatmul.mubr.bf16.gmra.mrb[0].mxu0 %v3763
    %v6055 = vpop.f32.mrb[0].mxu0
    %v6056 = vadd.f32 %v6005, %v6055
    %v6057 = vpop.f32.mrb[0].mxu0
    %v6058 = vadd.f32 %v6007, %v6057
    %v6059 = vpop.f32.mrb[0].mxu0
    %v6060 = vpop.f32.mrb[0].mxu0
    %6061 = vdwg.mxu0
    %6062 = vmatprep.subr.bf16.mxu0 %v5289
    %6063 = vmatpush1.bf16.msra.mxu0 %v5288
    %6064 = vmatprep.subr.bf16.mxu0 %v5295
    %6065 = vmatpush1.bf16.msra.mxu0 %v5294
    %6066 = vmatprep.subr.bf16.mxu0 %v5301
    %6067 = vmatpush1.bf16.msra.mxu0 %v5300
    %6068 = vmatprep.subr.bf16.mxu0 %v5307
    %6069 = vmatpush1.bf16.msra.mxu0 %v5306
    %6070 = vmatprep.subr.bf16.mxu0 %v5313
    %6071 = vmatpush1.bf16.msra.mxu0 %v5312
    %6072 = vmatprep.subr.bf16.mxu0 %v5319
    %6073 = vmatpush1.bf16.msra.mxu0 %v5318
    %6074 = vmatprep.subr.bf16.mxu0 %v5325
    %6075 = vmatpush1.bf16.msra.mxu0 %v5324
    %6076 = vmatprep.subr.bf16.mxu0 %v5331
    %6077 = vmatpush1.bf16.msra.mxu0 %v5330
    %6078 = vmatprep.subr.bf16.mxu0 %v5337
    %6079 = vmatpush1.bf16.msra.mxu0 %v5336
    %6080 = vmatprep.subr.bf16.mxu0 %v5343
    %6081 = vmatpush1.bf16.msra.mxu0 %v5342
    %6082 = vmatprep.subr.bf16.mxu0 %v5349
    %6083 = vmatpush1.bf16.msra.mxu0 %v5348
    %6084 = vmatprep.subr.bf16.mxu0 %v5355
    %6085 = vmatpush1.bf16.msra.mxu0 %v5354
    %6086 = vmatprep.subr.bf16.mxu0 %v5361
    %6087 = vmatpush1.bf16.msra.mxu0 %v5360
    %6088 = vmatprep.subr.bf16.mxu0 %v5367
    %6089 = vmatpush1.bf16.msra.mxu0 %v5366
    %6090 = vmatprep.subr.bf16.mxu0 %v5373
    %6091 = vmatpush1.bf16.msra.mxu0 %v5372
    %6092 = vmatprep.subr.bf16.mxu0 %v5379
    %6093 = vmatpush1.bf16.msra.mxu0 %v5378
    %6094 = vmatprep.mubr.bf16.mxu0 %v3666
    %6095 = vmatmul.mubr.bf16.gmra.mrb[0].mxu0 %v3662
    %v6096 = vpop.f32.mrb[0].mxu0
    %v6097 = vadd.f32 %v6046, %v6096
    %v6098 = vpop.f32.mrb[0].mxu0
    %v6099 = vadd.f32 %v6048, %v6098
    %v6100 = vpop.f32.mrb[0].mxu0
    %v6101 = vadd.f32 %v6050, %v6100
    %v6102 = vpop.f32.mrb[0].mxu0
    %v6103 = vadd.f32 %v6052, %v6102
    %6104 = vmatprep.mubr.bf16.mxu0 %v3762
    %6105 = vmatmul.mubr.bf16.gmra.mrb[0].mxu0 %v3748
    %v6106 = vpop.f32.mrb[0].mxu0
    %v6107 = vadd.f32 %v6056, %v6106
    %v6108 = vpop.f32.mrb[0].mxu0
    %v6109 = vadd.f32 %v6058, %v6108
    %v6110 = vpop.f32.mrb[0].mxu0
    %v6111 = vpop.f32.mrb[0].mxu0
    %6112 = vdwg.mxu0
    %6113 = vmatprep.subr.bf16.mxu0 %v5385
    %6114 = vmatpush1.bf16.msra.mxu0 %v5384
    %6115 = vmatprep.subr.bf16.mxu0 %v5391
    %6116 = vmatpush1.bf16.msra.mxu0 %v5390
    %6117 = vmatprep.subr.bf16.mxu0 %v5397
    %6118 = vmatpush1.bf16.msra.mxu0 %v5396
    %6119 = vmatprep.subr.bf16.mxu0 %v5403
    %6120 = vmatpush1.bf16.msra.mxu0 %v5402
    %6121 = vmatprep.subr.bf16.mxu0 %v5409
    %6122 = vmatpush1.bf16.msra.mxu0 %v5408
    %6123 = vmatprep.subr.bf16.mxu0 %v5415
    %6124 = vmatpush1.bf16.msra.mxu0 %v5414
    %6125 = vmatprep.subr.bf16.mxu0 %v5421
    %6126 = vmatpush1.bf16.msra.mxu0 %v5420
    %6127 = vmatprep.subr.bf16.mxu0 %v5427
    %6128 = vmatpush1.bf16.msra.mxu0 %v5426
    %6129 = vmatprep.subr.bf16.mxu0 %v5433
    %6130 = vmatpush1.bf16.msra.mxu0 %v5432
    %6131 = vmatprep.subr.bf16.mxu0 %v5439
    %6132 = vmatpush1.bf16.msra.mxu0 %v5438
    %6133 = vmatprep.subr.bf16.mxu0 %v5445
    %6134 = vmatpush1.bf16.msra.mxu0 %v5444
    %6135 = vmatprep.subr.bf16.mxu0 %v5451
    %6136 = vmatpush1.bf16.msra.mxu0 %v5450
    %6137 = vmatprep.subr.bf16.mxu0 %v5457
    %6138 = vmatpush1.bf16.msra.mxu0 %v5456
    %6139 = vmatprep.subr.bf16.mxu0 %v5463
    %6140 = vmatpush1.bf16.msra.mxu0 %v5462
    %6141 = vmatprep.subr.bf16.mxu0 %v5469
    %6142 = vmatpush1.bf16.msra.mxu0 %v5468
    %6143 = vmatprep.subr.bf16.mxu0 %v5475
    %6144 = vmatpush1.bf16.msra.mxu0 %v5474
    %6145 = vmatprep.mubr.bf16.mxu0 %v3667
    %6146 = vmatmul.mubr.bf16.gmra.mrb[0].mxu0 %v3663
    %v6147 = vpop.f32.mrb[0].mxu0
    %v6148 = vadd.f32 %v6097, %v6147
    %v6149 = vpop.f32.mrb[0].mxu0
    %v6150 = vadd.f32 %v6099, %v6149
    %v6151 = vpop.f32.mrb[0].mxu0
    %v6152 = vadd.f32 %v6101, %v6151
    %v6153 = vpop.f32.mrb[0].mxu0
    %v6154 = vadd.f32 %v6103, %v6153
    %6155 = vmatprep.mubr.bf16.mxu0 %v3766
    %6156 = vmatmul.mubr.bf16.gmra.mrb[0].mxu0 %v3764
    %v6157 = vpop.f32.mrb[0].mxu0
    %v6158 = vadd.f32 %v6107, %v6157
    %v6159 = vpop.f32.mrb[0].mxu0
    %v6160 = vadd.f32 %v6109, %v6159
    %v6161 = vpop.f32.mrb[0].mxu0
    %v6162 = vpop.f32.mrb[0].mxu0
    %6163 = vdwg.mxu0
    %6164 = vmatprep.subr.bf16.mxu0 %v5481
    %6165 = vmatpush1.bf16.msra.mxu0 %v5480
    %6166 = vmatprep.subr.bf16.mxu0 %v5487
    %6167 = vmatpush1.bf16.msra.mxu0 %v5486
    %6168 = vmatprep.subr.bf16.mxu0 %v5493
    %6169 = vmatpush1.bf16.msra.mxu0 %v5492
    %6170 = vmatprep.subr.bf16.mxu0 %v5499
    %6171 = vmatpush1.bf16.msra.mxu0 %v5498
    %6172 = vmatprep.subr.bf16.mxu0 %v5505
    %6173 = vmatpush1.bf16.msra.mxu0 %v5504
    %6174 = vmatprep.subr.bf16.mxu0 %v5511
    %6175 = vmatpush1.bf16.msra.mxu0 %v5510
    %6176 = vmatprep.subr.bf16.mxu0 %v5517
    %6177 = vmatpush1.bf16.msra.mxu0 %v5516
    %6178 = vmatprep.subr.bf16.mxu0 %v5523
    %6179 = vmatpush1.bf16.msra.mxu0 %v5522
    %6180 = vmatprep.subr.bf16.mxu0 0
    %6181 = vmatpush1.bf16.msra.mxu0 0
    %6182 = vmatprep.subr.bf16.mxu0 0
    %6183 = vmatpush1.bf16.msra.mxu0 0
    %6184 = vmatprep.subr.bf16.mxu0 0
    %6185 = vmatpush1.bf16.msra.mxu0 0
    %6186 = vmatprep.subr.bf16.mxu0 0
    %6187 = vmatpush1.bf16.msra.mxu0 0
    %6188 = vmatprep.subr.bf16.mxu0 0
    %6189 = vmatpush1.bf16.msra.mxu0 0
    %6190 = vmatprep.subr.bf16.mxu0 0
    %6191 = vmatpush1.bf16.msra.mxu0 0
    %6192 = vmatprep.subr.bf16.mxu0 0
    %6193 = vmatpush1.bf16.msra.mxu0 0
    %6194 = vmatprep.subr.bf16.mxu0 0
    %6195 = vmatpush1.bf16.msra.mxu0 0
    %6196 = vmatprep.mubr.bf16.mxu0 0
    %6197 = vmatmul.mubr.bf16.gmra.mrb[0].mxu0 %v3716
    %v6198 = vpop.f32.mrb[0].mxu0
    %v6199 = vadd.f32 %v6148, %v6198
    %v6200 = vpop.f32.mrb[0].mxu0
    %v6201 = vadd.f32 %v6150, %v6200
    %v6202 = vpop.f32.mrb[0].mxu0
    %v6203 = vadd.f32 %v6152, %v6202
    %v6204 = vpop.f32.mrb[0].mxu0
    %v6205 = vadd.f32 %v6154, %v6204
    %6206 = vmatprep.mubr.bf16.mxu0 0
    %6207 = vmatmul.mubr.bf16.gmra.mrb[0].mxu0 %v3781
    %v6208 = vpop.f32.mrb[0].mxu0
    %v6209 = vadd.f32 %v6158, %v6208
    %v6210 = vpop.f32.mrb[0].mxu0
    %v6211 = vadd.f32 %v6160, %v6210
    %v6212 = vpop.f32.mrb[0].mxu0
    %v6213 = vpop.f32.mrb[0].mxu0
    %6214 = vdwg.mxu0
    %6215 = vmatprep.subr.bf16.mxu0 %v5099
    %6216 = vmatpush1.bf16.msra.mxu0 %v5098
    %6217 = vmatprep.subr.bf16.mxu0 %v5105
    %6218 = vmatpush1.bf16.msra.mxu0 %v5104
    %6219 = vmatprep.subr.bf16.mxu0 %v5111
    %6220 = vmatpush1.bf16.msra.mxu0 %v5110
    %6221 = vmatprep.subr.bf16.mxu0 %v5117
    %6222 = vmatpush1.bf16.msra.mxu0 %v5116
    %6223 = vmatprep.subr.bf16.mxu0 %v5123
    %6224 = vmatpush1.bf16.msra.mxu0 %v5122
    %6225 = vmatprep.subr.bf16.mxu0 %v5129
    %6226 = vmatpush1.bf16.msra.mxu0 %v5128
    %6227 = vmatprep.subr.bf16.mxu0 %v5135
    %6228 = vmatpush1.bf16.msra.mxu0 %v5134
    %6229 = vmatprep.subr.bf16.mxu0 %v5141
    %6230 = vmatpush1.bf16.msra.mxu0 %v5140
    %6231 = vmatprep.subr.bf16.mxu0 %v5147
    %6232 = vmatpush1.bf16.msra.mxu0 %v5146
    %6233 = vmatprep.subr.bf16.mxu0 %v5153
    %6234 = vmatpush1.bf16.msra.mxu0 %v5152
    %6235 = vmatprep.subr.bf16.mxu0 %v5159
    %6236 = vmatpush1.bf16.msra.mxu0 %v5158
    %6237 = vmatprep.subr.bf16.mxu0 %v5165
    %6238 = vmatpush1.bf16.msra.mxu0 %v5164
    %6239 = vmatprep.subr.bf16.mxu0 %v5171
    %6240 = vmatpush1.bf16.msra.mxu0 %v5170
    %6241 = vmatprep.subr.bf16.mxu0 %v5177
    %6242 = vmatpush1.bf16.msra.mxu0 %v5176
    %6243 = vmatprep.subr.bf16.mxu0 %v5183
    %6244 = vmatpush1.bf16.msra.mxu0 %v5182
    %6245 = vmatprep.subr.bf16.mxu0 %v5189
    %6246 = vmatpush1.bf16.msra.mxu0 %v5188
    %6247 = vmatprep.mubr.bf16.mxu0 %v3664
    %6248 = vmatmul.mubr.bf16.gmra.mrb[0].mxu0 %v3660
    %v6249 = vpop.f32.mrb[0].mxu0
    %v6250 = vadd.f32 %v3513, %v6249
    %v6251 = vpop.f32.mrb[0].mxu0
    %v6252 = vadd.f32 %v3517, %v6251
    %v6253 = vpop.f32.mrb[0].mxu0
    %v6254 = vadd.f32 %v3513, %v6253
    %v6255 = vpop.f32.mrb[0].mxu0
    %v6256 = vadd.f32 %v3517, %v6255
    %6257 = vmatprep.mubr.bf16.mxu0 %v3755
    %6258 = vmatmul.mubr.bf16.gmra.mrb[0].mxu0 %v3741
    %v6259 = vpop.f32.mrb[0].mxu0
    %v6260 = vadd.f32 %v3513, %v6259
    %v6261 = vpop.f32.mrb[0].mxu0
    %v6262 = vadd.f32 %v3517, %v6261
    %v6263 = vpop.f32.mrb[0].mxu0
    %v6264 = vpop.f32.mrb[0].mxu0
    %6265 = vdwg.mxu0
    %6266 = vmatprep.subr.bf16.mxu0 %v5195
    %6267 = vmatpush1.bf16.msra.mxu0 %v5194
    %6268 = vmatprep.subr.bf16.mxu0 %v5201
    %6269 = vmatpush1.bf16.msra.mxu0 %v5200
    %6270 = vmatprep.subr.bf16.mxu0 %v5207
    %6271 = vmatpush1.bf16.msra.mxu0 %v5206
    %6272 = vmatprep.subr.bf16.mxu0 %v5213
    %6273 = vmatpush1.bf16.msra.mxu0 %v5212
    %6274 = vmatprep.subr.bf16.mxu0 %v5219
    %6275 = vmatpush1.bf16.msra.mxu0 %v5218
    %6276 = vmatprep.subr.bf16.mxu0 %v5225
    %6277 = vmatpush1.bf16.msra.mxu0 %v5224
    %6278 = vmatprep.subr.bf16.mxu0 %v5231
    %6279 = vmatpush1.bf16.msra.mxu0 %v5230
    %6280 = vmatprep.subr.bf16.mxu0 %v5237
    %6281 = vmatpush1.bf16.msra.mxu0 %v5236
    %6282 = vmatprep.subr.bf16.mxu0 %v5243
    %6283 = vmatpush1.bf16.msra.mxu0 %v5242
    %6284 = vmatprep.subr.bf16.mxu0 %v5249
    %6285 = vmatpush1.bf16.msra.mxu0 %v5248
    %6286 = vmatprep.subr.bf16.mxu0 %v5255
    %6287 = vmatpush1.bf16.msra.mxu0 %v5254
    %6288 = vmatprep.subr.bf16.mxu0 %v5261
    %6289 = vmatpush1.bf16.msra.mxu0 %v5260
    %6290 = vmatprep.subr.bf16.mxu0 %v5267
    %6291 = vmatpush1.bf16.msra.mxu0 %v5266
    %6292 = vmatprep.subr.bf16.mxu0 %v5273
    %6293 = vmatpush1.bf16.msra.mxu0 %v5272
    %6294 = vmatprep.subr.bf16.mxu0 %v5279
    %6295 = vmatpush1.bf16.msra.mxu0 %v5278
    %6296 = vmatprep.subr.bf16.mxu0 %v5285
    %6297 = vmatpush1.bf16.msra.mxu0 %v5284
    %6298 = vmatprep.mubr.bf16.mxu0 %v3665
    %6299 = vmatmul.mubr.bf16.gmra.mrb[0].mxu0 %v3661
    %v6300 = vpop.f32.mrb[0].mxu0
    %v6301 = vadd.f32 %v6250, %v6300
    %v6302 = vpop.f32.mrb[0].mxu0
    %v6303 = vadd.f32 %v6252, %v6302
    %v6304 = vpop.f32.mrb[0].mxu0
    %v6305 = vadd.f32 %v6254, %v6304
    %v6306 = vpop.f32.mrb[0].mxu0
    %v6307 = vadd.f32 %v6256, %v6306
    %6308 = vmatprep.mubr.bf16.mxu0 %v3765
    %6309 = vmatmul.mubr.bf16.gmra.mrb[0].mxu0 %v3763
    %v6310 = vpop.f32.mrb[0].mxu0
    %v6311 = vadd.f32 %v6260, %v6310
    %v6312 = vpop.f32.mrb[0].mxu0
    %v6313 = vadd.f32 %v6262, %v6312
    %v6314 = vpop.f32.mrb[0].mxu0
    %v6315 = vpop.f32.mrb[0].mxu0
    %6316 = vdwg.mxu0
    %6317 = vmatprep.subr.bf16.mxu0 %v5291
    %6318 = vmatpush1.bf16.msra.mxu0 %v5290
    %6319 = vmatprep.subr.bf16.mxu0 %v5297
    %6320 = vmatpush1.bf16.msra.mxu0 %v5296
    %6321 = vmatprep.subr.bf16.mxu0 %v5303
    %6322 = vmatpush1.bf16.msra.mxu0 %v5302
    %6323 = vmatprep.subr.bf16.mxu0 %v5309
    %6324 = vmatpush1.bf16.msra.mxu0 %v5308
    %6325 = vmatprep.subr.bf16.mxu0 %v5315
    %6326 = vmatpush1.bf16.msra.mxu0 %v5314
    %6327 = vmatprep.subr.bf16.mxu0 %v5321
    %6328 = vmatpush1.bf16.msra.mxu0 %v5320
    %6329 = vmatprep.subr.bf16.mxu0 %v5327
    %6330 = vmatpush1.bf16.msra.mxu0 %v5326
    %6331 = vmatprep.subr.bf16.mxu0 %v5333
    %6332 = vmatpush1.bf16.msra.mxu0 %v5332
    %6333 = vmatprep.subr.bf16.mxu0 %v5339
    %6334 = vmatpush1.bf16.msra.mxu0 %v5338
    %6335 = vmatprep.subr.bf16.mxu0 %v5345
    %6336 = vmatpush1.bf16.msra.mxu0 %v5344
    %6337 = vmatprep.subr.bf16.mxu0 %v5351
    %6338 = vmatpush1.bf16.msra.mxu0 %v5350
    %6339 = vmatprep.subr.bf16.mxu0 %v5357
    %6340 = vmatpush1.bf16.msra.mxu0 %v5356
    %6341 = vmatprep.subr.bf16.mxu0 %v5363
    %6342 = vmatpush1.bf16.msra.mxu0 %v5362
    %6343 = vmatprep.subr.bf16.mxu0 %v5369
    %6344 = vmatpush1.bf16.msra.mxu0 %v5368
    %6345 = vmatprep.subr.bf16.mxu0 %v5375
    %6346 = vmatpush1.bf16.msra.mxu0 %v5374
    %6347 = vmatprep.subr.bf16.mxu0 %v5381
    %6348 = vmatpush1.bf16.msra.mxu0 %v5380
    %6349 = vmatprep.mubr.bf16.mxu0 %v3666
    %6350 = vmatmul.mubr.bf16.gmra.mrb[0].mxu0 %v3662
    %v6351 = vpop.f32.mrb[0].mxu0
    %v6352 = vadd.f32 %v6301, %v6351
    %v6353 = vpop.f32.mrb[0].mxu0
    %v6354 = vadd.f32 %v6303, %v6353
    %v6355 = vpop.f32.mrb[0].mxu0
    %v6356 = vadd.f32 %v6305, %v6355
    %v6357 = vpop.f32.mrb[0].mxu0
    %v6358 = vadd.f32 %v6307, %v6357
    %6359 = vmatprep.mubr.bf16.mxu0 %v3762
    %6360 = vmatmul.mubr.bf16.gmra.mrb[0].mxu0 %v3748
    %v6361 = vpop.f32.mrb[0].mxu0
    %v6362 = vadd.f32 %v6311, %v6361
    %v6363 = vpop.f32.mrb[0].mxu0
    %v6364 = vadd.f32 %v6313, %v6363
    %v6365 = vpop.f32.mrb[0].mxu0
    %v6366 = vpop.f32.mrb[0].mxu0
    %6367 = vdwg.mxu0
    %6368 = vmatprep.subr.bf16.mxu0 %v5387
    %6369 = vmatpush1.bf16.msra.mxu0 %v5386
    %6370 = vmatprep.subr.bf16.mxu0 %v5393
    %6371 = vmatpush1.bf16.msra.mxu0 %v5392
    %6372 = vmatprep.subr.bf16.mxu0 %v5399
    %6373 = vmatpush1.bf16.msra.mxu0 %v5398
    %6374 = vmatprep.subr.bf16.mxu0 %v5405
    %6375 = vmatpush1.bf16.msra.mxu0 %v5404
    %6376 = vmatprep.subr.bf16.mxu0 %v5411
    %6377 = vmatpush1.bf16.msra.mxu0 %v5410
    %6378 = vmatprep.subr.bf16.mxu0 %v5417
    %6379 = vmatpush1.bf16.msra.mxu0 %v5416
    %6380 = vmatprep.subr.bf16.mxu0 %v5423
    %6381 = vmatpush1.bf16.msra.mxu0 %v5422
    %6382 = vmatprep.subr.bf16.mxu0 %v5429
    %6383 = vmatpush1.bf16.msra.mxu0 %v5428
    %6384 = vmatprep.subr.bf16.mxu0 %v5435
    %6385 = vmatpush1.bf16.msra.mxu0 %v5434
    %6386 = vmatprep.subr.bf16.mxu0 %v5441
    %6387 = vmatpush1.bf16.msra.mxu0 %v5440
    %6388 = vmatprep.subr.bf16.mxu0 %v5447
    %6389 = vmatpush1.bf16.msra.mxu0 %v5446
    %6390 = vmatprep.subr.bf16.mxu0 %v5453
    %6391 = vmatpush1.bf16.msra.mxu0 %v5452
    %6392 = vmatprep.subr.bf16.mxu0 %v5459
    %6393 = vmatpush1.bf16.msra.mxu0 %v5458
    %6394 = vmatprep.subr.bf16.mxu0 %v5465
    %6395 = vmatpush1.bf16.msra.mxu0 %v5464
    %6396 = vmatprep.subr.bf16.mxu0 %v5471
    %6397 = vmatpush1.bf16.msra.mxu0 %v5470
    %6398 = vmatprep.subr.bf16.mxu0 %v5477
    %6399 = vmatpush1.bf16.msra.mxu0 %v5476
    %6400 = vmatprep.mubr.bf16.mxu0 %v3667
    %6401 = vmatmul.mubr.bf16.gmra.mrb[0].mxu0 %v3663
    %v6402 = vpop.f32.mrb[0].mxu0
    %v6403 = vadd.f32 %v6352, %v6402
    %v6404 = vpop.f32.mrb[0].mxu0
    %v6405 = vadd.f32 %v6354, %v6404
    %v6406 = vpop.f32.mrb[0].mxu0
    %v6407 = vadd.f32 %v6356, %v6406
    %v6408 = vpop.f32.mrb[0].mxu0
    %v6409 = vadd.f32 %v6358, %v6408
    %6410 = vmatprep.mubr.bf16.mxu0 %v3766
    %6411 = vmatmul.mubr.bf16.gmra.mrb[0].mxu0 %v3764
    %v6412 = vpop.f32.mrb[0].mxu0
    %v6413 = vadd.f32 %v6362, %v6412
    %v6414 = vpop.f32.mrb[0].mxu0
    %v6415 = vadd.f32 %v6364, %v6414
    %v6416 = vpop.f32.mrb[0].mxu0
    %v6417 = vpop.f32.mrb[0].mxu0
    %6418 = vdwg.mxu0
    %6419 = vmatprep.subr.bf16.mxu0 %v5483
    %6420 = vmatpush1.bf16.msra.mxu0 %v5482
    %6421 = vmatprep.subr.bf16.mxu0 %v5489
    %6422 = vmatpush1.bf16.msra.mxu0 %v5488
    %6423 = vmatprep.subr.bf16.mxu0 %v5495
    %6424 = vmatpush1.bf16.msra.mxu0 %v5494
    %6425 = vmatprep.subr.bf16.mxu0 %v5501
    %6426 = vmatpush1.bf16.msra.mxu0 %v5500
    %6427 = vmatprep.subr.bf16.mxu0 %v5507
    %6428 = vmatpush1.bf16.msra.mxu0 %v5506
    %6429 = vmatprep.subr.bf16.mxu0 %v5513
    %6430 = vmatpush1.bf16.msra.mxu0 %v5512
    %6431 = vmatprep.subr.bf16.mxu0 %v5519
    %6432 = vmatpush1.bf16.msra.mxu0 %v5518
    %6433 = vmatprep.subr.bf16.mxu0 %v5525
    %6434 = vmatpush1.bf16.msra.mxu0 %v5524
    %6435 = vmatprep.subr.bf16.mxu0 0
    %6436 = vmatpush1.bf16.msra.mxu0 0
    %6437 = vmatprep.subr.bf16.mxu0 0
    %6438 = vmatpush1.bf16.msra.mxu0 0
    %6439 = vmatprep.subr.bf16.mxu0 0
    %6440 = vmatpush1.bf16.msra.mxu0 0
    %6441 = vmatprep.subr.bf16.mxu0 0
    %6442 = vmatpush1.bf16.msra.mxu0 0
    %6443 = vmatprep.subr.bf16.mxu0 0
    %6444 = vmatpush1.bf16.msra.mxu0 0
    %6445 = vmatprep.subr.bf16.mxu0 0
    %6446 = vmatpush1.bf16.msra.mxu0 0
    %6447 = vmatprep.subr.bf16.mxu0 0
    %6448 = vmatpush1.bf16.msra.mxu0 0
    %6449 = vmatprep.subr.bf16.mxu0 0
    %6450 = vmatpush1.bf16.msra.mxu0 0
    %6451 = vmatprep.mubr.bf16.mxu0 0
    %6452 = vmatmul.mubr.bf16.gmra.mrb[0].mxu0 %v3716
    %v6453 = vpop.f32.mrb[0].mxu0
    %v6454 = vadd.f32 %v6403, %v6453
    %v6455 = vpop.f32.mrb[0].mxu0
    %v6456 = vadd.f32 %v6405, %v6455
    %v6457 = vpop.f32.mrb[0].mxu0
    %v6458 = vadd.f32 %v6407, %v6457
    %v6459 = vpop.f32.mrb[0].mxu0
    %v6460 = vadd.f32 %v6409, %v6459
    %6461 = vmatprep.mubr.bf16.mxu0 0
    %6462 = vmatmul.mubr.bf16.gmra.mrb[0].mxu0 %v3781
    %v6463 = vpop.f32.mrb[0].mxu0
    %v6464 = vadd.f32 %v6413, %v6463
    %v6465 = vpop.f32.mrb[0].mxu0
    %v6466 = vadd.f32 %v6415, %v6465
    %v6467 = vpop.f32.mrb[0].mxu0
    %v6468 = vpop.f32.mrb[0].mxu0
    %6469 = vdwg.mxu0
    %6470 = vmatprep.subr.bf16.mxu0 %v5101
    %6471 = vmatpush1.bf16.msra.mxu0 %v5100
    %6472 = vmatprep.subr.bf16.mxu0 %v5107
    %6473 = vmatpush1.bf16.msra.mxu0 %v5106
    %6474 = vmatprep.subr.bf16.mxu0 %v5113
    %6475 = vmatpush1.bf16.msra.mxu0 %v5112
    %6476 = vmatprep.subr.bf16.mxu0 %v5119
    %6477 = vmatpush1.bf16.msra.mxu0 %v5118
    %6478 = vmatprep.subr.bf16.mxu0 %v5125
    %6479 = vmatpush1.bf16.msra.mxu0 %v5124
    %6480 = vmatprep.subr.bf16.mxu0 %v5131
    %6481 = vmatpush1.bf16.msra.mxu0 %v5130
    %6482 = vmatprep.subr.bf16.mxu0 %v5137
    %6483 = vmatpush1.bf16.msra.mxu0 %v5136
    %6484 = vmatprep.subr.bf16.mxu0 %v5143
    %6485 = vmatpush1.bf16.msra.mxu0 %v5142
    %6486 = vmatprep.subr.bf16.mxu0 %v5149
    %6487 = vmatpush1.bf16.msra.mxu0 %v5148
    %6488 = vmatprep.subr.bf16.mxu0 %v5155
    %6489 = vmatpush1.bf16.msra.mxu0 %v5154
    %6490 = vmatprep.subr.bf16.mxu0 %v5161
    %6491 = vmatpush1.bf16.msra.mxu0 %v5160
    %6492 = vmatprep.subr.bf16.mxu0 %v5167
    %6493 = vmatpush1.bf16.msra.mxu0 %v5166
    %6494 = vmatprep.subr.bf16.mxu0 %v5173
    %6495 = vmatpush1.bf16.msra.mxu0 %v5172
    %6496 = vmatprep.subr.bf16.mxu0 %v5179
    %6497 = vmatpush1.bf16.msra.mxu0 %v5178
    %6498 = vmatprep.subr.bf16.mxu0 %v5185
    %6499 = vmatpush1.bf16.msra.mxu0 %v5184
    %6500 = vmatprep.subr.bf16.mxu0 %v5191
    %6501 = vmatpush1.bf16.msra.mxu0 %v5190
    %6502 = vmatprep.mubr.bf16.mxu0 %v3664
    %6503 = vmatmul.mubr.bf16.gmra.mrb[0].mxu0 %v3660
    %v6504 = vpop.f32.mrb[0].mxu0
    %v6505 = vadd.f32 %v3521, %v6504
    %v6506 = vpop.f32.mrb[0].mxu0
    %v6507 = vadd.f32 %v3525, %v6506
    %v6508 = vpop.f32.mrb[0].mxu0
    %v6509 = vadd.f32 %v3521, %v6508
    %v6510 = vpop.f32.mrb[0].mxu0
    %v6511 = vadd.f32 %v3525, %v6510
    %6512 = vmatprep.mubr.bf16.mxu0 %v3755
    %6513 = vmatmul.mubr.bf16.gmra.mrb[0].mxu0 %v3741
    %v6514 = vpop.f32.mrb[0].mxu0
    %v6515 = vadd.f32 %v3521, %v6514
    %v6516 = vpop.f32.mrb[0].mxu0
    %v6517 = vadd.f32 %v3525, %v6516
    %v6518 = vpop.f32.mrb[0].mxu0
    %v6519 = vpop.f32.mrb[0].mxu0
    %6520 = vdwg.mxu0
    %6521 = vmatprep.subr.bf16.mxu0 %v5197
    %6522 = vmatpush1.bf16.msra.mxu0 %v5196
    %6523 = vmatprep.subr.bf16.mxu0 %v5203
    %6524 = vmatpush1.bf16.msra.mxu0 %v5202
    %6525 = vmatprep.subr.bf16.mxu0 %v5209
    %6526 = vmatpush1.bf16.msra.mxu0 %v5208
    %6527 = vmatprep.subr.bf16.mxu0 %v5215
    %6528 = vmatpush1.bf16.msra.mxu0 %v5214
    %6529 = vmatprep.subr.bf16.mxu0 %v5221
    %6530 = vmatpush1.bf16.msra.mxu0 %v5220
    %6531 = vmatprep.subr.bf16.mxu0 %v5227
    %6532 = vmatpush1.bf16.msra.mxu0 %v5226
    %6533 = vmatprep.subr.bf16.mxu0 %v5233
    %6534 = vmatpush1.bf16.msra.mxu0 %v5232
    %6535 = vmatprep.subr.bf16.mxu0 %v5239
    %6536 = vmatpush1.bf16.msra.mxu0 %v5238
    %6537 = vmatprep.subr.bf16.mxu0 %v5245
    %6538 = vmatpush1.bf16.msra.mxu0 %v5244
    %6539 = vmatprep.subr.bf16.mxu0 %v5251
    %6540 = vmatpush1.bf16.msra.mxu0 %v5250
    %6541 = vmatprep.subr.bf16.mxu0 %v5257
    %6542 = vmatpush1.bf16.msra.mxu0 %v5256
    %6543 = vmatprep.subr.bf16.mxu0 %v5263
    %6544 = vmatpush1.bf16.msra.mxu0 %v5262
    %6545 = vmatprep.subr.bf16.mxu0 %v5269
    %6546 = vmatpush1.bf16.msra.mxu0 %v5268
    %6547 = vmatprep.subr.bf16.mxu0 %v5275
    %6548 = vmatpush1.bf16.msra.mxu0 %v5274
    %6549 = vmatprep.subr.bf16.mxu0 %v5281
    %6550 = vmatpush1.bf16.msra.mxu0 %v5280
    %6551 = vmatprep.subr.bf16.mxu0 %v5287
    %6552 = vmatpush1.bf16.msra.mxu0 %v5286
    %6553 = vmatprep.mubr.bf16.mxu0 %v3665
    %6554 = vmatmul.mubr.bf16.gmra.mrb[0].mxu0 %v3661
    %v6555 = vpop.f32.mrb[0].mxu0
    %v6556 = vadd.f32 %v6505, %v6555
    %v6557 = vpop.f32.mrb[0].mxu0
    %v6558 = vadd.f32 %v6507, %v6557
    %v6559 = vpop.f32.mrb[0].mxu0
    %v6560 = vadd.f32 %v6509, %v6559
    %v6561 = vpop.f32.mrb[0].mxu0
    %v6562 = vadd.f32 %v6511, %v6561
    %6563 = vmatprep.mubr.bf16.mxu0 %v3765
    %6564 = vmatmul.mubr.bf16.gmra.mrb[0].mxu0 %v3763
    %v6565 = vpop.f32.mrb[0].mxu0
    %v6566 = vadd.f32 %v6515, %v6565
    %v6567 = vpop.f32.mrb[0].mxu0
    %v6568 = vadd.f32 %v6517, %v6567
    %v6569 = vpop.f32.mrb[0].mxu0
    %v6570 = vpop.f32.mrb[0].mxu0
    %6571 = vdwg.mxu0
    %6572 = vmatprep.subr.bf16.mxu0 %v5293
    %6573 = vmatpush1.bf16.msra.mxu0 %v5292
    %6574 = vmatprep.subr.bf16.mxu0 %v5299
    %6575 = vmatpush1.bf16.msra.mxu0 %v5298
    %6576 = vmatprep.subr.bf16.mxu0 %v5305
    %6577 = vmatpush1.bf16.msra.mxu0 %v5304
    %6578 = vmatprep.subr.bf16.mxu0 %v5311
    %6579 = vmatpush1.bf16.msra.mxu0 %v5310
    %6580 = vmatprep.subr.bf16.mxu0 %v5317
    %6581 = vmatpush1.bf16.msra.mxu0 %v5316
    %6582 = vmatprep.subr.bf16.mxu0 %v5323
    %6583 = vmatpush1.bf16.msra.mxu0 %v5322
    %6584 = vmatprep.subr.bf16.mxu0 %v5329
    %6585 = vmatpush1.bf16.msra.mxu0 %v5328
    %6586 = vmatprep.subr.bf16.mxu0 %v5335
    %6587 = vmatpush1.bf16.msra.mxu0 %v5334
    %6588 = vmatprep.subr.bf16.mxu0 %v5341
    %6589 = vmatpush1.bf16.msra.mxu0 %v5340
    %6590 = vmatprep.subr.bf16.mxu0 %v5347
    %6591 = vmatpush1.bf16.msra.mxu0 %v5346
    %6592 = vmatprep.subr.bf16.mxu0 %v5353
    %6593 = vmatpush1.bf16.msra.mxu0 %v5352
    %6594 = vmatprep.subr.bf16.mxu0 %v5359
    %6595 = vmatpush1.bf16.msra.mxu0 %v5358
    %6596 = vmatprep.subr.bf16.mxu0 %v5365
    %6597 = vmatpush1.bf16.msra.mxu0 %v5364
    %6598 = vmatprep.subr.bf16.mxu0 %v5371
    %6599 = vmatpush1.bf16.msra.mxu0 %v5370
    %6600 = vmatprep.subr.bf16.mxu0 %v5377
    %6601 = vmatpush1.bf16.msra.mxu0 %v5376
    %6602 = vmatprep.subr.bf16.mxu0 %v5383
    %6603 = vmatpush1.bf16.msra.mxu0 %v5382
    %6604 = vmatprep.mubr.bf16.mxu0 %v3666
    %6605 = vmatmul.mubr.bf16.gmra.mrb[0].mxu0 %v3662
    %v6606 = vpop.f32.mrb[0].mxu0
    %v6607 = vadd.f32 %v6556, %v6606
    %v6608 = vpop.f32.mrb[0].mxu0
    %v6609 = vadd.f32 %v6558, %v6608
    %v6610 = vpop.f32.mrb[0].mxu0
    %v6611 = vadd.f32 %v6560, %v6610
    %v6612 = vpop.f32.mrb[0].mxu0
    %v6613 = vadd.f32 %v6562, %v6612
    %6614 = vmatprep.mubr.bf16.mxu0 %v3762
    %6615 = vmatmul.mubr.bf16.gmra.mrb[0].mxu0 %v3748
    %v6616 = vpop.f32.mrb[0].mxu0
    %v6617 = vadd.f32 %v6566, %v6616
    %v6618 = vpop.f32.mrb[0].mxu0
    %v6619 = vadd.f32 %v6568, %v6618
    %v6620 = vpop.f32.mrb[0].mxu0
    %v6621 = vpop.f32.mrb[0].mxu0
    %6622 = vdwg.mxu0
    %6623 = vmatprep.subr.bf16.mxu0 %v5389
    %6624 = vmatpush1.bf16.msra.mxu0 %v5388
    %6625 = vmatprep.subr.bf16.mxu0 %v5395
    %6626 = vmatpush1.bf16.msra.mxu0 %v5394
    %6627 = vmatprep.subr.bf16.mxu0 %v5401
    %6628 = vmatpush1.bf16.msra.mxu0 %v5400
    %6629 = vmatprep.subr.bf16.mxu0 %v5407
    %6630 = vmatpush1.bf16.msra.mxu0 %v5406
    %6631 = vmatprep.subr.bf16.mxu0 %v5413
    %6632 = vmatpush1.bf16.msra.mxu0 %v5412
    %6633 = vmatprep.subr.bf16.mxu0 %v5419
    %6634 = vmatpush1.bf16.msra.mxu0 %v5418
    %6635 = vmatprep.subr.bf16.mxu0 %v5425
    %6636 = vmatpush1.bf16.msra.mxu0 %v5424
    %6637 = vmatprep.subr.bf16.mxu0 %v5431
    %6638 = vmatpush1.bf16.msra.mxu0 %v5430
    %6639 = vmatprep.subr.bf16.mxu0 %v5437
    %6640 = vmatpush1.bf16.msra.mxu0 %v5436
    %6641 = vmatprep.subr.bf16.mxu0 %v5443
    %6642 = vmatpush1.bf16.msra.mxu0 %v5442
    %6643 = vmatprep.subr.bf16.mxu0 %v5449
    %6644 = vmatpush1.bf16.msra.mxu0 %v5448
    %6645 = vmatprep.subr.bf16.mxu0 %v5455
    %6646 = vmatpush1.bf16.msra.mxu0 %v5454
    %6647 = vmatprep.subr.bf16.mxu0 %v5461
    %6648 = vmatpush1.bf16.msra.mxu0 %v5460
    %6649 = vmatprep.subr.bf16.mxu0 %v5467
    %6650 = vmatpush1.bf16.msra.mxu0 %v5466
    %6651 = vmatprep.subr.bf16.mxu0 %v5473
    %6652 = vmatpush1.bf16.msra.mxu0 %v5472
    %6653 = vmatprep.subr.bf16.mxu0 %v5479
    %6654 = vmatpush1.bf16.msra.mxu0 %v5478
    %6655 = vmatprep.mubr.bf16.mxu0 %v3667
    %6656 = vmatmul.mubr.bf16.gmra.mrb[0].mxu0 %v3663
    %v6657 = vpop.f32.mrb[0].mxu0
    %v6658 = vadd.f32 %v6607, %v6657
    %v6659 = vpop.f32.mrb[0].mxu0
    %v6660 = vadd.f32 %v6609, %v6659
    %v6661 = vpop.f32.mrb[0].mxu0
    %v6662 = vadd.f32 %v6611, %v6661
    %v6663 = vpop.f32.mrb[0].mxu0
    %v6664 = vadd.f32 %v6613, %v6663
    %6665 = vmatprep.mubr.bf16.mxu0 %v3766
    %6666 = vmatmul.mubr.bf16.gmra.mrb[0].mxu0 %v3764
    %v6667 = vpop.f32.mrb[0].mxu0
    %v6668 = vadd.f32 %v6617, %v6667
    %v6669 = vpop.f32.mrb[0].mxu0
    %v6670 = vadd.f32 %v6619, %v6669
    %v6671 = vpop.f32.mrb[0].mxu0
    %v6672 = vpop.f32.mrb[0].mxu0
    %6673 = vdwg.mxu0
    %6674 = vmatprep.subr.bf16.mxu0 %v5485
    %6675 = vmatpush1.bf16.msra.mxu0 %v5484
    %6676 = vmatprep.subr.bf16.mxu0 %v5491
    %6677 = vmatpush1.bf16.msra.mxu0 %v5490
    %6678 = vmatprep.subr.bf16.mxu0 %v5497
    %6679 = vmatpush1.bf16.msra.mxu0 %v5496
    %6680 = vmatprep.subr.bf16.mxu0 %v5503
    %6681 = vmatpush1.bf16.msra.mxu0 %v5502
    %6682 = vmatprep.subr.bf16.mxu0 %v5509
    %6683 = vmatpush1.bf16.msra.mxu0 %v5508
    %6684 = vmatprep.subr.bf16.mxu0 %v5515
    %6685 = vmatpush1.bf16.msra.mxu0 %v5514
    %6686 = vmatprep.subr.bf16.mxu0 %v5521
    %6687 = vmatpush1.bf16.msra.mxu0 %v5520
    %6688 = vmatprep.subr.bf16.mxu0 %v5527
    %6689 = vmatpush1.bf16.msra.mxu0 %v5526
    %6690 = vmatprep.subr.bf16.mxu0 0
    %6691 = vmatpush1.bf16.msra.mxu0 0
    %6692 = vmatprep.subr.bf16.mxu0 0
    %6693 = vmatpush1.bf16.msra.mxu0 0
    %6694 = vmatprep.subr.bf16.mxu0 0
    %6695 = vmatpush1.bf16.msra.mxu0 0
    %6696 = vmatprep.subr.bf16.mxu0 0
    %6697 = vmatpush1.bf16.msra.mxu0 0
    %6698 = vmatprep.subr.bf16.mxu0 0
    %6699 = vmatpush1.bf16.msra.mxu0 0
    %6700 = vmatprep.subr.bf16.mxu0 0
    %6701 = vmatpush1.bf16.msra.mxu0 0
    %6702 = vmatprep.subr.bf16.mxu0 0
    %6703 = vmatpush1.bf16.msra.mxu0 0
    %6704 = vmatprep.subr.bf16.mxu0 0
    %6705 = vmatpush1.bf16.msra.mxu0 0
    %6706 = vmatprep.mubr.bf16.mxu0 0
    %6707 = vmatmul.mubr.bf16.gmra.mrb[0].mxu0 %v3716
    %v6708 = vpop.f32.mrb[0].mxu0
    %v6709 = vadd.f32 %v6658, %v6708
    %v6710 = vpop.f32.mrb[0].mxu0
    %v6711 = vadd.f32 %v6660, %v6710
    %v6712 = vpop.f32.mrb[0].mxu0
    %v6713 = vadd.f32 %v6662, %v6712
    %v6714 = vpop.f32.mrb[0].mxu0
    %v6715 = vadd.f32 %v6664, %v6714
    %6716 = vmatprep.mubr.bf16.mxu0 0
    %6717 = vmatmul.mubr.bf16.gmra.mrb[0].mxu0 %v3781
    %v6718 = vpop.f32.mrb[0].mxu0
    %v6719 = vadd.f32 %v6668, %v6718
    %v6720 = vpop.f32.mrb[0].mxu0
    %v6721 = vadd.f32 %v6670, %v6720
    %v6722 = vpop.f32.mrb[0].mxu0
    %v6723 = vpop.f32.mrb[0].mxu0
    %6724 = vdwg.mxu0
    %v6725 = vmax.f32 %v6199, 0.0
    %v6726 = vmax.f32 %v6201, 0.0
    %v6727 = vmax.f32 %v6454, 0.0
    %v6728 = vmax.f32 %v6456, 0.0
    %v6729 = vmax.f32 %v6709, 0.0
    %v6730 = vmax.f32 %v6711, 0.0
    %v6731 = vmax.f32 %v6203, 0.0
    %v6732 = vmax.f32 %v6205, 0.0
    %v6733 = vmax.f32 %v6458, 0.0
    %v6734 = vmax.f32 %v6460, 0.0
    %v6735 = vmax.f32 %v6713, 0.0
    %v6736 = vmax.f32 %v6715, 0.0
    %v6737 = vmax.f32 %v6209, 0.0
    %v6738 = vmax.f32 %v6211, 0.0
    %v6739 = vmax.f32 %v6464, 0.0
    %v6740 = vmax.f32 %v6466, 0.0
    %v6741 = vmax.f32 %v6719, 0.0
    %v6742 = vmax.f32 %v6721, 0.0
    %v6743 = vld [vmem:[#allocation13] sm:$0x3f]
    %v6745 = vlaneseq
    %v6746 = vshrl.u32 %v6745, 7
    %v6747 = vsub.s32 0, %v6746
    %v6748 = vrot.slane %v6743, %v6747
    %v6749 = vlaneseq
    %v6750 = vshrl.u32 %v6749, 7
    %v6751 = vsub.s32 1, %v6750
    %v6752 = vrot.slane %v6743, %v6751
    %v6753 = vlaneseq
    %v6754 = vshrl.u32 %v6753, 7
    %v6755 = vsub.s32 2, %v6754
    %v6756 = vrot.slane %v6743, %v6755
    %v6757 = vlaneseq
    %v6758 = vshrl.u32 %v6757, 7
    %v6759 = vsub.s32 3, %v6758
    %v6760 = vrot.slane %v6743, %v6759
    %v6761 = vlaneseq
    %v6762 = vshrl.u32 %v6761, 7
    %v6763 = vsub.s32 4, %v6762
    %v6764 = vrot.slane %v6743, %v6763
    %v6765 = vlaneseq
    %v6766 = vshrl.u32 %v6765, 7
    %v6767 = vsub.s32 5, %v6766
    %v6768 = vrot.slane %v6743, %v6767
    %v6775 = vmul.f32 %v6725, %v6748
    %v6776 = vmul.f32 %v6726, %v6752
    %v6777 = vmul.f32 %v6727, %v6756
    %v6778 = vmul.f32 %v6728, %v6760
    %v6779 = vmul.f32 %v6729, %v6764
    %v6780 = vmul.f32 %v6730, %v6768
    %v6781 = vmul.f32 %v6731, %v6748
    %v6782 = vmul.f32 %v6732, %v6752
    %v6783 = vmul.f32 %v6733, %v6756
    %v6784 = vmul.f32 %v6734, %v6760
    %v6785 = vmul.f32 %v6735, %v6764
    %v6786 = vmul.f32 %v6736, %v6768
    %v6787 = vmul.f32 %v6737, %v6748
    %v6788 = vmul.f32 %v6738, %v6752
    %v6789 = vmul.f32 %v6739, %v6756
    %v6790 = vmul.f32 %v6740, %v6760
    %v6791 = vmul.f32 %v6741, %v6764
    %v6792 = vmul.f32 %v6742, %v6768
    %v6793 = vld [vmem:[#allocation14] sm:$0x3f]
    %v6795 = vlaneseq
    %v6796 = vshrl.u32 %v6795, 7
    %v6797 = vsub.s32 0, %v6796
    %v6798 = vrot.slane %v6793, %v6797
    %v6799 = vlaneseq
    %v6800 = vshrl.u32 %v6799, 7
    %v6801 = vsub.s32 1, %v6800
    %v6802 = vrot.slane %v6793, %v6801
    %v6803 = vlaneseq
    %v6804 = vshrl.u32 %v6803, 7
    %v6805 = vsub.s32 2, %v6804
    %v6806 = vrot.slane %v6793, %v6805
    %v6807 = vlaneseq
    %v6808 = vshrl.u32 %v6807, 7
    %v6809 = vsub.s32 3, %v6808
    %v6810 = vrot.slane %v6793, %v6809
    %v6811 = vlaneseq
    %v6812 = vshrl.u32 %v6811, 7
    %v6813 = vsub.s32 4, %v6812
    %v6814 = vrot.slane %v6793, %v6813
    %v6815 = vlaneseq
    %v6816 = vshrl.u32 %v6815, 7
    %v6817 = vsub.s32 5, %v6816
    %v6818 = vrot.slane %v6793, %v6817
    %v6825 = vadd.f32 %v6775, %v6798
    %v6826 = vadd.f32 %v6776, %v6802
    %v6827 = vadd.f32 %v6777, %v6806
    %v6828 = vadd.f32 %v6778, %v6810
    %v6829 = vadd.f32 %v6779, %v6814
    %v6830 = vadd.f32 %v6780, %v6818
    %v6831 = vadd.f32 %v6781, %v6798
    %v6832 = vadd.f32 %v6782, %v6802
    %v6833 = vadd.f32 %v6783, %v6806
    %v6834 = vadd.f32 %v6784, %v6810
    %v6835 = vadd.f32 %v6785, %v6814
    %v6836 = vadd.f32 %v6786, %v6818
    %v6837 = vadd.f32 %v6787, %v6798
    %v6838 = vadd.f32 %v6788, %v6802
    %v6839 = vadd.f32 %v6789, %v6806
    %v6840 = vadd.f32 %v6790, %v6810
    %v6841 = vadd.f32 %v6791, %v6814
    %v6842 = vadd.f32 %v6792, %v6818
    %v6843 = vmax.f32 %v6825, %v6828
    %v6844 = vmax.f32 %v6826, %v6829
    %v6845 = vmax.f32 %v6827, %v6830
    %v6846 = vmax.f32 %v6831, %v6834
    %v6847 = vmax.f32 %v6832, %v6835
    %v6848 = vmax.f32 %v6833, %v6836
    %v6849 = vmax.f32 %v6837, %v6840
    %v6850 = vmax.f32 %v6838, %v6841
    %v6851 = vmax.f32 %v6839, %v6842
    %v6861 = vcombine.low %v6843, %v6844
    %v6862 = vcombine.high %v6843, %v6844
    %v6863 = vcombine.high %v6845, %v6845
    %v6865 = vunpack.c.l.s4 1983009808
    %v6866 = vunpack.c.0.s8 %v6865
    %v6867 = vlaneseq
    %v6868 = vshrl.u32 %v6867, 7
    %v6869 = vsub.s32 %v6866, %v6868
    %v6870 = vrot.slane %v6861, %v6869
    %v6872 = vunpack.c.l.s4 1983009808
    %v6873 = vunpack.c.0.s8 %v6872
    %v6874 = vlaneseq
    %v6875 = vshrl.u32 %v6874, 7
    %v6876 = vsub.s32 %v6873, %v6875
    %v6877 = vrot.slane %v6862, %v6876
    %v6879 = vunpack.c.l.s4 1983009808
    %v6880 = vunpack.c.0.s8 %v6879
    %v6881 = vlaneseq
    %v6882 = vshrl.u32 %v6881, 7
    %v6883 = vsub.s32 %v6880, %v6882
    %v6884 = vrot.slane %v6845, %v6883
    %v6886 = vunpack.c.l.s4 1983009808
    %v6887 = vunpack.c.0.s8 %v6886
    %v6888 = vlaneseq
    %v6889 = vshrl.u32 %v6888, 7
    %v6890 = vsub.s32 %v6887, %v6889
    %v6891 = vrot.slane %v6863, %v6890
    %v6892 = vcombine.low %v6870, %v6884
    %v6893 = vcombine.high %v6870, %v6884
    %v6894 = vcombine.low %v6877, %v6891
    %v6895 = vcombine.high %v6877, %v6891
    %v6896 = vcombine.low %v6846, %v6847
    %v6897 = vcombine.high %v6846, %v6847
    %v6898 = vcombine.high %v6848, %v6848
    %v6900 = vunpack.c.l.s4 1983009808
    %v6901 = vunpack.c.0.s8 %v6900
    %v6902 = vlaneseq
    %v6903 = vshrl.u32 %v6902, 7
    %v6904 = vsub.s32 %v6901, %v6903
    %v6905 = vrot.slane %v6896, %v6904
    %v6907 = vunpack.c.l.s4 1983009808
    %v6908 = vunpack.c.0.s8 %v6907
    %v6909 = vlaneseq
    %v6910 = vshrl.u32 %v6909, 7
    %v6911 = vsub.s32 %v6908, %v6910
    %v6912 = vrot.slane %v6897, %v6911
    %v6914 = vunpack.c.l.s4 1983009808
    %v6915 = vunpack.c.0.s8 %v6914
    %v6916 = vlaneseq
    %v6917 = vshrl.u32 %v6916, 7
    %v6918 = vsub.s32 %v6915, %v6917
    %v6919 = vrot.slane %v6848, %v6918
    %v6921 = vunpack.c.l.s4 1983009808
    %v6922 = vunpack.c.0.s8 %v6921
    %v6923 = vlaneseq
    %v6924 = vshrl.u32 %v6923, 7
    %v6925 = vsub.s32 %v6922, %v6924
    %v6926 = vrot.slane %v6898, %v6925
    %v6927 = vcombine.low %v6905, %v6919
    %v6928 = vcombine.high %v6905, %v6919
    %v6929 = vcombine.low %v6912, %v6926
    %v6930 = vcombine.high %v6912, %v6926
    %v6931 = vcombine.low %v6849, %v6850
    %v6933 = vunpack.c.l.s4 1983009808
    %v6934 = vunpack.c.0.s8 %v6933
    %v6935 = vlaneseq
    %v6936 = vshrl.u32 %v6935, 7
    %v6937 = vsub.s32 %v6934, %v6936
    %v6938 = vrot.slane %v6931, %v6937
    %v6940 = vunpack.c.l.s4 1983009808
    %v6941 = vunpack.c.0.s8 %v6940
    %v6942 = vlaneseq
    %v6943 = vshrl.u32 %v6942, 7
    %v6944 = vsub.s32 %v6941, %v6943
    %v6945 = vrot.slane %v6851, %v6944
    %v6946 = vcombine.low %v6938, %v6945
    %v6947 = vcombine.high %v6938, %v6945
    %v6948 = vcombine.high %v6892, %v6892
    %v6950 = vunpack.c.l.s4 1983009808
    %v6951 = vunpack.c.0.s8 %v6950
    %v6952 = vlaneseq
    %v6953 = vshrl.u32 %v6952, 7
    %v6954 = vsub.s32 %v6951, %v6953
    %v6955 = vrot.slane %v6892, %v6954
    %v6957 = vunpack.c.l.s4 1983009808
    %v6958 = vunpack.c.0.s8 %v6957
    %v6959 = vlaneseq
    %v6960 = vshrl.u32 %v6959, 7
    %v6961 = vsub.s32 %v6958, %v6960
    %v6962 = vrot.slane %v6948, %v6961
    %v6963 = vcombine.high %v6955, %v6955
    %v6964 = vcombine.high %v6893, %v6893
    %v6966 = vunpack.c.l.s4 1983009808
    %v6967 = vunpack.c.0.s8 %v6966
    %v6968 = vlaneseq
    %v6969 = vshrl.u32 %v6968, 7
    %v6970 = vsub.s32 %v6967, %v6969
    %v6971 = vrot.slane %v6893, %v6970
    %v6973 = vunpack.c.l.s4 1983009808
    %v6974 = vunpack.c.0.s8 %v6973
    %v6975 = vlaneseq
    %v6976 = vshrl.u32 %v6975, 7
    %v6977 = vsub.s32 %v6974, %v6976
    %v6978 = vrot.slane %v6964, %v6977
    %v6979 = vcombine.high %v6971, %v6971
    %v6980 = vcombine.high %v6894, %v6894
    %v6982 = vunpack.c.l.s4 1983009808
    %v6983 = vunpack.c.0.s8 %v6982
    %v6984 = vlaneseq
    %v6985 = vshrl.u32 %v6984, 7
    %v6986 = vsub.s32 %v6983, %v6985
    %v6987 = vrot.slane %v6894, %v6986
    %v6989 = vunpack.c.l.s4 1983009808
    %v6990 = vunpack.c.0.s8 %v6989
    %v6991 = vlaneseq
    %v6992 = vshrl.u32 %v6991, 7
    %v6993 = vsub.s32 %v6990, %v6992
    %v6994 = vrot.slane %v6980, %v6993
    %v6995 = vcombine.high %v6987, %v6987
    %v6996 = vcombine.high %v6895, %v6895
    %v6998 = vunpack.c.l.s4 1983009808
    %v6999 = vunpack.c.0.s8 %v6998
    %v7000 = vlaneseq
    %v7001 = vshrl.u32 %v7000, 7
    %v7002 = vsub.s32 %v6999, %v7001
    %v7003 = vrot.slane %v6895, %v7002
    %v7005 = vunpack.c.l.s4 1983009808
    %v7006 = vunpack.c.0.s8 %v7005
    %v7007 = vlaneseq
    %v7008 = vshrl.u32 %v7007, 7
    %v7009 = vsub.s32 %v7006, %v7008
    %v7010 = vrot.slane %v6996, %v7009
    %v7011 = vcombine.high %v7003, %v7003
    %v7012 = vcombine.high %v6927, %v6927
    %v7014 = vunpack.c.l.s4 1983009808
    %v7015 = vunpack.c.0.s8 %v7014
    %v7016 = vlaneseq
    %v7017 = vshrl.u32 %v7016, 7
    %v7018 = vsub.s32 %v7015, %v7017
    %v7019 = vrot.slane %v6927, %v7018
    %v7021 = vunpack.c.l.s4 1983009808
    %v7022 = vunpack.c.0.s8 %v7021
    %v7023 = vlaneseq
    %v7024 = vshrl.u32 %v7023, 7
    %v7025 = vsub.s32 %v7022, %v7024
    %v7026 = vrot.slane %v7012, %v7025
    %v7027 = vcombine.high %v7019, %v7019
    %v7028 = vcombine.high %v6928, %v6928
    %v7030 = vunpack.c.l.s4 1983009808
    %v7031 = vunpack.c.0.s8 %v7030
    %v7032 = vlaneseq
    %v7033 = vshrl.u32 %v7032, 7
    %v7034 = vsub.s32 %v7031, %v7033
    %v7035 = vrot.slane %v6928, %v7034
    %v7037 = vunpack.c.l.s4 1983009808
    %v7038 = vunpack.c.0.s8 %v7037
    %v7039 = vlaneseq
    %v7040 = vshrl.u32 %v7039, 7
    %v7041 = vsub.s32 %v7038, %v7040
    %v7042 = vrot.slane %v7028, %v7041
    %v7043 = vcombine.high %v7035, %v7035
    %v7044 = vcombine.high %v6929, %v6929
    %v7046 = vunpack.c.l.s4 1983009808
    %v7047 = vunpack.c.0.s8 %v7046
    %v7048 = vlaneseq
    %v7049 = vshrl.u32 %v7048, 7
    %v7050 = vsub.s32 %v7047, %v7049
    %v7051 = vrot.slane %v6929, %v7050
    %v7053 = vunpack.c.l.s4 1983009808
    %v7054 = vunpack.c.0.s8 %v7053
    %v7055 = vlaneseq
    %v7056 = vshrl.u32 %v7055, 7
    %v7057 = vsub.s32 %v7054, %v7056
    %v7058 = vrot.slane %v7044, %v7057
    %v7059 = vcombine.high %v7051, %v7051
    %v7060 = vcombine.high %v6930, %v6930
    %v7062 = vunpack.c.l.s4 1983009808
    %v7063 = vunpack.c.0.s8 %v7062
    %v7064 = vlaneseq
    %v7065 = vshrl.u32 %v7064, 7
    %v7066 = vsub.s32 %v7063, %v7065
    %v7067 = vrot.slane %v6930, %v7066
    %v7069 = vunpack.c.l.s4 1983009808
    %v7070 = vunpack.c.0.s8 %v7069
    %v7071 = vlaneseq
    %v7072 = vshrl.u32 %v7071, 7
    %v7073 = vsub.s32 %v7070, %v7072
    %v7074 = vrot.slane %v7060, %v7073
    %v7075 = vcombine.high %v7067, %v7067
    %v7076 = vcombine.high %v6946, %v6946
    %v7078 = vunpack.c.l.s4 1983009808
    %v7079 = vunpack.c.0.s8 %v7078
    %v7080 = vlaneseq
    %v7081 = vshrl.u32 %v7080, 7
    %v7082 = vsub.s32 %v7079, %v7081
    %v7083 = vrot.slane %v6946, %v7082
    %v7085 = vunpack.c.l.s4 1983009808
    %v7086 = vunpack.c.0.s8 %v7085
    %v7087 = vlaneseq
    %v7088 = vshrl.u32 %v7087, 7
    %v7089 = vsub.s32 %v7086, %v7088
    %v7090 = vrot.slane %v7076, %v7089
    %v7091 = vcombine.high %v7083, %v7083
    %v7092 = vcombine.high %v6947, %v6947
    %v7094 = vunpack.c.l.s4 1983009808
    %v7095 = vunpack.c.0.s8 %v7094
    %v7096 = vlaneseq
    %v7097 = vshrl.u32 %v7096, 7
    %v7098 = vsub.s32 %v7095, %v7097
    %v7099 = vrot.slane %v6947, %v7098
    %v7101 = vunpack.c.l.s4 1983009808
    %v7102 = vunpack.c.0.s8 %v7101
    %v7103 = vlaneseq
    %v7104 = vshrl.u32 %v7103, 7
    %v7105 = vsub.s32 %v7102, %v7104
    %v7106 = vrot.slane %v7092, %v7105
    %v7107 = vcombine.high %v7099, %v7099
    %v7138 = vsel %vm1866, %v6955, -inf
    %v7139 = vrot.slane %v7138, 4
    %v7140 = vmax.f32 %v7138, %v7139
    %v7141 = vrot.slane %v7140, 2
    %v7142 = vmax.f32 %v7140, %v7141
    %v7143 = vrot.slane %v7142, 1
    %v7144 = vmax.f32 %v7142, %v7143
    %v7145 = vsel %vm1866, %v6963, -inf
    %v7146 = vrot.slane %v7145, 4
    %v7147 = vmax.f32 %v7145, %v7146
    %v7148 = vrot.slane %v7147, 2
    %v7149 = vmax.f32 %v7147, %v7148
    %v7150 = vrot.slane %v7149, 1
    %v7151 = vmax.f32 %v7149, %v7150
    %v7152 = vsel %vm1866, %v6962, -inf
    %v7153 = vrot.slane %v7152, 4
    %v7154 = vmax.f32 %v7152, %v7153
    %v7155 = vrot.slane %v7154, 2
    %v7156 = vmax.f32 %v7154, %v7155
    %v7157 = vrot.slane %v7156, 1
    %v7158 = vmax.f32 %v7156, %v7157
    %v7159 = vsel %vm1866, %v6971, -inf
    %v7160 = vrot.slane %v7159, 4
    %v7161 = vmax.f32 %v7159, %v7160
    %v7162 = vrot.slane %v7161, 2
    %v7163 = vmax.f32 %v7161, %v7162
    %v7164 = vrot.slane %v7163, 1
    %v7165 = vmax.f32 %v7163, %v7164
    %v7166 = vsel %vm1866, %v6979, -inf
    %v7167 = vrot.slane %v7166, 4
    %v7168 = vmax.f32 %v7166, %v7167
    %v7169 = vrot.slane %v7168, 2
    %v7170 = vmax.f32 %v7168, %v7169
    %v7171 = vrot.slane %v7170, 1
    %v7172 = vmax.f32 %v7170, %v7171
    %v7173 = vsel %vm1866, %v6978, -inf
    %v7174 = vrot.slane %v7173, 4
    %v7175 = vmax.f32 %v7173, %v7174
    %v7176 = vrot.slane %v7175, 2
    %v7177 = vmax.f32 %v7175, %v7176
    %v7178 = vrot.slane %v7177, 1
    %v7179 = vmax.f32 %v7177, %v7178
    %v7180 = vsel %vm1866, %v6987, -inf
    %v7181 = vrot.slane %v7180, 4
    %v7182 = vmax.f32 %v7180, %v7181
    %v7183 = vrot.slane %v7182, 2
    %v7184 = vmax.f32 %v7182, %v7183
    %v7185 = vrot.slane %v7184, 1
    %v7186 = vmax.f32 %v7184, %v7185
    %v7187 = vsel %vm1866, %v6995, -inf
    %v7188 = vrot.slane %v7187, 4
    %v7189 = vmax.f32 %v7187, %v7188
    %v7190 = vrot.slane %v7189, 2
    %v7191 = vmax.f32 %v7189, %v7190
    %v7192 = vrot.slane %v7191, 1
    %v7193 = vmax.f32 %v7191, %v7192
    %v7194 = vsel %vm1866, %v6994, -inf
    %v7195 = vrot.slane %v7194, 4
    %v7196 = vmax.f32 %v7194, %v7195
    %v7197 = vrot.slane %v7196, 2
    %v7198 = vmax.f32 %v7196, %v7197
    %v7199 = vrot.slane %v7198, 1
    %v7200 = vmax.f32 %v7198, %v7199
    %v7201 = vsel %vm1866, %v7003, -inf
    %v7202 = vrot.slane %v7201, 4
    %v7203 = vmax.f32 %v7201, %v7202
    %v7204 = vrot.slane %v7203, 2
    %v7205 = vmax.f32 %v7203, %v7204
    %v7206 = vrot.slane %v7205, 1
    %v7207 = vmax.f32 %v7205, %v7206
    %v7208 = vsel %vm1866, %v7011, -inf
    %v7209 = vrot.slane %v7208, 4
    %v7210 = vmax.f32 %v7208, %v7209
    %v7211 = vrot.slane %v7210, 2
    %v7212 = vmax.f32 %v7210, %v7211
    %v7213 = vrot.slane %v7212, 1
    %v7214 = vmax.f32 %v7212, %v7213
    %v7215 = vsel %vm1866, %v7010, -inf
    %v7216 = vrot.slane %v7215, 4
    %v7217 = vmax.f32 %v7215, %v7216
    %v7218 = vrot.slane %v7217, 2
    %v7219 = vmax.f32 %v7217, %v7218
    %v7220 = vrot.slane %v7219, 1
    %v7221 = vmax.f32 %v7219, %v7220
    %v7222 = vsel %vm1866, %v7019, -inf
    %v7223 = vrot.slane %v7222, 4
    %v7224 = vmax.f32 %v7222, %v7223
    %v7225 = vrot.slane %v7224, 2
    %v7226 = vmax.f32 %v7224, %v7225
    %v7227 = vrot.slane %v7226, 1
    %v7228 = vmax.f32 %v7226, %v7227
    %v7229 = vsel %vm1866, %v7027, -inf
    %v7230 = vrot.slane %v7229, 4
    %v7231 = vmax.f32 %v7229, %v7230
    %v7232 = vrot.slane %v7231, 2
    %v7233 = vmax.f32 %v7231, %v7232
    %v7234 = vrot.slane %v7233, 1
    %v7235 = vmax.f32 %v7233, %v7234
    %v7236 = vsel %vm1866, %v7026, -inf
    %v7237 = vrot.slane %v7236, 4
    %v7238 = vmax.f32 %v7236, %v7237
    %v7239 = vrot.slane %v7238, 2
    %v7240 = vmax.f32 %v7238, %v7239
    %v7241 = vrot.slane %v7240, 1
    %v7242 = vmax.f32 %v7240, %v7241
    %v7243 = vsel %vm1866, %v7035, -inf
    %v7244 = vrot.slane %v7243, 4
    %v7245 = vmax.f32 %v7243, %v7244
    %v7246 = vrot.slane %v7245, 2
    %v7247 = vmax.f32 %v7245, %v7246
    %v7248 = vrot.slane %v7247, 1
    %v7249 = vmax.f32 %v7247, %v7248
    %v7250 = vsel %vm1866, %v7043, -inf
    %v7251 = vrot.slane %v7250, 4
    %v7252 = vmax.f32 %v7250, %v7251
    %v7253 = vrot.slane %v7252, 2
    %v7254 = vmax.f32 %v7252, %v7253
    %v7255 = vrot.slane %v7254, 1
    %v7256 = vmax.f32 %v7254, %v7255
    %v7257 = vsel %vm1866, %v7042, -inf
    %v7258 = vrot.slane %v7257, 4
    %v7259 = vmax.f32 %v7257, %v7258
    %v7260 = vrot.slane %v7259, 2
    %v7261 = vmax.f32 %v7259, %v7260
    %v7262 = vrot.slane %v7261, 1
    %v7263 = vmax.f32 %v7261, %v7262
    %v7264 = vsel %vm1866, %v7051, -inf
    %v7265 = vrot.slane %v7264, 4
    %v7266 = vmax.f32 %v7264, %v7265
    %v7267 = vrot.slane %v7266, 2
    %v7268 = vmax.f32 %v7266, %v7267
    %v7269 = vrot.slane %v7268, 1
    %v7270 = vmax.f32 %v7268, %v7269
    %v7271 = vsel %vm1866, %v7059, -inf
    %v7272 = vrot.slane %v7271, 4
    %v7273 = vmax.f32 %v7271, %v7272
    %v7274 = vrot.slane %v7273, 2
    %v7275 = vmax.f32 %v7273, %v7274
    %v7276 = vrot.slane %v7275, 1
    %v7277 = vmax.f32 %v7275, %v7276
    %v7278 = vsel %vm1866, %v7058, -inf
    %v7279 = vrot.slane %v7278, 4
    %v7280 = vmax.f32 %v7278, %v7279
    %v7281 = vrot.slane %v7280, 2
    %v7282 = vmax.f32 %v7280, %v7281
    %v7283 = vrot.slane %v7282, 1
    %v7284 = vmax.f32 %v7282, %v7283
    %v7285 = vsel %vm1866, %v7067, -inf
    %v7286 = vrot.slane %v7285, 4
    %v7287 = vmax.f32 %v7285, %v7286
    %v7288 = vrot.slane %v7287, 2
    %v7289 = vmax.f32 %v7287, %v7288
    %v7290 = vrot.slane %v7289, 1
    %v7291 = vmax.f32 %v7289, %v7290
    %v7292 = vsel %vm1866, %v7075, -inf
    %v7293 = vrot.slane %v7292, 4
    %v7294 = vmax.f32 %v7292, %v7293
    %v7295 = vrot.slane %v7294, 2
    %v7296 = vmax.f32 %v7294, %v7295
    %v7297 = vrot.slane %v7296, 1
    %v7298 = vmax.f32 %v7296, %v7297
    %v7299 = vsel %vm1866, %v7074, -inf
    %v7300 = vrot.slane %v7299, 4
    %v7301 = vmax.f32 %v7299, %v7300
    %v7302 = vrot.slane %v7301, 2
    %v7303 = vmax.f32 %v7301, %v7302
    %v7304 = vrot.slane %v7303, 1
    %v7305 = vmax.f32 %v7303, %v7304
    %v7306 = vsel %vm1866, %v7083, -inf
    %v7307 = vrot.slane %v7306, 4
    %v7308 = vmax.f32 %v7306, %v7307
    %v7309 = vrot.slane %v7308, 2
    %v7310 = vmax.f32 %v7308, %v7309
    %v7311 = vrot.slane %v7310, 1
    %v7312 = vmax.f32 %v7310, %v7311
    %v7313 = vsel %vm1866, %v7091, -inf
    %v7314 = vrot.slane %v7313, 4
    %v7315 = vmax.f32 %v7313, %v7314
    %v7316 = vrot.slane %v7315, 2
    %v7317 = vmax.f32 %v7315, %v7316
    %v7318 = vrot.slane %v7317, 1
    %v7319 = vmax.f32 %v7317, %v7318
    %v7320 = vsel %vm1866, %v7090, -inf
    %v7321 = vrot.slane %v7320, 4
    %v7322 = vmax.f32 %v7320, %v7321
    %v7323 = vrot.slane %v7322, 2
    %v7324 = vmax.f32 %v7322, %v7323
    %v7325 = vrot.slane %v7324, 1
    %v7326 = vmax.f32 %v7324, %v7325
    %v7327 = vsel %vm1866, %v7099, -inf
    %v7328 = vrot.slane %v7327, 4
    %v7329 = vmax.f32 %v7327, %v7328
    %v7330 = vrot.slane %v7329, 2
    %v7331 = vmax.f32 %v7329, %v7330
    %v7332 = vrot.slane %v7331, 1
    %v7333 = vmax.f32 %v7331, %v7332
    %v7334 = vsel %vm1866, %v7107, -inf
    %v7335 = vrot.slane %v7334, 4
    %v7336 = vmax.f32 %v7334, %v7335
    %v7337 = vrot.slane %v7336, 2
    %v7338 = vmax.f32 %v7336, %v7337
    %v7339 = vrot.slane %v7338, 1
    %v7340 = vmax.f32 %v7338, %v7339
    %v7341 = vsel %vm1866, %v7106, -inf
    %v7342 = vrot.slane %v7341, 4
    %v7343 = vmax.f32 %v7341, %v7342
    %v7344 = vrot.slane %v7343, 2
    %v7345 = vmax.f32 %v7343, %v7344
    %v7346 = vrot.slane %v7345, 1
    %v7347 = vmax.f32 %v7345, %v7346
    %v7348 = vpack.c.bf16 %v7144, %v7144
    %v7349 = vpack.c.bf16 %v7151, %v7151
    %v7350 = vpack.c.bf16 %v7158, %v7158
    %v7351 = vpack.c.bf16 %v7165, %v7165
    %v7352 = vpack.c.bf16 %v7172, %v7172
    %v7353 = vpack.c.bf16 %v7179, %v7179
    %v7354 = vpack.c.bf16 %v7186, %v7186
    %v7355 = vpack.c.bf16 %v7193, %v7193
    %v7356 = vpack.c.bf16 %v7200, %v7200
    %v7357 = vpack.c.bf16 %v7207, %v7207
    %v7358 = vpack.c.bf16 %v7214, %v7214
    %v7359 = vpack.c.bf16 %v7221, %v7221
    %v7360 = vpack.c.bf16 %v7228, %v7228
    %v7361 = vpack.c.bf16 %v7235, %v7235
    %v7362 = vpack.c.bf16 %v7242, %v7242
    %v7363 = vpack.c.bf16 %v7249, %v7249
    %v7364 = vpack.c.bf16 %v7256, %v7256
    %v7365 = vpack.c.bf16 %v7263, %v7263
    %v7366 = vpack.c.bf16 %v7270, %v7270
    %v7367 = vpack.c.bf16 %v7277, %v7277
    %v7368 = vpack.c.bf16 %v7284, %v7284
    %v7369 = vpack.c.bf16 %v7291, %v7291
    %v7370 = vpack.c.bf16 %v7298, %v7298
    %v7371 = vpack.c.bf16 %v7305, %v7305
    %v7372 = vpack.c.bf16 %v7312, %v7312
    %v7373 = vpack.c.bf16 %v7319, %v7319
    %v7374 = vpack.c.bf16 %v7326, %v7326
    %v7375 = vpack.c.bf16 %v7333, %v7333
    %v7376 = vpack.c.bf16 %v7340, %v7340
    %v7377 = vpack.c.bf16 %v7347, %v7347
    %v7378 = vld [vmem:[#allocation17] sm:$0x3]
    %v7379 = vld [vmem:[#allocation16] sm:$0xff]
    %v7380 = vld [vmem:[#allocation16 + $0x8] sm:$0xff]
    %v7381 = vld [vmem:[#allocation16 + $0x10] sm:$0xff]
    %v7382 = vld [vmem:[#allocation16 + $0x18] sm:$0xff]
    %v7383 = vld [vmem:[#allocation16 + $0x20] sm:$0xff]
    %v7384 = vld [vmem:[#allocation16 + $0x28] sm:$0xff]
    %v7385 = vld [vmem:[#allocation16 + $0x30] sm:$0xff]
    %v7386 = vld [vmem:[#allocation16 + $0x38] sm:$0xff]
    %v7387 = vld [vmem:[#allocation16 + $0x40] sm:$0xff]
    %v7388 = vld [vmem:[#allocation16 + $0x48] sm:$0xff]
    %v7389 = vld [vmem:[#allocation16 + $0x50] sm:$0xff]
    %v7390 = vld [vmem:[#allocation16 + $0x58] sm:$0xff]
    %v7391 = vld [vmem:[#allocation16 + $0x60] sm:$0xff]
    %v7392 = vld [vmem:[#allocation16 + $0x68] sm:$0xff]
    %v7393 = vld [vmem:[#allocation16 + $0x70] sm:$0xff]
    %v7394 = vld [vmem:[#allocation16 + $0x78] sm:$0xff]
    %v7395 = vld [vmem:[#allocation16 + $0x80] sm:$0xff]
    %v7396 = vld [vmem:[#allocation16 + $0x88] sm:$0xff]
    %v7397 = vld [vmem:[#allocation16 + $0x90] sm:$0xff]
    %v7398 = vld [vmem:[#allocation16 + $0x98] sm:$0xff]
    %v7399 = vld [vmem:[#allocation16 + $0xa0] sm:$0xff]
    %v7400 = vld [vmem:[#allocation16 + $0xa8] sm:$0xff]
    %v7401 = vld [vmem:[#allocation16 + $0xb0] sm:$0xff]
    %v7402 = vld [vmem:[#allocation16 + $0xb8] sm:$0xff]
    %v7403 = vld [vmem:[#allocation16 + $0xc0] sm:$0xff]
    %v7404 = vld [vmem:[#allocation16 + $0xc8] sm:$0xff]
    %v7405 = vld [vmem:[#allocation16 + $0xd0] sm:$0xff]
    %v7406 = vld [vmem:[#allocation16 + $0xd8] sm:$0xff]
    %v7407 = vld [vmem:[#allocation16 + $0xe0] sm:$0xff]
    %v7408 = vld [vmem:[#allocation16 + $0xe8] sm:$0xff]
    %v7409 = vld [vmem:[#allocation16 + $0xf0] sm:$0xff]
    %v7410 = vld [vmem:[#allocation16 + $0xf8] sm:$0xff]
    %v7411 = vld [vmem:[#allocation16 + $0x100] sm:$0xff]
    %v7412 = vld [vmem:[#allocation16 + $0x108] sm:$0xff]
    %v7413 = vld [vmem:[#allocation16 + $0x110] sm:$0xff]
    %v7414 = vld [vmem:[#allocation16 + $0x118] sm:$0xff]
    %v7415 = vld [vmem:[#allocation16 + $0x120] sm:$0xff]
    %v7416 = vld [vmem:[#allocation16 + $0x128] sm:$0xff]
    %v7417 = vld [vmem:[#allocation16 + $0x130] sm:$0xff]
    %v7418 = vld [vmem:[#allocation16 + $0x138] sm:$0xff]
    %v7419 = vld [vmem:[#allocation16 + $0x140] sm:$0xff]
    %v7420 = vld [vmem:[#allocation16 + $0x148] sm:$0xff]
    %v7421 = vld [vmem:[#allocation16 + $0x150] sm:$0xff]
    %v7422 = vld [vmem:[#allocation16 + $0x158] sm:$0xff]
    %v7423 = vld [vmem:[#allocation16 + $0x160] sm:$0xff]
    %v7424 = vld [vmem:[#allocation16 + $0x168] sm:$0xff]
    %v7425 = vld [vmem:[#allocation16 + $0x170] sm:$0xff]
    %v7426 = vld [vmem:[#allocation16 + $0x178] sm:$0xff]
    %v7433 = vunpack.c.l.b16 %v7348
    %v7434 = vunpack.c.l.b16 %v7349
    %v7435 = vunpack.c.l.b16 %v7350
    %v7436 = vunpack.c.l.b16 %v7363
    %v7437 = vunpack.c.l.b16 %v7364
    %v7438 = vunpack.c.l.b16 %v7365
    %v7439 = vsel %vm2563, %v7436, %v7433
    %v7440 = vsel %vm2563, %v7437, %v7434
    %v7441 = vsel %vm2563, %v7438, %v7435
    %v7442 = vpack.c.b16 %v7439, %v7439
    %v7443 = vpack.c.b16 %v7440, %v7440
    %v7444 = vpack.c.b16 %v7441, %v7441
    %v7496 = vunpack.c.l.b16 %v7379
    %v7497 = vunpack.c.h.b16 %v7379
    %v7498 = vunpack.c.l.b16 %v7380
    %v7499 = vunpack.c.h.b16 %v7380
    %v7500 = vunpack.c.l.b16 %v7381
    %v7501 = vunpack.c.h.b16 %v7381
    %v7502 = vunpack.c.l.b16 %v7382
    %v7503 = vunpack.c.h.b16 %v7382
    %v7504 = vunpack.c.l.b16 %v7383
    %v7505 = vunpack.c.h.b16 %v7383
    %v7506 = vunpack.c.l.b16 %v7384
    %v7507 = vunpack.c.h.b16 %v7384
    %v7508 = vunpack.c.l.b16 %v7385
    %v7509 = vunpack.c.h.b16 %v7385
    %v7510 = vunpack.c.l.b16 %v7386
    %v7511 = vunpack.c.h.b16 %v7386
    %v7512 = vunpack.c.l.b16 %v7387
    %v7513 = vunpack.c.h.b16 %v7387
    %v7514 = vunpack.c.l.b16 %v7388
    %v7515 = vunpack.c.h.b16 %v7388
    %v7516 = vunpack.c.l.b16 %v7389
    %v7517 = vunpack.c.h.b16 %v7389
    %v7518 = vunpack.c.l.b16 %v7390
    %v7519 = vunpack.c.h.b16 %v7390
    %v7520 = vunpack.c.l.b16 %v7391
    %v7521 = vunpack.c.h.b16 %v7391
    %v7522 = vunpack.c.l.b16 %v7392
    %v7523 = vunpack.c.h.b16 %v7392
    %v7524 = vunpack.c.l.b16 %v7393
    %v7525 = vunpack.c.h.b16 %v7393
    %v7526 = vunpack.c.l.b16 %v7394
    %v7527 = vunpack.c.h.b16 %v7394
    %v7528 = vunpack.c.l.b16 %v7395
    %v7529 = vunpack.c.h.b16 %v7395
    %v7530 = vunpack.c.l.b16 %v7396
    %v7531 = vunpack.c.h.b16 %v7396
    %v7532 = vunpack.c.l.b16 %v7397
    %v7533 = vunpack.c.h.b16 %v7397
    %v7534 = vunpack.c.l.b16 %v7398
    %v7535 = vunpack.c.h.b16 %v7398
    %v7536 = vunpack.c.l.b16 %v7399
    %v7537 = vunpack.c.h.b16 %v7399
    %v7538 = vunpack.c.l.b16 %v7400
    %v7539 = vunpack.c.h.b16 %v7400
    %v7540 = vunpack.c.l.b16 %v7401
    %v7541 = vunpack.c.h.b16 %v7401
    %v7542 = vunpack.c.l.b16 %v7402
    %v7543 = vunpack.c.h.b16 %v7402
    %v7544 = vunpack.c.l.b16 %v7403
    %v7545 = vunpack.c.h.b16 %v7403
    %v7546 = vunpack.c.l.b16 %v7404
    %v7547 = vunpack.c.h.b16 %v7404
    %v7548 = vunpack.c.l.b16 %v7405
    %v7549 = vunpack.c.h.b16 %v7405
    %v7550 = vunpack.c.l.b16 %v7406
    %v7551 = vunpack.c.h.b16 %v7406
    %v7552 = vunpack.c.l.b16 %v7407
    %v7553 = vunpack.c.h.b16 %v7407
    %v7554 = vunpack.c.l.b16 %v7408
    %v7555 = vunpack.c.h.b16 %v7408
    %v7556 = vunpack.c.l.b16 %v7409
    %v7557 = vunpack.c.h.b16 %v7409
    %v7558 = vunpack.c.l.b16 %v7410
    %v7559 = vunpack.c.h.b16 %v7410
    %v7560 = vunpack.c.l.b16 %v7411
    %v7561 = vunpack.c.h.b16 %v7411
    %v7562 = vunpack.c.l.b16 %v7412
    %v7563 = vunpack.c.h.b16 %v7412
    %v7564 = vunpack.c.l.b16 %v7413
    %v7565 = vunpack.c.h.b16 %v7413
    %v7566 = vunpack.c.l.b16 %v7414
    %v7567 = vunpack.c.h.b16 %v7414
    %v7568 = vunpack.c.l.b16 %v7415
    %v7569 = vunpack.c.h.b16 %v7415
    %v7570 = vunpack.c.l.b16 %v7416
    %v7571 = vunpack.c.h.b16 %v7416
    %v7572 = vunpack.c.l.b16 %v7417
    %v7573 = vunpack.c.h.b16 %v7417
    %v7574 = vunpack.c.l.b16 %v7418
    %v7575 = vunpack.c.h.b16 %v7418
    %v7576 = vunpack.c.l.b16 %v7419
    %v7577 = vunpack.c.h.b16 %v7419
    %v7578 = vunpack.c.l.b16 %v7420
    %v7579 = vunpack.c.h.b16 %v7420
    %v7580 = vunpack.c.l.b16 %v7421
    %v7581 = vunpack.c.h.b16 %v7421
    %v7582 = vunpack.c.l.b16 %v7422
    %v7583 = vunpack.c.h.b16 %v7422
    %v7584 = vunpack.c.l.b16 %v7423
    %v7585 = vunpack.c.h.b16 %v7423
    %v7586 = vunpack.c.l.b16 %v7424
    %v7587 = vunpack.c.h.b16 %v7424
    %v7588 = vunpack.c.l.b16 %v7425
    %v7589 = vunpack.c.h.b16 %v7425
    %v7590 = vunpack.c.l.b16 %v7426
    %v7591 = vunpack.c.h.b16 %v7426
    %v7592 = vpack.c.b16 %v7498, %v7496
    %v7593 = vpack.c.b16 %v7499, %v7497
    %v7594 = vpack.c.b16 %v7502, %v7500
    %v7595 = vpack.c.b16 %v7503, %v7501
    %v7596 = vpack.c.b16 %v7506, %v7504
    %v7597 = vpack.c.b16 %v7507, %v7505
    %v7598 = vpack.c.b16 %v7510, %v7508
    %v7599 = vpack.c.b16 %v7511, %v7509
    %v7600 = vpack.c.b16 %v7514, %v7512
    %v7601 = vpack.c.b16 %v7515, %v7513
    %v7602 = vpack.c.b16 %v7518, %v7516
    %v7603 = vpack.c.b16 %v7519, %v7517
    %v7604 = vpack.c.b16 %v7522, %v7520
    %v7605 = vpack.c.b16 %v7523, %v7521
    %v7606 = vpack.c.b16 %v7526, %v7524
    %v7607 = vpack.c.b16 %v7527, %v7525
    %v7608 = vpack.c.b16 %v7530, %v7528
    %v7609 = vpack.c.b16 %v7531, %v7529
    %v7610 = vpack.c.b16 %v7534, %v7532
    %v7611 = vpack.c.b16 %v7535, %v7533
    %v7612 = vpack.c.b16 %v7538, %v7536
    %v7613 = vpack.c.b16 %v7539, %v7537
    %v7614 = vpack.c.b16 %v7542, %v7540
    %v7615 = vpack.c.b16 %v7543, %v7541
    %v7616 = vpack.c.b16 %v7546, %v7544
    %v7617 = vpack.c.b16 %v7547, %v7545
    %v7618 = vpack.c.b16 %v7550, %v7548
    %v7619 = vpack.c.b16 %v7551, %v7549
    %v7620 = vpack.c.b16 %v7554, %v7552
    %v7621 = vpack.c.b16 %v7555, %v7553
    %v7622 = vpack.c.b16 %v7558, %v7556
    %v7623 = vpack.c.b16 %v7559, %v7557
    %v7624 = vpack.c.b16 %v7562, %v7560
    %v7625 = vpack.c.b16 %v7563, %v7561
    %v7626 = vpack.c.b16 %v7566, %v7564
    %v7627 = vpack.c.b16 %v7567, %v7565
    %v7628 = vpack.c.b16 %v7570, %v7568
    %v7629 = vpack.c.b16 %v7571, %v7569
    %v7630 = vpack.c.b16 %v7574, %v7572
    %v7631 = vpack.c.b16 %v7575, %v7573
    %v7632 = vpack.c.b16 %v7578, %v7576
    %v7633 = vpack.c.b16 %v7579, %v7577
    %v7634 = vpack.c.b16 %v7582, %v7580
    %v7635 = vpack.c.b16 %v7583, %v7581
    %v7636 = vpack.c.b16 %v7586, %v7584
    %v7637 = vpack.c.b16 %v7587, %v7585
    %v7638 = vpack.c.b16 %v7590, %v7588
    %v7639 = vpack.c.b16 %v7591, %v7589
    %7688 = vmatprep.subr.bf16.mxu0 %v7593
    %7689 = vmatpush1.bf16.msra.mxu0 %v7592
    %7690 = vmatprep.subr.bf16.mxu0 %v7595
    %7691 = vmatpush1.bf16.msra.mxu0 %v7594
    %7692 = vmatprep.subr.bf16.mxu0 %v7597
    %7693 = vmatpush1.bf16.msra.mxu0 %v7596
    %7694 = vmatprep.subr.bf16.mxu0 %v7599
    %7695 = vmatpush1.bf16.msra.mxu0 %v7598
    %7696 = vmatprep.subr.bf16.mxu0 %v7601
    %7697 = vmatpush1.bf16.msra.mxu0 %v7600
    %7698 = vmatprep.subr.bf16.mxu0 %v7603
    %7699 = vmatpush1.bf16.msra.mxu0 %v7602
    %7700 = vmatprep.subr.bf16.mxu0 %v7605
    %7701 = vmatpush1.bf16.msra.mxu0 %v7604
    %7702 = vmatprep.subr.bf16.mxu0 %v7607
    %7703 = vmatpush1.bf16.msra.mxu0 %v7606
    %7704 = vmatprep.subr.bf16.mxu0 %v7609
    %7705 = vmatpush1.bf16.msra.mxu0 %v7608
    %7706 = vmatprep.subr.bf16.mxu0 %v7611
    %7707 = vmatpush1.bf16.msra.mxu0 %v7610
    %7708 = vmatprep.subr.bf16.mxu0 %v7613
    %7709 = vmatpush1.bf16.msra.mxu0 %v7612
    %7710 = vmatprep.subr.bf16.mxu0 %v7615
    %7711 = vmatpush1.bf16.msra.mxu0 %v7614
    %7712 = vmatprep.subr.bf16.mxu0 %v7617
    %7713 = vmatpush1.bf16.msra.mxu0 %v7616
    %7714 = vmatprep.subr.bf16.mxu0 %v7619
    %7715 = vmatpush1.bf16.msra.mxu0 %v7618
    %7716 = vmatprep.subr.bf16.mxu0 %v7621
    %7717 = vmatpush1.bf16.msra.mxu0 %v7620
    %7718 = vmatprep.subr.bf16.mxu0 %v7623
    %7719 = vmatpush1.bf16.msra.mxu0 %v7622
    %7720 = vmatprep.mubr.bf16.mxu0 %v7443
    %7721 = vmatmul.mubr.bf16.gmra.mrb[0].mxu0 %v7442
    %v7722 = vpop.f32.mrb[0].mxu0
    %v7723 = vadd.f32 0.0, %v7722
    %v7724 = vpop.f32.mrb[0].mxu0
    %v7725 = vadd.f32 0.0, %v7724
    %v7726 = vpop.f32.mrb[0].mxu0
    %v7727 = vpop.f32.mrb[0].mxu0
    %7728 = vdwg.mxu0
    %7729 = vmatprep.subr.bf16.mxu0 %v7625
    %7730 = vmatpush1.bf16.msra.mxu0 %v7624
    %7731 = vmatprep.subr.bf16.mxu0 %v7627
    %7732 = vmatpush1.bf16.msra.mxu0 %v7626
    %7733 = vmatprep.subr.bf16.mxu0 %v7629
    %7734 = vmatpush1.bf16.msra.mxu0 %v7628
    %7735 = vmatprep.subr.bf16.mxu0 %v7631
    %7736 = vmatpush1.bf16.msra.mxu0 %v7630
    %7737 = vmatprep.subr.bf16.mxu0 %v7633
    %7738 = vmatpush1.bf16.msra.mxu0 %v7632
    %7739 = vmatprep.subr.bf16.mxu0 %v7635
    %7740 = vmatpush1.bf16.msra.mxu0 %v7634
    %7741 = vmatprep.subr.bf16.mxu0 %v7637
    %7742 = vmatpush1.bf16.msra.mxu0 %v7636
    %7743 = vmatprep.subr.bf16.mxu0 %v7639
    %7744 = vmatpush1.bf16.msra.mxu0 %v7638
    %7745 = vmatprep.subr.bf16.mxu0 0
    %7746 = vmatpush1.bf16.msra.mxu0 0
    %7747 = vmatprep.subr.bf16.mxu0 0
    %7748 = vmatpush1.bf16.msra.mxu0 0
    %7749 = vmatprep.subr.bf16.mxu0 0
    %7750 = vmatpush1.bf16.msra.mxu0 0
    %7751 = vmatprep.subr.bf16.mxu0 0
    %7752 = vmatpush1.bf16.msra.mxu0 0
    %7753 = vmatprep.subr.bf16.mxu0 0
    %7754 = vmatpush1.bf16.msra.mxu0 0
    %7755 = vmatprep.subr.bf16.mxu0 0
    %7756 = vmatpush1.bf16.msra.mxu0 0
    %7757 = vmatprep.subr.bf16.mxu0 0
    %7758 = vmatpush1.bf16.msra.mxu0 0
    %7759 = vmatprep.subr.bf16.mxu0 0
    %7760 = vmatpush1.bf16.msra.mxu0 0
    %7761 = vmatprep.mubr.bf16.mxu0 0
    %7762 = vmatmul.mubr.bf16.gmra.mrb[0].mxu0 %v7444
    %v7763 = vpop.f32.mrb[0].mxu0
    %v7764 = vadd.f32 %v7723, %v7763
    %v7765 = vpop.f32.mrb[0].mxu0
    %v7766 = vadd.f32 %v7725, %v7765
    %v7767 = vpop.f32.mrb[0].mxu0
    %v7768 = vpop.f32.mrb[0].mxu0
    %7769 = vdwg.mxu0
    %v7771 = vlaneseq
    %v7772 = vshrl.u32 %v7771, 7
    %v7773 = vsub.s32 0, %v7772
    %v7774 = vrot.slane %v7378, %v7773
    %v7775 = vlaneseq
    %v7776 = vshrl.u32 %v7775, 7
    %v7777 = vsub.s32 1, %v7776
    %v7778 = vrot.slane %v7378, %v7777
    %v7781 = vadd.f32 %v7774, %v7764
    %v7782 = vadd.f32 %v7778, %v7766
    %s7783 = scalar_lea.vmem [#allocation16], 384
    %v7784 = vld [vmem:[%s7783] sm:$0xff]
    %v7785 = vld [vmem:[%s7783 + $0x8] sm:$0xff]
    %v7786 = vld [vmem:[%s7783 + $0x10] sm:$0xff]
    %v7787 = vld [vmem:[%s7783 + $0x18] sm:$0xff]
    %v7788 = vld [vmem:[%s7783 + $0x20] sm:$0xff]
    %v7789 = vld [vmem:[%s7783 + $0x28] sm:$0xff]
    %v7790 = vld [vmem:[%s7783 + $0x30] sm:$0xff]
    %v7791 = vld [vmem:[%s7783 + $0x38] sm:$0xff]
    %v7792 = vld [vmem:[%s7783 + $0x40] sm:$0xff]
    %v7793 = vld [vmem:[%s7783 + $0x48] sm:$0xff]
    %v7794 = vld [vmem:[%s7783 + $0x50] sm:$0xff]
    %v7795 = vld [vmem:[%s7783 + $0x58] sm:$0xff]
    %v7796 = vld [vmem:[%s7783 + $0x60] sm:$0xff]
    %v7797 = vld [vmem:[%s7783 + $0x68] sm:$0xff]
    %v7798 = vld [vmem:[%s7783 + $0x70] sm:$0xff]
    %v7799 = vld [vmem:[%s7783 + $0x78] sm:$0xff]
    %v7800 = vld [vmem:[%s7783 + $0x80] sm:$0xff]
    %v7801 = vld [vmem:[%s7783 + $0x88] sm:$0xff]
    %v7802 = vld [vmem:[%s7783 + $0x90] sm:$0xff]
    %v7803 = vld [vmem:[%s7783 + $0x98] sm:$0xff]
    %v7804 = vld [vmem:[%s7783 + $0xa0] sm:$0xff]
    %v7805 = vld [vmem:[%s7783 + $0xa8] sm:$0xff]
    %v7806 = vld [vmem:[%s7783 + $0xb0] sm:$0xff]
    %v7807 = vld [vmem:[%s7783 + $0xb8] sm:$0xff]
    %v7808 = vld [vmem:[%s7783 + $0xc0] sm:$0xff]
    %v7809 = vld [vmem:[%s7783 + $0xc8] sm:$0xff]
    %v7810 = vld [vmem:[%s7783 + $0xd0] sm:$0xff]
    %v7811 = vld [vmem:[%s7783 + $0xd8] sm:$0xff]
    %v7812 = vld [vmem:[%s7783 + $0xe0] sm:$0xff]
    %v7813 = vld [vmem:[%s7783 + $0xe8] sm:$0xff]
    %v7814 = vld [vmem:[%s7783 + $0xf0] sm:$0xff]
    %v7815 = vld [vmem:[%s7783 + $0xf8] sm:$0xff]
    %v7816 = vld [vmem:[%s7783 + $0x100] sm:$0xff]
    %v7817 = vld [vmem:[%s7783 + $0x108] sm:$0xff]
    %v7818 = vld [vmem:[%s7783 + $0x110] sm:$0xff]
    %v7819 = vld [vmem:[%s7783 + $0x118] sm:$0xff]
    %v7820 = vld [vmem:[%s7783 + $0x120] sm:$0xff]
    %v7821 = vld [vmem:[%s7783 + $0x128] sm:$0xff]
    %v7822 = vld [vmem:[%s7783 + $0x130] sm:$0xff]
    %v7823 = vld [vmem:[%s7783 + $0x138] sm:$0xff]
    %v7824 = vld [vmem:[%s7783 + $0x140] sm:$0xff]
    %v7825 = vld [vmem:[%s7783 + $0x148] sm:$0xff]
    %v7826 = vld [vmem:[%s7783 + $0x150] sm:$0xff]
    %v7827 = vld [vmem:[%s7783 + $0x158] sm:$0xff]
    %v7828 = vld [vmem:[%s7783 + $0x160] sm:$0xff]
    %v7829 = vld [vmem:[%s7783 + $0x168] sm:$0xff]
    %v7830 = vld [vmem:[%s7783 + $0x170] sm:$0xff]
    %v7831 = vld [vmem:[%s7783 + $0x178] sm:$0xff]
    %v7838 = vunpack.c.l.b16 %v7351
    %v7839 = vunpack.c.l.b16 %v7352
    %v7840 = vunpack.c.l.b16 %v7353
    %v7841 = vunpack.c.l.b16 %v7366
    %v7842 = vunpack.c.l.b16 %v7367
    %v7843 = vunpack.c.l.b16 %v7368
    %v7844 = vsel %vm2563, %v7841, %v7838
    %v7845 = vsel %vm2563, %v7842, %v7839
    %v7846 = vsel %vm2563, %v7843, %v7840
    %v7847 = vpack.c.b16 %v7844, %v7844
    %v7848 = vpack.c.b16 %v7845, %v7845
    %v7849 = vpack.c.b16 %v7846, %v7846
    %v7901 = vunpack.c.l.b16 %v7784
    %v7902 = vunpack.c.h.b16 %v7784
    %v7903 = vunpack.c.l.b16 %v7785
    %v7904 = vunpack.c.h.b16 %v7785
    %v7905 = vunpack.c.l.b16 %v7786
    %v7906 = vunpack.c.h.b16 %v7786
    %v7907 = vunpack.c.l.b16 %v7787
    %v7908 = vunpack.c.h.b16 %v7787
    %v7909 = vunpack.c.l.b16 %v7788
    %v7910 = vunpack.c.h.b16 %v7788
    %v7911 = vunpack.c.l.b16 %v7789
    %v7912 = vunpack.c.h.b16 %v7789
    %v7913 = vunpack.c.l.b16 %v7790
    %v7914 = vunpack.c.h.b16 %v7790
    %v7915 = vunpack.c.l.b16 %v7791
    %v7916 = vunpack.c.h.b16 %v7791
    %v7917 = vunpack.c.l.b16 %v7792
    %v7918 = vunpack.c.h.b16 %v7792
    %v7919 = vunpack.c.l.b16 %v7793
    %v7920 = vunpack.c.h.b16 %v7793
    %v7921 = vunpack.c.l.b16 %v7794
    %v7922 = vunpack.c.h.b16 %v7794
    %v7923 = vunpack.c.l.b16 %v7795
    %v7924 = vunpack.c.h.b16 %v7795
    %v7925 = vunpack.c.l.b16 %v7796
    %v7926 = vunpack.c.h.b16 %v7796
    %v7927 = vunpack.c.l.b16 %v7797
    %v7928 = vunpack.c.h.b16 %v7797
    %v7929 = vunpack.c.l.b16 %v7798
    %v7930 = vunpack.c.h.b16 %v7798
    %v7931 = vunpack.c.l.b16 %v7799
    %v7932 = vunpack.c.h.b16 %v7799
    %v7933 = vunpack.c.l.b16 %v7800
    %v7934 = vunpack.c.h.b16 %v7800
    %v7935 = vunpack.c.l.b16 %v7801
    %v7936 = vunpack.c.h.b16 %v7801
    %v7937 = vunpack.c.l.b16 %v7802
    %v7938 = vunpack.c.h.b16 %v7802
    %v7939 = vunpack.c.l.b16 %v7803
    %v7940 = vunpack.c.h.b16 %v7803
    %v7941 = vunpack.c.l.b16 %v7804
    %v7942 = vunpack.c.h.b16 %v7804
    %v7943 = vunpack.c.l.b16 %v7805
    %v7944 = vunpack.c.h.b16 %v7805
    %v7945 = vunpack.c.l.b16 %v7806
    %v7946 = vunpack.c.h.b16 %v7806
    %v7947 = vunpack.c.l.b16 %v7807
    %v7948 = vunpack.c.h.b16 %v7807
    %v7949 = vunpack.c.l.b16 %v7808
    %v7950 = vunpack.c.h.b16 %v7808
    %v7951 = vunpack.c.l.b16 %v7809
    %v7952 = vunpack.c.h.b16 %v7809
    %v7953 = vunpack.c.l.b16 %v7810
    %v7954 = vunpack.c.h.b16 %v7810
    %v7955 = vunpack.c.l.b16 %v7811
    %v7956 = vunpack.c.h.b16 %v7811
    %v7957 = vunpack.c.l.b16 %v7812
    %v7958 = vunpack.c.h.b16 %v7812
    %v7959 = vunpack.c.l.b16 %v7813
    %v7960 = vunpack.c.h.b16 %v7813
    %v7961 = vunpack.c.l.b16 %v7814
    %v7962 = vunpack.c.h.b16 %v7814
    %v7963 = vunpack.c.l.b16 %v7815
    %v7964 = vunpack.c.h.b16 %v7815
    %v7965 = vunpack.c.l.b16 %v7816
    %v7966 = vunpack.c.h.b16 %v7816
    %v7967 = vunpack.c.l.b16 %v7817
    %v7968 = vunpack.c.h.b16 %v7817
    %v7969 = vunpack.c.l.b16 %v7818
    %v7970 = vunpack.c.h.b16 %v7818
    %v7971 = vunpack.c.l.b16 %v7819
    %v7972 = vunpack.c.h.b16 %v7819
    %v7973 = vunpack.c.l.b16 %v7820
    %v7974 = vunpack.c.h.b16 %v7820
    %v7975 = vunpack.c.l.b16 %v7821
    %v7976 = vunpack.c.h.b16 %v7821
    %v7977 = vunpack.c.l.b16 %v7822
    %v7978 = vunpack.c.h.b16 %v7822
    %v7979 = vunpack.c.l.b16 %v7823
    %v7980 = vunpack.c.h.b16 %v7823
    %v7981 = vunpack.c.l.b16 %v7824
    %v7982 = vunpack.c.h.b16 %v7824
    %v7983 = vunpack.c.l.b16 %v7825
    %v7984 = vunpack.c.h.b16 %v7825
    %v7985 = vunpack.c.l.b16 %v7826
    %v7986 = vunpack.c.h.b16 %v7826
    %v7987 = vunpack.c.l.b16 %v7827
    %v7988 = vunpack.c.h.b16 %v7827
    %v7989 = vunpack.c.l.b16 %v7828
    %v7990 = vunpack.c.h.b16 %v7828
    %v7991 = vunpack.c.l.b16 %v7829
    %v7992 = vunpack.c.h.b16 %v7829
    %v7993 = vunpack.c.l.b16 %v7830
    %v7994 = vunpack.c.h.b16 %v7830
    %v7995 = vunpack.c.l.b16 %v7831
    %v7996 = vunpack.c.h.b16 %v7831
    %v7997 = vpack.c.b16 %v7903, %v7901
    %v7998 = vpack.c.b16 %v7904, %v7902
    %v7999 = vpack.c.b16 %v7907, %v7905
    %v8000 = vpack.c.b16 %v7908, %v7906
    %v8001 = vpack.c.b16 %v7911, %v7909
    %v8002 = vpack.c.b16 %v7912, %v7910
    %v8003 = vpack.c.b16 %v7915, %v7913
    %v8004 = vpack.c.b16 %v7916, %v7914
    %v8005 = vpack.c.b16 %v7919, %v7917
    %v8006 = vpack.c.b16 %v7920, %v7918
    %v8007 = vpack.c.b16 %v7923, %v7921
    %v8008 = vpack.c.b16 %v7924, %v7922
    %v8009 = vpack.c.b16 %v7927, %v7925
    %v8010 = vpack.c.b16 %v7928, %v7926
    %v8011 = vpack.c.b16 %v7931, %v7929
    %v8012 = vpack.c.b16 %v7932, %v7930
    %v8013 = vpack.c.b16 %v7935, %v7933
    %v8014 = vpack.c.b16 %v7936, %v7934
    %v8015 = vpack.c.b16 %v7939, %v7937
    %v8016 = vpack.c.b16 %v7940, %v7938
    %v8017 = vpack.c.b16 %v7943, %v7941
    %v8018 = vpack.c.b16 %v7944, %v7942
    %v8019 = vpack.c.b16 %v7947, %v7945
    %v8020 = vpack.c.b16 %v7948, %v7946
    %v8021 = vpack.c.b16 %v7951, %v7949
    %v8022 = vpack.c.b16 %v7952, %v7950
    %v8023 = vpack.c.b16 %v7955, %v7953
    %v8024 = vpack.c.b16 %v7956, %v7954
    %v8025 = vpack.c.b16 %v7959, %v7957
    %v8026 = vpack.c.b16 %v7960, %v7958
    %v8027 = vpack.c.b16 %v7963, %v7961
    %v8028 = vpack.c.b16 %v7964, %v7962
    %v8029 = vpack.c.b16 %v7967, %v7965
    %v8030 = vpack.c.b16 %v7968, %v7966
    %v8031 = vpack.c.b16 %v7971, %v7969
    %v8032 = vpack.c.b16 %v7972, %v7970
    %v8033 = vpack.c.b16 %v7975, %v7973
    %v8034 = vpack.c.b16 %v7976, %v7974
    %v8035 = vpack.c.b16 %v7979, %v7977
    %v8036 = vpack.c.b16 %v7980, %v7978
    %v8037 = vpack.c.b16 %v7983, %v7981
    %v8038 = vpack.c.b16 %v7984, %v7982
    %v8039 = vpack.c.b16 %v7987, %v7985
    %v8040 = vpack.c.b16 %v7988, %v7986
    %v8041 = vpack.c.b16 %v7991, %v7989
    %v8042 = vpack.c.b16 %v7992, %v7990
    %v8043 = vpack.c.b16 %v7995, %v7993
    %v8044 = vpack.c.b16 %v7996, %v7994
    %8093 = vmatprep.subr.bf16.mxu0 %v7998
    %8094 = vmatpush1.bf16.msra.mxu0 %v7997
    %8095 = vmatprep.subr.bf16.mxu0 %v8000
    %8096 = vmatpush1.bf16.msra.mxu0 %v7999
    %8097 = vmatprep.subr.bf16.mxu0 %v8002
    %8098 = vmatpush1.bf16.msra.mxu0 %v8001
    %8099 = vmatprep.subr.bf16.mxu0 %v8004
    %8100 = vmatpush1.bf16.msra.mxu0 %v8003
    %8101 = vmatprep.subr.bf16.mxu0 %v8006
    %8102 = vmatpush1.bf16.msra.mxu0 %v8005
    %8103 = vmatprep.subr.bf16.mxu0 %v8008
    %8104 = vmatpush1.bf16.msra.mxu0 %v8007
    %8105 = vmatprep.subr.bf16.mxu0 %v8010
    %8106 = vmatpush1.bf16.msra.mxu0 %v8009
    %8107 = vmatprep.subr.bf16.mxu0 %v8012
    %8108 = vmatpush1.bf16.msra.mxu0 %v8011
    %8109 = vmatprep.subr.bf16.mxu0 %v8014
    %8110 = vmatpush1.bf16.msra.mxu0 %v8013
    %8111 = vmatprep.subr.bf16.mxu0 %v8016
    %8112 = vmatpush1.bf16.msra.mxu0 %v8015
    %8113 = vmatprep.subr.bf16.mxu0 %v8018
    %8114 = vmatpush1.bf16.msra.mxu0 %v8017
    %8115 = vmatprep.subr.bf16.mxu0 %v8020
    %8116 = vmatpush1.bf16.msra.mxu0 %v8019
    %8117 = vmatprep.subr.bf16.mxu0 %v8022
    %8118 = vmatpush1.bf16.msra.mxu0 %v8021
    %8119 = vmatprep.subr.bf16.mxu0 %v8024
    %8120 = vmatpush1.bf16.msra.mxu0 %v8023
    %8121 = vmatprep.subr.bf16.mxu0 %v8026
    %8122 = vmatpush1.bf16.msra.mxu0 %v8025
    %8123 = vmatprep.subr.bf16.mxu0 %v8028
    %8124 = vmatpush1.bf16.msra.mxu0 %v8027
    %8125 = vmatprep.mubr.bf16.mxu0 %v7848
    %8126 = vmatmul.mubr.bf16.gmra.mrb[0].mxu0 %v7847
    %v8127 = vpop.f32.mrb[0].mxu0
    %v8128 = vadd.f32 0.0, %v8127
    %v8129 = vpop.f32.mrb[0].mxu0
    %v8130 = vadd.f32 0.0, %v8129
    %v8131 = vpop.f32.mrb[0].mxu0
    %v8132 = vpop.f32.mrb[0].mxu0
    %8133 = vdwg.mxu0
    %8134 = vmatprep.subr.bf16.mxu0 %v8030
    %8135 = vmatpush1.bf16.msra.mxu0 %v8029
    %8136 = vmatprep.subr.bf16.mxu0 %v8032
    %8137 = vmatpush1.bf16.msra.mxu0 %v8031
    %8138 = vmatprep.subr.bf16.mxu0 %v8034
    %8139 = vmatpush1.bf16.msra.mxu0 %v8033
    %8140 = vmatprep.subr.bf16.mxu0 %v8036
    %8141 = vmatpush1.bf16.msra.mxu0 %v8035
    %8142 = vmatprep.subr.bf16.mxu0 %v8038
    %8143 = vmatpush1.bf16.msra.mxu0 %v8037
    %8144 = vmatprep.subr.bf16.mxu0 %v8040
    %8145 = vmatpush1.bf16.msra.mxu0 %v8039
    %8146 = vmatprep.subr.bf16.mxu0 %v8042
    %8147 = vmatpush1.bf16.msra.mxu0 %v8041
    %8148 = vmatprep.subr.bf16.mxu0 %v8044
    %8149 = vmatpush1.bf16.msra.mxu0 %v8043
    %8150 = vmatprep.subr.bf16.mxu0 0
    %8151 = vmatpush1.bf16.msra.mxu0 0
    %8152 = vmatprep.subr.bf16.mxu0 0
    %8153 = vmatpush1.bf16.msra.mxu0 0
    %8154 = vmatprep.subr.bf16.mxu0 0
    %8155 = vmatpush1.bf16.msra.mxu0 0
    %8156 = vmatprep.subr.bf16.mxu0 0
    %8157 = vmatpush1.bf16.msra.mxu0 0
    %8158 = vmatprep.subr.bf16.mxu0 0
    %8159 = vmatpush1.bf16.msra.mxu0 0
    %8160 = vmatprep.subr.bf16.mxu0 0
    %8161 = vmatpush1.bf16.msra.mxu0 0
    %8162 = vmatprep.subr.bf16.mxu0 0
    %8163 = vmatpush1.bf16.msra.mxu0 0
    %8164 = vmatprep.subr.bf16.mxu0 0
    %8165 = vmatpush1.bf16.msra.mxu0 0
    %8166 = vmatprep.mubr.bf16.mxu0 0
    %8167 = vmatmul.mubr.bf16.gmra.mrb[0].mxu0 %v7849
    %v8168 = vpop.f32.mrb[0].mxu0
    %v8169 = vadd.f32 %v8128, %v8168
    %v8170 = vpop.f32.mrb[0].mxu0
    %v8171 = vadd.f32 %v8130, %v8170
    %v8172 = vpop.f32.mrb[0].mxu0
    %v8173 = vpop.f32.mrb[0].mxu0
    %8174 = vdwg.mxu0
    %v8175 = vadd.f32 %v7781, %v8169
    %v8176 = vadd.f32 %v7782, %v8171
    %s8177 = scalar_lea.vmem [#allocation16], 768
    %v8178 = vld [vmem:[%s8177] sm:$0xff]
    %v8179 = vld [vmem:[%s8177 + $0x8] sm:$0xff]
    %v8180 = vld [vmem:[%s8177 + $0x10] sm:$0xff]
    %v8181 = vld [vmem:[%s8177 + $0x18] sm:$0xff]
    %v8182 = vld [vmem:[%s8177 + $0x20] sm:$0xff]
    %v8183 = vld [vmem:[%s8177 + $0x28] sm:$0xff]
    %v8184 = vld [vmem:[%s8177 + $0x30] sm:$0xff]
    %v8185 = vld [vmem:[%s8177 + $0x38] sm:$0xff]
    %v8186 = vld [vmem:[%s8177 + $0x40] sm:$0xff]
    %v8187 = vld [vmem:[%s8177 + $0x48] sm:$0xff]
    %v8188 = vld [vmem:[%s8177 + $0x50] sm:$0xff]
    %v8189 = vld [vmem:[%s8177 + $0x58] sm:$0xff]
    %v8190 = vld [vmem:[%s8177 + $0x60] sm:$0xff]
    %v8191 = vld [vmem:[%s8177 + $0x68] sm:$0xff]
    %v8192 = vld [vmem:[%s8177 + $0x70] sm:$0xff]
    %v8193 = vld [vmem:[%s8177 + $0x78] sm:$0xff]
    %v8194 = vld [vmem:[%s8177 + $0x80] sm:$0xff]
    %v8195 = vld [vmem:[%s8177 + $0x88] sm:$0xff]
    %v8196 = vld [vmem:[%s8177 + $0x90] sm:$0xff]
    %v8197 = vld [vmem:[%s8177 + $0x98] sm:$0xff]
    %v8198 = vld [vmem:[%s8177 + $0xa0] sm:$0xff]
    %v8199 = vld [vmem:[%s8177 + $0xa8] sm:$0xff]
    %v8200 = vld [vmem:[%s8177 + $0xb0] sm:$0xff]
    %v8201 = vld [vmem:[%s8177 + $0xb8] sm:$0xff]
    %v8202 = vld [vmem:[%s8177 + $0xc0] sm:$0xff]
    %v8203 = vld [vmem:[%s8177 + $0xc8] sm:$0xff]
    %v8204 = vld [vmem:[%s8177 + $0xd0] sm:$0xff]
    %v8205 = vld [vmem:[%s8177 + $0xd8] sm:$0xff]
    %v8206 = vld [vmem:[%s8177 + $0xe0] sm:$0xff]
    %v8207 = vld [vmem:[%s8177 + $0xe8] sm:$0xff]
    %v8208 = vld [vmem:[%s8177 + $0xf0] sm:$0xff]
    %v8209 = vld [vmem:[%s8177 + $0xf8] sm:$0xff]
    %v8210 = vld [vmem:[%s8177 + $0x100] sm:$0xff]
    %v8211 = vld [vmem:[%s8177 + $0x108] sm:$0xff]
    %v8212 = vld [vmem:[%s8177 + $0x110] sm:$0xff]
    %v8213 = vld [vmem:[%s8177 + $0x118] sm:$0xff]
    %v8214 = vld [vmem:[%s8177 + $0x120] sm:$0xff]
    %v8215 = vld [vmem:[%s8177 + $0x128] sm:$0xff]
    %v8216 = vld [vmem:[%s8177 + $0x130] sm:$0xff]
    %v8217 = vld [vmem:[%s8177 + $0x138] sm:$0xff]
    %v8218 = vld [vmem:[%s8177 + $0x140] sm:$0xff]
    %v8219 = vld [vmem:[%s8177 + $0x148] sm:$0xff]
    %v8220 = vld [vmem:[%s8177 + $0x150] sm:$0xff]
    %v8221 = vld [vmem:[%s8177 + $0x158] sm:$0xff]
    %v8222 = vld [vmem:[%s8177 + $0x160] sm:$0xff]
    %v8223 = vld [vmem:[%s8177 + $0x168] sm:$0xff]
    %v8224 = vld [vmem:[%s8177 + $0x170] sm:$0xff]
    %v8225 = vld [vmem:[%s8177 + $0x178] sm:$0xff]
    %v8232 = vunpack.c.l.b16 %v7354
    %v8233 = vunpack.c.l.b16 %v7355
    %v8234 = vunpack.c.l.b16 %v7356
    %v8235 = vunpack.c.l.b16 %v7369
    %v8236 = vunpack.c.l.b16 %v7370
    %v8237 = vunpack.c.l.b16 %v7371
    %v8238 = vsel %vm2563, %v8235, %v8232
    %v8239 = vsel %vm2563, %v8236, %v8233
    %v8240 = vsel %vm2563, %v8237, %v8234
    %v8241 = vpack.c.b16 %v8238, %v8238
    %v8242 = vpack.c.b16 %v8239, %v8239
    %v8243 = vpack.c.b16 %v8240, %v8240
    %v8295 = vunpack.c.l.b16 %v8178
    %v8296 = vunpack.c.h.b16 %v8178
    %v8297 = vunpack.c.l.b16 %v8179
    %v8298 = vunpack.c.h.b16 %v8179
    %v8299 = vunpack.c.l.b16 %v8180
    %v8300 = vunpack.c.h.b16 %v8180
    %v8301 = vunpack.c.l.b16 %v8181
    %v8302 = vunpack.c.h.b16 %v8181
    %v8303 = vunpack.c.l.b16 %v8182
    %v8304 = vunpack.c.h.b16 %v8182
    %v8305 = vunpack.c.l.b16 %v8183
    %v8306 = vunpack.c.h.b16 %v8183
    %v8307 = vunpack.c.l.b16 %v8184
    %v8308 = vunpack.c.h.b16 %v8184
    %v8309 = vunpack.c.l.b16 %v8185
    %v8310 = vunpack.c.h.b16 %v8185
    %v8311 = vunpack.c.l.b16 %v8186
    %v8312 = vunpack.c.h.b16 %v8186
    %v8313 = vunpack.c.l.b16 %v8187
    %v8314 = vunpack.c.h.b16 %v8187
    %v8315 = vunpack.c.l.b16 %v8188
    %v8316 = vunpack.c.h.b16 %v8188
    %v8317 = vunpack.c.l.b16 %v8189
    %v8318 = vunpack.c.h.b16 %v8189
    %v8319 = vunpack.c.l.b16 %v8190
    %v8320 = vunpack.c.h.b16 %v8190
    %v8321 = vunpack.c.l.b16 %v8191
    %v8322 = vunpack.c.h.b16 %v8191
    %v8323 = vunpack.c.l.b16 %v8192
    %v8324 = vunpack.c.h.b16 %v8192
    %v8325 = vunpack.c.l.b16 %v8193
    %v8326 = vunpack.c.h.b16 %v8193
    %v8327 = vunpack.c.l.b16 %v8194
    %v8328 = vunpack.c.h.b16 %v8194
    %v8329 = vunpack.c.l.b16 %v8195
    %v8330 = vunpack.c.h.b16 %v8195
    %v8331 = vunpack.c.l.b16 %v8196
    %v8332 = vunpack.c.h.b16 %v8196
    %v8333 = vunpack.c.l.b16 %v8197
    %v8334 = vunpack.c.h.b16 %v8197
    %v8335 = vunpack.c.l.b16 %v8198
    %v8336 = vunpack.c.h.b16 %v8198
    %v8337 = vunpack.c.l.b16 %v8199
    %v8338 = vunpack.c.h.b16 %v8199
    %v8339 = vunpack.c.l.b16 %v8200
    %v8340 = vunpack.c.h.b16 %v8200
    %v8341 = vunpack.c.l.b16 %v8201
    %v8342 = vunpack.c.h.b16 %v8201
    %v8343 = vunpack.c.l.b16 %v8202
    %v8344 = vunpack.c.h.b16 %v8202
    %v8345 = vunpack.c.l.b16 %v8203
    %v8346 = vunpack.c.h.b16 %v8203
    %v8347 = vunpack.c.l.b16 %v8204
    %v8348 = vunpack.c.h.b16 %v8204
    %v8349 = vunpack.c.l.b16 %v8205
    %v8350 = vunpack.c.h.b16 %v8205
    %v8351 = vunpack.c.l.b16 %v8206
    %v8352 = vunpack.c.h.b16 %v8206
    %v8353 = vunpack.c.l.b16 %v8207
    %v8354 = vunpack.c.h.b16 %v8207
    %v8355 = vunpack.c.l.b16 %v8208
    %v8356 = vunpack.c.h.b16 %v8208
    %v8357 = vunpack.c.l.b16 %v8209
    %v8358 = vunpack.c.h.b16 %v8209
    %v8359 = vunpack.c.l.b16 %v8210
    %v8360 = vunpack.c.h.b16 %v8210
    %v8361 = vunpack.c.l.b16 %v8211
    %v8362 = vunpack.c.h.b16 %v8211
    %v8363 = vunpack.c.l.b16 %v8212
    %v8364 = vunpack.c.h.b16 %v8212
    %v8365 = vunpack.c.l.b16 %v8213
    %v8366 = vunpack.c.h.b16 %v8213
    %v8367 = vunpack.c.l.b16 %v8214
    %v8368 = vunpack.c.h.b16 %v8214
    %v8369 = vunpack.c.l.b16 %v8215
    %v8370 = vunpack.c.h.b16 %v8215
    %v8371 = vunpack.c.l.b16 %v8216
    %v8372 = vunpack.c.h.b16 %v8216
    %v8373 = vunpack.c.l.b16 %v8217
    %v8374 = vunpack.c.h.b16 %v8217
    %v8375 = vunpack.c.l.b16 %v8218
    %v8376 = vunpack.c.h.b16 %v8218
    %v8377 = vunpack.c.l.b16 %v8219
    %v8378 = vunpack.c.h.b16 %v8219
    %v8379 = vunpack.c.l.b16 %v8220
    %v8380 = vunpack.c.h.b16 %v8220
    %v8381 = vunpack.c.l.b16 %v8221
    %v8382 = vunpack.c.h.b16 %v8221
    %v8383 = vunpack.c.l.b16 %v8222
    %v8384 = vunpack.c.h.b16 %v8222
    %v8385 = vunpack.c.l.b16 %v8223
    %v8386 = vunpack.c.h.b16 %v8223
    %v8387 = vunpack.c.l.b16 %v8224
    %v8388 = vunpack.c.h.b16 %v8224
    %v8389 = vunpack.c.l.b16 %v8225
    %v8390 = vunpack.c.h.b16 %v8225
    %v8391 = vpack.c.b16 %v8297, %v8295
    %v8392 = vpack.c.b16 %v8298, %v8296
    %v8393 = vpack.c.b16 %v8301, %v8299
    %v8394 = vpack.c.b16 %v8302, %v8300
    %v8395 = vpack.c.b16 %v8305, %v8303
    %v8396 = vpack.c.b16 %v8306, %v8304
    %v8397 = vpack.c.b16 %v8309, %v8307
    %v8398 = vpack.c.b16 %v8310, %v8308
    %v8399 = vpack.c.b16 %v8313, %v8311
    %v8400 = vpack.c.b16 %v8314, %v8312
    %v8401 = vpack.c.b16 %v8317, %v8315
    %v8402 = vpack.c.b16 %v8318, %v8316
    %v8403 = vpack.c.b16 %v8321, %v8319
    %v8404 = vpack.c.b16 %v8322, %v8320
    %v8405 = vpack.c.b16 %v8325, %v8323
    %v8406 = vpack.c.b16 %v8326, %v8324
    %v8407 = vpack.c.b16 %v8329, %v8327
    %v8408 = vpack.c.b16 %v8330, %v8328
    %v8409 = vpack.c.b16 %v8333, %v8331
    %v8410 = vpack.c.b16 %v8334, %v8332
    %v8411 = vpack.c.b16 %v8337, %v8335
    %v8412 = vpack.c.b16 %v8338, %v8336
    %v8413 = vpack.c.b16 %v8341, %v8339
    %v8414 = vpack.c.b16 %v8342, %v8340
    %v8415 = vpack.c.b16 %v8345, %v8343
    %v8416 = vpack.c.b16 %v8346, %v8344
    %v8417 = vpack.c.b16 %v8349, %v8347
    %v8418 = vpack.c.b16 %v8350, %v8348
    %v8419 = vpack.c.b16 %v8353, %v8351
    %v8420 = vpack.c.b16 %v8354, %v8352
    %v8421 = vpack.c.b16 %v8357, %v8355
    %v8422 = vpack.c.b16 %v8358, %v8356
    %v8423 = vpack.c.b16 %v8361, %v8359
    %v8424 = vpack.c.b16 %v8362, %v8360
    %v8425 = vpack.c.b16 %v8365, %v8363
    %v8426 = vpack.c.b16 %v8366, %v8364
    %v8427 = vpack.c.b16 %v8369, %v8367
    %v8428 = vpack.c.b16 %v8370, %v8368
    %v8429 = vpack.c.b16 %v8373, %v8371
    %v8430 = vpack.c.b16 %v8374, %v8372
    %v8431 = vpack.c.b16 %v8377, %v8375
    %v8432 = vpack.c.b16 %v8378, %v8376
    %v8433 = vpack.c.b16 %v8381, %v8379
    %v8434 = vpack.c.b16 %v8382, %v8380
    %v8435 = vpack.c.b16 %v8385, %v8383
    %v8436 = vpack.c.b16 %v8386, %v8384
    %v8437 = vpack.c.b16 %v8389, %v8387
    %v8438 = vpack.c.b16 %v8390, %v8388
    %8487 = vmatprep.subr.bf16.mxu0 %v8392
    %8488 = vmatpush1.bf16.msra.mxu0 %v8391
    %8489 = vmatprep.subr.bf16.mxu0 %v8394
    %8490 = vmatpush1.bf16.msra.mxu0 %v8393
    %8491 = vmatprep.subr.bf16.mxu0 %v8396
    %8492 = vmatpush1.bf16.msra.mxu0 %v8395
    %8493 = vmatprep.subr.bf16.mxu0 %v8398
    %8494 = vmatpush1.bf16.msra.mxu0 %v8397
    %8495 = vmatprep.subr.bf16.mxu0 %v8400
    %8496 = vmatpush1.bf16.msra.mxu0 %v8399
    %8497 = vmatprep.subr.bf16.mxu0 %v8402
    %8498 = vmatpush1.bf16.msra.mxu0 %v8401
    %8499 = vmatprep.subr.bf16.mxu0 %v8404
    %8500 = vmatpush1.bf16.msra.mxu0 %v8403
    %8501 = vmatprep.subr.bf16.mxu0 %v8406
    %8502 = vmatpush1.bf16.msra.mxu0 %v8405
    %8503 = vmatprep.subr.bf16.mxu0 %v8408
    %8504 = vmatpush1.bf16.msra.mxu0 %v8407
    %8505 = vmatprep.subr.bf16.mxu0 %v8410
    %8506 = vmatpush1.bf16.msra.mxu0 %v8409
    %8507 = vmatprep.subr.bf16.mxu0 %v8412
    %8508 = vmatpush1.bf16.msra.mxu0 %v8411
    %8509 = vmatprep.subr.bf16.mxu0 %v8414
    %8510 = vmatpush1.bf16.msra.mxu0 %v8413
    %8511 = vmatprep.subr.bf16.mxu0 %v8416
    %8512 = vmatpush1.bf16.msra.mxu0 %v8415
    %8513 = vmatprep.subr.bf16.mxu0 %v8418
    %8514 = vmatpush1.bf16.msra.mxu0 %v8417
    %8515 = vmatprep.subr.bf16.mxu0 %v8420
    %8516 = vmatpush1.bf16.msra.mxu0 %v8419
    %8517 = vmatprep.subr.bf16.mxu0 %v8422
    %8518 = vmatpush1.bf16.msra.mxu0 %v8421
    %8519 = vmatprep.mubr.bf16.mxu0 %v8242
    %8520 = vmatmul.mubr.bf16.gmra.mrb[0].mxu0 %v8241
    %v8521 = vpop.f32.mrb[0].mxu0
    %v8522 = vadd.f32 0.0, %v8521
    %v8523 = vpop.f32.mrb[0].mxu0
    %v8524 = vadd.f32 0.0, %v8523
    %v8525 = vpop.f32.mrb[0].mxu0
    %v8526 = vpop.f32.mrb[0].mxu0
    %8527 = vdwg.mxu0
    %8528 = vmatprep.subr.bf16.mxu0 %v8424
    %8529 = vmatpush1.bf16.msra.mxu0 %v8423
    %8530 = vmatprep.subr.bf16.mxu0 %v8426
    %8531 = vmatpush1.bf16.msra.mxu0 %v8425
    %8532 = vmatprep.subr.bf16.mxu0 %v8428
    %8533 = vmatpush1.bf16.msra.mxu0 %v8427
    %8534 = vmatprep.subr.bf16.mxu0 %v8430
    %8535 = vmatpush1.bf16.msra.mxu0 %v8429
    %8536 = vmatprep.subr.bf16.mxu0 %v8432
    %8537 = vmatpush1.bf16.msra.mxu0 %v8431
    %8538 = vmatprep.subr.bf16.mxu0 %v8434
    %8539 = vmatpush1.bf16.msra.mxu0 %v8433
    %8540 = vmatprep.subr.bf16.mxu0 %v8436
    %8541 = vmatpush1.bf16.msra.mxu0 %v8435
    %8542 = vmatprep.subr.bf16.mxu0 %v8438
    %8543 = vmatpush1.bf16.msra.mxu0 %v8437
    %8544 = vmatprep.subr.bf16.mxu0 0
    %8545 = vmatpush1.bf16.msra.mxu0 0
    %8546 = vmatprep.subr.bf16.mxu0 0
    %8547 = vmatpush1.bf16.msra.mxu0 0
    %8548 = vmatprep.subr.bf16.mxu0 0
    %8549 = vmatpush1.bf16.msra.mxu0 0
    %8550 = vmatprep.subr.bf16.mxu0 0
    %8551 = vmatpush1.bf16.msra.mxu0 0
    %8552 = vmatprep.subr.bf16.mxu0 0
    %8553 = vmatpush1.bf16.msra.mxu0 0
    %8554 = vmatprep.subr.bf16.mxu0 0
    %8555 = vmatpush1.bf16.msra.mxu0 0
    %8556 = vmatprep.subr.bf16.mxu0 0
    %8557 = vmatpush1.bf16.msra.mxu0 0
    %8558 = vmatprep.subr.bf16.mxu0 0
    %8559 = vmatpush1.bf16.msra.mxu0 0
    %8560 = vmatprep.mubr.bf16.mxu0 0
    %8561 = vmatmul.mubr.bf16.gmra.mrb[0].mxu0 %v8243
    %v8562 = vpop.f32.mrb[0].mxu0
    %v8563 = vadd.f32 %v8522, %v8562
    %v8564 = vpop.f32.mrb[0].mxu0
    %v8565 = vadd.f32 %v8524, %v8564
    %v8566 = vpop.f32.mrb[0].mxu0
    %v8567 = vpop.f32.mrb[0].mxu0
    %8568 = vdwg.mxu0
    %v8569 = vadd.f32 %v8175, %v8563
    %v8570 = vadd.f32 %v8176, %v8565
    %s8571 = scalar_lea.vmem [#allocation16], 1152
    %v8572 = vld [vmem:[%s8571] sm:$0xff]
    %v8573 = vld [vmem:[%s8571 + $0x8] sm:$0xff]
    %v8574 = vld [vmem:[%s8571 + $0x10] sm:$0xff]
    %v8575 = vld [vmem:[%s8571 + $0x18] sm:$0xff]
    %v8576 = vld [vmem:[%s8571 + $0x20] sm:$0xff]
    %v8577 = vld [vmem:[%s8571 + $0x28] sm:$0xff]
    %v8578 = vld [vmem:[%s8571 + $0x30] sm:$0xff]
    %v8579 = vld [vmem:[%s8571 + $0x38] sm:$0xff]
    %v8580 = vld [vmem:[%s8571 + $0x40] sm:$0xff]
    %v8581 = vld [vmem:[%s8571 + $0x48] sm:$0xff]
    %v8582 = vld [vmem:[%s8571 + $0x50] sm:$0xff]
    %v8583 = vld [vmem:[%s8571 + $0x58] sm:$0xff]
    %v8584 = vld [vmem:[%s8571 + $0x60] sm:$0xff]
    %v8585 = vld [vmem:[%s8571 + $0x68] sm:$0xff]
    %v8586 = vld [vmem:[%s8571 + $0x70] sm:$0xff]
    %v8587 = vld [vmem:[%s8571 + $0x78] sm:$0xff]
    %v8588 = vld [vmem:[%s8571 + $0x80] sm:$0xff]
    %v8589 = vld [vmem:[%s8571 + $0x88] sm:$0xff]
    %v8590 = vld [vmem:[%s8571 + $0x90] sm:$0xff]
    %v8591 = vld [vmem:[%s8571 + $0x98] sm:$0xff]
    %v8592 = vld [vmem:[%s8571 + $0xa0] sm:$0xff]
    %v8593 = vld [vmem:[%s8571 + $0xa8] sm:$0xff]
    %v8594 = vld [vmem:[%s8571 + $0xb0] sm:$0xff]
    %v8595 = vld [vmem:[%s8571 + $0xb8] sm:$0xff]
    %v8596 = vld [vmem:[%s8571 + $0xc0] sm:$0xff]
    %v8597 = vld [vmem:[%s8571 + $0xc8] sm:$0xff]
    %v8598 = vld [vmem:[%s8571 + $0xd0] sm:$0xff]
    %v8599 = vld [vmem:[%s8571 + $0xd8] sm:$0xff]
    %v8600 = vld [vmem:[%s8571 + $0xe0] sm:$0xff]
    %v8601 = vld [vmem:[%s8571 + $0xe8] sm:$0xff]
    %v8602 = vld [vmem:[%s8571 + $0xf0] sm:$0xff]
    %v8603 = vld [vmem:[%s8571 + $0xf8] sm:$0xff]
    %v8604 = vld [vmem:[%s8571 + $0x100] sm:$0xff]
    %v8605 = vld [vmem:[%s8571 + $0x108] sm:$0xff]
    %v8606 = vld [vmem:[%s8571 + $0x110] sm:$0xff]
    %v8607 = vld [vmem:[%s8571 + $0x118] sm:$0xff]
    %v8608 = vld [vmem:[%s8571 + $0x120] sm:$0xff]
    %v8609 = vld [vmem:[%s8571 + $0x128] sm:$0xff]
    %v8610 = vld [vmem:[%s8571 + $0x130] sm:$0xff]
    %v8611 = vld [vmem:[%s8571 + $0x138] sm:$0xff]
    %v8612 = vld [vmem:[%s8571 + $0x140] sm:$0xff]
    %v8613 = vld [vmem:[%s8571 + $0x148] sm:$0xff]
    %v8614 = vld [vmem:[%s8571 + $0x150] sm:$0xff]
    %v8615 = vld [vmem:[%s8571 + $0x158] sm:$0xff]
    %v8616 = vld [vmem:[%s8571 + $0x160] sm:$0xff]
    %v8617 = vld [vmem:[%s8571 + $0x168] sm:$0xff]
    %v8618 = vld [vmem:[%s8571 + $0x170] sm:$0xff]
    %v8619 = vld [vmem:[%s8571 + $0x178] sm:$0xff]
    %v8626 = vunpack.c.l.b16 %v7357
    %v8627 = vunpack.c.l.b16 %v7358
    %v8628 = vunpack.c.l.b16 %v7359
    %v8629 = vunpack.c.l.b16 %v7372
    %v8630 = vunpack.c.l.b16 %v7373
    %v8631 = vunpack.c.l.b16 %v7374
    %v8632 = vsel %vm2563, %v8629, %v8626
    %v8633 = vsel %vm2563, %v8630, %v8627
    %v8634 = vsel %vm2563, %v8631, %v8628
    %v8635 = vpack.c.b16 %v8632, %v8632
    %v8636 = vpack.c.b16 %v8633, %v8633
    %v8637 = vpack.c.b16 %v8634, %v8634
    %v8689 = vunpack.c.l.b16 %v8572
    %v8690 = vunpack.c.h.b16 %v8572
    %v8691 = vunpack.c.l.b16 %v8573
    %v8692 = vunpack.c.h.b16 %v8573
    %v8693 = vunpack.c.l.b16 %v8574
    %v8694 = vunpack.c.h.b16 %v8574
    %v8695 = vunpack.c.l.b16 %v8575
    %v8696 = vunpack.c.h.b16 %v8575
    %v8697 = vunpack.c.l.b16 %v8576
    %v8698 = vunpack.c.h.b16 %v8576
    %v8699 = vunpack.c.l.b16 %v8577
    %v8700 = vunpack.c.h.b16 %v8577
    %v8701 = vunpack.c.l.b16 %v8578
    %v8702 = vunpack.c.h.b16 %v8578
    %v8703 = vunpack.c.l.b16 %v8579
    %v8704 = vunpack.c.h.b16 %v8579
    %v8705 = vunpack.c.l.b16 %v8580
    %v8706 = vunpack.c.h.b16 %v8580
    %v8707 = vunpack.c.l.b16 %v8581
    %v8708 = vunpack.c.h.b16 %v8581
    %v8709 = vunpack.c.l.b16 %v8582
    %v8710 = vunpack.c.h.b16 %v8582
    %v8711 = vunpack.c.l.b16 %v8583
    %v8712 = vunpack.c.h.b16 %v8583
    %v8713 = vunpack.c.l.b16 %v8584
    %v8714 = vunpack.c.h.b16 %v8584
    %v8715 = vunpack.c.l.b16 %v8585
    %v8716 = vunpack.c.h.b16 %v8585
    %v8717 = vunpack.c.l.b16 %v8586
    %v8718 = vunpack.c.h.b16 %v8586
    %v8719 = vunpack.c.l.b16 %v8587
    %v8720 = vunpack.c.h.b16 %v8587
    %v8721 = vunpack.c.l.b16 %v8588
    %v8722 = vunpack.c.h.b16 %v8588
    %v8723 = vunpack.c.l.b16 %v8589
    %v8724 = vunpack.c.h.b16 %v8589
    %v8725 = vunpack.c.l.b16 %v8590
    %v8726 = vunpack.c.h.b16 %v8590
    %v8727 = vunpack.c.l.b16 %v8591
    %v8728 = vunpack.c.h.b16 %v8591
    %v8729 = vunpack.c.l.b16 %v8592
    %v8730 = vunpack.c.h.b16 %v8592
    %v8731 = vunpack.c.l.b16 %v8593
    %v8732 = vunpack.c.h.b16 %v8593
    %v8733 = vunpack.c.l.b16 %v8594
    %v8734 = vunpack.c.h.b16 %v8594
    %v8735 = vunpack.c.l.b16 %v8595
    %v8736 = vunpack.c.h.b16 %v8595
    %v8737 = vunpack.c.l.b16 %v8596
    %v8738 = vunpack.c.h.b16 %v8596
    %v8739 = vunpack.c.l.b16 %v8597
    %v8740 = vunpack.c.h.b16 %v8597
    %v8741 = vunpack.c.l.b16 %v8598
    %v8742 = vunpack.c.h.b16 %v8598
    %v8743 = vunpack.c.l.b16 %v8599
    %v8744 = vunpack.c.h.b16 %v8599
    %v8745 = vunpack.c.l.b16 %v8600
    %v8746 = vunpack.c.h.b16 %v8600
    %v8747 = vunpack.c.l.b16 %v8601
    %v8748 = vunpack.c.h.b16 %v8601
    %v8749 = vunpack.c.l.b16 %v8602
    %v8750 = vunpack.c.h.b16 %v8602
    %v8751 = vunpack.c.l.b16 %v8603
    %v8752 = vunpack.c.h.b16 %v8603
    %v8753 = vunpack.c.l.b16 %v8604
    %v8754 = vunpack.c.h.b16 %v8604
    %v8755 = vunpack.c.l.b16 %v8605
    %v8756 = vunpack.c.h.b16 %v8605
    %v8757 = vunpack.c.l.b16 %v8606
    %v8758 = vunpack.c.h.b16 %v8606
    %v8759 = vunpack.c.l.b16 %v8607
    %v8760 = vunpack.c.h.b16 %v8607
    %v8761 = vunpack.c.l.b16 %v8608
    %v8762 = vunpack.c.h.b16 %v8608
    %v8763 = vunpack.c.l.b16 %v8609
    %v8764 = vunpack.c.h.b16 %v8609
    %v8765 = vunpack.c.l.b16 %v8610
    %v8766 = vunpack.c.h.b16 %v8610
    %v8767 = vunpack.c.l.b16 %v8611
    %v8768 = vunpack.c.h.b16 %v8611
    %v8769 = vunpack.c.l.b16 %v8612
    %v8770 = vunpack.c.h.b16 %v8612
    %v8771 = vunpack.c.l.b16 %v8613
    %v8772 = vunpack.c.h.b16 %v8613
    %v8773 = vunpack.c.l.b16 %v8614
    %v8774 = vunpack.c.h.b16 %v8614
    %v8775 = vunpack.c.l.b16 %v8615
    %v8776 = vunpack.c.h.b16 %v8615
    %v8777 = vunpack.c.l.b16 %v8616
    %v8778 = vunpack.c.h.b16 %v8616
    %v8779 = vunpack.c.l.b16 %v8617
    %v8780 = vunpack.c.h.b16 %v8617
    %v8781 = vunpack.c.l.b16 %v8618
    %v8782 = vunpack.c.h.b16 %v8618
    %v8783 = vunpack.c.l.b16 %v8619
    %v8784 = vunpack.c.h.b16 %v8619
    %v8785 = vpack.c.b16 %v8691, %v8689
    %v8786 = vpack.c.b16 %v8692, %v8690
    %v8787 = vpack.c.b16 %v8695, %v8693
    %v8788 = vpack.c.b16 %v8696, %v8694
    %v8789 = vpack.c.b16 %v8699, %v8697
    %v8790 = vpack.c.b16 %v8700, %v8698
    %v8791 = vpack.c.b16 %v8703, %v8701
    %v8792 = vpack.c.b16 %v8704, %v8702
    %v8793 = vpack.c.b16 %v8707, %v8705
    %v8794 = vpack.c.b16 %v8708, %v8706
    %v8795 = vpack.c.b16 %v8711, %v8709
    %v8796 = vpack.c.b16 %v8712, %v8710
    %v8797 = vpack.c.b16 %v8715, %v8713
    %v8798 = vpack.c.b16 %v8716, %v8714
    %v8799 = vpack.c.b16 %v8719, %v8717
    %v8800 = vpack.c.b16 %v8720, %v8718
    %v8801 = vpack.c.b16 %v8723, %v8721
    %v8802 = vpack.c.b16 %v8724, %v8722
    %v8803 = vpack.c.b16 %v8727, %v8725
    %v8804 = vpack.c.b16 %v8728, %v8726
    %v8805 = vpack.c.b16 %v8731, %v8729
    %v8806 = vpack.c.b16 %v8732, %v8730
    %v8807 = vpack.c.b16 %v8735, %v8733
    %v8808 = vpack.c.b16 %v8736, %v8734
    %v8809 = vpack.c.b16 %v8739, %v8737
    %v8810 = vpack.c.b16 %v8740, %v8738
    %v8811 = vpack.c.b16 %v8743, %v8741
    %v8812 = vpack.c.b16 %v8744, %v8742
    %v8813 = vpack.c.b16 %v8747, %v8745
    %v8814 = vpack.c.b16 %v8748, %v8746
    %v8815 = vpack.c.b16 %v8751, %v8749
    %v8816 = vpack.c.b16 %v8752, %v8750
    %v8817 = vpack.c.b16 %v8755, %v8753
    %v8818 = vpack.c.b16 %v8756, %v8754
    %v8819 = vpack.c.b16 %v8759, %v8757
    %v8820 = vpack.c.b16 %v8760, %v8758
    %v8821 = vpack.c.b16 %v8763, %v8761
    %v8822 = vpack.c.b16 %v8764, %v8762
    %v8823 = vpack.c.b16 %v8767, %v8765
    %v8824 = vpack.c.b16 %v8768, %v8766
    %v8825 = vpack.c.b16 %v8771, %v8769
    %v8826 = vpack.c.b16 %v8772, %v8770
    %v8827 = vpack.c.b16 %v8775, %v8773
    %v8828 = vpack.c.b16 %v8776, %v8774
    %v8829 = vpack.c.b16 %v8779, %v8777
    %v8830 = vpack.c.b16 %v8780, %v8778
    %v8831 = vpack.c.b16 %v8783, %v8781
    %v8832 = vpack.c.b16 %v8784, %v8782
    %8881 = vmatprep.subr.bf16.mxu0 %v8786
    %8882 = vmatpush1.bf16.msra.mxu0 %v8785
    %8883 = vmatprep.subr.bf16.mxu0 %v8788
    %8884 = vmatpush1.bf16.msra.mxu0 %v8787
    %8885 = vmatprep.subr.bf16.mxu0 %v8790
    %8886 = vmatpush1.bf16.msra.mxu0 %v8789
    %8887 = vmatprep.subr.bf16.mxu0 %v8792
    %8888 = vmatpush1.bf16.msra.mxu0 %v8791
    %8889 = vmatprep.subr.bf16.mxu0 %v8794
    %8890 = vmatpush1.bf16.msra.mxu0 %v8793
    %8891 = vmatprep.subr.bf16.mxu0 %v8796
    %8892 = vmatpush1.bf16.msra.mxu0 %v8795
    %8893 = vmatprep.subr.bf16.mxu0 %v8798
    %8894 = vmatpush1.bf16.msra.mxu0 %v8797
    %8895 = vmatprep.subr.bf16.mxu0 %v8800
    %8896 = vmatpush1.bf16.msra.mxu0 %v8799
    %8897 = vmatprep.subr.bf16.mxu0 %v8802
    %8898 = vmatpush1.bf16.msra.mxu0 %v8801
    %8899 = vmatprep.subr.bf16.mxu0 %v8804
    %8900 = vmatpush1.bf16.msra.mxu0 %v8803
    %8901 = vmatprep.subr.bf16.mxu0 %v8806
    %8902 = vmatpush1.bf16.msra.mxu0 %v8805
    %8903 = vmatprep.subr.bf16.mxu0 %v8808
    %8904 = vmatpush1.bf16.msra.mxu0 %v8807
    %8905 = vmatprep.subr.bf16.mxu0 %v8810
    %8906 = vmatpush1.bf16.msra.mxu0 %v8809
    %8907 = vmatprep.subr.bf16.mxu0 %v8812
    %8908 = vmatpush1.bf16.msra.mxu0 %v8811
    %8909 = vmatprep.subr.bf16.mxu0 %v8814
    %8910 = vmatpush1.bf16.msra.mxu0 %v8813
    %8911 = vmatprep.subr.bf16.mxu0 %v8816
    %8912 = vmatpush1.bf16.msra.mxu0 %v8815
    %8913 = vmatprep.mubr.bf16.mxu0 %v8636
    %8914 = vmatmul.mubr.bf16.gmra.mrb[0].mxu0 %v8635
    %v8915 = vpop.f32.mrb[0].mxu0
    %v8916 = vadd.f32 0.0, %v8915
    %v8917 = vpop.f32.mrb[0].mxu0
    %v8918 = vadd.f32 0.0, %v8917
    %v8919 = vpop.f32.mrb[0].mxu0
    %v8920 = vpop.f32.mrb[0].mxu0
    %8921 = vdwg.mxu0
    %8922 = vmatprep.subr.bf16.mxu0 %v8818
    %8923 = vmatpush1.bf16.msra.mxu0 %v8817
    %8924 = vmatprep.subr.bf16.mxu0 %v8820
    %8925 = vmatpush1.bf16.msra.mxu0 %v8819
    %8926 = vmatprep.subr.bf16.mxu0 %v8822
    %8927 = vmatpush1.bf16.msra.mxu0 %v8821
    %8928 = vmatprep.subr.bf16.mxu0 %v8824
    %8929 = vmatpush1.bf16.msra.mxu0 %v8823
    %8930 = vmatprep.subr.bf16.mxu0 %v8826
    %8931 = vmatpush1.bf16.msra.mxu0 %v8825
    %8932 = vmatprep.subr.bf16.mxu0 %v8828
    %8933 = vmatpush1.bf16.msra.mxu0 %v8827
    %8934 = vmatprep.subr.bf16.mxu0 %v8830
    %8935 = vmatpush1.bf16.msra.mxu0 %v8829
    %8936 = vmatprep.subr.bf16.mxu0 %v8832
    %8937 = vmatpush1.bf16.msra.mxu0 %v8831
    %8938 = vmatprep.subr.bf16.mxu0 0
    %8939 = vmatpush1.bf16.msra.mxu0 0
    %8940 = vmatprep.subr.bf16.mxu0 0
    %8941 = vmatpush1.bf16.msra.mxu0 0
    %8942 = vmatprep.subr.bf16.mxu0 0
    %8943 = vmatpush1.bf16.msra.mxu0 0
    %8944 = vmatprep.subr.bf16.mxu0 0
    %8945 = vmatpush1.bf16.msra.mxu0 0
    %8946 = vmatprep.subr.bf16.mxu0 0
    %8947 = vmatpush1.bf16.msra.mxu0 0
    %8948 = vmatprep.subr.bf16.mxu0 0
    %8949 = vmatpush1.bf16.msra.mxu0 0
    %8950 = vmatprep.subr.bf16.mxu0 0
    %8951 = vmatpush1.bf16.msra.mxu0 0
    %8952 = vmatprep.subr.bf16.mxu0 0
    %8953 = vmatpush1.bf16.msra.mxu0 0
    %8954 = vmatprep.mubr.bf16.mxu0 0
    %8955 = vmatmul.mubr.bf16.gmra.mrb[0].mxu0 %v8637
    %v8956 = vpop.f32.mrb[0].mxu0
    %v8957 = vadd.f32 %v8916, %v8956
    %v8958 = vpop.f32.mrb[0].mxu0
    %v8959 = vadd.f32 %v8918, %v8958
    %v8960 = vpop.f32.mrb[0].mxu0
    %v8961 = vpop.f32.mrb[0].mxu0
    %8962 = vdwg.mxu0
    %v8963 = vadd.f32 %v8569, %v8957
    %v8964 = vadd.f32 %v8570, %v8959
    %s8965 = scalar_lea.vmem [#allocation16], 1536
    %v8966 = vld [vmem:[%s8965] sm:$0xff]
    %v8967 = vld [vmem:[%s8965 + $0x8] sm:$0xff]
    %v8968 = vld [vmem:[%s8965 + $0x10] sm:$0xff]
    %v8969 = vld [vmem:[%s8965 + $0x18] sm:$0xff]
    %v8970 = vld [vmem:[%s8965 + $0x20] sm:$0xff]
    %v8971 = vld [vmem:[%s8965 + $0x28] sm:$0xff]
    %v8972 = vld [vmem:[%s8965 + $0x30] sm:$0xff]
    %v8973 = vld [vmem:[%s8965 + $0x38] sm:$0xff]
    %v8974 = vld [vmem:[%s8965 + $0x40] sm:$0xff]
    %v8975 = vld [vmem:[%s8965 + $0x48] sm:$0xff]
    %v8976 = vld [vmem:[%s8965 + $0x50] sm:$0xff]
    %v8977 = vld [vmem:[%s8965 + $0x58] sm:$0xff]
    %v8978 = vld [vmem:[%s8965 + $0x60] sm:$0xff]
    %v8979 = vld [vmem:[%s8965 + $0x68] sm:$0xff]
    %v8980 = vld [vmem:[%s8965 + $0x70] sm:$0xff]
    %v8981 = vld [vmem:[%s8965 + $0x78] sm:$0xff]
    %v8982 = vld [vmem:[%s8965 + $0x80] sm:$0xff]
    %v8983 = vld [vmem:[%s8965 + $0x88] sm:$0xff]
    %v8984 = vld [vmem:[%s8965 + $0x90] sm:$0xff]
    %v8985 = vld [vmem:[%s8965 + $0x98] sm:$0xff]
    %v8986 = vld [vmem:[%s8965 + $0xa0] sm:$0xff]
    %v8987 = vld [vmem:[%s8965 + $0xa8] sm:$0xff]
    %v8988 = vld [vmem:[%s8965 + $0xb0] sm:$0xff]
    %v8989 = vld [vmem:[%s8965 + $0xb8] sm:$0xff]
    %v8990 = vld [vmem:[%s8965 + $0xc0] sm:$0xff]
    %v8991 = vld [vmem:[%s8965 + $0xc8] sm:$0xff]
    %v8992 = vld [vmem:[%s8965 + $0xd0] sm:$0xff]
    %v8993 = vld [vmem:[%s8965 + $0xd8] sm:$0xff]
    %v8994 = vld [vmem:[%s8965 + $0xe0] sm:$0xff]
    %v8995 = vld [vmem:[%s8965 + $0xe8] sm:$0xff]
    %v8996 = vld [vmem:[%s8965 + $0xf0] sm:$0xff]
    %v8997 = vld [vmem:[%s8965 + $0xf8] sm:$0xff]
    %v8998 = vld [vmem:[%s8965 + $0x100] sm:$0xff]
    %v8999 = vld [vmem:[%s8965 + $0x108] sm:$0xff]
    %v9000 = vld [vmem:[%s8965 + $0x110] sm:$0xff]
    %v9001 = vld [vmem:[%s8965 + $0x118] sm:$0xff]
    %v9002 = vld [vmem:[%s8965 + $0x120] sm:$0xff]
    %v9003 = vld [vmem:[%s8965 + $0x128] sm:$0xff]
    %v9004 = vld [vmem:[%s8965 + $0x130] sm:$0xff]
    %v9005 = vld [vmem:[%s8965 + $0x138] sm:$0xff]
    %v9006 = vld [vmem:[%s8965 + $0x140] sm:$0xff]
    %v9007 = vld [vmem:[%s8965 + $0x148] sm:$0xff]
    %v9008 = vld [vmem:[%s8965 + $0x150] sm:$0xff]
    %v9009 = vld [vmem:[%s8965 + $0x158] sm:$0xff]
    %v9010 = vld [vmem:[%s8965 + $0x160] sm:$0xff]
    %v9011 = vld [vmem:[%s8965 + $0x168] sm:$0xff]
    %v9012 = vld [vmem:[%s8965 + $0x170] sm:$0xff]
    %v9013 = vld [vmem:[%s8965 + $0x178] sm:$0xff]
    %v9020 = vunpack.c.l.b16 %v7360
    %v9021 = vunpack.c.l.b16 %v7361
    %v9022 = vunpack.c.l.b16 %v7362
    %v9023 = vunpack.c.l.b16 %v7375
    %v9024 = vunpack.c.l.b16 %v7376
    %v9025 = vunpack.c.l.b16 %v7377
    %v9026 = vsel %vm2563, %v9023, %v9020
    %v9027 = vsel %vm2563, %v9024, %v9021
    %v9028 = vsel %vm2563, %v9025, %v9022
    %v9029 = vpack.c.b16 %v9026, %v9026
    %v9030 = vpack.c.b16 %v9027, %v9027
    %v9031 = vpack.c.b16 %v9028, %v9028
    %v9083 = vunpack.c.l.b16 %v8966
    %v9084 = vunpack.c.h.b16 %v8966
    %v9085 = vunpack.c.l.b16 %v8967
    %v9086 = vunpack.c.h.b16 %v8967
    %v9087 = vunpack.c.l.b16 %v8968
    %v9088 = vunpack.c.h.b16 %v8968
    %v9089 = vunpack.c.l.b16 %v8969
    %v9090 = vunpack.c.h.b16 %v8969
    %v9091 = vunpack.c.l.b16 %v8970
    %v9092 = vunpack.c.h.b16 %v8970
    %v9093 = vunpack.c.l.b16 %v8971
    %v9094 = vunpack.c.h.b16 %v8971
    %v9095 = vunpack.c.l.b16 %v8972
    %v9096 = vunpack.c.h.b16 %v8972
    %v9097 = vunpack.c.l.b16 %v8973
    %v9098 = vunpack.c.h.b16 %v8973
    %v9099 = vunpack.c.l.b16 %v8974
    %v9100 = vunpack.c.h.b16 %v8974
    %v9101 = vunpack.c.l.b16 %v8975
    %v9102 = vunpack.c.h.b16 %v8975
    %v9103 = vunpack.c.l.b16 %v8976
    %v9104 = vunpack.c.h.b16 %v8976
    %v9105 = vunpack.c.l.b16 %v8977
    %v9106 = vunpack.c.h.b16 %v8977
    %v9107 = vunpack.c.l.b16 %v8978
    %v9108 = vunpack.c.h.b16 %v8978
    %v9109 = vunpack.c.l.b16 %v8979
    %v9110 = vunpack.c.h.b16 %v8979
    %v9111 = vunpack.c.l.b16 %v8980
    %v9112 = vunpack.c.h.b16 %v8980
    %v9113 = vunpack.c.l.b16 %v8981
    %v9114 = vunpack.c.h.b16 %v8981
    %v9115 = vunpack.c.l.b16 %v8982
    %v9116 = vunpack.c.h.b16 %v8982
    %v9117 = vunpack.c.l.b16 %v8983
    %v9118 = vunpack.c.h.b16 %v8983
    %v9119 = vunpack.c.l.b16 %v8984
    %v9120 = vunpack.c.h.b16 %v8984
    %v9121 = vunpack.c.l.b16 %v8985
    %v9122 = vunpack.c.h.b16 %v8985
    %v9123 = vunpack.c.l.b16 %v8986
    %v9124 = vunpack.c.h.b16 %v8986
    %v9125 = vunpack.c.l.b16 %v8987
    %v9126 = vunpack.c.h.b16 %v8987
    %v9127 = vunpack.c.l.b16 %v8988
    %v9128 = vunpack.c.h.b16 %v8988
    %v9129 = vunpack.c.l.b16 %v8989
    %v9130 = vunpack.c.h.b16 %v8989
    %v9131 = vunpack.c.l.b16 %v8990
    %v9132 = vunpack.c.h.b16 %v8990
    %v9133 = vunpack.c.l.b16 %v8991
    %v9134 = vunpack.c.h.b16 %v8991
    %v9135 = vunpack.c.l.b16 %v8992
    %v9136 = vunpack.c.h.b16 %v8992
    %v9137 = vunpack.c.l.b16 %v8993
    %v9138 = vunpack.c.h.b16 %v8993
    %v9139 = vunpack.c.l.b16 %v8994
    %v9140 = vunpack.c.h.b16 %v8994
    %v9141 = vunpack.c.l.b16 %v8995
    %v9142 = vunpack.c.h.b16 %v8995
    %v9143 = vunpack.c.l.b16 %v8996
    %v9144 = vunpack.c.h.b16 %v8996
    %v9145 = vunpack.c.l.b16 %v8997
    %v9146 = vunpack.c.h.b16 %v8997
    %v9147 = vunpack.c.l.b16 %v8998
    %v9148 = vunpack.c.h.b16 %v8998
    %v9149 = vunpack.c.l.b16 %v8999
    %v9150 = vunpack.c.h.b16 %v8999
    %v9151 = vunpack.c.l.b16 %v9000
    %v9152 = vunpack.c.h.b16 %v9000
    %v9153 = vunpack.c.l.b16 %v9001
    %v9154 = vunpack.c.h.b16 %v9001
    %v9155 = vunpack.c.l.b16 %v9002
    %v9156 = vunpack.c.h.b16 %v9002
    %v9157 = vunpack.c.l.b16 %v9003
    %v9158 = vunpack.c.h.b16 %v9003
    %v9159 = vunpack.c.l.b16 %v9004
    %v9160 = vunpack.c.h.b16 %v9004
    %v9161 = vunpack.c.l.b16 %v9005
    %v9162 = vunpack.c.h.b16 %v9005
    %v9163 = vunpack.c.l.b16 %v9006
    %v9164 = vunpack.c.h.b16 %v9006
    %v9165 = vunpack.c.l.b16 %v9007
    %v9166 = vunpack.c.h.b16 %v9007
    %v9167 = vunpack.c.l.b16 %v9008
    %v9168 = vunpack.c.h.b16 %v9008
    %v9169 = vunpack.c.l.b16 %v9009
    %v9170 = vunpack.c.h.b16 %v9009
    %v9171 = vunpack.c.l.b16 %v9010
    %v9172 = vunpack.c.h.b16 %v9010
    %v9173 = vunpack.c.l.b16 %v9011
    %v9174 = vunpack.c.h.b16 %v9011
    %v9175 = vunpack.c.l.b16 %v9012
    %v9176 = vunpack.c.h.b16 %v9012
    %v9177 = vunpack.c.l.b16 %v9013
    %v9178 = vunpack.c.h.b16 %v9013
    %v9179 = vpack.c.b16 %v9085, %v9083
    %v9180 = vpack.c.b16 %v9086, %v9084
    %v9181 = vpack.c.b16 %v9089, %v9087
    %v9182 = vpack.c.b16 %v9090, %v9088
    %v9183 = vpack.c.b16 %v9093, %v9091
    %v9184 = vpack.c.b16 %v9094, %v9092
    %v9185 = vpack.c.b16 %v9097, %v9095
    %v9186 = vpack.c.b16 %v9098, %v9096
    %v9187 = vpack.c.b16 %v9101, %v9099
    %v9188 = vpack.c.b16 %v9102, %v9100
    %v9189 = vpack.c.b16 %v9105, %v9103
    %v9190 = vpack.c.b16 %v9106, %v9104
    %v9191 = vpack.c.b16 %v9109, %v9107
    %v9192 = vpack.c.b16 %v9110, %v9108
    %v9193 = vpack.c.b16 %v9113, %v9111
    %v9194 = vpack.c.b16 %v9114, %v9112
    %v9195 = vpack.c.b16 %v9117, %v9115
    %v9196 = vpack.c.b16 %v9118, %v9116
    %v9197 = vpack.c.b16 %v9121, %v9119
    %v9198 = vpack.c.b16 %v9122, %v9120
    %v9199 = vpack.c.b16 %v9125, %v9123
    %v9200 = vpack.c.b16 %v9126, %v9124
    %v9201 = vpack.c.b16 %v9129, %v9127
    %v9202 = vpack.c.b16 %v9130, %v9128
    %v9203 = vpack.c.b16 %v9133, %v9131
    %v9204 = vpack.c.b16 %v9134, %v9132
    %v9205 = vpack.c.b16 %v9137, %v9135
    %v9206 = vpack.c.b16 %v9138, %v9136
    %v9207 = vpack.c.b16 %v9141, %v9139
    %v9208 = vpack.c.b16 %v9142, %v9140
    %v9209 = vpack.c.b16 %v9145, %v9143
    %v9210 = vpack.c.b16 %v9146, %v9144
    %v9211 = vpack.c.b16 %v9149, %v9147
    %v9212 = vpack.c.b16 %v9150, %v9148
    %v9213 = vpack.c.b16 %v9153, %v9151
    %v9214 = vpack.c.b16 %v9154, %v9152
    %v9215 = vpack.c.b16 %v9157, %v9155
    %v9216 = vpack.c.b16 %v9158, %v9156
    %v9217 = vpack.c.b16 %v9161, %v9159
    %v9218 = vpack.c.b16 %v9162, %v9160
    %v9219 = vpack.c.b16 %v9165, %v9163
    %v9220 = vpack.c.b16 %v9166, %v9164
    %v9221 = vpack.c.b16 %v9169, %v9167
    %v9222 = vpack.c.b16 %v9170, %v9168
    %v9223 = vpack.c.b16 %v9173, %v9171
    %v9224 = vpack.c.b16 %v9174, %v9172
    %v9225 = vpack.c.b16 %v9177, %v9175
    %v9226 = vpack.c.b16 %v9178, %v9176
    %9275 = vmatprep.subr.bf16.mxu0 %v9180
    %9276 = vmatpush1.bf16.msra.mxu0 %v9179
    %9277 = vmatprep.subr.bf16.mxu0 %v9182
    %9278 = vmatpush1.bf16.msra.mxu0 %v9181
    %9279 = vmatprep.subr.bf16.mxu0 %v9184
    %9280 = vmatpush1.bf16.msra.mxu0 %v9183
    %9281 = vmatprep.subr.bf16.mxu0 %v9186
    %9282 = vmatpush1.bf16.msra.mxu0 %v9185
    %9283 = vmatprep.subr.bf16.mxu0 %v9188
    %9284 = vmatpush1.bf16.msra.mxu0 %v9187
    %9285 = vmatprep.subr.bf16.mxu0 %v9190
    %9286 = vmatpush1.bf16.msra.mxu0 %v9189
    %9287 = vmatprep.subr.bf16.mxu0 %v9192
    %9288 = vmatpush1.bf16.msra.mxu0 %v9191
    %9289 = vmatprep.subr.bf16.mxu0 %v9194
    %9290 = vmatpush1.bf16.msra.mxu0 %v9193
    %9291 = vmatprep.subr.bf16.mxu0 %v9196
    %9292 = vmatpush1.bf16.msra.mxu0 %v9195
    %9293 = vmatprep.subr.bf16.mxu0 %v9198
    %9294 = vmatpush1.bf16.msra.mxu0 %v9197
    %9295 = vmatprep.subr.bf16.mxu0 %v9200
    %9296 = vmatpush1.bf16.msra.mxu0 %v9199
    %9297 = vmatprep.subr.bf16.mxu0 %v9202
    %9298 = vmatpush1.bf16.msra.mxu0 %v9201
    %9299 = vmatprep.subr.bf16.mxu0 %v9204
    %9300 = vmatpush1.bf16.msra.mxu0 %v9203
    %9301 = vmatprep.subr.bf16.mxu0 %v9206
    %9302 = vmatpush1.bf16.msra.mxu0 %v9205
    %9303 = vmatprep.subr.bf16.mxu0 %v9208
    %9304 = vmatpush1.bf16.msra.mxu0 %v9207
    %9305 = vmatprep.subr.bf16.mxu0 %v9210
    %9306 = vmatpush1.bf16.msra.mxu0 %v9209
    %9307 = vmatprep.mubr.bf16.mxu0 %v9030
    %9308 = vmatmul.mubr.bf16.gmra.mrb[0].mxu0 %v9029
    %v9309 = vpop.f32.mrb[0].mxu0
    %v9310 = vadd.f32 0.0, %v9309
    %v9311 = vpop.f32.mrb[0].mxu0
    %v9312 = vadd.f32 0.0, %v9311
    %v9313 = vpop.f32.mrb[0].mxu0
    %v9314 = vpop.f32.mrb[0].mxu0
    %9315 = vdwg.mxu0
    %9316 = vmatprep.subr.bf16.mxu0 %v9212
    %9317 = vmatpush1.bf16.msra.mxu0 %v9211
    %9318 = vmatprep.subr.bf16.mxu0 %v9214
    %9319 = vmatpush1.bf16.msra.mxu0 %v9213
    %9320 = vmatprep.subr.bf16.mxu0 %v9216
    %9321 = vmatpush1.bf16.msra.mxu0 %v9215
    %9322 = vmatprep.subr.bf16.mxu0 %v9218
    %9323 = vmatpush1.bf16.msra.mxu0 %v9217
    %9324 = vmatprep.subr.bf16.mxu0 %v9220
    %9325 = vmatpush1.bf16.msra.mxu0 %v9219
    %9326 = vmatprep.subr.bf16.mxu0 %v9222
    %9327 = vmatpush1.bf16.msra.mxu0 %v9221
    %9328 = vmatprep.subr.bf16.mxu0 %v9224
    %9329 = vmatpush1.bf16.msra.mxu0 %v9223
    %9330 = vmatprep.subr.bf16.mxu0 %v9226
    %9331 = vmatpush1.bf16.msra.mxu0 %v9225
    %9332 = vmatprep.subr.bf16.mxu0 0
    %9333 = vmatpush1.bf16.msra.mxu0 0
    %9334 = vmatprep.subr.bf16.mxu0 0
    %9335 = vmatpush1.bf16.msra.mxu0 0
    %9336 = vmatprep.subr.bf16.mxu0 0
    %9337 = vmatpush1.bf16.msra.mxu0 0
    %9338 = vmatprep.subr.bf16.mxu0 0
    %9339 = vmatpush1.bf16.msra.mxu0 0
    %9340 = vmatprep.subr.bf16.mxu0 0
    %9341 = vmatpush1.bf16.msra.mxu0 0
    %9342 = vmatprep.subr.bf16.mxu0 0
    %9343 = vmatpush1.bf16.msra.mxu0 0
    %9344 = vmatprep.subr.bf16.mxu0 0
    %9345 = vmatpush1.bf16.msra.mxu0 0
    %9346 = vmatprep.subr.bf16.mxu0 0
    %9347 = vmatpush1.bf16.msra.mxu0 0
    %9348 = vmatprep.mubr.bf16.mxu0 0
    %9349 = vmatmul.mubr.bf16.gmra.mrb[0].mxu0 %v9031
    %v9350 = vpop.f32.mrb[0].mxu0
    %v9351 = vadd.f32 %v9310, %v9350
    %v9352 = vpop.f32.mrb[0].mxu0
    %v9353 = vadd.f32 %v9312, %v9352
    %v9354 = vpop.f32.mrb[0].mxu0
    %v9355 = vpop.f32.mrb[0].mxu0
    %9356 = vdwg.mxu0
    %v9357 = vadd.f32 %v8963, %v9351
    %v9358 = vadd.f32 %v8964, %v9353
    %v9359 = vmax.f32 %v9357, 0.0
    %v9360 = vmax.f32 %v9358, 0.0
    %v9361 = vpack.c.bf16 %v9359, %v9359
    %v9362 = vpack.c.bf16 %v9360, %v9360
    %v9363 = vld [vmem:[#allocation19] sm:$0xf]
    %v9364 = vld [vmem:[#allocation19 + $0x4] sm:$0xf]
    %v9365 = vld [vmem:[#allocation19 + $0x8] sm:$0xf]
    %v9366 = vld [vmem:[#allocation19 + $0xc] sm:$0xf]
    %v9367 = vld [vmem:[#allocation19 + $0x10] sm:$0xf]
    %v9368 = vld [vmem:[#allocation19 + $0x14] sm:$0xf]
    %v9369 = vld [vmem:[#allocation19 + $0x18] sm:$0xf]
    %v9370 = vld [vmem:[#allocation19 + $0x1c] sm:$0xf]
    %v9371 = vld [vmem:[#allocation19 + $0x20] sm:$0xf]
    %v9372 = vld [vmem:[#allocation19 + $0x24] sm:$0xf]
    %v9373 = vld [vmem:[#allocation19 + $0x28] sm:$0xf]
    %v9374 = vld [vmem:[#allocation19 + $0x2c] sm:$0xf]
    %v9375 = vld [vmem:[#allocation19 + $0x30] sm:$0xf]
    %v9376 = vld [vmem:[#allocation19 + $0x34] sm:$0xf]
    %v9377 = vld [vmem:[#allocation19 + $0x38] sm:$0xf]
    %v9378 = vld [vmem:[#allocation19 + $0x3c] sm:$0xf]
    %v9379 = vld [vmem:[#allocation19 + $0x40] sm:$0xf]
    %v9380 = vld [vmem:[#allocation19 + $0x44] sm:$0xf]
    %v9381 = vld [vmem:[#allocation19 + $0x48] sm:$0xf]
    %v9382 = vld [vmem:[#allocation19 + $0x4c] sm:$0xf]
    %v9383 = vld [vmem:[#allocation19 + $0x50] sm:$0xf]
    %v9384 = vld [vmem:[#allocation19 + $0x54] sm:$0xf]
    %v9385 = vld [vmem:[#allocation19 + $0x58] sm:$0xf]
    %v9386 = vld [vmem:[#allocation19 + $0x5c] sm:$0xf]
    %v9387 = vld [vmem:[#allocation19 + $0x60] sm:$0xf]
    %v9388 = vld [vmem:[#allocation19 + $0x64] sm:$0xf]
    %v9389 = vld [vmem:[#allocation19 + $0x68] sm:$0xf]
    %v9390 = vld [vmem:[#allocation19 + $0x6c] sm:$0xf]
    %v9391 = vld [vmem:[#allocation19 + $0x70] sm:$0xf]
    %v9392 = vld [vmem:[#allocation19 + $0x74] sm:$0xf]
    %v9393 = vld [vmem:[#allocation19 + $0x78] sm:$0xf]
    %v9394 = vld [vmem:[#allocation19 + $0x7c] sm:$0xf]
    %v9395 = vld [vmem:[#allocation20] sm:$0x1]
    %v9397 = vlaneseq
    %v9398 = vshrl.u32 %v9397, 7
    %v9399 = vsub.s32 0, %v9398
    %v9400 = vrot.slane %v9395, %v9399
    %v9434 = vunpack.c.l.b16 %v9363
    %v9435 = vunpack.c.l.b16 %v9364
    %v9436 = vunpack.c.l.b16 %v9365
    %v9437 = vunpack.c.l.b16 %v9366
    %v9438 = vunpack.c.l.b16 %v9367
    %v9439 = vunpack.c.l.b16 %v9368
    %v9440 = vunpack.c.l.b16 %v9369
    %v9441 = vunpack.c.l.b16 %v9370
    %v9442 = vunpack.c.l.b16 %v9371
    %v9443 = vunpack.c.l.b16 %v9372
    %v9444 = vunpack.c.l.b16 %v9373
    %v9445 = vunpack.c.l.b16 %v9374
    %v9446 = vunpack.c.l.b16 %v9375
    %v9447 = vunpack.c.l.b16 %v9376
    %v9448 = vunpack.c.l.b16 %v9377
    %v9449 = vunpack.c.l.b16 %v9378
    %v9450 = vunpack.c.l.b16 %v9379
    %v9451 = vunpack.c.l.b16 %v9380
    %v9452 = vunpack.c.l.b16 %v9381
    %v9453 = vunpack.c.l.b16 %v9382
    %v9454 = vunpack.c.l.b16 %v9383
    %v9455 = vunpack.c.l.b16 %v9384
    %v9456 = vunpack.c.l.b16 %v9385
    %v9457 = vunpack.c.l.b16 %v9386
    %v9458 = vunpack.c.l.b16 %v9387
    %v9459 = vunpack.c.l.b16 %v9388
    %v9460 = vunpack.c.l.b16 %v9389
    %v9461 = vunpack.c.l.b16 %v9390
    %v9462 = vunpack.c.l.b16 %v9391
    %v9463 = vunpack.c.l.b16 %v9392
    %v9464 = vunpack.c.l.b16 %v9393
    %v9465 = vunpack.c.l.b16 %v9394
    %v9466 = vpack.c.b16 %v9435, %v9434
    %v9467 = vpack.c.b16 %v9437, %v9436
    %v9468 = vpack.c.b16 %v9439, %v9438
    %v9469 = vpack.c.b16 %v9441, %v9440
    %v9470 = vpack.c.b16 %v9443, %v9442
    %v9471 = vpack.c.b16 %v9445, %v9444
    %v9472 = vpack.c.b16 %v9447, %v9446
    %v9473 = vpack.c.b16 %v9449, %v9448
    %v9474 = vpack.c.b16 %v9451, %v9450
    %v9475 = vpack.c.b16 %v9453, %v9452
    %v9476 = vpack.c.b16 %v9455, %v9454
    %v9477 = vpack.c.b16 %v9457, %v9456
    %v9478 = vpack.c.b16 %v9459, %v9458
    %v9479 = vpack.c.b16 %v9461, %v9460
    %v9480 = vpack.c.b16 %v9463, %v9462
    %v9481 = vpack.c.b16 %v9465, %v9464
    %9498 = vmatprep.subr.bf16.mxu0 0
    %9499 = vmatpush1.bf16.msra.mxu0 %v9466
    %9500 = vmatprep.subr.bf16.mxu0 0
    %9501 = vmatpush1.bf16.msra.mxu0 %v9467
    %9502 = vmatprep.subr.bf16.mxu0 0
    %9503 = vmatpush1.bf16.msra.mxu0 %v9468
    %9504 = vmatprep.subr.bf16.mxu0 0
    %9505 = vmatpush1.bf16.msra.mxu0 %v9469
    %9506 = vmatprep.subr.bf16.mxu0 0
    %9507 = vmatpush1.bf16.msra.mxu0 %v9470
    %9508 = vmatprep.subr.bf16.mxu0 0
    %9509 = vmatpush1.bf16.msra.mxu0 %v9471
    %9510 = vmatprep.subr.bf16.mxu0 0
    %9511 = vmatpush1.bf16.msra.mxu0 %v9472
    %9512 = vmatprep.subr.bf16.mxu0 0
    %9513 = vmatpush1.bf16.msra.mxu0 %v9473
    %9514 = vmatprep.subr.bf16.mxu0 0
    %9515 = vmatpush1.bf16.msra.mxu0 %v9474
    %9516 = vmatprep.subr.bf16.mxu0 0
    %9517 = vmatpush1.bf16.msra.mxu0 %v9475
    %9518 = vmatprep.subr.bf16.mxu0 0
    %9519 = vmatpush1.bf16.msra.mxu0 %v9476
    %9520 = vmatprep.subr.bf16.mxu0 0
    %9521 = vmatpush1.bf16.msra.mxu0 %v9477
    %9522 = vmatprep.subr.bf16.mxu0 0
    %9523 = vmatpush1.bf16.msra.mxu0 %v9478
    %9524 = vmatprep.subr.bf16.mxu0 0
    %9525 = vmatpush1.bf16.msra.mxu0 %v9479
    %9526 = vmatprep.subr.bf16.mxu0 0
    %9527 = vmatpush1.bf16.msra.mxu0 %v9480
    %9528 = vmatprep.subr.bf16.mxu0 0
    %9529 = vmatpush1.bf16.msra.mxu0 %v9481
    %9530 = vmatprep.mubr.bf16.mxu0 %v9362
    %9531 = vmatmul.mubr.bf16.gmra.mrb[0].mxu0 %v9361
    %v9532 = vpop.f32.mrb[0].mxu0
    %v9533 = vadd.f32 %v9400, %v9532
    %v9534 = vpop.f32.mrb[0].mxu0
    %v9535 = vpop.f32.mrb[0].mxu0
    %v9536 = vpop.f32.mrb[0].mxu0
    %9537 = vdwg.mxu0
    %v9538 = vmax.f32 %v9533, 0.0
    %v9539 = vpack.c.bf16 %v9538, %v9538
    %v9540 = vld [vmem:[#allocation22] sm:$0xf]
    %v9541 = vld [vmem:[#allocation22 + $0x4] sm:$0xf]
    %v9542 = vld [vmem:[#allocation22 + $0x8] sm:$0xf]
    %v9543 = vld [vmem:[#allocation22 + $0xc] sm:$0xf]
    %v9544 = vld [vmem:[#allocation22 + $0x10] sm:$0xf]
    %v9545 = vld [vmem:[#allocation22 + $0x14] sm:$0xf]
    %v9546 = vld [vmem:[#allocation22 + $0x18] sm:$0xf]
    %v9547 = vld [vmem:[#allocation22 + $0x1c] sm:$0xf]
    %v9548 = vld [vmem:[#allocation22 + $0x20] sm:$0xf]
    %v9549 = vld [vmem:[#allocation22 + $0x24] sm:$0xf]
    %v9550 = vld [vmem:[#allocation22 + $0x28] sm:$0xf]
    %v9551 = vld [vmem:[#allocation22 + $0x2c] sm:$0xf]
    %v9552 = vld [vmem:[#allocation22 + $0x30] sm:$0xf]
    %v9553 = vld [vmem:[#allocation22 + $0x34] sm:$0xf]
    %v9554 = vld [vmem:[#allocation22 + $0x38] sm:$0xf]
    %v9555 = vld [vmem:[#allocation22 + $0x3c] sm:$0xf]
    %v9556 = vld [vmem:[#allocation23] sm:$0x1]
    %v9558 = vlaneseq
    %v9559 = vshrl.u32 %v9558, 7
    %v9560 = vsub.s32 0, %v9559
    %v9561 = vrot.slane %v9556, %v9560
    %v9579 = vunpack.c.l.b16 %v9540
    %v9580 = vunpack.c.l.b16 %v9541
    %v9581 = vunpack.c.l.b16 %v9542
    %v9582 = vunpack.c.l.b16 %v9543
    %v9583 = vunpack.c.l.b16 %v9544
    %v9584 = vunpack.c.l.b16 %v9545
    %v9585 = vunpack.c.l.b16 %v9546
    %v9586 = vunpack.c.l.b16 %v9547
    %v9587 = vunpack.c.l.b16 %v9548
    %v9588 = vunpack.c.l.b16 %v9549
    %v9589 = vunpack.c.l.b16 %v9550
    %v9590 = vunpack.c.l.b16 %v9551
    %v9591 = vunpack.c.l.b16 %v9552
    %v9592 = vunpack.c.l.b16 %v9553
    %v9593 = vunpack.c.l.b16 %v9554
    %v9594 = vunpack.c.l.b16 %v9555
    %v9595 = vpack.c.b16 %v9580, %v9579
    %v9596 = vpack.c.b16 %v9582, %v9581
    %v9597 = vpack.c.b16 %v9584, %v9583
    %v9598 = vpack.c.b16 %v9586, %v9585
    %v9599 = vpack.c.b16 %v9588, %v9587
    %v9600 = vpack.c.b16 %v9590, %v9589
    %v9601 = vpack.c.b16 %v9592, %v9591
    %v9602 = vpack.c.b16 %v9594, %v9593
    %9611 = vmatprep.subr.bf16.mxu0 0
    %9612 = vmatpush1.bf16.msra.mxu0 %v9595
    %9613 = vmatprep.subr.bf16.mxu0 0
    %9614 = vmatpush1.bf16.msra.mxu0 %v9596
    %9615 = vmatprep.subr.bf16.mxu0 0
    %9616 = vmatpush1.bf16.msra.mxu0 %v9597
    %9617 = vmatprep.subr.bf16.mxu0 0
    %9618 = vmatpush1.bf16.msra.mxu0 %v9598
    %9619 = vmatprep.subr.bf16.mxu0 0
    %9620 = vmatpush1.bf16.msra.mxu0 %v9599
    %9621 = vmatprep.subr.bf16.mxu0 0
    %9622 = vmatpush1.bf16.msra.mxu0 %v9600
    %9623 = vmatprep.subr.bf16.mxu0 0
    %9624 = vmatpush1.bf16.msra.mxu0 %v9601
    %9625 = vmatprep.subr.bf16.mxu0 0
    %9626 = vmatpush1.bf16.msra.mxu0 %v9602
    %9627 = vmatprep.subr.bf16.mxu0 0
    %9628 = vmatpush1.bf16.msra.mxu0 0
    %9629 = vmatprep.subr.bf16.mxu0 0
    %9630 = vmatpush1.bf16.msra.mxu0 0
    %9631 = vmatprep.subr.bf16.mxu0 0
    %9632 = vmatpush1.bf16.msra.mxu0 0
    %9633 = vmatprep.subr.bf16.mxu0 0
    %9634 = vmatpush1.bf16.msra.mxu0 0
    %9635 = vmatprep.subr.bf16.mxu0 0
    %9636 = vmatpush1.bf16.msra.mxu0 0
    %9637 = vmatprep.subr.bf16.mxu0 0
    %9638 = vmatpush1.bf16.msra.mxu0 0
    %9639 = vmatprep.subr.bf16.mxu0 0
    %9640 = vmatpush1.bf16.msra.mxu0 0
    %9641 = vmatprep.subr.bf16.mxu0 0
    %9642 = vmatpush1.bf16.msra.mxu0 0
    %9643 = vmatprep.mubr.bf16.mxu0 0
    %9644 = vmatmul.mubr.bf16.gmra.mrb[0].mxu0 %v9539
    %v9645 = vpop.f32.mrb[0].mxu0
    %v9646 = vadd.f32 %v9561, %v9645
    %v9647 = vpop.f32.mrb[0].mxu0
    %v9648 = vpop.f32.mrb[0].mxu0
    %v9649 = vpop.f32.mrb[0].mxu0
    %9650 = vdwg.mxu0
    %v9651 = vmax.f32 %v9646, 0.0
    %v9652 = vpack.c.bf16 %v9651, %v9651
    %v9653 = vld [vmem:[#allocation25] sm:$0xf]
    %v9654 = vld [vmem:[#allocation25 + $0x4] sm:$0xf]
    %v9655 = vld [vmem:[#allocation25 + $0x8] sm:$0xf]
    %v9656 = vld [vmem:[#allocation25 + $0xc] sm:$0xf]
    %v9657 = vld [vmem:[#allocation25 + $0x10] sm:$0xf]
    %v9658 = vld [vmem:[#allocation25 + $0x14] sm:$0xf]
    %v9659 = vld [vmem:[#allocation25 + $0x18] sm:$0xf]
    %v9660 = vld [vmem:[#allocation25 + $0x1c] sm:$0xf]
    %v9661 = vld [vmem:[#allocation25 + $0x20] sm:$0xf]
    %v9662 = vld [vmem:[#allocation25 + $0x24] sm:$0xf]
    %v9663 = vld [vmem:[#allocation25 + $0x28] sm:$0xf]
    %v9664 = vld [vmem:[#allocation25 + $0x2c] sm:$0xf]
    %v9665 = vld [vmem:[#allocation25 + $0x30] sm:$0xf]
    %v9666 = vld [vmem:[#allocation25 + $0x34] sm:$0xf]
    %v9667 = vld [vmem:[#allocation25 + $0x38] sm:$0xf]
    %v9668 = vld [vmem:[#allocation25 + $0x3c] sm:$0xf]
    %v9669 = vld [vmem:[#allocation26] sm:$0x1]
    %v9671 = vlaneseq
    %v9672 = vshrl.u32 %v9671, 7
    %v9673 = vsub.s32 0, %v9672
    %v9674 = vrot.slane %v9669, %v9673
    %v9692 = vunpack.c.l.b16 %v9653
    %v9693 = vunpack.c.l.b16 %v9654
    %v9694 = vunpack.c.l.b16 %v9655
    %v9695 = vunpack.c.l.b16 %v9656
    %v9696 = vunpack.c.l.b16 %v9657
    %v9697 = vunpack.c.l.b16 %v9658
    %v9698 = vunpack.c.l.b16 %v9659
    %v9699 = vunpack.c.l.b16 %v9660
    %v9700 = vunpack.c.l.b16 %v9661
    %v9701 = vunpack.c.l.b16 %v9662
    %v9702 = vunpack.c.l.b16 %v9663
    %v9703 = vunpack.c.l.b16 %v9664
    %v9704 = vunpack.c.l.b16 %v9665
    %v9705 = vunpack.c.l.b16 %v9666
    %v9706 = vunpack.c.l.b16 %v9667
    %v9707 = vunpack.c.l.b16 %v9668
    %v9708 = vpack.c.b16 %v9693, %v9692
    %v9709 = vpack.c.b16 %v9695, %v9694
    %v9710 = vpack.c.b16 %v9697, %v9696
    %v9711 = vpack.c.b16 %v9699, %v9698
    %v9712 = vpack.c.b16 %v9701, %v9700
    %v9713 = vpack.c.b16 %v9703, %v9702
    %v9714 = vpack.c.b16 %v9705, %v9704
    %v9715 = vpack.c.b16 %v9707, %v9706
    %9724 = vmatprep.subr.bf16.mxu0 0
    %9725 = vmatpush1.bf16.msra.mxu0 %v9708
    %9726 = vmatprep.subr.bf16.mxu0 0
    %9727 = vmatpush1.bf16.msra.mxu0 %v9709
    %9728 = vmatprep.subr.bf16.mxu0 0
    %9729 = vmatpush1.bf16.msra.mxu0 %v9710
    %9730 = vmatprep.subr.bf16.mxu0 0
    %9731 = vmatpush1.bf16.msra.mxu0 %v9711
    %9732 = vmatprep.subr.bf16.mxu0 0
    %9733 = vmatpush1.bf16.msra.mxu0 %v9712
    %9734 = vmatprep.subr.bf16.mxu0 0
    %9735 = vmatpush1.bf16.msra.mxu0 %v9713
    %9736 = vmatprep.subr.bf16.mxu0 0
    %9737 = vmatpush1.bf16.msra.mxu0 %v9714
    %9738 = vmatprep.subr.bf16.mxu0 0
    %9739 = vmatpush1.bf16.msra.mxu0 %v9715
    %9740 = vmatprep.subr.bf16.mxu0 0
    %9741 = vmatpush1.bf16.msra.mxu0 0
    %9742 = vmatprep.subr.bf16.mxu0 0
    %9743 = vmatpush1.bf16.msra.mxu0 0
    %9744 = vmatprep.subr.bf16.mxu0 0
    %9745 = vmatpush1.bf16.msra.mxu0 0
    %9746 = vmatprep.subr.bf16.mxu0 0
    %9747 = vmatpush1.bf16.msra.mxu0 0
    %9748 = vmatprep.subr.bf16.mxu0 0
    %9749 = vmatpush1.bf16.msra.mxu0 0
    %9750 = vmatprep.subr.bf16.mxu0 0
    %9751 = vmatpush1.bf16.msra.mxu0 0
    %9752 = vmatprep.subr.bf16.mxu0 0
    %9753 = vmatpush1.bf16.msra.mxu0 0
    %9754 = vmatprep.subr.bf16.mxu0 0
    %9755 = vmatpush1.bf16.msra.mxu0 0
    %9756 = vmatprep.mubr.bf16.mxu0 0
    %9757 = vmatmul.mubr.bf16.gmra.mrb[0].mxu0 %v9652
    %v9758 = vpop.f32.mrb[0].mxu0
    %v9759 = vadd.f32 %v9674, %v9758
    %v9760 = vpop.f32.mrb[0].mxu0
    %v9761 = vpop.f32.mrb[0].mxu0
    %v9762 = vpop.f32.mrb[0].mxu0
    %9763 = vdwg.mxu0
    %v9764 = vsel %vm1866, %v9759, -inf
    %9765 = vmax.xlane.f32.xlu0 %v9764
    %v9766 = vpop.xlane.xlu0 %9765
    %v9767 = vsub.f32 %v9759, %v9766
    %v9768 = vmul.f32 %v9767, 1.442695
    %v9769 = vpow.pop %v9768
    %v9770 = vsel %vm1866, %v9769, 0.0
    %9771 = vadd.xlane.f32.xlu0 %v9770
    %v9772 = vpop.xlane.xlu0 %9771
    %v9773 = vlog2.pop %v9772
    %v9774 = vmul.f32 %v9773, 0.6931472
    %v9775 = vadd.f32 %v9774, %v9766
    %v9776 = vsub.f32 %v9759, %v9775
    %9777 = vst [vmem:[#allocation28] sm:$0x3] %v9776
    // Predicated region
    $region134: #{_forward_jit.1} parent=1 // pred_check
      _
    $region135: #{_forward_jit.1} parent=1 // pred_check_branch
      %9779 = sbr.rel (0) target = $region137
    $region136: #{_forward_jit.1} parent=1 // pred_region
      %s9781 = ssub.s32 32, 32
      %9782 = vsyncadd [#allocation4], %s9781
      %s9784 = sshll.u32 [#allocation28], 4
      %s9785 = int_to_ptr.vmem [resolvable:$true] %s9784
      %9787 = dma.vmem_to_hbm [thread:$0]  %s9785, 32, %s17, [#allocation4]
    $region137: #{_forward_jit.1} parent=1 // pred_fallthru
      _
    // Predicated region
    $region138: #{_forward_jit.1} parent=1 // pred_check
      _
    $region139: #{_forward_jit.1} parent=1 // pred_check_branch
      %9789 = sbr.rel (0) target = $region141
    $region140: #{_forward_jit.1} parent=1 // pred_region
      %9790 = dma.done [#allocation4], 32
    $region141: #{_forward_jit.1} parent=1 // pred_fallthru
      _
    %9791 = vsyncpa [#allocation3], 1
    %9792 = vsyncpa [#allocation6], 1
    %9793 = vsyncpa [#allocation9], 1
    %9794 = vsyncpa [#allocation12], 1
    %9795 = vsyncpa [#allocation15], 1
    %9796 = vsyncpa [#allocation18], 1
    %9797 = vsyncpa [#allocation21], 1
    %9798 = vsyncpa [#allocation24], 1
    %9799 = vsyncpa [#allocation27], 1
    %9800 = vsyncpa [#allocation4], 1

</llo_original>
